<compile_context>
chip_gen: v7x
topology: tpu7x:2x2x1
jax: 0.10.0
libtpu: 0.0.40
codegen_flags: <defaults>
</compile_context>

<pallas_src>
import functools

import jax
import jax.numpy as jnp
from jax import lax
from jax.experimental import pallas as pl
from jax.experimental.pallas import tpu as pltpu

_MIB = 1024 * 1024


def _gnn_v2_kernel(pos_ref, feat_ref, out_ref, kn_ref, fe_ref, *, k, tq):
    # Blocks / scratch:
    #   pos_ref:  (1, Cp, N)    positional channels (resident per batch elem)
    #   feat_ref: (1, Cf, N)    feature channels    (resident per batch elem)
    #   out_ref:  (1, Cf, TQ)   lane-dense output tile
    #   kn_ref:   (Cp, N) f32   L2-normalized keys   (computed at qi == 0)
    #   fe_ref:   (Cf+1, N)     features + ones row  (native dtype, qi == 0)
    cf = out_ref.shape[1]
    n = pos_ref.shape[2]
    qo = pl.program_id(1)
    qi = pl.program_id(2)
    n_qi = pl.num_programs(2)

    # ---- once per (batch, query-outer) pair: normalize keys, stage feats ---
    @pl.when(qi == 0)
    def _prep():
        p = pos_ref[0].astype(jnp.float32)                        # (Cp, N)
        ss = jnp.sum(p * p, axis=0, keepdims=True)                # (1, N)
        inv = 1.0 / jnp.maximum(jnp.sqrt(ss), 1e-12)              # torch eps
        kn_ref[...] = p * inv
        fe_ref[:cf, :] = feat_ref[0]                              # native dtype
        fe_ref[cf:cf + 1, :] = jnp.ones((1, n), fe_ref.dtype)     # z row

    # ---- per query tile -----------------------------------------------
    q_start = pl.multiple_of((qo * n_qi + qi) * tq, tq)
    q_n = kn_ref[:, pl.ds(q_start, tq)]                           # (Cp, TQ)
    k_n = kn_ref[...]                                             # (Cp, N)

    # sim[q, j] = <q_n[:, q], k_n[:, j]> : channel contraction on the MXU.
    sim = lax.dot_general(q_n, k_n, (((0,), (0,)), ((), ())),
                          preferred_element_type=jnp.float32)     # (TQ, N)

    # k rounds of (row argmax, mask out) with fused softmax numerators.
    # Ties break to the lowest column index (matches lax.top_k); round r's
    # numerator is exp(rowmax_r - rowmax_0), so exp runs over k*TQ elements.
    col = lax.broadcasted_iota(jnp.int32, (1, n), 1)              # (1, N)
    neg = jnp.float32(-1e30)
    work = sim
    attn = None
    m0 = None
    for r in range(k):                    # k is small & static -> unrolled
        rowmax = jnp.max(work, axis=-1, keepdims=True)            # (TQ, 1)
        is_max = work == rowmax
        first = jnp.min(jnp.where(is_max, col, n), axis=-1, keepdims=True)
        sel = col == first                                        # (TQ, N)
        if r == 0:
            m0 = rowmax
            attn = jnp.where(sel, jnp.float32(1.0), jnp.float32(0.0))
        else:
            wgt = jnp.exp(rowmax - m0)                            # (TQ, 1)
            attn = jnp.where(sel, wgt, attn)
        if r + 1 < k:
            work = jnp.where(sel, neg, work)

    # out_ext = [feat; 1] @ attn^T : rows [0, Cf) are the un-normalized
    # weighted sums, row Cf is the softmax denominator z (>= 1 always).
    attn_mm = attn.astype(fe_ref.dtype)
    out_ext = lax.dot_general(fe_ref[...], attn_mm, (((1,), (1,)), ((), ())),
                              preferred_element_type=jnp.float32)  # (Cf+1, TQ)
    out = out_ext[:cf, :] / out_ext[cf:cf + 1, :]                 # (Cf, TQ)
    out_ref[0] = out.astype(out_ref.dtype)                        # lane-dense


def _vmem_capacity_bytes():
    try:
        return int(pltpu.get_tpu_info().vmem_capacity_bytes)
    except Exception:
        return 64 * _MIB   # conservative default (v7x physical VMEM per core)


def _working_set_bytes(tq, n, cp, cf, in_itemsize):
    # ~6 live (TQ, N) f32 temporaries in the top-k selection loop dominate;
    # plus double-buffered (Cp/Cf, N) input blocks, the (Cp, N) f32 key
    # scratch, the (Cf+1, N) staged-feature scratch and the output blocks.
    loop = 6 * tq * n * 4
    fixed = (2 * (cp + cf) * in_itemsize + cp * 4 + (cf + 1) * in_itemsize) * n
    fixed += 2 * cf * tq * 4
    return loop + fixed


def _pick_tq(n, budget, cp, cf, in_itemsize):
    if n % 128 != 0:
        return n            # unaligned: single full-row tile (block == dim)
    cands = [c for c in (1024, 512, 256, 128) if c < n and n % c == 0]
    if n <= 1024:
        cands.insert(0, n)
    for c in cands:
        if _working_set_bytes(c, n, cp, cf, in_itemsize) <= budget:
            return c
    # TODO(synk): very large N would also need key-axis tiling; fall back to
    # the smallest query tile and let the raised vmem limit absorb it.
    return cands[-1]


def gnn_v2(feat_pos, dim, k, *, tq=None, vmem_limit_bytes=None):
    """Pallas implementation of GNNV2.forward.

    feat_pos: NCHW (b, c, h, w) with c = dim feature channels followed by
    (c - dim) positional channels.  Returns NCHW (b, dim, h, w).
    """
    b, c, h, w = feat_pos.shape
    n = h * w
    x = feat_pos.reshape(b, c, n)      # (b, C, N): free reshape, no transpose
    # TODO(synk): the reference code slices feat = [:, :, :c] / pos = [:, :, c:]
    # with c == total channel count, which makes `pos` empty (a bug in the
    # original module); we follow the clear intent and split at `dim` feature
    # channels, the remaining channels being positional.
    feat = x[:, :dim, :]                # (b, Cf, N)
    pos = x[:, dim:, :]                 # (b, Cp, N)
    cf = feat.shape[1]
    cp = pos.shape[1]
    assert cp > 0, "need at least one positional channel"
    assert k <= n

    itemsize = jnp.dtype(feat_pos.dtype).itemsize
    capacity = _vmem_capacity_bytes()
    if tq is None:
        budget = max(capacity - 40 * _MIB, 8 * _MIB)
        tq = _pick_tq(n, budget, cp, cf, itemsize)
    assert n % tq == 0 and (tq % 128 == 0 or tq == n), (n, tq)

    # Grid: (batch, query-outer, query-inner).  The query-inner axis carries
    # the per-batch scratch (normalized keys / staged features), so it must be
    # "arbitrary"; batch and query-outer are "parallel" (megacore sharding).
    # query-outer only exists to give both v7x TensorCores work when b == 1.
    nq = n // tq
    qo = 2 if (b == 1 and nq >= 2 and nq % 2 == 0) else 1
    nqi = nq // qo

    est = _working_set_bytes(tq, n, cp, cf, itemsize)
    if vmem_limit_bytes is None:
        # Always set explicitly (v5e's scoped default is only 16 MiB); cap is
        # generation-dependent via the physical VMEM size queried above.
        cap = max(capacity - 16 * _MIB, 32 * _MIB)
        vmem_limit_bytes = int(min(max(est + est // 2 + 2 * _MIB, 32 * _MIB),
                                   cap))

    out_tok = pl.pallas_call(
        functools.partial(_gnn_v2_kernel, k=k, tq=tq),
        out_shape=jax.ShapeDtypeStruct((b, cf, n), feat_pos.dtype),
        grid_spec=pltpu.PrefetchScalarGridSpec(
            num_scalar_prefetch=0,
            grid=(b, qo, nqi),
            in_specs=[
                # Resident per batch element: Pallas only re-DMAs a block when
                # its block index changes, i.e. once per batch element.
                pl.BlockSpec((1, cp, n), lambda bi, qo_, qi: (bi, 0, 0)),
                pl.BlockSpec((1, cf, n), lambda bi, qo_, qi: (bi, 0, 0)),
            ],
            out_specs=pl.BlockSpec(
                (1, cf, tq), lambda bi, qo_, qi: (bi, 0, qo_ * nqi + qi)),
            scratch_shapes=[
                pltpu.VMEM((cp, n), jnp.float32),          # normalized keys
                pltpu.VMEM((cf + 1, n), feat_pos.dtype),   # feats + ones row
            ],
        ),
        compiler_params=pltpu.CompilerParams(
            dimension_semantics=("parallel", "parallel", "arbitrary"),
            vmem_limit_bytes=vmem_limit_bytes),
    )(pos, feat)

    return out_tok.reshape(b, cf, h, w)


def gnn_v2_ref(feat_pos, dim, k):
    """Pure-JAX reference mirroring the PyTorch forward (with the dim split)."""
    b, c, h, w = feat_pos.shape
    n = h * w
    tok = jnp.transpose(feat_pos.reshape(b, c, n), (0, 2, 1))
    feat = tok[:, :, :dim]
    pos = tok[:, :, dim:]
    pos_n = pos / jnp.maximum(
        jnp.sqrt(jnp.sum(pos * pos, axis=-1, keepdims=True)), 1e-12)
    sim = jnp.einsum("bnc,bmc->bnm", pos_n, pos_n)
    topksim, topkid = lax.top_k(sim, k)
    topkfeat = jax.vmap(lambda f, ids: f[ids])(feat, topkid)   # (b, N, k, dim)
    attn = jax.nn.softmax(topksim, axis=-1)
    out = jnp.sum(attn[..., None] * topkfeat, axis=-2)          # (b, N, dim)
    return jnp.transpose(out.reshape(b, h, w, dim), (0, 3, 1, 2))


if __name__ == "__main__":
    key = jax.random.PRNGKey(0)
    b, h, w = 2, 16, 16
    dim = 8        # feature channels   (GNNV2(dim, k) -> dim)
    pos_dim = 8    # positional channels
    c = dim + pos_dim
    k = 8          # GNNV2(dim, k) -> k

    x = jax.random.normal(key, (b, c, h, w), dtype=jnp.float32)
    ref = gnn_v2_ref(x, dim, k)

    # Default path: single query tile per batch element (TQ == N == 256).
    out = jax.block_until_ready(gnn_v2(x, dim, k))
    assert out.shape == (b, dim, h, w), out.shape
    max_err = float(jnp.max(jnp.abs(out - ref)))
    assert jnp.allclose(out, ref, atol=1e-5, rtol=1e-5), max_err

    # Row-tiled path (grid = (b, 1, 2), TQ = 128): exercises the persistent
    # normalized-key / staged-feature scratch across query tiles.
    out_tiled = jax.block_until_ready(gnn_v2(x, dim, k, tq=128))
    max_err_tiled = float(jnp.max(jnp.abs(out_tiled - ref)))
    assert jnp.allclose(out_tiled, ref, atol=1e-5, rtol=1e-5), max_err_tiled

    # b == 1 path: query-outer axis split in two (grid = (1, 2, 1)) so both
    # v7x TensorCores get work on small batches.
    x1 = x[:1]
    out_b1 = jax.block_until_ready(gnn_v2(x1, dim, k, tq=128))
    max_err_b1 = float(jnp.max(jnp.abs(out_b1 - ref[:1])))
    assert jnp.allclose(out_b1, ref[:1], atol=1e-5, rtol=1e-5), max_err_b1

    print("KERNEL_OK")
</pallas_src>

<mosaic_0001>
module attributes {stable_mosaic.version = 11 : i64} {
  func.func @_gnn_v2_kernel(%arg0: i32, %arg1: i32, %arg2: i32, %arg3: memref<1x8x256xf32, #tpu.memory_space<vmem>>, %arg4: memref<1x8x256xf32, #tpu.memory_space<vmem>>, %arg5: memref<1x8x256xf32, #tpu.memory_space<vmem>>, %arg6: memref<8x256xf32, #tpu.memory_space<vmem>>, %arg7: memref<9x256xf32, #tpu.memory_space<vmem>>) attributes {dimension_semantics = [#tpu.dimension_semantics<parallel>, #tpu.dimension_semantics<parallel>, #tpu.dimension_semantics<arbitrary>], iteration_bounds = array<i64: 2, 1, 1>, scalar_prefetch = 0 : i64, scratch_operands = 2 : i64, tpu.core_type = #tpu.core_type<tc>, window_params = [{transform_indices = @transform_0, window_bounds = array<i64: 1, 8, 256>}, {transform_indices = @transform_1, window_bounds = array<i64: 1, 8, 256>}, {transform_indices = @transform_2, window_bounds = array<i64: 1, 8, 256>}]} {
    %c0_i32 = arith.constant 0 : i32
    %0 = arith.cmpi eq, %arg2, %c0_i32 : i32
    %1 = arith.extui %0 : i1 to i32
    %c0_i32_0 = arith.constant 0 : i32
    %2 = arith.cmpi ne, %1, %c0_i32_0 : i32
    scf.if %2 {
      %c0_42 = arith.constant 0 : index
      %c0_43 = arith.constant 0 : index
      %c0_44 = arith.constant 0 : index
      %177 = vector.load %arg3[%c0_42, %c0_43, %c0_44] : memref<1x8x256xf32, #tpu.memory_space<vmem>>, vector<1x8x256xf32>
      %178 = vector.shape_cast %177 : vector<1x8x256xf32> to vector<8x256xf32>
      %179 = arith.mulf %178, %178 : vector<8x256xf32>
      %cst_45 = arith.constant dense<0.000000e+00> : vector<256xf32>
      %180 = vector.multi_reduction <add>, %179, %cst_45 [0] : vector<8x256xf32> to vector<256xf32>
      %181 = vector.shape_cast %180 : vector<256xf32> to vector<1x256xf32>
      %182 = math.sqrt %181 : vector<1x256xf32>
      %cst_46 = arith.constant 9.99999996E-13 : f32
      %183 = vector.broadcast %cst_46 : f32 to vector<1x256xf32>
      %184 = arith.maximumf %182, %183 : vector<1x256xf32>
      %cst_47 = arith.constant 1.000000e+00 : f32
      %185 = vector.broadcast %cst_47 : f32 to vector<1x256xf32>
      %186 = arith.divf %185, %184 : vector<1x256xf32>
      %187 = vector.broadcast %186 : vector<1x256xf32> to vector<8x256xf32>
      %188 = arith.mulf %178, %187 : vector<8x256xf32>
      %c0_48 = arith.constant 0 : index
      %c0_49 = arith.constant 0 : index
      %189 = vector.load %arg6[%c0_48, %c0_49] : memref<8x256xf32, #tpu.memory_space<vmem>>, vector<8x256xf32>
      tpu.vector_store %arg6[%c0_48, %c0_49], %188 {strides = array<i32>} : memref<8x256xf32, #tpu.memory_space<vmem>>, vector<8x256xf32>,
      %c0_50 = arith.constant 0 : index
      %c0_51 = arith.constant 0 : index
      %c0_52 = arith.constant 0 : index
      %190 = vector.load %arg4[%c0_50, %c0_51, %c0_52] : memref<1x8x256xf32, #tpu.memory_space<vmem>>, vector<1x8x256xf32>
      %191 = vector.shape_cast %190 : vector<1x8x256xf32> to vector<8x256xf32>
      %c0_53 = arith.constant 0 : index
      %c0_54 = arith.constant 0 : index
      %192 = vector.load %arg7[%c0_53, %c0_54] : memref<9x256xf32, #tpu.memory_space<vmem>>, vector<8x256xf32>
      tpu.vector_store %arg7[%c0_53, %c0_54], %191 {strides = array<i32>} : memref<9x256xf32, #tpu.memory_space<vmem>>, vector<8x256xf32>,
      %cst_55 = arith.constant 1.000000e+00 : f32
      %193 = vector.broadcast %cst_55 : f32 to vector<1x256xf32>
      %c8 = arith.constant 8 : index
      %c0_56 = arith.constant 0 : index
      %194 = vector.load %arg7[%c8, %c0_56] : memref<9x256xf32, #tpu.memory_space<vmem>>, vector<1x256xf32>
      tpu.vector_store %arg7[%c8, %c0_56], %193 {strides = array<i32>} : memref<9x256xf32, #tpu.memory_space<vmem>>, vector<1x256xf32>,
    } else {
    }
    %c1_i32 = arith.constant 1 : i32
    %3 = arith.muli %arg1, %c1_i32 : i32
    %4 = arith.addi %3, %arg2 : i32
    %c256_i32 = arith.constant 256 : i32
    %5 = arith.muli %4, %c256_i32 : i32
    %6 = tpu.assume_multiple %5, 256 : i32
    %c0 = arith.constant 0 : index
    %7 = arith.index_cast %6 : i32 to index
    %8 = vector.load %arg6[%c0, %7] : memref<8x256xf32, #tpu.memory_space<vmem>>, vector<8x256xf32>
    %c0_1 = arith.constant 0 : index
    %c0_2 = arith.constant 0 : index
    %9 = vector.load %arg6[%c0_1, %c0_2] : memref<8x256xf32, #tpu.memory_space<vmem>>, vector<8x256xf32>
    %cst = arith.constant dense<0.000000e+00> : vector<256x256xf32>
    %10 = tpu.matmul %8, %9, %cst {dimension_numbers = #tpu.dot_dimension_numbers<[0], [0], [1], [1], [0, 1, 1, 1], [], []>} : vector<8x256xf32>, vector<8x256xf32>, vector<256x256xf32> -> vector<256x256xf32>
    %11 = tpu.iota {dimensions = array<i32: 1>} : vector<1x256xi32>
    %cst_3 = arith.constant dense<0xFF800000> : vector<256xf32>
    %12 = vector.multi_reduction <maximumf>, %10, %cst_3 [1] : vector<256x256xf32> to vector<256xf32>
    %13 = vector.shape_cast %12 : vector<256xf32> to vector<256x1xf32>
    %14 = vector.broadcast %13 : vector<256x1xf32> to vector<256x256xf32>
    %15 = arith.cmpf oeq, %10, %14 : vector<256x256xf32>
    %c256_i32_4 = arith.constant 256 : i32
    %16 = vector.shape_cast %11 : vector<1x256xi32> to vector<1x256xi32>
    %17 = vector.broadcast %16 : vector<1x256xi32> to vector<256x256xi32>
    %18 = vector.broadcast %c256_i32_4 : i32 to vector<256x256xi32>
    %19 = arith.select %15, %17, %18 : vector<256x256xi1>, vector<256x256xi32>
    %cst_5 = arith.constant dense<2147483647> : vector<256xi32>
    %20 = vector.multi_reduction <minsi>, %19, %cst_5 [1] : vector<256x256xi32> to vector<256xi32>
    %21 = vector.shape_cast %20 : vector<256xi32> to vector<256x1xi32>
    %22 = vector.broadcast %11 : vector<1x256xi32> to vector<256x256xi32>
    %23 = vector.broadcast %21 : vector<256x1xi32> to vector<256x256xi32>
    %24 = arith.cmpi eq, %22, %23 : vector<256x256xi32>
    %cst_6 = arith.constant 1.000000e+00 : f32
    %cst_7 = arith.constant 0.000000e+00 : f32
    %25 = vector.broadcast %cst_6 : f32 to vector<256x256xf32>
    %26 = vector.broadcast %cst_7 : f32 to vector<256x256xf32>
    %27 = arith.select %24, %25, %26 : vector<256x256xi1>, vector<256x256xf32>
    %cst_8 = arith.constant -1.000000e+30 : f32
    %28 = vector.broadcast %cst_8 : f32 to vector<256x256xf32>
    %29 = arith.select %24, %28, %10 : vector<256x256xi1>, vector<256x256xf32>
    %cst_9 = arith.constant dense<0xFF800000> : vector<256xf32>
    %30 = vector.multi_reduction <maximumf>, %29, %cst_9 [1] : vector<256x256xf32> to vector<256xf32>
    %31 = vector.shape_cast %30 : vector<256xf32> to vector<256x1xf32>
    %32 = vector.broadcast %31 : vector<256x1xf32> to vector<256x256xf32>
    %33 = arith.cmpf oeq, %29, %32 : vector<256x256xf32>
    %c256_i32_10 = arith.constant 256 : i32
    %34 = vector.shape_cast %11 : vector<1x256xi32> to vector<1x256xi32>
    %35 = vector.broadcast %34 : vector<1x256xi32> to vector<256x256xi32>
    %36 = vector.broadcast %c256_i32_10 : i32 to vector<256x256xi32>
    %37 = arith.select %33, %35, %36 : vector<256x256xi1>, vector<256x256xi32>
    %cst_11 = arith.constant dense<2147483647> : vector<256xi32>
    %38 = vector.multi_reduction <minsi>, %37, %cst_11 [1] : vector<256x256xi32> to vector<256xi32>
    %39 = vector.shape_cast %38 : vector<256xi32> to vector<256x1xi32>
    %40 = vector.broadcast %11 : vector<1x256xi32> to vector<256x256xi32>
    %41 = vector.broadcast %39 : vector<256x1xi32> to vector<256x256xi32>
    %42 = arith.cmpi eq, %40, %41 : vector<256x256xi32>
    %43 = arith.subf %31, %13 : vector<256x1xf32>
    %44 = math.exp %43 : vector<256x1xf32>
    %45 = vector.shape_cast %44 : vector<256x1xf32> to vector<256x1xf32>
    %46 = vector.broadcast %45 : vector<256x1xf32> to vector<256x256xf32>
    %47 = arith.select %42, %46, %27 : vector<256x256xi1>, vector<256x256xf32>
    %cst_12 = arith.constant -1.000000e+30 : f32
    %48 = vector.broadcast %cst_12 : f32 to vector<256x256xf32>
    %49 = arith.select %42, %48, %29 : vector<256x256xi1>, vector<256x256xf32>
    %cst_13 = arith.constant dense<0xFF800000> : vector<256xf32>
    %50 = vector.multi_reduction <maximumf>, %49, %cst_13 [1] : vector<256x256xf32> to vector<256xf32>
    %51 = vector.shape_cast %50 : vector<256xf32> to vector<256x1xf32>
    %52 = vector.broadcast %51 : vector<256x1xf32> to vector<256x256xf32>
    %53 = arith.cmpf oeq, %49, %52 : vector<256x256xf32>
    %c256_i32_14 = arith.constant 256 : i32
    %54 = vector.shape_cast %11 : vector<1x256xi32> to vector<1x256xi32>
    %55 = vector.broadcast %54 : vector<1x256xi32> to vector<256x256xi32>
    %56 = vector.broadcast %c256_i32_14 : i32 to vector<256x256xi32>
    %57 = arith.select %53, %55, %56 : vector<256x256xi1>, vector<256x256xi32>
    %cst_15 = arith.constant dense<2147483647> : vector<256xi32>
    %58 = vector.multi_reduction <minsi>, %57, %cst_15 [1] : vector<256x256xi32> to vector<256xi32>
    %59 = vector.shape_cast %58 : vector<256xi32> to vector<256x1xi32>
    %60 = vector.broadcast %11 : vector<1x256xi32> to vector<256x256xi32>
    %61 = vector.broadcast %59 : vector<256x1xi32> to vector<256x256xi32>
    %62 = arith.cmpi eq, %60, %61 : vector<256x256xi32>
    %63 = arith.subf %51, %13 : vector<256x1xf32>
    %64 = math.exp %63 : vector<256x1xf32>
    %65 = vector.shape_cast %64 : vector<256x1xf32> to vector<256x1xf32>
    %66 = vector.broadcast %65 : vector<256x1xf32> to vector<256x256xf32>
    %67 = arith.select %62, %66, %47 : vector<256x256xi1>, vector<256x256xf32>
    %cst_16 = arith.constant -1.000000e+30 : f32
    %68 = vector.broadcast %cst_16 : f32 to vector<256x256xf32>
    %69 = arith.select %62, %68, %49 : vector<256x256xi1>, vector<256x256xf32>
    %cst_17 = arith.constant dense<0xFF800000> : vector<256xf32>
    %70 = vector.multi_reduction <maximumf>, %69, %cst_17 [1] : vector<256x256xf32> to vector<256xf32>
    %71 = vector.shape_cast %70 : vector<256xf32> to vector<256x1xf32>
    %72 = vector.broadcast %71 : vector<256x1xf32> to vector<256x256xf32>
    %73 = arith.cmpf oeq, %69, %72 : vector<256x256xf32>
    %c256_i32_18 = arith.constant 256 : i32
    %74 = vector.shape_cast %11 : vector<1x256xi32> to vector<1x256xi32>
    %75 = vector.broadcast %74 : vector<1x256xi32> to vector<256x256xi32>
    %76 = vector.broadcast %c256_i32_18 : i32 to vector<256x256xi32>
    %77 = arith.select %73, %75, %76 : vector<256x256xi1>, vector<256x256xi32>
    %cst_19 = arith.constant dense<2147483647> : vector<256xi32>
    %78 = vector.multi_reduction <minsi>, %77, %cst_19 [1] : vector<256x256xi32> to vector<256xi32>
    %79 = vector.shape_cast %78 : vector<256xi32> to vector<256x1xi32>
    %80 = vector.broadcast %11 : vector<1x256xi32> to vector<256x256xi32>
    %81 = vector.broadcast %79 : vector<256x1xi32> to vector<256x256xi32>
    %82 = arith.cmpi eq, %80, %81 : vector<256x256xi32>
    %83 = arith.subf %71, %13 : vector<256x1xf32>
    %84 = math.exp %83 : vector<256x1xf32>
    %85 = vector.shape_cast %84 : vector<256x1xf32> to vector<256x1xf32>
    %86 = vector.broadcast %85 : vector<256x1xf32> to vector<256x256xf32>
    %87 = arith.select %82, %86, %67 : vector<256x256xi1>, vector<256x256xf32>
    %cst_20 = arith.constant -1.000000e+30 : f32
    %88 = vector.broadcast %cst_20 : f32 to vector<256x256xf32>
    %89 = arith.select %82, %88, %69 : vector<256x256xi1>, vector<256x256xf32>
    %cst_21 = arith.constant dense<0xFF800000> : vector<256xf32>
    %90 = vector.multi_reduction <maximumf>, %89, %cst_21 [1] : vector<256x256xf32> to vector<256xf32>
    %91 = vector.shape_cast %90 : vector<256xf32> to vector<256x1xf32>
    %92 = vector.broadcast %91 : vector<256x1xf32> to vector<256x256xf32>
    %93 = arith.cmpf oeq, %89, %92 : vector<256x256xf32>
    %c256_i32_22 = arith.constant 256 : i32
    %94 = vector.shape_cast %11 : vector<1x256xi32> to vector<1x256xi32>
    %95 = vector.broadcast %94 : vector<1x256xi32> to vector<256x256xi32>
    %96 = vector.broadcast %c256_i32_22 : i32 to vector<256x256xi32>
    %97 = arith.select %93, %95, %96 : vector<256x256xi1>, vector<256x256xi32>
    %cst_23 = arith.constant dense<2147483647> : vector<256xi32>
    %98 = vector.multi_reduction <minsi>, %97, %cst_23 [1] : vector<256x256xi32> to vector<256xi32>
    %99 = vector.shape_cast %98 : vector<256xi32> to vector<256x1xi32>
    %100 = vector.broadcast %11 : vector<1x256xi32> to vector<256x256xi32>
    %101 = vector.broadcast %99 : vector<256x1xi32> to vector<256x256xi32>
    %102 = arith.cmpi eq, %100, %101 : vector<256x256xi32>
    %103 = arith.subf %91, %13 : vector<256x1xf32>
    %104 = math.exp %103 : vector<256x1xf32>
    %105 = vector.shape_cast %104 : vector<256x1xf32> to vector<256x1xf32>
    %106 = vector.broadcast %105 : vector<256x1xf32> to vector<256x256xf32>
    %107 = arith.select %102, %106, %87 : vector<256x256xi1>, vector<256x256xf32>
    %cst_24 = arith.constant -1.000000e+30 : f32
    %108 = vector.broadcast %cst_24 : f32 to vector<256x256xf32>
    %109 = arith.select %102, %108, %89 : vector<256x256xi1>, vector<256x256xf32>
    %cst_25 = arith.constant dense<0xFF800000> : vector<256xf32>
    %110 = vector.multi_reduction <maximumf>, %109, %cst_25 [1] : vector<256x256xf32> to vector<256xf32>
    %111 = vector.shape_cast %110 : vector<256xf32> to vector<256x1xf32>
    %112 = vector.broadcast %111 : vector<256x1xf32> to vector<256x256xf32>
    %113 = arith.cmpf oeq, %109, %112 : vector<256x256xf32>
    %c256_i32_26 = arith.constant 256 : i32
    %114 = vector.shape_cast %11 : vector<1x256xi32> to vector<1x256xi32>
    %115 = vector.broadcast %114 : vector<1x256xi32> to vector<256x256xi32>
    %116 = vector.broadcast %c256_i32_26 : i32 to vector<256x256xi32>
    %117 = arith.select %113, %115, %116 : vector<256x256xi1>, vector<256x256xi32>
    %cst_27 = arith.constant dense<2147483647> : vector<256xi32>
    %118 = vector.multi_reduction <minsi>, %117, %cst_27 [1] : vector<256x256xi32> to vector<256xi32>
    %119 = vector.shape_cast %118 : vector<256xi32> to vector<256x1xi32>
    %120 = vector.broadcast %11 : vector<1x256xi32> to vector<256x256xi32>
    %121 = vector.broadcast %119 : vector<256x1xi32> to vector<256x256xi32>
    %122 = arith.cmpi eq, %120, %121 : vector<256x256xi32>
    %123 = arith.subf %111, %13 : vector<256x1xf32>
    %124 = math.exp %123 : vector<256x1xf32>
    %125 = vector.shape_cast %124 : vector<256x1xf32> to vector<256x1xf32>
    %126 = vector.broadcast %125 : vector<256x1xf32> to vector<256x256xf32>
    %127 = arith.select %122, %126, %107 : vector<256x256xi1>, vector<256x256xf32>
    %cst_28 = arith.constant -1.000000e+30 : f32
    %128 = vector.broadcast %cst_28 : f32 to vector<256x256xf32>
    %129 = arith.select %122, %128, %109 : vector<256x256xi1>, vector<256x256xf32>
    %cst_29 = arith.constant dense<0xFF800000> : vector<256xf32>
    %130 = vector.multi_reduction <maximumf>, %129, %cst_29 [1] : vector<256x256xf32> to vector<256xf32>
    %131 = vector.shape_cast %130 : vector<256xf32> to vector<256x1xf32>
    %132 = vector.broadcast %131 : vector<256x1xf32> to vector<256x256xf32>
    %133 = arith.cmpf oeq, %129, %132 : vector<256x256xf32>
    %c256_i32_30 = arith.constant 256 : i32
    %134 = vector.shape_cast %11 : vector<1x256xi32> to vector<1x256xi32>
    %135 = vector.broadcast %134 : vector<1x256xi32> to vector<256x256xi32>
    %136 = vector.broadcast %c256_i32_30 : i32 to vector<256x256xi32>
    %137 = arith.select %133, %135, %136 : vector<256x256xi1>, vector<256x256xi32>
    %cst_31 = arith.constant dense<2147483647> : vector<256xi32>
    %138 = vector.multi_reduction <minsi>, %137, %cst_31 [1] : vector<256x256xi32> to vector<256xi32>
    %139 = vector.shape_cast %138 : vector<256xi32> to vector<256x1xi32>
    %140 = vector.broadcast %11 : vector<1x256xi32> to vector<256x256xi32>
    %141 = vector.broadcast %139 : vector<256x1xi32> to vector<256x256xi32>
    %142 = arith.cmpi eq, %140, %141 : vector<256x256xi32>
    %143 = arith.subf %131, %13 : vector<256x1xf32>
    %144 = math.exp %143 : vector<256x1xf32>
    %145 = vector.shape_cast %144 : vector<256x1xf32> to vector<256x1xf32>
    %146 = vector.broadcast %145 : vector<256x1xf32> to vector<256x256xf32>
    %147 = arith.select %142, %146, %127 : vector<256x256xi1>, vector<256x256xf32>
    %cst_32 = arith.constant -1.000000e+30 : f32
    %148 = vector.broadcast %cst_32 : f32 to vector<256x256xf32>
    %149 = arith.select %142, %148, %129 : vector<256x256xi1>, vector<256x256xf32>
    %cst_33 = arith.constant dense<0xFF800000> : vector<256xf32>
    %150 = vector.multi_reduction <maximumf>, %149, %cst_33 [1] : vector<256x256xf32> to vector<256xf32>
    %151 = vector.shape_cast %150 : vector<256xf32> to vector<256x1xf32>
    %152 = vector.broadcast %151 : vector<256x1xf32> to vector<256x256xf32>
    %153 = arith.cmpf oeq, %149, %152 : vector<256x256xf32>
    %c256_i32_34 = arith.constant 256 : i32
    %154 = vector.shape_cast %11 : vector<1x256xi32> to vector<1x256xi32>
    %155 = vector.broadcast %154 : vector<1x256xi32> to vector<256x256xi32>
    %156 = vector.broadcast %c256_i32_34 : i32 to vector<256x256xi32>
    %157 = arith.select %153, %155, %156 : vector<256x256xi1>, vector<256x256xi32>
    %cst_35 = arith.constant dense<2147483647> : vector<256xi32>
    %158 = vector.multi_reduction <minsi>, %157, %cst_35 [1] : vector<256x256xi32> to vector<256xi32>
    %159 = vector.shape_cast %158 : vector<256xi32> to vector<256x1xi32>
    %160 = vector.broadcast %11 : vector<1x256xi32> to vector<256x256xi32>
    %161 = vector.broadcast %159 : vector<256x1xi32> to vector<256x256xi32>
    %162 = arith.cmpi eq, %160, %161 : vector<256x256xi32>
    %163 = arith.subf %151, %13 : vector<256x1xf32>
    %164 = math.exp %163 : vector<256x1xf32>
    %165 = vector.shape_cast %164 : vector<256x1xf32> to vector<256x1xf32>
    %166 = vector.broadcast %165 : vector<256x1xf32> to vector<256x256xf32>
    %167 = arith.select %162, %166, %147 : vector<256x256xi1>, vector<256x256xf32>
    %c0_36 = arith.constant 0 : index
    %c0_37 = arith.constant 0 : index
    %168 = vector.load %arg7[%c0_36, %c0_37] : memref<9x256xf32, #tpu.memory_space<vmem>>, vector<9x256xf32>
    %cst_38 = arith.constant dense<0.000000e+00> : vector<9x256xf32>
    %169 = tpu.matmul %168, %167, %cst_38 {dimension_numbers = #tpu.dot_dimension_numbers<[1], [1], [0], [0], [0, 0, 1, 0], [], []>} : vector<9x256xf32>, vector<256x256xf32>, vector<9x256xf32> -> vector<9x256xf32>
    %170 = vector.extract_strided_slice %169 {offsets = [0, 0], sizes = [8, 256], strides = [1, 1]} : vector<9x256xf32> to vector<8x256xf32>
    %171 = vector.extract_strided_slice %169 {offsets = [8, 0], sizes = [1, 256], strides = [1, 1]} : vector<9x256xf32> to vector<1x256xf32>
    %172 = vector.broadcast %171 : vector<1x256xf32> to vector<8x256xf32>
    %173 = arith.divf %170, %172 : vector<8x256xf32>
    %c0_39 = arith.constant 0 : index
    %c0_40 = arith.constant 0 : index
    %c0_41 = arith.constant 0 : index
    %174 = vector.load %arg5[%c0_39, %c0_40, %c0_41] : memref<1x8x256xf32, #tpu.memory_space<vmem>>, vector<1x8x256xf32>
    %175 = vector.shape_cast %174 : vector<1x8x256xf32> to vector<8x256xf32>
    %176 = vector.shape_cast %173 : vector<8x256xf32> to vector<1x8x256xf32>
    tpu.vector_store %arg5[%c0_39, %c0_40, %c0_41], %176 {strides = array<i32>} : memref<1x8x256xf32, #tpu.memory_space<vmem>>, vector<1x8x256xf32>,
    return
  }
  func.func @transform_0(%arg0: i32, %arg1: i32, %arg2: i32) -> (i32, i32, i32) {
    %c0_i32 = arith.constant 0 : i32
    %c0_i32_0 = arith.constant 0 : i32
    %c0_i32_1 = arith.constant 0 : i32
    return %arg0, %c0_i32, %c0_i32_0 : i32, i32, i32
  }
  func.func @transform_1(%arg0: i32, %arg1: i32, %arg2: i32) -> (i32, i32, i32) {
    %c0_i32 = arith.constant 0 : i32
    %c0_i32_0 = arith.constant 0 : i32
    %c0_i32_1 = arith.constant 0 : i32
    return %arg0, %c0_i32, %c0_i32_0 : i32, i32, i32
  }
  func.func @transform_2(%arg0: i32, %arg1: i32, %arg2: i32) -> (i32, i32, i32) {
    %c1_i32 = arith.constant 1 : i32
    %0 = arith.muli %arg1, %c1_i32 : i32
    %1 = arith.addi %0, %arg2 : i32
    %c0_i32 = arith.constant 0 : i32
    %c0_i32_0 = arith.constant 0 : i32
    return %arg0, %c0_i32, %1 : i32, i32, i32
  }
}

</mosaic_0001>

<llo_original>
// kernel: tpu_custom_call.1
$region0: #{tpu_custom_call.1}
  #allocation0 [shape = 'u32[]', space=smem, size = 0x4, offset = 0x4, fixed_abs, tag = 'smem constant byte address 0x4 - core index']
  #allocation1 [shape = 'u32[144,128]{1,0:T(1,128)}', space=vmem, size = 0x12000, scoped, tag = 'internal scratch']
  #allocation2 [shape = 'f32[8,256]{1,0:T(8,128)}', space=vmem, size = 0x2000, scoped, tag = 'scratch operand']
  #allocation3 [shape = 'f32[9,256]{1,0:T(8,128)}', space=vmem, size = 0x4000, scoped, tag = 'scratch operand']
  %s0 = inlined_call_operand.hbm [shape: f32[2,8,256], index: 0, kind: input, shape index: {}]
  %s1 = inlined_call_operand.hbm [shape: f32[2,8,256], index: 1, kind: input, shape index: {}]
  %s2 = inlined_call_operand.hbm [shape: f32[2,8,256], index: 2, kind: output, shape index: {}]
  %s3 = sld [smem:[#allocation0]]
  $region53: #{tpu_custom_call.1} parent=0
    _
  %s5 = ssub.s32 1, %s3
  %s6 = scalar_select 0, %s5, %s3
  $region1: #{tpu_custom_call.1} parent=0
    #allocation4 [shape = 'u8[16384]{0}', space=vmem, size = 0x4000, scoped, tag = 'input window, operand 0']
    #allocation5 [shape = 's32[2]{0}', space=sflag, size = 0x8, scoped, tag = 'scoped memory for tpu_custom_call.1']
    #allocation6 [shape = 's32[2]{0}', space=sflag, size = 0x8, scoped, tag = 'scoped memory for tpu_custom_call.1']
    #allocation7 [shape = 'u8[16384]{0}', space=vmem, size = 0x4000, scoped, tag = 'input window, operand 1']
    #allocation8 [shape = 's32[2]{0}', space=sflag, size = 0x8, scoped, tag = 'scoped memory for tpu_custom_call.1']
    #allocation9 [shape = 'u8[16384]{0}', space=vmem, size = 0x4000, scoped, tag = 'output window, operand 0']
    %7 = vsyncpa [#allocation5], 0
    %s8 = scalar_lea.sflag [#allocation5], 1
    %9 = vsyncpa %s8, 0
    %10 = vsyncpa [#allocation8], 0
    %s11 = scalar_lea.sflag [#allocation8], 1
    %12 = vsyncpa %s11, 0
    %13 = vsyncpa [#allocation6], 0
    %s14 = scalar_lea.sflag [#allocation6], 1
    %15 = vsyncpa %s14, 0
    loop: start=0, step=1, limit=4
    $region2: #{tpu_custom_call.1} parent=1 // loop_pre_header
      _
    $region3: #{tpu_custom_call.1} parent=1 // loop_header
      %s17 = sphi 0, %s21
      %p18 = scmp.ge.s32.totalorder %s17, 4
      %s24 = sphi 0, %s43
      %s25 = sphi 0, %s39
      %s26 = sphi 0, %s35
      %s27 = sphi 0, %s24
      %s28 = sphi 0, %s25
      %s29 = sphi 0, %s26
      %s30 = sphi 0, %s27
      %s31 = sphi 0, %s28
      %s32 = sphi 0, %s29
      %s46 = sphi 0, %s48
      %s49 = sphi 0, %s46
      %s50 = sphi 0, %s49
      %s66 = sphi 0, %s50
      %s72 = sphi 0, %s74
      %s75 = sphi 0, %s72
      %s76 = sphi 0, %s75
      %s92 = sphi 0, %s76
      %s102 = sphi 0, %s104
      %s105 = sphi 0, %s102
      %s106 = sphi 0, %s105
      %s122 = sphi 0, %s106
    $region4: #{tpu_custom_call.1} parent=1 // loop_header_branch
      %20 = sbr.rel (%p18) target = $region8
    $region5: #{tpu_custom_call.1} parent=1 // loop_body
      %s22 = ssub.s32 %s17, 1
      %s23 = ssub.s32 %s17, 2
      %s33 = sadd.s32 1, %s26
      %p34 = scmp.ge.s32.totalorder %s33, 1
      %s35 = scalar_select %p34, 0, %s33
      %s36 = sadd.s32 1, %s25
      %s37 = scalar_select %p34, %s36, %s25
      %p38 = scmp.ge.s32.totalorder %s37, 1
      %s39 = scalar_select %p38, 0, %s37
      %s40 = sadd.s32 1, %s24
      %s41 = scalar_select %p38, %s40, %s24
      %p42 = scmp.ge.s32.totalorder %s41, 2
      %s43 = scalar_select %p42, 0, %s41
      %s44 = ssub.s32 %s24, %s43
      %p45 = scmp.eq.s32.totalorder %s44, 0
      %s47 = sadd.s32 %s46, 1
      %s48 = scalar_select %p45, %s46, %s47
      %p51 = pneg %p45
      %p52 = scmp.eq.s32.totalorder %s17, 1
      %p53 = por %p51, %p52
      %p54 = scmp.ne.s32.totalorder %s46, %s49
      %p55 = scmp.eq.s32.totalorder %s17, 0
      %p56 = por %p54, %p55
      %p57 = scmp.ne.s32.totalorder %s46, %s49
      %p58 = scmp.eq.s32.totalorder %s22, 1
      %p59 = por %p57, %p58
      %p60 = scmp.ne.s32.totalorder %s49, %s50
      %p61 = scmp.eq.s32.totalorder %s22, 0
      %p62 = por %p60, %p61
      %p63 = scmp.ne.s32.totalorder %s49, %s50
      %p64 = scmp.eq.s32.totalorder %s23, 1
      %p65 = por %p63, %p64
      %p67 = scmp.ne.s32.totalorder %s50, %s66
      %p68 = scmp.eq.s32.totalorder %s23, 0
      %p69 = por %p67, %p68
      %s70 = ssub.s32 %s24, %s43
      %p71 = scmp.eq.s32.totalorder %s70, 0
      %s73 = sadd.s32 %s72, 1
      %s74 = scalar_select %p71, %s72, %s73
      %p77 = pneg %p71
      %p78 = scmp.eq.s32.totalorder %s17, 1
      %p79 = por %p77, %p78
      %p80 = scmp.ne.s32.totalorder %s72, %s75
      %p81 = scmp.eq.s32.totalorder %s17, 0
      %p82 = por %p80, %p81
      %p83 = scmp.ne.s32.totalorder %s72, %s75
      %p84 = scmp.eq.s32.totalorder %s22, 1
      %p85 = por %p83, %p84
      %p86 = scmp.ne.s32.totalorder %s75, %s76
      %p87 = scmp.eq.s32.totalorder %s22, 0
      %p88 = por %p86, %p87
      %p89 = scmp.ne.s32.totalorder %s75, %s76
      %p90 = scmp.eq.s32.totalorder %s23, 1
      %p91 = por %p89, %p90
      %p93 = scmp.ne.s32.totalorder %s76, %s92
      %p94 = scmp.eq.s32.totalorder %s23, 0
      %p95 = por %p93, %p94
      %s96 = sadd.s32 %s25, %s26
      %s97 = sadd.s32 %s39, %s35
      %s98 = ssub.s32 %s24, %s43
      %s99 = ssub.s32 %s96, %s97
      %s100 = sor.u32 %s98, %s99
      %p101 = scmp.eq.s32.totalorder %s100, 0
      %s103 = sadd.s32 %s102, 1
      %s104 = scalar_select %p101, %s102, %s103
      %p107 = pneg %p101
      %p108 = scmp.eq.s32.totalorder %s17, 1
      %p109 = por %p107, %p108
      %p110 = scmp.ne.s32.totalorder %s102, %s105
      %p111 = scmp.eq.s32.totalorder %s17, 0
      %p112 = por %p110, %p111
      %p113 = scmp.ne.s32.totalorder %s102, %s105
      %p114 = scmp.eq.s32.totalorder %s22, 1
      %p115 = por %p113, %p114
      %p116 = scmp.ne.s32.totalorder %s105, %s106
      %p117 = scmp.eq.s32.totalorder %s22, 0
      %p118 = por %p116, %p117
      %p119 = scmp.ne.s32.totalorder %s105, %s106
      %p120 = scmp.eq.s32.totalorder %s23, 1
      %p121 = por %p119, %p120
      %p123 = scmp.ne.s32.totalorder %s106, %s122
      %p124 = scmp.eq.s32.totalorder %s23, 0
      %p125 = por %p123, %p124
      %p126 = scmp.le.s32.totalorder 1, %s17
      %p127 = scmp.lt.s32.totalorder %s17, 3
      %p128 = pnand %p126, %p127
      %p129 = pneg %p128
      // Predicated region
      $region9: #{tpu_custom_call.1} parent=5 // pred_check
        _
      $region10: #{tpu_custom_call.1} parent=5 // pred_check_branch
        %131 = sbr.rel (%p128) target = $region12
      $region11: #{tpu_custom_call.1} parent=5 // pred_region
        %s132 = ssub.s32 %s17, 1
      $region12: #{tpu_custom_call.1} parent=5 // pred_fallthru
        _
      %p133 = scmp.lt.s32.totalorder %s17, 2
      // Predicated region
      $region13: #{tpu_custom_call.1} parent=5 // pred_check
        %p134 = pneg %p133
      $region14: #{tpu_custom_call.1} parent=5 // pred_check_branch
        %136 = sbr.rel (%p134) target = $region16
      $region15: #{tpu_custom_call.1} parent=5 // pred_region
        // Predicated region
        $region17: #{tpu_custom_call.1} parent=15 // pred_check
          %p137 = pneg %p56
        $region18: #{tpu_custom_call.1} parent=15 // pred_check_branch
          %139 = sbr.rel (%p137) target = $region20
        $region19: #{tpu_custom_call.1} parent=15 // pred_region
          %s140 = sand.u32 %s46, 1
          %s141 = scalar_lea.sflag [#allocation5], %s140
          %s142 = sand.u32 %s46, 1
          %s143 = smul.addr %s142, 16
          %s144 = scalar_lea.vmem [#allocation4], %s143
          %s146 = ssub.s32 256, 256
          %147 = vsyncadd %s141, %s146
          %s148 = smul.addr %s24, 2
          %s149 = smul.addr %s148, 128
          %s150 = scalar_lea.hbm %s0, %s149
          %s152 = sshll.u32 %s144, 4
          %s153 = int_to_ptr.vmem [resolvable:$true] %s152
          %155 = dma.hbm_to_vmem [thread:$0]  %s150, 256, %s153, %s141
        $region20: #{tpu_custom_call.1} parent=15 // pred_fallthru
          _
        // Predicated region
        $region21: #{tpu_custom_call.1} parent=15 // pred_check
          %p156 = pneg %p82
        $region22: #{tpu_custom_call.1} parent=15 // pred_check_branch
          %158 = sbr.rel (%p156) target = $region24
        $region23: #{tpu_custom_call.1} parent=15 // pred_region
          %s159 = sand.u32 %s72, 1
          %s160 = scalar_lea.sflag [#allocation8], %s159
          %s161 = sand.u32 %s72, 1
          %s162 = smul.addr %s161, 16
          %s163 = scalar_lea.vmem [#allocation7], %s162
          %s165 = ssub.s32 256, 256
          %166 = vsyncadd %s160, %s165
          %s167 = smul.addr %s24, 2
          %s168 = smul.addr %s167, 128
          %s169 = scalar_lea.hbm %s1, %s168
          %s171 = sshll.u32 %s163, 4
          %s172 = int_to_ptr.vmem [resolvable:$true] %s171
          %174 = dma.hbm_to_vmem [thread:$0]  %s169, 256, %s172, %s160
        $region24: #{tpu_custom_call.1} parent=15 // pred_fallthru
          _
      $region16: #{tpu_custom_call.1} parent=5 // pred_fallthru
        _
      %p175 = scmp.le.s32.totalorder 1, %s17
      %p176 = scmp.lt.s32.totalorder %s17, 3
      %p177 = pnand %p175, %p176
      %p178 = pneg %p177
      // Predicated region
      $region25: #{tpu_custom_call.1} parent=5 // pred_check
        _
      $region26: #{tpu_custom_call.1} parent=5 // pred_check_branch
        %180 = sbr.rel (%p177) target = $region28
      $region27: #{tpu_custom_call.1} parent=5 // pred_region
        %s181 = ssub.s32 %s17, 1
        %s182 = sand.u32 %s49, 1
        %s183 = scalar_lea.sflag [#allocation5], %s182
        %s184 = sand.u32 %s49, 1
        %s185 = smul.addr %s184, 16
        %s186 = scalar_lea.vmem [#allocation4], %s185
        // Predicated region
        $region29: #{tpu_custom_call.1} parent=27 // pred_check
          %p187 = pneg %p62
        $region30: #{tpu_custom_call.1} parent=27 // pred_check_branch
          %189 = sbr.rel (%p187) target = $region32
        $region31: #{tpu_custom_call.1} parent=27 // pred_region
          %190 = dma.done %s183, 256
        $region32: #{tpu_custom_call.1} parent=27 // pred_fallthru
          _
        %s191 = sand.u32 %s75, 1
        %s192 = scalar_lea.sflag [#allocation8], %s191
        %s193 = sand.u32 %s75, 1
        %s194 = smul.addr %s193, 16
        %s195 = scalar_lea.vmem [#allocation7], %s194
        // Predicated region
        $region33: #{tpu_custom_call.1} parent=27 // pred_check
          %p196 = pneg %p88
        $region34: #{tpu_custom_call.1} parent=27 // pred_check_branch
          %198 = sbr.rel (%p196) target = $region36
        $region35: #{tpu_custom_call.1} parent=27 // pred_region
          %199 = dma.done %s192, 256
        $region36: #{tpu_custom_call.1} parent=27 // pred_fallthru
          _
        %s200 = sand.u32 %s49, 1
        %s201 = scalar_lea.sflag [#allocation5], %s200
        %s202 = sand.u32 %s49, 1
        %s203 = smul.addr %s202, 16
        %s204 = scalar_lea.vmem [#allocation4], %s203
        %p205 = pneg %p62
        %p206 = pneg %p59
        %s207 = sand.u32 %s75, 1
        %s208 = scalar_lea.sflag [#allocation8], %s207
        %s209 = sand.u32 %s75, 1
        %s210 = smul.addr %s209, 16
        %s211 = scalar_lea.vmem [#allocation7], %s210
        %p212 = pneg %p88
        %p213 = pneg %p85
        %p214 = pneg %p118
        %p215 = pneg %p115
        %s216 = sand.u32 %s105, 1
        %s217 = scalar_lea.sflag [#allocation6], %s216
        %s218 = sand.u32 %s105, 1
        %s219 = smul.addr %s218, 16
        %s220 = scalar_lea.vmem [#allocation9], %s219
        %s221 = sadd.s32 %s28, %s29
        %s222 = smul.u32 2, %s221
        %p223 = scmp.eq.s32.totalorder %s29, 0
        // Predicated region
        $region37: #{tpu_custom_call.1} parent=27 // pred_check
          %p224 = pneg %p223
        $region38: #{tpu_custom_call.1} parent=27 // pred_check_branch
          %226 = sbr.rel (%p224) target = $region40
        $region39: #{tpu_custom_call.1} parent=27 // pred_region
          %v227 = vld [vmem:[%s186] sm:$0xff]
          %v228 = vld [vmem:[%s186 + $0x8] sm:$0xff]
          %v229 = vmul.f32 %v227, %v227
          %v230 = vmul.f32 %v228, %v228
          %v231 = vrot.slane %v229, 4
          %v232 = vadd.f32 %v229, %v231
          %v233 = vrot.slane %v232, 2
          %v234 = vadd.f32 %v232, %v233
          %v235 = vrot.slane %v234, 1
          %v236 = vadd.f32 %v234, %v235
          %v237 = vrot.slane %v230, 4
          %v238 = vadd.f32 %v230, %v237
          %v239 = vrot.slane %v238, 2
          %v240 = vadd.f32 %v238, %v239
          %v241 = vrot.slane %v240, 1
          %v242 = vadd.f32 %v240, %v241
          %v243 = vrsqrt.pop %v236
          %v244 = vmul.f32 %v236, %v243
          %vm245 = vcmp.eq.f32.partialorder %v236, inf
          %v246 = vsel %vm245, %v236, %v244
          %vm247 = vcmp.eq.f32.partialorder %v236, 0.0
          %v248 = vand.u32 %v236, 2147483648
          %v249 = vsel %vm247, %v248, %v246
          %v250 = vrsqrt.pop %v242
          %v251 = vmul.f32 %v242, %v250
          %vm252 = vcmp.eq.f32.partialorder %v242, inf
          %v253 = vsel %vm252, %v242, %v251
          %vm254 = vcmp.eq.f32.partialorder %v242, 0.0
          %v255 = vand.u32 %v242, 2147483648
          %v256 = vsel %vm254, %v255, %v253
          %v257 = vmax.f32 %v249, 1e-12
          %v258 = vmax.f32 %v256, 1e-12
          %v259 = vrcp.pop %v257
          %v260 = vmul.f32 1.0, %v259
          %v261 = vrcp.pop %v258
          %v262 = vmul.f32 1.0, %v261
          %v263 = vmul.f32 %v227, %v260
          %v264 = vmul.f32 %v228, %v262
          %265 = vst [vmem:[#allocation2] sm:$0xff] %v263
          %266 = vst [vmem:[#allocation2 + $0x8] sm:$0xff] %v264
          %v267 = vld [vmem:[%s195] sm:$0xff]
          %v268 = vld [vmem:[%s195 + $0x8] sm:$0xff]
          %269 = vst [vmem:[#allocation3] sm:$0xff] %v267
          %270 = vst [vmem:[#allocation3 + $0x8] sm:$0xff] %v268
          %v271 = vlaneseq
          %vm272 = vcmp.ge.s32.totalorder %v271, 0
          %vm273 = vcmp.lt.s32.totalorder %v271, 256
          %vm274 = vmand %vm272, %vm273
          %s275 = scalar_lea.vmem [#allocation3], 16
          %276 = vst.msk [vmem:[%s275] ss:$8 sm:$0x3] %vm274, 1.0
          %277 = vst.msk [vmem:[%s275] ss:$8 sm:$0x0] %vm274, 1.0
        $region40: #{tpu_custom_call.1} parent=27 // pred_fallthru
          _
        %s278 = sadd.s32 %s28, %s29
        %s279 = smul.u32 %s278, 256
        %s280 = sshra.s32 %s279, 7
        %s281 = sand.u32 %s279, 127
        %s282 = smul.addr %s280, 8
        %s283 = scalar_lea.vmem [#allocation2], %s282
        %v284 = vld [vmem:[%s283] sm:$0xff]
        %v285 = vld [vmem:[%s283 + $0x8] sm:$0xff]
        %v286 = vld [vmem:[#allocation2] sm:$0xff]
        %v287 = vld [vmem:[#allocation2 + $0x8] sm:$0xff]
        %288 = vxpose.xlu0.b32.start [1/16] %v284, 128
        %289 = vxpose.xlu0.b32.cont [2/16] 0.0, 128
        %290 = vxpose.xlu0.b32.cont [3/16] 0.0, 128
        %291 = vxpose.xlu0.b32.cont [4/16] 0.0, 128
        %292 = vxpose.xlu0.b32.cont [5/16] 0.0, 128
        %293 = vxpose.xlu0.b32.cont [6/16] 0.0, 128
        %294 = vxpose.xlu0.b32.cont [7/16] 0.0, 128
        %295 = vxpose.xlu0.b32.cont [8/16] 0.0, 128
        %296 = vxpose.xlu0.b32.cont [9/16] 0.0, 128
        %297 = vxpose.xlu0.b32.cont [10/16] 0.0, 128
        %298 = vxpose.xlu0.b32.cont [11/16] 0.0, 128
        %299 = vxpose.xlu0.b32.cont [12/16] 0.0, 128
        %300 = vxpose.xlu0.b32.cont [13/16] 0.0, 128
        %301 = vxpose.xlu0.b32.cont [14/16] 0.0, 128
        %302 = vxpose.xlu0.b32.cont [15/16] 0.0, 128
        %303 = vxpose.xlu0.b32.end [16/16] 0.0, 128
        %v304 = vpop.trf.xlu0
        %v305 = vpop.trf.xlu0
        %v306 = vpop.trf.xlu0
        %v307 = vpop.trf.xlu0
        %v308 = vpop.trf.xlu0
        %v309 = vpop.trf.xlu0
        %v310 = vpop.trf.xlu0
        %v311 = vpop.trf.xlu0
        %v312 = vpop.trf.xlu0
        %v313 = vpop.trf.xlu0
        %v314 = vpop.trf.xlu0
        %v315 = vpop.trf.xlu0
        %v316 = vpop.trf.xlu0
        %v317 = vpop.trf.xlu0
        %v318 = vpop.trf.xlu0
        %v319 = vpop.trf.xlu0
        %320 = vxpose.xlu0.b32.start [1/16] %v285, 128
        %321 = vxpose.xlu0.b32.cont [2/16] 0.0, 128
        %322 = vxpose.xlu0.b32.cont [3/16] 0.0, 128
        %323 = vxpose.xlu0.b32.cont [4/16] 0.0, 128
        %324 = vxpose.xlu0.b32.cont [5/16] 0.0, 128
        %325 = vxpose.xlu0.b32.cont [6/16] 0.0, 128
        %326 = vxpose.xlu0.b32.cont [7/16] 0.0, 128
        %327 = vxpose.xlu0.b32.cont [8/16] 0.0, 128
        %328 = vxpose.xlu0.b32.cont [9/16] 0.0, 128
        %329 = vxpose.xlu0.b32.cont [10/16] 0.0, 128
        %330 = vxpose.xlu0.b32.cont [11/16] 0.0, 128
        %331 = vxpose.xlu0.b32.cont [12/16] 0.0, 128
        %332 = vxpose.xlu0.b32.cont [13/16] 0.0, 128
        %333 = vxpose.xlu0.b32.cont [14/16] 0.0, 128
        %334 = vxpose.xlu0.b32.cont [15/16] 0.0, 128
        %335 = vxpose.xlu0.b32.end [16/16] 0.0, 128
        %v336 = vpop.trf.xlu0
        %v337 = vpop.trf.xlu0
        %v338 = vpop.trf.xlu0
        %v339 = vpop.trf.xlu0
        %v340 = vpop.trf.xlu0
        %v341 = vpop.trf.xlu0
        %v342 = vpop.trf.xlu0
        %v343 = vpop.trf.xlu0
        %v344 = vpop.trf.xlu0
        %v345 = vpop.trf.xlu0
        %v346 = vpop.trf.xlu0
        %v347 = vpop.trf.xlu0
        %v348 = vpop.trf.xlu0
        %v349 = vpop.trf.xlu0
        %v350 = vpop.trf.xlu0
        %v351 = vpop.trf.xlu0
        %vm352 = vcmask 64512
        %v354 = vsel %vm352, %v304, 0
        %v357 = vsel %vm352, %v305, 0
        %v360 = vsel %vm352, %v306, 0
        %v363 = vsel %vm352, %v307, 0
        %v366 = vsel %vm352, %v308, 0
        %v369 = vsel %vm352, %v309, 0
        %v372 = vsel %vm352, %v310, 0
        %v375 = vsel %vm352, %v311, 0
        %v378 = vsel %vm352, %v312, 0
        %v381 = vsel %vm352, %v313, 0
        %v384 = vsel %vm352, %v314, 0
        %v387 = vsel %vm352, %v315, 0
        %v390 = vsel %vm352, %v316, 0
        %v393 = vsel %vm352, %v317, 0
        %v396 = vsel %vm352, %v318, 0
        %v399 = vsel %vm352, %v319, 0
        %v402 = vsel %vm352, %v336, 0
        %v405 = vsel %vm352, %v337, 0
        %v408 = vsel %vm352, %v338, 0
        %v411 = vsel %vm352, %v339, 0
        %v414 = vsel %vm352, %v340, 0
        %v417 = vsel %vm352, %v341, 0
        %v420 = vsel %vm352, %v342, 0
        %v423 = vsel %vm352, %v343, 0
        %v426 = vsel %vm352, %v344, 0
        %v429 = vsel %vm352, %v345, 0
        %v432 = vsel %vm352, %v346, 0
        %v435 = vsel %vm352, %v347, 0
        %v438 = vsel %vm352, %v348, 0
        %v441 = vsel %vm352, %v349, 0
        %v444 = vsel %vm352, %v350, 0
        %v447 = vsel %vm352, %v351, 0
        %449 = vmatprep.subr.mxu0 %v287
        %450 = vmatpush1.msra.mxu0 %v286
        %451 = vmatprep.subr.mxu0 0.0
        %452 = vmatpush1.msra.mxu0 0.0
        %453 = vmatprep.subr.mxu0 0.0
        %454 = vmatpush1.msra.mxu0 0.0
        %455 = vmatprep.subr.mxu0 0.0
        %456 = vmatpush1.msra.mxu0 0.0
        %457 = vmatprep.subr.mxu0 0.0
        %458 = vmatpush1.msra.mxu0 0.0
        %459 = vmatprep.subr.mxu0 0.0
        %460 = vmatpush1.msra.mxu0 0.0
        %461 = vmatprep.subr.mxu0 0.0
        %462 = vmatpush1.msra.mxu0 0.0
        %463 = vmatprep.subr.mxu0 0.0
        %464 = vmatpush1.msra.mxu0 0.0
        %465 = vmatprep.subr.mxu0 0.0
        %466 = vmatpush1.msra.mxu0 0.0
        %467 = vmatprep.subr.mxu0 0.0
        %468 = vmatpush1.msra.mxu0 0.0
        %469 = vmatprep.subr.mxu0 0.0
        %470 = vmatpush1.msra.mxu0 0.0
        %471 = vmatprep.subr.mxu0 0.0
        %472 = vmatpush1.msra.mxu0 0.0
        %473 = vmatprep.subr.mxu0 0.0
        %474 = vmatpush1.msra.mxu0 0.0
        %475 = vmatprep.subr.mxu0 0.0
        %476 = vmatpush1.msra.mxu0 0.0
        %477 = vmatprep.subr.mxu0 0.0
        %478 = vmatpush1.msra.mxu0 0.0
        %479 = vmatprep.subr.mxu0 0.0
        %480 = vmatpush1.msra.mxu0 0.0
        %481 = vmatprep.subr.mxu0 0.0
        %482 = vmatpush1.msra.mxu0 0.0
        %483 = vmatprep.subr.mxu0 0.0
        %484 = vmatpush1.msra.mxu0 0.0
        %485 = vmatprep.subr.mxu0 0.0
        %486 = vmatpush1.msra.mxu0 0.0
        %487 = vmatprep.subr.mxu0 0.0
        %488 = vmatpush1.msra.mxu0 0.0
        %489 = vmatprep.subr.mxu0 0.0
        %490 = vmatpush1.msra.mxu0 0.0
        %491 = vmatprep.subr.mxu0 0.0
        %492 = vmatpush1.msra.mxu0 0.0
        %493 = vmatprep.subr.mxu0 0.0
        %494 = vmatpush1.msra.mxu0 0.0
        %495 = vmatprep.subr.mxu0 0.0
        %496 = vmatpush1.msra.mxu0 0.0
        %497 = vmatprep.subr.mxu0 0.0
        %498 = vmatpush1.msra.mxu0 0.0
        %499 = vmatprep.subr.mxu0 0.0
        %500 = vmatpush1.msra.mxu0 0.0
        %501 = vmatprep.subr.mxu0 0.0
        %502 = vmatpush1.msra.mxu0 0.0
        %503 = vmatprep.subr.mxu0 0.0
        %504 = vmatpush1.msra.mxu0 0.0
        %505 = vmatprep.subr.mxu0 0.0
        %506 = vmatpush1.msra.mxu0 0.0
        %507 = vmatprep.subr.mxu0 0.0
        %508 = vmatpush1.msra.mxu0 0.0
        %509 = vmatprep.subr.mxu0 0.0
        %510 = vmatpush1.msra.mxu0 0.0
        %511 = vmatprep.subr.mxu0 0.0
        %512 = vmatpush1.msra.mxu0 0.0
        %513 = vmatprep.mubr.f32.mxu0 0.0
        %514 = vmatmul.mubr.f32.gmra.mrb[0].mxu0 %v354
        %v515 = vpop.f32.mrb[0].mxu0
        %v516 = vadd.f32 0.0, %v515
        %v517 = vpop.f32.mrb[0].mxu0
        %v518 = vadd.f32 0.0, %v517
        %519 = vmatprep.mubr.f32.mxu0 0.0
        %520 = vmatmul.mubr.f32.gmra.mrb[0].mxu0 %v357
        %v521 = vpop.f32.mrb[0].mxu0
        %v522 = vadd.f32 0.0, %v521
        %v523 = vpop.f32.mrb[0].mxu0
        %v524 = vadd.f32 0.0, %v523
        %525 = vmatprep.mubr.f32.mxu0 0.0
        %526 = vmatmul.mubr.f32.gmra.mrb[0].mxu0 %v360
        %v527 = vpop.f32.mrb[0].mxu0
        %v528 = vadd.f32 0.0, %v527
        %v529 = vpop.f32.mrb[0].mxu0
        %v530 = vadd.f32 0.0, %v529
        %531 = vmatprep.mubr.f32.mxu0 0.0
        %532 = vmatmul.mubr.f32.gmra.mrb[0].mxu0 %v363
        %v533 = vpop.f32.mrb[0].mxu0
        %v534 = vadd.f32 0.0, %v533
        %v535 = vpop.f32.mrb[0].mxu0
        %v536 = vadd.f32 0.0, %v535
        %537 = vmatprep.mubr.f32.mxu0 0.0
        %538 = vmatmul.mubr.f32.gmra.mrb[0].mxu0 %v366
        %v539 = vpop.f32.mrb[0].mxu0
        %v540 = vadd.f32 0.0, %v539
        %v541 = vpop.f32.mrb[0].mxu0
        %v542 = vadd.f32 0.0, %v541
        %543 = vmatprep.mubr.f32.mxu0 0.0
        %544 = vmatmul.mubr.f32.gmra.mrb[0].mxu0 %v369
        %v545 = vpop.f32.mrb[0].mxu0
        %v546 = vadd.f32 0.0, %v545
        %v547 = vpop.f32.mrb[0].mxu0
        %v548 = vadd.f32 0.0, %v547
        %549 = vmatprep.mubr.f32.mxu0 0.0
        %550 = vmatmul.mubr.f32.gmra.mrb[0].mxu0 %v372
        %v551 = vpop.f32.mrb[0].mxu0
        %v552 = vadd.f32 0.0, %v551
        %v553 = vpop.f32.mrb[0].mxu0
        %v554 = vadd.f32 0.0, %v553
        %555 = vmatprep.mubr.f32.mxu0 0.0
        %556 = vmatmul.mubr.f32.gmra.mrb[0].mxu0 %v375
        %v557 = vpop.f32.mrb[0].mxu0
        %v558 = vadd.f32 0.0, %v557
        %v559 = vpop.f32.mrb[0].mxu0
        %v560 = vadd.f32 0.0, %v559
        %561 = vmatprep.mubr.f32.mxu0 0.0
        %562 = vmatmul.mubr.f32.gmra.mrb[0].mxu0 %v378
        %v563 = vpop.f32.mrb[0].mxu0
        %v564 = vadd.f32 0.0, %v563
        %v565 = vpop.f32.mrb[0].mxu0
        %v566 = vadd.f32 0.0, %v565
        %567 = vmatprep.mubr.f32.mxu0 0.0
        %568 = vmatmul.mubr.f32.gmra.mrb[0].mxu0 %v381
        %v569 = vpop.f32.mrb[0].mxu0
        %v570 = vadd.f32 0.0, %v569
        %v571 = vpop.f32.mrb[0].mxu0
        %v572 = vadd.f32 0.0, %v571
        %573 = vmatprep.mubr.f32.mxu0 0.0
        %574 = vmatmul.mubr.f32.gmra.mrb[0].mxu0 %v384
        %v575 = vpop.f32.mrb[0].mxu0
        %v576 = vadd.f32 0.0, %v575
        %v577 = vpop.f32.mrb[0].mxu0
        %v578 = vadd.f32 0.0, %v577
        %579 = vmatprep.mubr.f32.mxu0 0.0
        %580 = vmatmul.mubr.f32.gmra.mrb[0].mxu0 %v387
        %v581 = vpop.f32.mrb[0].mxu0
        %v582 = vadd.f32 0.0, %v581
        %v583 = vpop.f32.mrb[0].mxu0
        %v584 = vadd.f32 0.0, %v583
        %585 = vmatprep.mubr.f32.mxu0 0.0
        %586 = vmatmul.mubr.f32.gmra.mrb[0].mxu0 %v390
        %v587 = vpop.f32.mrb[0].mxu0
        %v588 = vadd.f32 0.0, %v587
        %v589 = vpop.f32.mrb[0].mxu0
        %v590 = vadd.f32 0.0, %v589
        %591 = vmatprep.mubr.f32.mxu0 0.0
        %592 = vmatmul.mubr.f32.gmra.mrb[0].mxu0 %v393
        %v593 = vpop.f32.mrb[0].mxu0
        %v594 = vadd.f32 0.0, %v593
        %v595 = vpop.f32.mrb[0].mxu0
        %v596 = vadd.f32 0.0, %v595
        %597 = vmatprep.mubr.f32.mxu0 0.0
        %598 = vmatmul.mubr.f32.gmra.mrb[0].mxu0 %v396
        %v599 = vpop.f32.mrb[0].mxu0
        %v600 = vadd.f32 0.0, %v599
        %v601 = vpop.f32.mrb[0].mxu0
        %v602 = vadd.f32 0.0, %v601
        %603 = vmatprep.mubr.f32.mxu0 0.0
        %604 = vmatmul.mubr.f32.gmra.mrb[0].mxu0 %v399
        %v605 = vpop.f32.mrb[0].mxu0
        %v606 = vadd.f32 0.0, %v605
        %v607 = vpop.f32.mrb[0].mxu0
        %v608 = vadd.f32 0.0, %v607
        %609 = vmatprep.mubr.f32.mxu0 0.0
        %610 = vmatmul.mubr.f32.gmra.mrb[0].mxu0 %v402
        %v611 = vpop.f32.mrb[0].mxu0
        %v612 = vadd.f32 0.0, %v611
        %v613 = vpop.f32.mrb[0].mxu0
        %v614 = vadd.f32 0.0, %v613
        %615 = vmatprep.mubr.f32.mxu0 0.0
        %616 = vmatmul.mubr.f32.gmra.mrb[0].mxu0 %v405
        %v617 = vpop.f32.mrb[0].mxu0
        %v618 = vadd.f32 0.0, %v617
        %v619 = vpop.f32.mrb[0].mxu0
        %v620 = vadd.f32 0.0, %v619
        %621 = vmatprep.mubr.f32.mxu0 0.0
        %622 = vmatmul.mubr.f32.gmra.mrb[0].mxu0 %v408
        %v623 = vpop.f32.mrb[0].mxu0
        %v624 = vadd.f32 0.0, %v623
        %v625 = vpop.f32.mrb[0].mxu0
        %v626 = vadd.f32 0.0, %v625
        %627 = vmatprep.mubr.f32.mxu0 0.0
        %628 = vmatmul.mubr.f32.gmra.mrb[0].mxu0 %v411
        %v629 = vpop.f32.mrb[0].mxu0
        %v630 = vadd.f32 0.0, %v629
        %v631 = vpop.f32.mrb[0].mxu0
        %v632 = vadd.f32 0.0, %v631
        %633 = vmatprep.mubr.f32.mxu0 0.0
        %634 = vmatmul.mubr.f32.gmra.mrb[0].mxu0 %v414
        %v635 = vpop.f32.mrb[0].mxu0
        %v636 = vadd.f32 0.0, %v635
        %v637 = vpop.f32.mrb[0].mxu0
        %v638 = vadd.f32 0.0, %v637
        %639 = vmatprep.mubr.f32.mxu0 0.0
        %640 = vmatmul.mubr.f32.gmra.mrb[0].mxu0 %v417
        %v641 = vpop.f32.mrb[0].mxu0
        %v642 = vadd.f32 0.0, %v641
        %v643 = vpop.f32.mrb[0].mxu0
        %v644 = vadd.f32 0.0, %v643
        %645 = vmatprep.mubr.f32.mxu0 0.0
        %646 = vmatmul.mubr.f32.gmra.mrb[0].mxu0 %v420
        %v647 = vpop.f32.mrb[0].mxu0
        %v648 = vadd.f32 0.0, %v647
        %v649 = vpop.f32.mrb[0].mxu0
        %v650 = vadd.f32 0.0, %v649
        %651 = vmatprep.mubr.f32.mxu0 0.0
        %652 = vmatmul.mubr.f32.gmra.mrb[0].mxu0 %v423
        %v653 = vpop.f32.mrb[0].mxu0
        %v654 = vadd.f32 0.0, %v653
        %v655 = vpop.f32.mrb[0].mxu0
        %v656 = vadd.f32 0.0, %v655
        %657 = vmatprep.mubr.f32.mxu0 0.0
        %658 = vmatmul.mubr.f32.gmra.mrb[0].mxu0 %v426
        %v659 = vpop.f32.mrb[0].mxu0
        %v660 = vadd.f32 0.0, %v659
        %v661 = vpop.f32.mrb[0].mxu0
        %v662 = vadd.f32 0.0, %v661
        %663 = vmatprep.mubr.f32.mxu0 0.0
        %664 = vmatmul.mubr.f32.gmra.mrb[0].mxu0 %v429
        %v665 = vpop.f32.mrb[0].mxu0
        %v666 = vadd.f32 0.0, %v665
        %v667 = vpop.f32.mrb[0].mxu0
        %v668 = vadd.f32 0.0, %v667
        %669 = vmatprep.mubr.f32.mxu0 0.0
        %670 = vmatmul.mubr.f32.gmra.mrb[0].mxu0 %v432
        %v671 = vpop.f32.mrb[0].mxu0
        %v672 = vadd.f32 0.0, %v671
        %v673 = vpop.f32.mrb[0].mxu0
        %v674 = vadd.f32 0.0, %v673
        %675 = vmatprep.mubr.f32.mxu0 0.0
        %676 = vmatmul.mubr.f32.gmra.mrb[0].mxu0 %v435
        %v677 = vpop.f32.mrb[0].mxu0
        %v678 = vadd.f32 0.0, %v677
        %v679 = vpop.f32.mrb[0].mxu0
        %v680 = vadd.f32 0.0, %v679
        %681 = vmatprep.mubr.f32.mxu0 0.0
        %682 = vmatmul.mubr.f32.gmra.mrb[0].mxu0 %v438
        %v683 = vpop.f32.mrb[0].mxu0
        %v684 = vadd.f32 0.0, %v683
        %v685 = vpop.f32.mrb[0].mxu0
        %v686 = vadd.f32 0.0, %v685
        %687 = vmatprep.mubr.f32.mxu0 0.0
        %688 = vmatmul.mubr.f32.gmra.mrb[0].mxu0 %v441
        %v689 = vpop.f32.mrb[0].mxu0
        %v690 = vadd.f32 0.0, %v689
        %v691 = vpop.f32.mrb[0].mxu0
        %v692 = vadd.f32 0.0, %v691
        %693 = vmatprep.mubr.f32.mxu0 0.0
        %694 = vmatmul.mubr.f32.gmra.mrb[0].mxu0 %v444
        %v695 = vpop.f32.mrb[0].mxu0
        %v696 = vadd.f32 0.0, %v695
        %v697 = vpop.f32.mrb[0].mxu0
        %v698 = vadd.f32 0.0, %v697
        %699 = vmatprep.mubr.f32.mxu0 0.0
        %700 = vmatmul.mubr.f32.gmra.mrb[0].mxu0 %v447
        %v701 = vpop.f32.mrb[0].mxu0
        %v702 = vadd.f32 0.0, %v701
        %v703 = vpop.f32.mrb[0].mxu0
        %v704 = vadd.f32 0.0, %v703
        %705 = vdwg.mxu0
        %v706 = vlaneseq
        %v707 = vand.u32 %v706, 127
        %v708 = vadd.s32 %v707, 128
        %v709 = vmax.f32 %v516, %v518
        %710 = vmax.xlane.f32.xlu0 %v709
        %v711 = vpop.xlane.xlu0 %710
        %v712 = vmax.f32 %v522, %v524
        %713 = vmax.xlane.f32.xlu0 %v712
        %v714 = vpop.xlane.xlu0 %713
        %v715 = vmax.f32 %v528, %v530
        %716 = vmax.xlane.f32.xlu0 %v715
        %v717 = vpop.xlane.xlu0 %716
        %v718 = vmax.f32 %v534, %v536
        %719 = vmax.xlane.f32.xlu0 %v718
        %v720 = vpop.xlane.xlu0 %719
        %v721 = vmax.f32 %v540, %v542
        %722 = vmax.xlane.f32.xlu0 %v721
        %v723 = vpop.xlane.xlu0 %722
        %v724 = vmax.f32 %v546, %v548
        %725 = vmax.xlane.f32.xlu0 %v724
        %v726 = vpop.xlane.xlu0 %725
        %v727 = vmax.f32 %v552, %v554
        %728 = vmax.xlane.f32.xlu0 %v727
        %v729 = vpop.xlane.xlu0 %728
        %v730 = vmax.f32 %v558, %v560
        %731 = vmax.xlane.f32.xlu0 %v730
        %v732 = vpop.xlane.xlu0 %731
        %v733 = vmax.f32 %v564, %v566
        %734 = vmax.xlane.f32.xlu0 %v733
        %v735 = vpop.xlane.xlu0 %734
        %v736 = vmax.f32 %v570, %v572
        %737 = vmax.xlane.f32.xlu0 %v736
        %v738 = vpop.xlane.xlu0 %737
        %v739 = vmax.f32 %v576, %v578
        %740 = vmax.xlane.f32.xlu0 %v739
        %v741 = vpop.xlane.xlu0 %740
        %v742 = vmax.f32 %v582, %v584
        %743 = vmax.xlane.f32.xlu0 %v742
        %v744 = vpop.xlane.xlu0 %743
        %v745 = vmax.f32 %v588, %v590
        %746 = vmax.xlane.f32.xlu0 %v745
        %v747 = vpop.xlane.xlu0 %746
        %v748 = vmax.f32 %v594, %v596
        %749 = vmax.xlane.f32.xlu0 %v748
        %v750 = vpop.xlane.xlu0 %749
        %v751 = vmax.f32 %v600, %v602
        %752 = vmax.xlane.f32.xlu0 %v751
        %v753 = vpop.xlane.xlu0 %752
        %v754 = vmax.f32 %v606, %v608
        %755 = vmax.xlane.f32.xlu0 %v754
        %v756 = vpop.xlane.xlu0 %755
        %v757 = vmax.f32 %v612, %v614
        %758 = vmax.xlane.f32.xlu0 %v757
        %v759 = vpop.xlane.xlu0 %758
        %v760 = vmax.f32 %v618, %v620
        %761 = vmax.xlane.f32.xlu0 %v760
        %v762 = vpop.xlane.xlu0 %761
        %v763 = vmax.f32 %v624, %v626
        %764 = vmax.xlane.f32.xlu0 %v763
        %v765 = vpop.xlane.xlu0 %764
        %v766 = vmax.f32 %v630, %v632
        %767 = vmax.xlane.f32.xlu0 %v766
        %v768 = vpop.xlane.xlu0 %767
        %v769 = vmax.f32 %v636, %v638
        %770 = vmax.xlane.f32.xlu0 %v769
        %v771 = vpop.xlane.xlu0 %770
        %v772 = vmax.f32 %v642, %v644
        %773 = vmax.xlane.f32.xlu0 %v772
        %v774 = vpop.xlane.xlu0 %773
        %v775 = vmax.f32 %v648, %v650
        %776 = vmax.xlane.f32.xlu0 %v775
        %v777 = vpop.xlane.xlu0 %776
        %v778 = vmax.f32 %v654, %v656
        %779 = vmax.xlane.f32.xlu0 %v778
        %v780 = vpop.xlane.xlu0 %779
        %v781 = vmax.f32 %v660, %v662
        %782 = vmax.xlane.f32.xlu0 %v781
        %v783 = vpop.xlane.xlu0 %782
        %v784 = vmax.f32 %v666, %v668
        %785 = vmax.xlane.f32.xlu0 %v784
        %v786 = vpop.xlane.xlu0 %785
        %v787 = vmax.f32 %v672, %v674
        %788 = vmax.xlane.f32.xlu0 %v787
        %v789 = vpop.xlane.xlu0 %788
        %v790 = vmax.f32 %v678, %v680
        %791 = vmax.xlane.f32.xlu0 %v790
        %v792 = vpop.xlane.xlu0 %791
        %v793 = vmax.f32 %v684, %v686
        %794 = vmax.xlane.f32.xlu0 %v793
        %v795 = vpop.xlane.xlu0 %794
        %v796 = vmax.f32 %v690, %v692
        %797 = vmax.xlane.f32.xlu0 %v796
        %v798 = vpop.xlane.xlu0 %797
        %v799 = vmax.f32 %v696, %v698
        %800 = vmax.xlane.f32.xlu0 %v799
        %v801 = vpop.xlane.xlu0 %800
        %v802 = vmax.f32 %v702, %v704
        %803 = vmax.xlane.f32.xlu0 %v802
        %v804 = vpop.xlane.xlu0 %803
        %vm805 = vcmp.eq.f32.partialorder %v516, %v711
        %vm806 = vcmp.eq.f32.partialorder %v518, %v711
        %vm807 = vcmp.eq.f32.partialorder %v522, %v714
        %vm808 = vcmp.eq.f32.partialorder %v524, %v714
        %vm809 = vcmp.eq.f32.partialorder %v528, %v717
        %vm810 = vcmp.eq.f32.partialorder %v530, %v717
        %vm811 = vcmp.eq.f32.partialorder %v534, %v720
        %vm812 = vcmp.eq.f32.partialorder %v536, %v720
        %vm813 = vcmp.eq.f32.partialorder %v540, %v723
        %vm814 = vcmp.eq.f32.partialorder %v542, %v723
        %vm815 = vcmp.eq.f32.partialorder %v546, %v726
        %vm816 = vcmp.eq.f32.partialorder %v548, %v726
        %vm817 = vcmp.eq.f32.partialorder %v552, %v729
        %vm818 = vcmp.eq.f32.partialorder %v554, %v729
        %vm819 = vcmp.eq.f32.partialorder %v558, %v732
        %vm820 = vcmp.eq.f32.partialorder %v560, %v732
        %vm821 = vcmp.eq.f32.partialorder %v564, %v735
        %vm822 = vcmp.eq.f32.partialorder %v566, %v735
        %vm823 = vcmp.eq.f32.partialorder %v570, %v738
        %vm824 = vcmp.eq.f32.partialorder %v572, %v738
        %vm825 = vcmp.eq.f32.partialorder %v576, %v741
        %vm826 = vcmp.eq.f32.partialorder %v578, %v741
        %vm827 = vcmp.eq.f32.partialorder %v582, %v744
        %vm828 = vcmp.eq.f32.partialorder %v584, %v744
        %vm829 = vcmp.eq.f32.partialorder %v588, %v747
        %vm830 = vcmp.eq.f32.partialorder %v590, %v747
        %vm831 = vcmp.eq.f32.partialorder %v594, %v750
        %vm832 = vcmp.eq.f32.partialorder %v596, %v750
        %vm833 = vcmp.eq.f32.partialorder %v600, %v753
        %vm834 = vcmp.eq.f32.partialorder %v602, %v753
        %vm835 = vcmp.eq.f32.partialorder %v606, %v756
        %vm836 = vcmp.eq.f32.partialorder %v608, %v756
        %vm837 = vcmp.eq.f32.partialorder %v612, %v759
        %vm838 = vcmp.eq.f32.partialorder %v614, %v759
        %vm839 = vcmp.eq.f32.partialorder %v618, %v762
        %vm840 = vcmp.eq.f32.partialorder %v620, %v762
        %vm841 = vcmp.eq.f32.partialorder %v624, %v765
        %vm842 = vcmp.eq.f32.partialorder %v626, %v765
        %vm843 = vcmp.eq.f32.partialorder %v630, %v768
        %vm844 = vcmp.eq.f32.partialorder %v632, %v768
        %vm845 = vcmp.eq.f32.partialorder %v636, %v771
        %vm846 = vcmp.eq.f32.partialorder %v638, %v771
        %vm847 = vcmp.eq.f32.partialorder %v642, %v774
        %vm848 = vcmp.eq.f32.partialorder %v644, %v774
        %vm849 = vcmp.eq.f32.partialorder %v648, %v777
        %vm850 = vcmp.eq.f32.partialorder %v650, %v777
        %vm851 = vcmp.eq.f32.partialorder %v654, %v780
        %vm852 = vcmp.eq.f32.partialorder %v656, %v780
        %vm853 = vcmp.eq.f32.partialorder %v660, %v783
        %vm854 = vcmp.eq.f32.partialorder %v662, %v783
        %vm855 = vcmp.eq.f32.partialorder %v666, %v786
        %vm856 = vcmp.eq.f32.partialorder %v668, %v786
        %vm857 = vcmp.eq.f32.partialorder %v672, %v789
        %vm858 = vcmp.eq.f32.partialorder %v674, %v789
        %vm859 = vcmp.eq.f32.partialorder %v678, %v792
        %vm860 = vcmp.eq.f32.partialorder %v680, %v792
        %vm861 = vcmp.eq.f32.partialorder %v684, %v795
        %vm862 = vcmp.eq.f32.partialorder %v686, %v795
        %vm863 = vcmp.eq.f32.partialorder %v690, %v798
        %vm864 = vcmp.eq.f32.partialorder %v692, %v798
        %vm865 = vcmp.eq.f32.partialorder %v696, %v801
        %vm866 = vcmp.eq.f32.partialorder %v698, %v801
        %vm867 = vcmp.eq.f32.partialorder %v702, %v804
        %vm868 = vcmp.eq.f32.partialorder %v704, %v804
        %v869 = vsel %vm805, %v707, 256
        %v870 = vsel %vm806, %v708, 256
        %v871 = vsel %vm807, %v707, 256
        %v872 = vsel %vm808, %v708, 256
        %v873 = vsel %vm809, %v707, 256
        %v874 = vsel %vm810, %v708, 256
        %v875 = vsel %vm811, %v707, 256
        %v876 = vsel %vm812, %v708, 256
        %v877 = vsel %vm813, %v707, 256
        %v878 = vsel %vm814, %v708, 256
        %v879 = vsel %vm815, %v707, 256
        %v880 = vsel %vm816, %v708, 256
        %v881 = vsel %vm817, %v707, 256
        %v882 = vsel %vm818, %v708, 256
        %v883 = vsel %vm819, %v707, 256
        %v884 = vsel %vm820, %v708, 256
        %v885 = vsel %vm821, %v707, 256
        %v886 = vsel %vm822, %v708, 256
        %v887 = vsel %vm823, %v707, 256
        %v888 = vsel %vm824, %v708, 256
        %v889 = vsel %vm825, %v707, 256
        %v890 = vsel %vm826, %v708, 256
        %v891 = vsel %vm827, %v707, 256
        %v892 = vsel %vm828, %v708, 256
        %v893 = vsel %vm829, %v707, 256
        %v894 = vsel %vm830, %v708, 256
        %v895 = vsel %vm831, %v707, 256
        %v896 = vsel %vm832, %v708, 256
        %v897 = vsel %vm833, %v707, 256
        %v898 = vsel %vm834, %v708, 256
        %v899 = vsel %vm835, %v707, 256
        %v900 = vsel %vm836, %v708, 256
        %v901 = vsel %vm837, %v707, 256
        %v902 = vsel %vm838, %v708, 256
        %v903 = vsel %vm839, %v707, 256
        %v904 = vsel %vm840, %v708, 256
        %v905 = vsel %vm841, %v707, 256
        %v906 = vsel %vm842, %v708, 256
        %v907 = vsel %vm843, %v707, 256
        %v908 = vsel %vm844, %v708, 256
        %v909 = vsel %vm845, %v707, 256
        %v910 = vsel %vm846, %v708, 256
        %v911 = vsel %vm847, %v707, 256
        %v912 = vsel %vm848, %v708, 256
        %v913 = vsel %vm849, %v707, 256
        %v914 = vsel %vm850, %v708, 256
        %v915 = vsel %vm851, %v707, 256
        %v916 = vsel %vm852, %v708, 256
        %v917 = vsel %vm853, %v707, 256
        %v918 = vsel %vm854, %v708, 256
        %v919 = vsel %vm855, %v707, 256
        %v920 = vsel %vm856, %v708, 256
        %v921 = vsel %vm857, %v707, 256
        %v922 = vsel %vm858, %v708, 256
        %v923 = vsel %vm859, %v707, 256
        %v924 = vsel %vm860, %v708, 256
        %v925 = vsel %vm861, %v707, 256
        %v926 = vsel %vm862, %v708, 256
        %v927 = vsel %vm863, %v707, 256
        %v928 = vsel %vm864, %v708, 256
        %v929 = vsel %vm865, %v707, 256
        %v930 = vsel %vm866, %v708, 256
        %v931 = vsel %vm867, %v707, 256
        %v932 = vsel %vm868, %v708, 256
        %vm933 = vcmp.lt.s32.totalorder %v869, %v870
        %v934 = vsel %vm933, %v869, %v870
        %v935 = vand.u32 %v934, 65535
        %v936 = vshra.s32 %v934, 16
        %v937 = vcvt.s32.f32 %v935
        %v938 = vcvt.s32.f32 %v936
        %939 = vmin.xlane.f32.xlu0 %v938
        %v940 = vpop.xlane.xlu0 %939
        %vm941 = vcmp.eq.f32.partialorder %v938, %v940
        %v942 = vsel %vm941, %v937, inf
        %943 = vmin.xlane.f32.xlu0 %v942
        %v944 = vpop.xlane.xlu0 %943
        %v945 = vcvt.f32.s32 %v944
        %v946 = vcvt.f32.s32 %v940
        %v947 = vshll.u32 %v946, 16
        %v948 = vadd.s32 %v947, %v945
        %vm949 = vcmp.lt.s32.totalorder %v871, %v872
        %v950 = vsel %vm949, %v871, %v872
        %v951 = vand.u32 %v950, 65535
        %v952 = vshra.s32 %v950, 16
        %v953 = vcvt.s32.f32 %v951
        %v954 = vcvt.s32.f32 %v952
        %955 = vmin.xlane.f32.xlu0 %v954
        %v956 = vpop.xlane.xlu0 %955
        %vm957 = vcmp.eq.f32.partialorder %v954, %v956
        %v958 = vsel %vm957, %v953, inf
        %959 = vmin.xlane.f32.xlu0 %v958
        %v960 = vpop.xlane.xlu0 %959
        %v961 = vcvt.f32.s32 %v960
        %v962 = vcvt.f32.s32 %v956
        %v963 = vshll.u32 %v962, 16
        %v964 = vadd.s32 %v963, %v961
        %vm965 = vcmp.lt.s32.totalorder %v873, %v874
        %v966 = vsel %vm965, %v873, %v874
        %v967 = vand.u32 %v966, 65535
        %v968 = vshra.s32 %v966, 16
        %v969 = vcvt.s32.f32 %v967
        %v970 = vcvt.s32.f32 %v968
        %971 = vmin.xlane.f32.xlu0 %v970
        %v972 = vpop.xlane.xlu0 %971
        %vm973 = vcmp.eq.f32.partialorder %v970, %v972
        %v974 = vsel %vm973, %v969, inf
        %975 = vmin.xlane.f32.xlu0 %v974
        %v976 = vpop.xlane.xlu0 %975
        %v977 = vcvt.f32.s32 %v976
        %v978 = vcvt.f32.s32 %v972
        %v979 = vshll.u32 %v978, 16
        %v980 = vadd.s32 %v979, %v977
        %vm981 = vcmp.lt.s32.totalorder %v875, %v876
        %v982 = vsel %vm981, %v875, %v876
        %v983 = vand.u32 %v982, 65535
        %v984 = vshra.s32 %v982, 16
        %v985 = vcvt.s32.f32 %v983
        %v986 = vcvt.s32.f32 %v984
        %987 = vmin.xlane.f32.xlu0 %v986
        %v988 = vpop.xlane.xlu0 %987
        %vm989 = vcmp.eq.f32.partialorder %v986, %v988
        %v990 = vsel %vm989, %v985, inf
        %991 = vmin.xlane.f32.xlu0 %v990
        %v992 = vpop.xlane.xlu0 %991
        %v993 = vcvt.f32.s32 %v992
        %v994 = vcvt.f32.s32 %v988
        %v995 = vshll.u32 %v994, 16
        %v996 = vadd.s32 %v995, %v993
        %vm997 = vcmp.lt.s32.totalorder %v877, %v878
        %v998 = vsel %vm997, %v877, %v878
        %v999 = vand.u32 %v998, 65535
        %v1000 = vshra.s32 %v998, 16
        %v1001 = vcvt.s32.f32 %v999
        %v1002 = vcvt.s32.f32 %v1000
        %1003 = vmin.xlane.f32.xlu0 %v1002
        %v1004 = vpop.xlane.xlu0 %1003
        %vm1005 = vcmp.eq.f32.partialorder %v1002, %v1004
        %v1006 = vsel %vm1005, %v1001, inf
        %1007 = vmin.xlane.f32.xlu0 %v1006
        %v1008 = vpop.xlane.xlu0 %1007
        %v1009 = vcvt.f32.s32 %v1008
        %v1010 = vcvt.f32.s32 %v1004
        %v1011 = vshll.u32 %v1010, 16
        %v1012 = vadd.s32 %v1011, %v1009
        %vm1013 = vcmp.lt.s32.totalorder %v879, %v880
        %v1014 = vsel %vm1013, %v879, %v880
        %v1015 = vand.u32 %v1014, 65535
        %v1016 = vshra.s32 %v1014, 16
        %v1017 = vcvt.s32.f32 %v1015
        %v1018 = vcvt.s32.f32 %v1016
        %1019 = vmin.xlane.f32.xlu0 %v1018
        %v1020 = vpop.xlane.xlu0 %1019
        %vm1021 = vcmp.eq.f32.partialorder %v1018, %v1020
        %v1022 = vsel %vm1021, %v1017, inf
        %1023 = vmin.xlane.f32.xlu0 %v1022
        %v1024 = vpop.xlane.xlu0 %1023
        %v1025 = vcvt.f32.s32 %v1024
        %v1026 = vcvt.f32.s32 %v1020
        %v1027 = vshll.u32 %v1026, 16
        %v1028 = vadd.s32 %v1027, %v1025
        %vm1029 = vcmp.lt.s32.totalorder %v881, %v882
        %v1030 = vsel %vm1029, %v881, %v882
        %v1031 = vand.u32 %v1030, 65535
        %v1032 = vshra.s32 %v1030, 16
        %v1033 = vcvt.s32.f32 %v1031
        %v1034 = vcvt.s32.f32 %v1032
        %1035 = vmin.xlane.f32.xlu0 %v1034
        %v1036 = vpop.xlane.xlu0 %1035
        %vm1037 = vcmp.eq.f32.partialorder %v1034, %v1036
        %v1038 = vsel %vm1037, %v1033, inf
        %1039 = vmin.xlane.f32.xlu0 %v1038
        %v1040 = vpop.xlane.xlu0 %1039
        %v1041 = vcvt.f32.s32 %v1040
        %v1042 = vcvt.f32.s32 %v1036
        %v1043 = vshll.u32 %v1042, 16
        %v1044 = vadd.s32 %v1043, %v1041
        %vm1045 = vcmp.lt.s32.totalorder %v883, %v884
        %v1046 = vsel %vm1045, %v883, %v884
        %v1047 = vand.u32 %v1046, 65535
        %v1048 = vshra.s32 %v1046, 16
        %v1049 = vcvt.s32.f32 %v1047
        %v1050 = vcvt.s32.f32 %v1048
        %1051 = vmin.xlane.f32.xlu0 %v1050
        %v1052 = vpop.xlane.xlu0 %1051
        %vm1053 = vcmp.eq.f32.partialorder %v1050, %v1052
        %v1054 = vsel %vm1053, %v1049, inf
        %1055 = vmin.xlane.f32.xlu0 %v1054
        %v1056 = vpop.xlane.xlu0 %1055
        %v1057 = vcvt.f32.s32 %v1056
        %v1058 = vcvt.f32.s32 %v1052
        %v1059 = vshll.u32 %v1058, 16
        %v1060 = vadd.s32 %v1059, %v1057
        %vm1061 = vcmp.lt.s32.totalorder %v885, %v886
        %v1062 = vsel %vm1061, %v885, %v886
        %v1063 = vand.u32 %v1062, 65535
        %v1064 = vshra.s32 %v1062, 16
        %v1065 = vcvt.s32.f32 %v1063
        %v1066 = vcvt.s32.f32 %v1064
        %1067 = vmin.xlane.f32.xlu0 %v1066
        %v1068 = vpop.xlane.xlu0 %1067
        %vm1069 = vcmp.eq.f32.partialorder %v1066, %v1068
        %v1070 = vsel %vm1069, %v1065, inf
        %1071 = vmin.xlane.f32.xlu0 %v1070
        %v1072 = vpop.xlane.xlu0 %1071
        %v1073 = vcvt.f32.s32 %v1072
        %v1074 = vcvt.f32.s32 %v1068
        %v1075 = vshll.u32 %v1074, 16
        %v1076 = vadd.s32 %v1075, %v1073
        %vm1077 = vcmp.lt.s32.totalorder %v887, %v888
        %v1078 = vsel %vm1077, %v887, %v888
        %v1079 = vand.u32 %v1078, 65535
        %v1080 = vshra.s32 %v1078, 16
        %v1081 = vcvt.s32.f32 %v1079
        %v1082 = vcvt.s32.f32 %v1080
        %1083 = vmin.xlane.f32.xlu0 %v1082
        %v1084 = vpop.xlane.xlu0 %1083
        %vm1085 = vcmp.eq.f32.partialorder %v1082, %v1084
        %v1086 = vsel %vm1085, %v1081, inf
        %1087 = vmin.xlane.f32.xlu0 %v1086
        %v1088 = vpop.xlane.xlu0 %1087
        %v1089 = vcvt.f32.s32 %v1088
        %v1090 = vcvt.f32.s32 %v1084
        %v1091 = vshll.u32 %v1090, 16
        %v1092 = vadd.s32 %v1091, %v1089
        %vm1093 = vcmp.lt.s32.totalorder %v889, %v890
        %v1094 = vsel %vm1093, %v889, %v890
        %v1095 = vand.u32 %v1094, 65535
        %v1096 = vshra.s32 %v1094, 16
        %v1097 = vcvt.s32.f32 %v1095
        %v1098 = vcvt.s32.f32 %v1096
        %1099 = vmin.xlane.f32.xlu0 %v1098
        %v1100 = vpop.xlane.xlu0 %1099
        %vm1101 = vcmp.eq.f32.partialorder %v1098, %v1100
        %v1102 = vsel %vm1101, %v1097, inf
        %1103 = vmin.xlane.f32.xlu0 %v1102
        %v1104 = vpop.xlane.xlu0 %1103
        %v1105 = vcvt.f32.s32 %v1104
        %v1106 = vcvt.f32.s32 %v1100
        %v1107 = vshll.u32 %v1106, 16
        %v1108 = vadd.s32 %v1107, %v1105
        %vm1109 = vcmp.lt.s32.totalorder %v891, %v892
        %v1110 = vsel %vm1109, %v891, %v892
        %v1111 = vand.u32 %v1110, 65535
        %v1112 = vshra.s32 %v1110, 16
        %v1113 = vcvt.s32.f32 %v1111
        %v1114 = vcvt.s32.f32 %v1112
        %1115 = vmin.xlane.f32.xlu0 %v1114
        %v1116 = vpop.xlane.xlu0 %1115
        %vm1117 = vcmp.eq.f32.partialorder %v1114, %v1116
        %v1118 = vsel %vm1117, %v1113, inf
        %1119 = vmin.xlane.f32.xlu0 %v1118
        %v1120 = vpop.xlane.xlu0 %1119
        %v1121 = vcvt.f32.s32 %v1120
        %v1122 = vcvt.f32.s32 %v1116
        %v1123 = vshll.u32 %v1122, 16
        %v1124 = vadd.s32 %v1123, %v1121
        %vm1125 = vcmp.lt.s32.totalorder %v893, %v894
        %v1126 = vsel %vm1125, %v893, %v894
        %v1127 = vand.u32 %v1126, 65535
        %v1128 = vshra.s32 %v1126, 16
        %v1129 = vcvt.s32.f32 %v1127
        %v1130 = vcvt.s32.f32 %v1128
        %1131 = vmin.xlane.f32.xlu0 %v1130
        %v1132 = vpop.xlane.xlu0 %1131
        %vm1133 = vcmp.eq.f32.partialorder %v1130, %v1132
        %v1134 = vsel %vm1133, %v1129, inf
        %1135 = vmin.xlane.f32.xlu0 %v1134
        %v1136 = vpop.xlane.xlu0 %1135
        %v1137 = vcvt.f32.s32 %v1136
        %v1138 = vcvt.f32.s32 %v1132
        %v1139 = vshll.u32 %v1138, 16
        %v1140 = vadd.s32 %v1139, %v1137
        %vm1141 = vcmp.lt.s32.totalorder %v895, %v896
        %v1142 = vsel %vm1141, %v895, %v896
        %v1143 = vand.u32 %v1142, 65535
        %v1144 = vshra.s32 %v1142, 16
        %v1145 = vcvt.s32.f32 %v1143
        %v1146 = vcvt.s32.f32 %v1144
        %1147 = vmin.xlane.f32.xlu0 %v1146
        %v1148 = vpop.xlane.xlu0 %1147
        %vm1149 = vcmp.eq.f32.partialorder %v1146, %v1148
        %v1150 = vsel %vm1149, %v1145, inf
        %1151 = vmin.xlane.f32.xlu0 %v1150
        %v1152 = vpop.xlane.xlu0 %1151
        %v1153 = vcvt.f32.s32 %v1152
        %v1154 = vcvt.f32.s32 %v1148
        %v1155 = vshll.u32 %v1154, 16
        %v1156 = vadd.s32 %v1155, %v1153
        %vm1157 = vcmp.lt.s32.totalorder %v897, %v898
        %v1158 = vsel %vm1157, %v897, %v898
        %v1159 = vand.u32 %v1158, 65535
        %v1160 = vshra.s32 %v1158, 16
        %v1161 = vcvt.s32.f32 %v1159
        %v1162 = vcvt.s32.f32 %v1160
        %1163 = vmin.xlane.f32.xlu0 %v1162
        %v1164 = vpop.xlane.xlu0 %1163
        %vm1165 = vcmp.eq.f32.partialorder %v1162, %v1164
        %v1166 = vsel %vm1165, %v1161, inf
        %1167 = vmin.xlane.f32.xlu0 %v1166
        %v1168 = vpop.xlane.xlu0 %1167
        %v1169 = vcvt.f32.s32 %v1168
        %v1170 = vcvt.f32.s32 %v1164
        %v1171 = vshll.u32 %v1170, 16
        %v1172 = vadd.s32 %v1171, %v1169
        %vm1173 = vcmp.lt.s32.totalorder %v899, %v900
        %v1174 = vsel %vm1173, %v899, %v900
        %v1175 = vand.u32 %v1174, 65535
        %v1176 = vshra.s32 %v1174, 16
        %v1177 = vcvt.s32.f32 %v1175
        %v1178 = vcvt.s32.f32 %v1176
        %1179 = vmin.xlane.f32.xlu0 %v1178
        %v1180 = vpop.xlane.xlu0 %1179
        %vm1181 = vcmp.eq.f32.partialorder %v1178, %v1180
        %v1182 = vsel %vm1181, %v1177, inf
        %1183 = vmin.xlane.f32.xlu0 %v1182
        %v1184 = vpop.xlane.xlu0 %1183
        %v1185 = vcvt.f32.s32 %v1184
        %v1186 = vcvt.f32.s32 %v1180
        %v1187 = vshll.u32 %v1186, 16
        %v1188 = vadd.s32 %v1187, %v1185
        %vm1189 = vcmp.lt.s32.totalorder %v901, %v902
        %v1190 = vsel %vm1189, %v901, %v902
        %v1191 = vand.u32 %v1190, 65535
        %v1192 = vshra.s32 %v1190, 16
        %v1193 = vcvt.s32.f32 %v1191
        %v1194 = vcvt.s32.f32 %v1192
        %1195 = vmin.xlane.f32.xlu0 %v1194
        %v1196 = vpop.xlane.xlu0 %1195
        %vm1197 = vcmp.eq.f32.partialorder %v1194, %v1196
        %v1198 = vsel %vm1197, %v1193, inf
        %1199 = vmin.xlane.f32.xlu0 %v1198
        %v1200 = vpop.xlane.xlu0 %1199
        %v1201 = vcvt.f32.s32 %v1200
        %v1202 = vcvt.f32.s32 %v1196
        %v1203 = vshll.u32 %v1202, 16
        %v1204 = vadd.s32 %v1203, %v1201
        %vm1205 = vcmp.lt.s32.totalorder %v903, %v904
        %v1206 = vsel %vm1205, %v903, %v904
        %v1207 = vand.u32 %v1206, 65535
        %v1208 = vshra.s32 %v1206, 16
        %v1209 = vcvt.s32.f32 %v1207
        %v1210 = vcvt.s32.f32 %v1208
        %1211 = vmin.xlane.f32.xlu0 %v1210
        %v1212 = vpop.xlane.xlu0 %1211
        %vm1213 = vcmp.eq.f32.partialorder %v1210, %v1212
        %v1214 = vsel %vm1213, %v1209, inf
        %1215 = vmin.xlane.f32.xlu0 %v1214
        %v1216 = vpop.xlane.xlu0 %1215
        %v1217 = vcvt.f32.s32 %v1216
        %v1218 = vcvt.f32.s32 %v1212
        %v1219 = vshll.u32 %v1218, 16
        %v1220 = vadd.s32 %v1219, %v1217
        %vm1221 = vcmp.lt.s32.totalorder %v905, %v906
        %v1222 = vsel %vm1221, %v905, %v906
        %v1223 = vand.u32 %v1222, 65535
        %v1224 = vshra.s32 %v1222, 16
        %v1225 = vcvt.s32.f32 %v1223
        %v1226 = vcvt.s32.f32 %v1224
        %1227 = vmin.xlane.f32.xlu0 %v1226
        %v1228 = vpop.xlane.xlu0 %1227
        %vm1229 = vcmp.eq.f32.partialorder %v1226, %v1228
        %v1230 = vsel %vm1229, %v1225, inf
        %1231 = vmin.xlane.f32.xlu0 %v1230
        %v1232 = vpop.xlane.xlu0 %1231
        %v1233 = vcvt.f32.s32 %v1232
        %v1234 = vcvt.f32.s32 %v1228
        %v1235 = vshll.u32 %v1234, 16
        %v1236 = vadd.s32 %v1235, %v1233
        %vm1237 = vcmp.lt.s32.totalorder %v907, %v908
        %v1238 = vsel %vm1237, %v907, %v908
        %v1239 = vand.u32 %v1238, 65535
        %v1240 = vshra.s32 %v1238, 16
        %v1241 = vcvt.s32.f32 %v1239
        %v1242 = vcvt.s32.f32 %v1240
        %1243 = vmin.xlane.f32.xlu0 %v1242
        %v1244 = vpop.xlane.xlu0 %1243
        %vm1245 = vcmp.eq.f32.partialorder %v1242, %v1244
        %v1246 = vsel %vm1245, %v1241, inf
        %1247 = vmin.xlane.f32.xlu0 %v1246
        %v1248 = vpop.xlane.xlu0 %1247
        %v1249 = vcvt.f32.s32 %v1248
        %v1250 = vcvt.f32.s32 %v1244
        %v1251 = vshll.u32 %v1250, 16
        %v1252 = vadd.s32 %v1251, %v1249
        %vm1253 = vcmp.lt.s32.totalorder %v909, %v910
        %v1254 = vsel %vm1253, %v909, %v910
        %v1255 = vand.u32 %v1254, 65535
        %v1256 = vshra.s32 %v1254, 16
        %v1257 = vcvt.s32.f32 %v1255
        %v1258 = vcvt.s32.f32 %v1256
        %1259 = vmin.xlane.f32.xlu0 %v1258
        %v1260 = vpop.xlane.xlu0 %1259
        %vm1261 = vcmp.eq.f32.partialorder %v1258, %v1260
        %v1262 = vsel %vm1261, %v1257, inf
        %1263 = vmin.xlane.f32.xlu0 %v1262
        %v1264 = vpop.xlane.xlu0 %1263
        %v1265 = vcvt.f32.s32 %v1264
        %v1266 = vcvt.f32.s32 %v1260
        %v1267 = vshll.u32 %v1266, 16
        %v1268 = vadd.s32 %v1267, %v1265
        %vm1269 = vcmp.lt.s32.totalorder %v911, %v912
        %v1270 = vsel %vm1269, %v911, %v912
        %v1271 = vand.u32 %v1270, 65535
        %v1272 = vshra.s32 %v1270, 16
        %v1273 = vcvt.s32.f32 %v1271
        %v1274 = vcvt.s32.f32 %v1272
        %1275 = vmin.xlane.f32.xlu0 %v1274
        %v1276 = vpop.xlane.xlu0 %1275
        %vm1277 = vcmp.eq.f32.partialorder %v1274, %v1276
        %v1278 = vsel %vm1277, %v1273, inf
        %1279 = vmin.xlane.f32.xlu0 %v1278
        %v1280 = vpop.xlane.xlu0 %1279
        %v1281 = vcvt.f32.s32 %v1280
        %v1282 = vcvt.f32.s32 %v1276
        %v1283 = vshll.u32 %v1282, 16
        %v1284 = vadd.s32 %v1283, %v1281
        %vm1285 = vcmp.lt.s32.totalorder %v913, %v914
        %v1286 = vsel %vm1285, %v913, %v914
        %v1287 = vand.u32 %v1286, 65535
        %v1288 = vshra.s32 %v1286, 16
        %v1289 = vcvt.s32.f32 %v1287
        %v1290 = vcvt.s32.f32 %v1288
        %1291 = vmin.xlane.f32.xlu0 %v1290
        %v1292 = vpop.xlane.xlu0 %1291
        %vm1293 = vcmp.eq.f32.partialorder %v1290, %v1292
        %v1294 = vsel %vm1293, %v1289, inf
        %1295 = vmin.xlane.f32.xlu0 %v1294
        %v1296 = vpop.xlane.xlu0 %1295
        %v1297 = vcvt.f32.s32 %v1296
        %v1298 = vcvt.f32.s32 %v1292
        %v1299 = vshll.u32 %v1298, 16
        %v1300 = vadd.s32 %v1299, %v1297
        %vm1301 = vcmp.lt.s32.totalorder %v915, %v916
        %v1302 = vsel %vm1301, %v915, %v916
        %v1303 = vand.u32 %v1302, 65535
        %v1304 = vshra.s32 %v1302, 16
        %v1305 = vcvt.s32.f32 %v1303
        %v1306 = vcvt.s32.f32 %v1304
        %1307 = vmin.xlane.f32.xlu0 %v1306
        %v1308 = vpop.xlane.xlu0 %1307
        %vm1309 = vcmp.eq.f32.partialorder %v1306, %v1308
        %v1310 = vsel %vm1309, %v1305, inf
        %1311 = vmin.xlane.f32.xlu0 %v1310
        %v1312 = vpop.xlane.xlu0 %1311
        %v1313 = vcvt.f32.s32 %v1312
        %v1314 = vcvt.f32.s32 %v1308
        %v1315 = vshll.u32 %v1314, 16
        %v1316 = vadd.s32 %v1315, %v1313
        %vm1317 = vcmp.lt.s32.totalorder %v917, %v918
        %v1318 = vsel %vm1317, %v917, %v918
        %v1319 = vand.u32 %v1318, 65535
        %v1320 = vshra.s32 %v1318, 16
        %v1321 = vcvt.s32.f32 %v1319
        %v1322 = vcvt.s32.f32 %v1320
        %1323 = vmin.xlane.f32.xlu0 %v1322
        %v1324 = vpop.xlane.xlu0 %1323
        %vm1325 = vcmp.eq.f32.partialorder %v1322, %v1324
        %v1326 = vsel %vm1325, %v1321, inf
        %1327 = vmin.xlane.f32.xlu0 %v1326
        %v1328 = vpop.xlane.xlu0 %1327
        %v1329 = vcvt.f32.s32 %v1328
        %v1330 = vcvt.f32.s32 %v1324
        %v1331 = vshll.u32 %v1330, 16
        %v1332 = vadd.s32 %v1331, %v1329
        %vm1333 = vcmp.lt.s32.totalorder %v919, %v920
        %v1334 = vsel %vm1333, %v919, %v920
        %v1335 = vand.u32 %v1334, 65535
        %v1336 = vshra.s32 %v1334, 16
        %v1337 = vcvt.s32.f32 %v1335
        %v1338 = vcvt.s32.f32 %v1336
        %1339 = vmin.xlane.f32.xlu0 %v1338
        %v1340 = vpop.xlane.xlu0 %1339
        %vm1341 = vcmp.eq.f32.partialorder %v1338, %v1340
        %v1342 = vsel %vm1341, %v1337, inf
        %1343 = vmin.xlane.f32.xlu0 %v1342
        %v1344 = vpop.xlane.xlu0 %1343
        %v1345 = vcvt.f32.s32 %v1344
        %v1346 = vcvt.f32.s32 %v1340
        %v1347 = vshll.u32 %v1346, 16
        %v1348 = vadd.s32 %v1347, %v1345
        %vm1349 = vcmp.lt.s32.totalorder %v921, %v922
        %v1350 = vsel %vm1349, %v921, %v922
        %v1351 = vand.u32 %v1350, 65535
        %v1352 = vshra.s32 %v1350, 16
        %v1353 = vcvt.s32.f32 %v1351
        %v1354 = vcvt.s32.f32 %v1352
        %1355 = vmin.xlane.f32.xlu0 %v1354
        %v1356 = vpop.xlane.xlu0 %1355
        %vm1357 = vcmp.eq.f32.partialorder %v1354, %v1356
        %v1358 = vsel %vm1357, %v1353, inf
        %1359 = vmin.xlane.f32.xlu0 %v1358
        %v1360 = vpop.xlane.xlu0 %1359
        %v1361 = vcvt.f32.s32 %v1360
        %v1362 = vcvt.f32.s32 %v1356
        %v1363 = vshll.u32 %v1362, 16
        %v1364 = vadd.s32 %v1363, %v1361
        %vm1365 = vcmp.lt.s32.totalorder %v923, %v924
        %v1366 = vsel %vm1365, %v923, %v924
        %v1367 = vand.u32 %v1366, 65535
        %v1368 = vshra.s32 %v1366, 16
        %v1369 = vcvt.s32.f32 %v1367
        %v1370 = vcvt.s32.f32 %v1368
        %1371 = vmin.xlane.f32.xlu0 %v1370
        %v1372 = vpop.xlane.xlu0 %1371
        %vm1373 = vcmp.eq.f32.partialorder %v1370, %v1372
        %v1374 = vsel %vm1373, %v1369, inf
        %1375 = vmin.xlane.f32.xlu0 %v1374
        %v1376 = vpop.xlane.xlu0 %1375
        %v1377 = vcvt.f32.s32 %v1376
        %v1378 = vcvt.f32.s32 %v1372
        %v1379 = vshll.u32 %v1378, 16
        %v1380 = vadd.s32 %v1379, %v1377
        %vm1381 = vcmp.lt.s32.totalorder %v925, %v926
        %v1382 = vsel %vm1381, %v925, %v926
        %v1383 = vand.u32 %v1382, 65535
        %v1384 = vshra.s32 %v1382, 16
        %v1385 = vcvt.s32.f32 %v1383
        %v1386 = vcvt.s32.f32 %v1384
        %1387 = vmin.xlane.f32.xlu0 %v1386
        %v1388 = vpop.xlane.xlu0 %1387
        %vm1389 = vcmp.eq.f32.partialorder %v1386, %v1388
        %v1390 = vsel %vm1389, %v1385, inf
        %1391 = vmin.xlane.f32.xlu0 %v1390
        %v1392 = vpop.xlane.xlu0 %1391
        %v1393 = vcvt.f32.s32 %v1392
        %v1394 = vcvt.f32.s32 %v1388
        %v1395 = vshll.u32 %v1394, 16
        %v1396 = vadd.s32 %v1395, %v1393
        %vm1397 = vcmp.lt.s32.totalorder %v927, %v928
        %v1398 = vsel %vm1397, %v927, %v928
        %v1399 = vand.u32 %v1398, 65535
        %v1400 = vshra.s32 %v1398, 16
        %v1401 = vcvt.s32.f32 %v1399
        %v1402 = vcvt.s32.f32 %v1400
        %1403 = vmin.xlane.f32.xlu0 %v1402
        %v1404 = vpop.xlane.xlu0 %1403
        %vm1405 = vcmp.eq.f32.partialorder %v1402, %v1404
        %v1406 = vsel %vm1405, %v1401, inf
        %1407 = vmin.xlane.f32.xlu0 %v1406
        %v1408 = vpop.xlane.xlu0 %1407
        %v1409 = vcvt.f32.s32 %v1408
        %v1410 = vcvt.f32.s32 %v1404
        %v1411 = vshll.u32 %v1410, 16
        %v1412 = vadd.s32 %v1411, %v1409
        %vm1413 = vcmp.lt.s32.totalorder %v929, %v930
        %v1414 = vsel %vm1413, %v929, %v930
        %v1415 = vand.u32 %v1414, 65535
        %v1416 = vshra.s32 %v1414, 16
        %v1417 = vcvt.s32.f32 %v1415
        %v1418 = vcvt.s32.f32 %v1416
        %1419 = vmin.xlane.f32.xlu0 %v1418
        %v1420 = vpop.xlane.xlu0 %1419
        %vm1421 = vcmp.eq.f32.partialorder %v1418, %v1420
        %v1422 = vsel %vm1421, %v1417, inf
        %1423 = vmin.xlane.f32.xlu0 %v1422
        %v1424 = vpop.xlane.xlu0 %1423
        %v1425 = vcvt.f32.s32 %v1424
        %v1426 = vcvt.f32.s32 %v1420
        %v1427 = vshll.u32 %v1426, 16
        %v1428 = vadd.s32 %v1427, %v1425
        %vm1429 = vcmp.lt.s32.totalorder %v931, %v932
        %v1430 = vsel %vm1429, %v931, %v932
        %v1431 = vand.u32 %v1430, 65535
        %v1432 = vshra.s32 %v1430, 16
        %v1433 = vcvt.s32.f32 %v1431
        %v1434 = vcvt.s32.f32 %v1432
        %1435 = vmin.xlane.f32.xlu0 %v1434
        %v1436 = vpop.xlane.xlu0 %1435
        %vm1437 = vcmp.eq.f32.partialorder %v1434, %v1436
        %v1438 = vsel %vm1437, %v1433, inf
        %1439 = vmin.xlane.f32.xlu0 %v1438
        %v1440 = vpop.xlane.xlu0 %1439
        %v1441 = vcvt.f32.s32 %v1440
        %v1442 = vcvt.f32.s32 %v1436
        %v1443 = vshll.u32 %v1442, 16
        %v1444 = vadd.s32 %v1443, %v1441
        %vm1445 = vcmp.eq.s32.totalorder %v707, %v948
        %vm1446 = vcmp.eq.s32.totalorder %v708, %v948
        %vm1447 = vcmp.eq.s32.totalorder %v707, %v964
        %vm1448 = vcmp.eq.s32.totalorder %v708, %v964
        %vm1449 = vcmp.eq.s32.totalorder %v707, %v980
        %vm1450 = vcmp.eq.s32.totalorder %v708, %v980
        %vm1451 = vcmp.eq.s32.totalorder %v707, %v996
        %vm1452 = vcmp.eq.s32.totalorder %v708, %v996
        %vm1453 = vcmp.eq.s32.totalorder %v707, %v1012
        %vm1454 = vcmp.eq.s32.totalorder %v708, %v1012
        %vm1455 = vcmp.eq.s32.totalorder %v707, %v1028
        %vm1456 = vcmp.eq.s32.totalorder %v708, %v1028
        %vm1457 = vcmp.eq.s32.totalorder %v707, %v1044
        %vm1458 = vcmp.eq.s32.totalorder %v708, %v1044
        %vm1459 = vcmp.eq.s32.totalorder %v707, %v1060
        %vm1460 = vcmp.eq.s32.totalorder %v708, %v1060
        %vm1461 = vcmp.eq.s32.totalorder %v707, %v1076
        %vm1462 = vcmp.eq.s32.totalorder %v708, %v1076
        %vm1463 = vcmp.eq.s32.totalorder %v707, %v1092
        %vm1464 = vcmp.eq.s32.totalorder %v708, %v1092
        %vm1465 = vcmp.eq.s32.totalorder %v707, %v1108
        %vm1466 = vcmp.eq.s32.totalorder %v708, %v1108
        %vm1467 = vcmp.eq.s32.totalorder %v707, %v1124
        %vm1468 = vcmp.eq.s32.totalorder %v708, %v1124
        %vm1469 = vcmp.eq.s32.totalorder %v707, %v1140
        %vm1470 = vcmp.eq.s32.totalorder %v708, %v1140
        %vm1471 = vcmp.eq.s32.totalorder %v707, %v1156
        %vm1472 = vcmp.eq.s32.totalorder %v708, %v1156
        %vm1473 = vcmp.eq.s32.totalorder %v707, %v1172
        %vm1474 = vcmp.eq.s32.totalorder %v708, %v1172
        %vm1475 = vcmp.eq.s32.totalorder %v707, %v1188
        %vm1476 = vcmp.eq.s32.totalorder %v708, %v1188
        %vm1477 = vcmp.eq.s32.totalorder %v707, %v1204
        %vm1478 = vcmp.eq.s32.totalorder %v708, %v1204
        %vm1479 = vcmp.eq.s32.totalorder %v707, %v1220
        %vm1480 = vcmp.eq.s32.totalorder %v708, %v1220
        %vm1481 = vcmp.eq.s32.totalorder %v707, %v1236
        %vm1482 = vcmp.eq.s32.totalorder %v708, %v1236
        %vm1483 = vcmp.eq.s32.totalorder %v707, %v1252
        %vm1484 = vcmp.eq.s32.totalorder %v708, %v1252
        %vm1485 = vcmp.eq.s32.totalorder %v707, %v1268
        %vm1486 = vcmp.eq.s32.totalorder %v708, %v1268
        %vm1487 = vcmp.eq.s32.totalorder %v707, %v1284
        %vm1488 = vcmp.eq.s32.totalorder %v708, %v1284
        %vm1489 = vcmp.eq.s32.totalorder %v707, %v1300
        %vm1490 = vcmp.eq.s32.totalorder %v708, %v1300
        %vm1491 = vcmp.eq.s32.totalorder %v707, %v1316
        %vm1492 = vcmp.eq.s32.totalorder %v708, %v1316
        %vm1493 = vcmp.eq.s32.totalorder %v707, %v1332
        %vm1494 = vcmp.eq.s32.totalorder %v708, %v1332
        %vm1495 = vcmp.eq.s32.totalorder %v707, %v1348
        %vm1496 = vcmp.eq.s32.totalorder %v708, %v1348
        %vm1497 = vcmp.eq.s32.totalorder %v707, %v1364
        %vm1498 = vcmp.eq.s32.totalorder %v708, %v1364
        %vm1499 = vcmp.eq.s32.totalorder %v707, %v1380
        %vm1500 = vcmp.eq.s32.totalorder %v708, %v1380
        %vm1501 = vcmp.eq.s32.totalorder %v707, %v1396
        %vm1502 = vcmp.eq.s32.totalorder %v708, %v1396
        %vm1503 = vcmp.eq.s32.totalorder %v707, %v1412
        %vm1504 = vcmp.eq.s32.totalorder %v708, %v1412
        %vm1505 = vcmp.eq.s32.totalorder %v707, %v1428
        %vm1506 = vcmp.eq.s32.totalorder %v708, %v1428
        %vm1507 = vcmp.eq.s32.totalorder %v707, %v1444
        %vm1508 = vcmp.eq.s32.totalorder %v708, %v1444
        %v1509 = vsel %vm1445, 1.0, 0.0
        %v1510 = vsel %vm1446, 1.0, 0.0
        %v1511 = vsel %vm1447, 1.0, 0.0
        %v1512 = vsel %vm1448, 1.0, 0.0
        %v1513 = vsel %vm1449, 1.0, 0.0
        %v1514 = vsel %vm1450, 1.0, 0.0
        %v1515 = vsel %vm1451, 1.0, 0.0
        %v1516 = vsel %vm1452, 1.0, 0.0
        %v1517 = vsel %vm1453, 1.0, 0.0
        %v1518 = vsel %vm1454, 1.0, 0.0
        %v1519 = vsel %vm1455, 1.0, 0.0
        %v1520 = vsel %vm1456, 1.0, 0.0
        %v1521 = vsel %vm1457, 1.0, 0.0
        %v1522 = vsel %vm1458, 1.0, 0.0
        %v1523 = vsel %vm1459, 1.0, 0.0
        %v1524 = vsel %vm1460, 1.0, 0.0
        %v1525 = vsel %vm1461, 1.0, 0.0
        %v1526 = vsel %vm1462, 1.0, 0.0
        %v1527 = vsel %vm1463, 1.0, 0.0
        %v1528 = vsel %vm1464, 1.0, 0.0
        %v1529 = vsel %vm1465, 1.0, 0.0
        %v1530 = vsel %vm1466, 1.0, 0.0
        %v1531 = vsel %vm1467, 1.0, 0.0
        %v1532 = vsel %vm1468, 1.0, 0.0
        %v1533 = vsel %vm1469, 1.0, 0.0
        %v1534 = vsel %vm1470, 1.0, 0.0
        %v1535 = vsel %vm1471, 1.0, 0.0
        %v1536 = vsel %vm1472, 1.0, 0.0
        %v1537 = vsel %vm1473, 1.0, 0.0
        %v1538 = vsel %vm1474, 1.0, 0.0
        %v1539 = vsel %vm1475, 1.0, 0.0
        %v1540 = vsel %vm1476, 1.0, 0.0
        %v1541 = vsel %vm1477, 1.0, 0.0
        %v1542 = vsel %vm1478, 1.0, 0.0
        %v1543 = vsel %vm1479, 1.0, 0.0
        %v1544 = vsel %vm1480, 1.0, 0.0
        %v1545 = vsel %vm1481, 1.0, 0.0
        %v1546 = vsel %vm1482, 1.0, 0.0
        %v1547 = vsel %vm1483, 1.0, 0.0
        %v1548 = vsel %vm1484, 1.0, 0.0
        %v1549 = vsel %vm1485, 1.0, 0.0
        %v1550 = vsel %vm1486, 1.0, 0.0
        %v1551 = vsel %vm1487, 1.0, 0.0
        %v1552 = vsel %vm1488, 1.0, 0.0
        %v1553 = vsel %vm1489, 1.0, 0.0
        %v1554 = vsel %vm1490, 1.0, 0.0
        %v1555 = vsel %vm1491, 1.0, 0.0
        %v1556 = vsel %vm1492, 1.0, 0.0
        %v1557 = vsel %vm1493, 1.0, 0.0
        %v1558 = vsel %vm1494, 1.0, 0.0
        %v1559 = vsel %vm1495, 1.0, 0.0
        %v1560 = vsel %vm1496, 1.0, 0.0
        %v1561 = vsel %vm1497, 1.0, 0.0
        %v1562 = vsel %vm1498, 1.0, 0.0
        %v1563 = vsel %vm1499, 1.0, 0.0
        %v1564 = vsel %vm1500, 1.0, 0.0
        %v1565 = vsel %vm1501, 1.0, 0.0
        %v1566 = vsel %vm1502, 1.0, 0.0
        %v1567 = vsel %vm1503, 1.0, 0.0
        %v1568 = vsel %vm1504, 1.0, 0.0
        %v1569 = vsel %vm1505, 1.0, 0.0
        %v1570 = vsel %vm1506, 1.0, 0.0
        %v1571 = vsel %vm1507, 1.0, 0.0
        %v1572 = vsel %vm1508, 1.0, 0.0
        %v1573 = vsel %vm1445, -1e+30, %v516
        %v1574 = vsel %vm1446, -1e+30, %v518
        %v1575 = vsel %vm1447, -1e+30, %v522
        %v1576 = vsel %vm1448, -1e+30, %v524
        %v1577 = vsel %vm1449, -1e+30, %v528
        %v1578 = vsel %vm1450, -1e+30, %v530
        %v1579 = vsel %vm1451, -1e+30, %v534
        %v1580 = vsel %vm1452, -1e+30, %v536
        %v1581 = vsel %vm1453, -1e+30, %v540
        %v1582 = vsel %vm1454, -1e+30, %v542
        %v1583 = vsel %vm1455, -1e+30, %v546
        %v1584 = vsel %vm1456, -1e+30, %v548
        %v1585 = vsel %vm1457, -1e+30, %v552
        %v1586 = vsel %vm1458, -1e+30, %v554
        %v1587 = vsel %vm1459, -1e+30, %v558
        %v1588 = vsel %vm1460, -1e+30, %v560
        %v1589 = vsel %vm1461, -1e+30, %v564
        %v1590 = vsel %vm1462, -1e+30, %v566
        %v1591 = vsel %vm1463, -1e+30, %v570
        %v1592 = vsel %vm1464, -1e+30, %v572
        %v1593 = vsel %vm1465, -1e+30, %v576
        %v1594 = vsel %vm1466, -1e+30, %v578
        %v1595 = vsel %vm1467, -1e+30, %v582
        %v1596 = vsel %vm1468, -1e+30, %v584
        %v1597 = vsel %vm1469, -1e+30, %v588
        %v1598 = vsel %vm1470, -1e+30, %v590
        %v1599 = vsel %vm1471, -1e+30, %v594
        %v1600 = vsel %vm1472, -1e+30, %v596
        %v1601 = vsel %vm1473, -1e+30, %v600
        %v1602 = vsel %vm1474, -1e+30, %v602
        %v1603 = vsel %vm1475, -1e+30, %v606
        %v1604 = vsel %vm1476, -1e+30, %v608
        %v1605 = vsel %vm1477, -1e+30, %v612
        %v1606 = vsel %vm1478, -1e+30, %v614
        %v1607 = vsel %vm1479, -1e+30, %v618
        %v1608 = vsel %vm1480, -1e+30, %v620
        %v1609 = vsel %vm1481, -1e+30, %v624
        %v1610 = vsel %vm1482, -1e+30, %v626
        %v1611 = vsel %vm1483, -1e+30, %v630
        %v1612 = vsel %vm1484, -1e+30, %v632
        %v1613 = vsel %vm1485, -1e+30, %v636
        %v1614 = vsel %vm1486, -1e+30, %v638
        %v1615 = vsel %vm1487, -1e+30, %v642
        %v1616 = vsel %vm1488, -1e+30, %v644
        %v1617 = vsel %vm1489, -1e+30, %v648
        %v1618 = vsel %vm1490, -1e+30, %v650
        %v1619 = vsel %vm1491, -1e+30, %v654
        %v1620 = vsel %vm1492, -1e+30, %v656
        %v1621 = vsel %vm1493, -1e+30, %v660
        %v1622 = vsel %vm1494, -1e+30, %v662
        %v1623 = vsel %vm1495, -1e+30, %v666
        %v1624 = vsel %vm1496, -1e+30, %v668
        %v1625 = vsel %vm1497, -1e+30, %v672
        %v1626 = vsel %vm1498, -1e+30, %v674
        %v1627 = vsel %vm1499, -1e+30, %v678
        %v1628 = vsel %vm1500, -1e+30, %v680
        %v1629 = vsel %vm1501, -1e+30, %v684
        %v1630 = vsel %vm1502, -1e+30, %v686
        %v1631 = vsel %vm1503, -1e+30, %v690
        %v1632 = vsel %vm1504, -1e+30, %v692
        %v1633 = vsel %vm1505, -1e+30, %v696
        %v1634 = vsel %vm1506, -1e+30, %v698
        %v1635 = vsel %vm1507, -1e+30, %v702
        %v1636 = vsel %vm1508, -1e+30, %v704
        %v1637 = vmax.f32 %v1573, %v1574
        %1638 = vmax.xlane.f32.xlu0 %v1637
        %v1639 = vpop.xlane.xlu0 %1638
        %v1640 = vmax.f32 %v1575, %v1576
        %1641 = vmax.xlane.f32.xlu0 %v1640
        %v1642 = vpop.xlane.xlu0 %1641
        %v1643 = vmax.f32 %v1577, %v1578
        %1644 = vmax.xlane.f32.xlu0 %v1643
        %v1645 = vpop.xlane.xlu0 %1644
        %v1646 = vmax.f32 %v1579, %v1580
        %1647 = vmax.xlane.f32.xlu0 %v1646
        %v1648 = vpop.xlane.xlu0 %1647
        %v1649 = vmax.f32 %v1581, %v1582
        %1650 = vmax.xlane.f32.xlu0 %v1649
        %v1651 = vpop.xlane.xlu0 %1650
        %v1652 = vmax.f32 %v1583, %v1584
        %1653 = vmax.xlane.f32.xlu0 %v1652
        %v1654 = vpop.xlane.xlu0 %1653
        %v1655 = vmax.f32 %v1585, %v1586
        %1656 = vmax.xlane.f32.xlu0 %v1655
        %v1657 = vpop.xlane.xlu0 %1656
        %v1658 = vmax.f32 %v1587, %v1588
        %1659 = vmax.xlane.f32.xlu0 %v1658
        %v1660 = vpop.xlane.xlu0 %1659
        %v1661 = vmax.f32 %v1589, %v1590
        %1662 = vmax.xlane.f32.xlu0 %v1661
        %v1663 = vpop.xlane.xlu0 %1662
        %v1664 = vmax.f32 %v1591, %v1592
        %1665 = vmax.xlane.f32.xlu0 %v1664
        %v1666 = vpop.xlane.xlu0 %1665
        %v1667 = vmax.f32 %v1593, %v1594
        %1668 = vmax.xlane.f32.xlu0 %v1667
        %v1669 = vpop.xlane.xlu0 %1668
        %v1670 = vmax.f32 %v1595, %v1596
        %1671 = vmax.xlane.f32.xlu0 %v1670
        %v1672 = vpop.xlane.xlu0 %1671
        %v1673 = vmax.f32 %v1597, %v1598
        %1674 = vmax.xlane.f32.xlu0 %v1673
        %v1675 = vpop.xlane.xlu0 %1674
        %v1676 = vmax.f32 %v1599, %v1600
        %1677 = vmax.xlane.f32.xlu0 %v1676
        %v1678 = vpop.xlane.xlu0 %1677
        %v1679 = vmax.f32 %v1601, %v1602
        %1680 = vmax.xlane.f32.xlu0 %v1679
        %v1681 = vpop.xlane.xlu0 %1680
        %v1682 = vmax.f32 %v1603, %v1604
        %1683 = vmax.xlane.f32.xlu0 %v1682
        %v1684 = vpop.xlane.xlu0 %1683
        %v1685 = vmax.f32 %v1605, %v1606
        %1686 = vmax.xlane.f32.xlu0 %v1685
        %v1687 = vpop.xlane.xlu0 %1686
        %v1688 = vmax.f32 %v1607, %v1608
        %1689 = vmax.xlane.f32.xlu0 %v1688
        %v1690 = vpop.xlane.xlu0 %1689
        %v1691 = vmax.f32 %v1609, %v1610
        %1692 = vmax.xlane.f32.xlu0 %v1691
        %v1693 = vpop.xlane.xlu0 %1692
        %v1694 = vmax.f32 %v1611, %v1612
        %1695 = vmax.xlane.f32.xlu0 %v1694
        %v1696 = vpop.xlane.xlu0 %1695
        %v1697 = vmax.f32 %v1613, %v1614
        %1698 = vmax.xlane.f32.xlu0 %v1697
        %v1699 = vpop.xlane.xlu0 %1698
        %v1700 = vmax.f32 %v1615, %v1616
        %1701 = vmax.xlane.f32.xlu0 %v1700
        %v1702 = vpop.xlane.xlu0 %1701
        %v1703 = vmax.f32 %v1617, %v1618
        %1704 = vmax.xlane.f32.xlu0 %v1703
        %v1705 = vpop.xlane.xlu0 %1704
        %v1706 = vmax.f32 %v1619, %v1620
        %1707 = vmax.xlane.f32.xlu0 %v1706
        %v1708 = vpop.xlane.xlu0 %1707
        %v1709 = vmax.f32 %v1621, %v1622
        %1710 = vmax.xlane.f32.xlu0 %v1709
        %v1711 = vpop.xlane.xlu0 %1710
        %v1712 = vmax.f32 %v1623, %v1624
        %1713 = vmax.xlane.f32.xlu0 %v1712
        %v1714 = vpop.xlane.xlu0 %1713
        %v1715 = vmax.f32 %v1625, %v1626
        %1716 = vmax.xlane.f32.xlu0 %v1715
        %v1717 = vpop.xlane.xlu0 %1716
        %v1718 = vmax.f32 %v1627, %v1628
        %1719 = vmax.xlane.f32.xlu0 %v1718
        %v1720 = vpop.xlane.xlu0 %1719
        %v1721 = vmax.f32 %v1629, %v1630
        %1722 = vmax.xlane.f32.xlu0 %v1721
        %v1723 = vpop.xlane.xlu0 %1722
        %v1724 = vmax.f32 %v1631, %v1632
        %1725 = vmax.xlane.f32.xlu0 %v1724
        %v1726 = vpop.xlane.xlu0 %1725
        %v1727 = vmax.f32 %v1633, %v1634
        %1728 = vmax.xlane.f32.xlu0 %v1727
        %v1729 = vpop.xlane.xlu0 %1728
        %v1730 = vmax.f32 %v1635, %v1636
        %1731 = vmax.xlane.f32.xlu0 %v1730
        %v1732 = vpop.xlane.xlu0 %1731
        %vm1733 = vcmp.eq.f32.partialorder %v1573, %v1639
        %vm1734 = vcmp.eq.f32.partialorder %v1574, %v1639
        %vm1735 = vcmp.eq.f32.partialorder %v1575, %v1642
        %vm1736 = vcmp.eq.f32.partialorder %v1576, %v1642
        %vm1737 = vcmp.eq.f32.partialorder %v1577, %v1645
        %vm1738 = vcmp.eq.f32.partialorder %v1578, %v1645
        %vm1739 = vcmp.eq.f32.partialorder %v1579, %v1648
        %vm1740 = vcmp.eq.f32.partialorder %v1580, %v1648
        %vm1741 = vcmp.eq.f32.partialorder %v1581, %v1651
        %vm1742 = vcmp.eq.f32.partialorder %v1582, %v1651
        %vm1743 = vcmp.eq.f32.partialorder %v1583, %v1654
        %vm1744 = vcmp.eq.f32.partialorder %v1584, %v1654
        %vm1745 = vcmp.eq.f32.partialorder %v1585, %v1657
        %vm1746 = vcmp.eq.f32.partialorder %v1586, %v1657
        %vm1747 = vcmp.eq.f32.partialorder %v1587, %v1660
        %vm1748 = vcmp.eq.f32.partialorder %v1588, %v1660
        %vm1749 = vcmp.eq.f32.partialorder %v1589, %v1663
        %vm1750 = vcmp.eq.f32.partialorder %v1590, %v1663
        %vm1751 = vcmp.eq.f32.partialorder %v1591, %v1666
        %vm1752 = vcmp.eq.f32.partialorder %v1592, %v1666
        %vm1753 = vcmp.eq.f32.partialorder %v1593, %v1669
        %vm1754 = vcmp.eq.f32.partialorder %v1594, %v1669
        %vm1755 = vcmp.eq.f32.partialorder %v1595, %v1672
        %vm1756 = vcmp.eq.f32.partialorder %v1596, %v1672
        %vm1757 = vcmp.eq.f32.partialorder %v1597, %v1675
        %vm1758 = vcmp.eq.f32.partialorder %v1598, %v1675
        %vm1759 = vcmp.eq.f32.partialorder %v1599, %v1678
        %vm1760 = vcmp.eq.f32.partialorder %v1600, %v1678
        %vm1761 = vcmp.eq.f32.partialorder %v1601, %v1681
        %vm1762 = vcmp.eq.f32.partialorder %v1602, %v1681
        %vm1763 = vcmp.eq.f32.partialorder %v1603, %v1684
        %vm1764 = vcmp.eq.f32.partialorder %v1604, %v1684
        %vm1765 = vcmp.eq.f32.partialorder %v1605, %v1687
        %vm1766 = vcmp.eq.f32.partialorder %v1606, %v1687
        %vm1767 = vcmp.eq.f32.partialorder %v1607, %v1690
        %vm1768 = vcmp.eq.f32.partialorder %v1608, %v1690
        %vm1769 = vcmp.eq.f32.partialorder %v1609, %v1693
        %vm1770 = vcmp.eq.f32.partialorder %v1610, %v1693
        %vm1771 = vcmp.eq.f32.partialorder %v1611, %v1696
        %vm1772 = vcmp.eq.f32.partialorder %v1612, %v1696
        %vm1773 = vcmp.eq.f32.partialorder %v1613, %v1699
        %vm1774 = vcmp.eq.f32.partialorder %v1614, %v1699
        %vm1775 = vcmp.eq.f32.partialorder %v1615, %v1702
        %vm1776 = vcmp.eq.f32.partialorder %v1616, %v1702
        %vm1777 = vcmp.eq.f32.partialorder %v1617, %v1705
        %vm1778 = vcmp.eq.f32.partialorder %v1618, %v1705
        %vm1779 = vcmp.eq.f32.partialorder %v1619, %v1708
        %vm1780 = vcmp.eq.f32.partialorder %v1620, %v1708
        %vm1781 = vcmp.eq.f32.partialorder %v1621, %v1711
        %vm1782 = vcmp.eq.f32.partialorder %v1622, %v1711
        %vm1783 = vcmp.eq.f32.partialorder %v1623, %v1714
        %vm1784 = vcmp.eq.f32.partialorder %v1624, %v1714
        %vm1785 = vcmp.eq.f32.partialorder %v1625, %v1717
        %vm1786 = vcmp.eq.f32.partialorder %v1626, %v1717
        %vm1787 = vcmp.eq.f32.partialorder %v1627, %v1720
        %vm1788 = vcmp.eq.f32.partialorder %v1628, %v1720
        %vm1789 = vcmp.eq.f32.partialorder %v1629, %v1723
        %vm1790 = vcmp.eq.f32.partialorder %v1630, %v1723
        %vm1791 = vcmp.eq.f32.partialorder %v1631, %v1726
        %vm1792 = vcmp.eq.f32.partialorder %v1632, %v1726
        %vm1793 = vcmp.eq.f32.partialorder %v1633, %v1729
        %vm1794 = vcmp.eq.f32.partialorder %v1634, %v1729
        %vm1795 = vcmp.eq.f32.partialorder %v1635, %v1732
        %vm1796 = vcmp.eq.f32.partialorder %v1636, %v1732
        %v1797 = vsel %vm1733, %v707, 256
        %v1798 = vsel %vm1734, %v708, 256
        %v1799 = vsel %vm1735, %v707, 256
        %v1800 = vsel %vm1736, %v708, 256
        %v1801 = vsel %vm1737, %v707, 256
        %v1802 = vsel %vm1738, %v708, 256
        %v1803 = vsel %vm1739, %v707, 256
        %v1804 = vsel %vm1740, %v708, 256
        %v1805 = vsel %vm1741, %v707, 256
        %v1806 = vsel %vm1742, %v708, 256
        %v1807 = vsel %vm1743, %v707, 256
        %v1808 = vsel %vm1744, %v708, 256
        %v1809 = vsel %vm1745, %v707, 256
        %v1810 = vsel %vm1746, %v708, 256
        %v1811 = vsel %vm1747, %v707, 256
        %v1812 = vsel %vm1748, %v708, 256
        %v1813 = vsel %vm1749, %v707, 256
        %v1814 = vsel %vm1750, %v708, 256
        %v1815 = vsel %vm1751, %v707, 256
        %v1816 = vsel %vm1752, %v708, 256
        %v1817 = vsel %vm1753, %v707, 256
        %v1818 = vsel %vm1754, %v708, 256
        %v1819 = vsel %vm1755, %v707, 256
        %v1820 = vsel %vm1756, %v708, 256
        %v1821 = vsel %vm1757, %v707, 256
        %v1822 = vsel %vm1758, %v708, 256
        %v1823 = vsel %vm1759, %v707, 256
        %v1824 = vsel %vm1760, %v708, 256
        %v1825 = vsel %vm1761, %v707, 256
        %v1826 = vsel %vm1762, %v708, 256
        %v1827 = vsel %vm1763, %v707, 256
        %v1828 = vsel %vm1764, %v708, 256
        %v1829 = vsel %vm1765, %v707, 256
        %v1830 = vsel %vm1766, %v708, 256
        %v1831 = vsel %vm1767, %v707, 256
        %v1832 = vsel %vm1768, %v708, 256
        %v1833 = vsel %vm1769, %v707, 256
        %v1834 = vsel %vm1770, %v708, 256
        %v1835 = vsel %vm1771, %v707, 256
        %v1836 = vsel %vm1772, %v708, 256
        %v1837 = vsel %vm1773, %v707, 256
        %v1838 = vsel %vm1774, %v708, 256
        %v1839 = vsel %vm1775, %v707, 256
        %v1840 = vsel %vm1776, %v708, 256
        %v1841 = vsel %vm1777, %v707, 256
        %v1842 = vsel %vm1778, %v708, 256
        %v1843 = vsel %vm1779, %v707, 256
        %v1844 = vsel %vm1780, %v708, 256
        %v1845 = vsel %vm1781, %v707, 256
        %v1846 = vsel %vm1782, %v708, 256
        %v1847 = vsel %vm1783, %v707, 256
        %v1848 = vsel %vm1784, %v708, 256
        %v1849 = vsel %vm1785, %v707, 256
        %v1850 = vsel %vm1786, %v708, 256
        %v1851 = vsel %vm1787, %v707, 256
        %v1852 = vsel %vm1788, %v708, 256
        %v1853 = vsel %vm1789, %v707, 256
        %v1854 = vsel %vm1790, %v708, 256
        %v1855 = vsel %vm1791, %v707, 256
        %v1856 = vsel %vm1792, %v708, 256
        %v1857 = vsel %vm1793, %v707, 256
        %v1858 = vsel %vm1794, %v708, 256
        %v1859 = vsel %vm1795, %v707, 256
        %v1860 = vsel %vm1796, %v708, 256
        %vm1861 = vcmp.lt.s32.totalorder %v1797, %v1798
        %v1862 = vsel %vm1861, %v1797, %v1798
        %v1863 = vand.u32 %v1862, 65535
        %v1864 = vshra.s32 %v1862, 16
        %v1865 = vcvt.s32.f32 %v1863
        %v1866 = vcvt.s32.f32 %v1864
        %1867 = vmin.xlane.f32.xlu0 %v1866
        %v1868 = vpop.xlane.xlu0 %1867
        %vm1869 = vcmp.eq.f32.partialorder %v1866, %v1868
        %v1870 = vsel %vm1869, %v1865, inf
        %1871 = vmin.xlane.f32.xlu0 %v1870
        %v1872 = vpop.xlane.xlu0 %1871
        %v1873 = vcvt.f32.s32 %v1872
        %v1874 = vcvt.f32.s32 %v1868
        %v1875 = vshll.u32 %v1874, 16
        %v1876 = vadd.s32 %v1875, %v1873
        %vm1877 = vcmp.lt.s32.totalorder %v1799, %v1800
        %v1878 = vsel %vm1877, %v1799, %v1800
        %v1879 = vand.u32 %v1878, 65535
        %v1880 = vshra.s32 %v1878, 16
        %v1881 = vcvt.s32.f32 %v1879
        %v1882 = vcvt.s32.f32 %v1880
        %1883 = vmin.xlane.f32.xlu0 %v1882
        %v1884 = vpop.xlane.xlu0 %1883
        %vm1885 = vcmp.eq.f32.partialorder %v1882, %v1884
        %v1886 = vsel %vm1885, %v1881, inf
        %1887 = vmin.xlane.f32.xlu0 %v1886
        %v1888 = vpop.xlane.xlu0 %1887
        %v1889 = vcvt.f32.s32 %v1888
        %v1890 = vcvt.f32.s32 %v1884
        %v1891 = vshll.u32 %v1890, 16
        %v1892 = vadd.s32 %v1891, %v1889
        %vm1893 = vcmp.lt.s32.totalorder %v1801, %v1802
        %v1894 = vsel %vm1893, %v1801, %v1802
        %v1895 = vand.u32 %v1894, 65535
        %v1896 = vshra.s32 %v1894, 16
        %v1897 = vcvt.s32.f32 %v1895
        %v1898 = vcvt.s32.f32 %v1896
        %1899 = vmin.xlane.f32.xlu0 %v1898
        %v1900 = vpop.xlane.xlu0 %1899
        %vm1901 = vcmp.eq.f32.partialorder %v1898, %v1900
        %v1902 = vsel %vm1901, %v1897, inf
        %1903 = vmin.xlane.f32.xlu0 %v1902
        %v1904 = vpop.xlane.xlu0 %1903
        %v1905 = vcvt.f32.s32 %v1904
        %v1906 = vcvt.f32.s32 %v1900
        %v1907 = vshll.u32 %v1906, 16
        %v1908 = vadd.s32 %v1907, %v1905
        %vm1909 = vcmp.lt.s32.totalorder %v1803, %v1804
        %v1910 = vsel %vm1909, %v1803, %v1804
        %v1911 = vand.u32 %v1910, 65535
        %v1912 = vshra.s32 %v1910, 16
        %v1913 = vcvt.s32.f32 %v1911
        %v1914 = vcvt.s32.f32 %v1912
        %1915 = vmin.xlane.f32.xlu0 %v1914
        %v1916 = vpop.xlane.xlu0 %1915
        %vm1917 = vcmp.eq.f32.partialorder %v1914, %v1916
        %v1918 = vsel %vm1917, %v1913, inf
        %1919 = vmin.xlane.f32.xlu0 %v1918
        %v1920 = vpop.xlane.xlu0 %1919
        %v1921 = vcvt.f32.s32 %v1920
        %v1922 = vcvt.f32.s32 %v1916
        %v1923 = vshll.u32 %v1922, 16
        %v1924 = vadd.s32 %v1923, %v1921
        %vm1925 = vcmp.lt.s32.totalorder %v1805, %v1806
        %v1926 = vsel %vm1925, %v1805, %v1806
        %v1927 = vand.u32 %v1926, 65535
        %v1928 = vshra.s32 %v1926, 16
        %v1929 = vcvt.s32.f32 %v1927
        %v1930 = vcvt.s32.f32 %v1928
        %1931 = vmin.xlane.f32.xlu0 %v1930
        %v1932 = vpop.xlane.xlu0 %1931
        %vm1933 = vcmp.eq.f32.partialorder %v1930, %v1932
        %v1934 = vsel %vm1933, %v1929, inf
        %1935 = vmin.xlane.f32.xlu0 %v1934
        %v1936 = vpop.xlane.xlu0 %1935
        %v1937 = vcvt.f32.s32 %v1936
        %v1938 = vcvt.f32.s32 %v1932
        %v1939 = vshll.u32 %v1938, 16
        %v1940 = vadd.s32 %v1939, %v1937
        %vm1941 = vcmp.lt.s32.totalorder %v1807, %v1808
        %v1942 = vsel %vm1941, %v1807, %v1808
        %v1943 = vand.u32 %v1942, 65535
        %v1944 = vshra.s32 %v1942, 16
        %v1945 = vcvt.s32.f32 %v1943
        %v1946 = vcvt.s32.f32 %v1944
        %1947 = vmin.xlane.f32.xlu0 %v1946
        %v1948 = vpop.xlane.xlu0 %1947
        %vm1949 = vcmp.eq.f32.partialorder %v1946, %v1948
        %v1950 = vsel %vm1949, %v1945, inf
        %1951 = vmin.xlane.f32.xlu0 %v1950
        %v1952 = vpop.xlane.xlu0 %1951
        %v1953 = vcvt.f32.s32 %v1952
        %v1954 = vcvt.f32.s32 %v1948
        %v1955 = vshll.u32 %v1954, 16
        %v1956 = vadd.s32 %v1955, %v1953
        %vm1957 = vcmp.lt.s32.totalorder %v1809, %v1810
        %v1958 = vsel %vm1957, %v1809, %v1810
        %v1959 = vand.u32 %v1958, 65535
        %v1960 = vshra.s32 %v1958, 16
        %v1961 = vcvt.s32.f32 %v1959
        %v1962 = vcvt.s32.f32 %v1960
        %1963 = vmin.xlane.f32.xlu0 %v1962
        %v1964 = vpop.xlane.xlu0 %1963
        %vm1965 = vcmp.eq.f32.partialorder %v1962, %v1964
        %v1966 = vsel %vm1965, %v1961, inf
        %1967 = vmin.xlane.f32.xlu0 %v1966
        %v1968 = vpop.xlane.xlu0 %1967
        %v1969 = vcvt.f32.s32 %v1968
        %v1970 = vcvt.f32.s32 %v1964
        %v1971 = vshll.u32 %v1970, 16
        %v1972 = vadd.s32 %v1971, %v1969
        %vm1973 = vcmp.lt.s32.totalorder %v1811, %v1812
        %v1974 = vsel %vm1973, %v1811, %v1812
        %v1975 = vand.u32 %v1974, 65535
        %v1976 = vshra.s32 %v1974, 16
        %v1977 = vcvt.s32.f32 %v1975
        %v1978 = vcvt.s32.f32 %v1976
        %1979 = vmin.xlane.f32.xlu0 %v1978
        %v1980 = vpop.xlane.xlu0 %1979
        %vm1981 = vcmp.eq.f32.partialorder %v1978, %v1980
        %v1982 = vsel %vm1981, %v1977, inf
        %1983 = vmin.xlane.f32.xlu0 %v1982
        %v1984 = vpop.xlane.xlu0 %1983
        %v1985 = vcvt.f32.s32 %v1984
        %v1986 = vcvt.f32.s32 %v1980
        %v1987 = vshll.u32 %v1986, 16
        %v1988 = vadd.s32 %v1987, %v1985
        %vm1989 = vcmp.lt.s32.totalorder %v1813, %v1814
        %v1990 = vsel %vm1989, %v1813, %v1814
        %v1991 = vand.u32 %v1990, 65535
        %v1992 = vshra.s32 %v1990, 16
        %v1993 = vcvt.s32.f32 %v1991
        %v1994 = vcvt.s32.f32 %v1992
        %1995 = vmin.xlane.f32.xlu0 %v1994
        %v1996 = vpop.xlane.xlu0 %1995
        %vm1997 = vcmp.eq.f32.partialorder %v1994, %v1996
        %v1998 = vsel %vm1997, %v1993, inf
        %1999 = vmin.xlane.f32.xlu0 %v1998
        %v2000 = vpop.xlane.xlu0 %1999
        %v2001 = vcvt.f32.s32 %v2000
        %v2002 = vcvt.f32.s32 %v1996
        %v2003 = vshll.u32 %v2002, 16
        %v2004 = vadd.s32 %v2003, %v2001
        %vm2005 = vcmp.lt.s32.totalorder %v1815, %v1816
        %v2006 = vsel %vm2005, %v1815, %v1816
        %v2007 = vand.u32 %v2006, 65535
        %v2008 = vshra.s32 %v2006, 16
        %v2009 = vcvt.s32.f32 %v2007
        %v2010 = vcvt.s32.f32 %v2008
        %2011 = vmin.xlane.f32.xlu0 %v2010
        %v2012 = vpop.xlane.xlu0 %2011
        %vm2013 = vcmp.eq.f32.partialorder %v2010, %v2012
        %v2014 = vsel %vm2013, %v2009, inf
        %2015 = vmin.xlane.f32.xlu0 %v2014
        %v2016 = vpop.xlane.xlu0 %2015
        %v2017 = vcvt.f32.s32 %v2016
        %v2018 = vcvt.f32.s32 %v2012
        %v2019 = vshll.u32 %v2018, 16
        %v2020 = vadd.s32 %v2019, %v2017
        %vm2021 = vcmp.lt.s32.totalorder %v1817, %v1818
        %v2022 = vsel %vm2021, %v1817, %v1818
        %v2023 = vand.u32 %v2022, 65535
        %v2024 = vshra.s32 %v2022, 16
        %v2025 = vcvt.s32.f32 %v2023
        %v2026 = vcvt.s32.f32 %v2024
        %2027 = vmin.xlane.f32.xlu0 %v2026
        %v2028 = vpop.xlane.xlu0 %2027
        %vm2029 = vcmp.eq.f32.partialorder %v2026, %v2028
        %v2030 = vsel %vm2029, %v2025, inf
        %2031 = vmin.xlane.f32.xlu0 %v2030
        %v2032 = vpop.xlane.xlu0 %2031
        %v2033 = vcvt.f32.s32 %v2032
        %v2034 = vcvt.f32.s32 %v2028
        %v2035 = vshll.u32 %v2034, 16
        %v2036 = vadd.s32 %v2035, %v2033
        %vm2037 = vcmp.lt.s32.totalorder %v1819, %v1820
        %v2038 = vsel %vm2037, %v1819, %v1820
        %v2039 = vand.u32 %v2038, 65535
        %v2040 = vshra.s32 %v2038, 16
        %v2041 = vcvt.s32.f32 %v2039
        %v2042 = vcvt.s32.f32 %v2040
        %2043 = vmin.xlane.f32.xlu0 %v2042
        %v2044 = vpop.xlane.xlu0 %2043
        %vm2045 = vcmp.eq.f32.partialorder %v2042, %v2044
        %v2046 = vsel %vm2045, %v2041, inf
        %2047 = vmin.xlane.f32.xlu0 %v2046
        %v2048 = vpop.xlane.xlu0 %2047
        %v2049 = vcvt.f32.s32 %v2048
        %v2050 = vcvt.f32.s32 %v2044
        %v2051 = vshll.u32 %v2050, 16
        %v2052 = vadd.s32 %v2051, %v2049
        %vm2053 = vcmp.lt.s32.totalorder %v1821, %v1822
        %v2054 = vsel %vm2053, %v1821, %v1822
        %v2055 = vand.u32 %v2054, 65535
        %v2056 = vshra.s32 %v2054, 16
        %v2057 = vcvt.s32.f32 %v2055
        %v2058 = vcvt.s32.f32 %v2056
        %2059 = vmin.xlane.f32.xlu0 %v2058
        %v2060 = vpop.xlane.xlu0 %2059
        %vm2061 = vcmp.eq.f32.partialorder %v2058, %v2060
        %v2062 = vsel %vm2061, %v2057, inf
        %2063 = vmin.xlane.f32.xlu0 %v2062
        %v2064 = vpop.xlane.xlu0 %2063
        %v2065 = vcvt.f32.s32 %v2064
        %v2066 = vcvt.f32.s32 %v2060
        %v2067 = vshll.u32 %v2066, 16
        %v2068 = vadd.s32 %v2067, %v2065
        %vm2069 = vcmp.lt.s32.totalorder %v1823, %v1824
        %v2070 = vsel %vm2069, %v1823, %v1824
        %v2071 = vand.u32 %v2070, 65535
        %v2072 = vshra.s32 %v2070, 16
        %v2073 = vcvt.s32.f32 %v2071
        %v2074 = vcvt.s32.f32 %v2072
        %2075 = vmin.xlane.f32.xlu0 %v2074
        %v2076 = vpop.xlane.xlu0 %2075
        %vm2077 = vcmp.eq.f32.partialorder %v2074, %v2076
        %v2078 = vsel %vm2077, %v2073, inf
        %2079 = vmin.xlane.f32.xlu0 %v2078
        %v2080 = vpop.xlane.xlu0 %2079
        %v2081 = vcvt.f32.s32 %v2080
        %v2082 = vcvt.f32.s32 %v2076
        %v2083 = vshll.u32 %v2082, 16
        %v2084 = vadd.s32 %v2083, %v2081
        %vm2085 = vcmp.lt.s32.totalorder %v1825, %v1826
        %v2086 = vsel %vm2085, %v1825, %v1826
        %v2087 = vand.u32 %v2086, 65535
        %v2088 = vshra.s32 %v2086, 16
        %v2089 = vcvt.s32.f32 %v2087
        %v2090 = vcvt.s32.f32 %v2088
        %2091 = vmin.xlane.f32.xlu0 %v2090
        %v2092 = vpop.xlane.xlu0 %2091
        %vm2093 = vcmp.eq.f32.partialorder %v2090, %v2092
        %v2094 = vsel %vm2093, %v2089, inf
        %2095 = vmin.xlane.f32.xlu0 %v2094
        %v2096 = vpop.xlane.xlu0 %2095
        %v2097 = vcvt.f32.s32 %v2096
        %v2098 = vcvt.f32.s32 %v2092
        %v2099 = vshll.u32 %v2098, 16
        %v2100 = vadd.s32 %v2099, %v2097
        %vm2101 = vcmp.lt.s32.totalorder %v1827, %v1828
        %v2102 = vsel %vm2101, %v1827, %v1828
        %v2103 = vand.u32 %v2102, 65535
        %v2104 = vshra.s32 %v2102, 16
        %v2105 = vcvt.s32.f32 %v2103
        %v2106 = vcvt.s32.f32 %v2104
        %2107 = vmin.xlane.f32.xlu0 %v2106
        %v2108 = vpop.xlane.xlu0 %2107
        %vm2109 = vcmp.eq.f32.partialorder %v2106, %v2108
        %v2110 = vsel %vm2109, %v2105, inf
        %2111 = vmin.xlane.f32.xlu0 %v2110
        %v2112 = vpop.xlane.xlu0 %2111
        %v2113 = vcvt.f32.s32 %v2112
        %v2114 = vcvt.f32.s32 %v2108
        %v2115 = vshll.u32 %v2114, 16
        %v2116 = vadd.s32 %v2115, %v2113
        %vm2117 = vcmp.lt.s32.totalorder %v1829, %v1830
        %v2118 = vsel %vm2117, %v1829, %v1830
        %v2119 = vand.u32 %v2118, 65535
        %v2120 = vshra.s32 %v2118, 16
        %v2121 = vcvt.s32.f32 %v2119
        %v2122 = vcvt.s32.f32 %v2120
        %2123 = vmin.xlane.f32.xlu0 %v2122
        %v2124 = vpop.xlane.xlu0 %2123
        %vm2125 = vcmp.eq.f32.partialorder %v2122, %v2124
        %v2126 = vsel %vm2125, %v2121, inf
        %2127 = vmin.xlane.f32.xlu0 %v2126
        %v2128 = vpop.xlane.xlu0 %2127
        %v2129 = vcvt.f32.s32 %v2128
        %v2130 = vcvt.f32.s32 %v2124
        %v2131 = vshll.u32 %v2130, 16
        %v2132 = vadd.s32 %v2131, %v2129
        %vm2133 = vcmp.lt.s32.totalorder %v1831, %v1832
        %v2134 = vsel %vm2133, %v1831, %v1832
        %v2135 = vand.u32 %v2134, 65535
        %v2136 = vshra.s32 %v2134, 16
        %v2137 = vcvt.s32.f32 %v2135
        %v2138 = vcvt.s32.f32 %v2136
        %2139 = vmin.xlane.f32.xlu0 %v2138
        %v2140 = vpop.xlane.xlu0 %2139
        %vm2141 = vcmp.eq.f32.partialorder %v2138, %v2140
        %v2142 = vsel %vm2141, %v2137, inf
        %2143 = vmin.xlane.f32.xlu0 %v2142
        %v2144 = vpop.xlane.xlu0 %2143
        %v2145 = vcvt.f32.s32 %v2144
        %v2146 = vcvt.f32.s32 %v2140
        %v2147 = vshll.u32 %v2146, 16
        %v2148 = vadd.s32 %v2147, %v2145
        %vm2149 = vcmp.lt.s32.totalorder %v1833, %v1834
        %v2150 = vsel %vm2149, %v1833, %v1834
        %v2151 = vand.u32 %v2150, 65535
        %v2152 = vshra.s32 %v2150, 16
        %v2153 = vcvt.s32.f32 %v2151
        %v2154 = vcvt.s32.f32 %v2152
        %2155 = vmin.xlane.f32.xlu0 %v2154
        %v2156 = vpop.xlane.xlu0 %2155
        %vm2157 = vcmp.eq.f32.partialorder %v2154, %v2156
        %v2158 = vsel %vm2157, %v2153, inf
        %2159 = vmin.xlane.f32.xlu0 %v2158
        %v2160 = vpop.xlane.xlu0 %2159
        %v2161 = vcvt.f32.s32 %v2160
        %v2162 = vcvt.f32.s32 %v2156
        %v2163 = vshll.u32 %v2162, 16
        %v2164 = vadd.s32 %v2163, %v2161
        %vm2165 = vcmp.lt.s32.totalorder %v1835, %v1836
        %v2166 = vsel %vm2165, %v1835, %v1836
        %v2167 = vand.u32 %v2166, 65535
        %v2168 = vshra.s32 %v2166, 16
        %v2169 = vcvt.s32.f32 %v2167
        %v2170 = vcvt.s32.f32 %v2168
        %2171 = vmin.xlane.f32.xlu0 %v2170
        %v2172 = vpop.xlane.xlu0 %2171
        %vm2173 = vcmp.eq.f32.partialorder %v2170, %v2172
        %v2174 = vsel %vm2173, %v2169, inf
        %2175 = vmin.xlane.f32.xlu0 %v2174
        %v2176 = vpop.xlane.xlu0 %2175
        %v2177 = vcvt.f32.s32 %v2176
        %v2178 = vcvt.f32.s32 %v2172
        %v2179 = vshll.u32 %v2178, 16
        %v2180 = vadd.s32 %v2179, %v2177
        %vm2181 = vcmp.lt.s32.totalorder %v1837, %v1838
        %v2182 = vsel %vm2181, %v1837, %v1838
        %v2183 = vand.u32 %v2182, 65535
        %v2184 = vshra.s32 %v2182, 16
        %v2185 = vcvt.s32.f32 %v2183
        %v2186 = vcvt.s32.f32 %v2184
        %2187 = vmin.xlane.f32.xlu0 %v2186
        %v2188 = vpop.xlane.xlu0 %2187
        %vm2189 = vcmp.eq.f32.partialorder %v2186, %v2188
        %v2190 = vsel %vm2189, %v2185, inf
        %2191 = vmin.xlane.f32.xlu0 %v2190
        %v2192 = vpop.xlane.xlu0 %2191
        %v2193 = vcvt.f32.s32 %v2192
        %v2194 = vcvt.f32.s32 %v2188
        %v2195 = vshll.u32 %v2194, 16
        %v2196 = vadd.s32 %v2195, %v2193
        %vm2197 = vcmp.lt.s32.totalorder %v1839, %v1840
        %v2198 = vsel %vm2197, %v1839, %v1840
        %v2199 = vand.u32 %v2198, 65535
        %v2200 = vshra.s32 %v2198, 16
        %v2201 = vcvt.s32.f32 %v2199
        %v2202 = vcvt.s32.f32 %v2200
        %2203 = vmin.xlane.f32.xlu0 %v2202
        %v2204 = vpop.xlane.xlu0 %2203
        %vm2205 = vcmp.eq.f32.partialorder %v2202, %v2204
        %v2206 = vsel %vm2205, %v2201, inf
        %2207 = vmin.xlane.f32.xlu0 %v2206
        %v2208 = vpop.xlane.xlu0 %2207
        %v2209 = vcvt.f32.s32 %v2208
        %v2210 = vcvt.f32.s32 %v2204
        %v2211 = vshll.u32 %v2210, 16
        %v2212 = vadd.s32 %v2211, %v2209
        %vm2213 = vcmp.lt.s32.totalorder %v1841, %v1842
        %v2214 = vsel %vm2213, %v1841, %v1842
        %v2215 = vand.u32 %v2214, 65535
        %v2216 = vshra.s32 %v2214, 16
        %v2217 = vcvt.s32.f32 %v2215
        %v2218 = vcvt.s32.f32 %v2216
        %2219 = vmin.xlane.f32.xlu0 %v2218
        %v2220 = vpop.xlane.xlu0 %2219
        %vm2221 = vcmp.eq.f32.partialorder %v2218, %v2220
        %v2222 = vsel %vm2221, %v2217, inf
        %2223 = vmin.xlane.f32.xlu0 %v2222
        %v2224 = vpop.xlane.xlu0 %2223
        %v2225 = vcvt.f32.s32 %v2224
        %v2226 = vcvt.f32.s32 %v2220
        %v2227 = vshll.u32 %v2226, 16
        %v2228 = vadd.s32 %v2227, %v2225
        %vm2229 = vcmp.lt.s32.totalorder %v1843, %v1844
        %v2230 = vsel %vm2229, %v1843, %v1844
        %v2231 = vand.u32 %v2230, 65535
        %v2232 = vshra.s32 %v2230, 16
        %v2233 = vcvt.s32.f32 %v2231
        %v2234 = vcvt.s32.f32 %v2232
        %2235 = vmin.xlane.f32.xlu0 %v2234
        %v2236 = vpop.xlane.xlu0 %2235
        %vm2237 = vcmp.eq.f32.partialorder %v2234, %v2236
        %v2238 = vsel %vm2237, %v2233, inf
        %2239 = vmin.xlane.f32.xlu0 %v2238
        %v2240 = vpop.xlane.xlu0 %2239
        %v2241 = vcvt.f32.s32 %v2240
        %v2242 = vcvt.f32.s32 %v2236
        %v2243 = vshll.u32 %v2242, 16
        %v2244 = vadd.s32 %v2243, %v2241
        %vm2245 = vcmp.lt.s32.totalorder %v1845, %v1846
        %v2246 = vsel %vm2245, %v1845, %v1846
        %v2247 = vand.u32 %v2246, 65535
        %v2248 = vshra.s32 %v2246, 16
        %v2249 = vcvt.s32.f32 %v2247
        %v2250 = vcvt.s32.f32 %v2248
        %2251 = vmin.xlane.f32.xlu0 %v2250
        %v2252 = vpop.xlane.xlu0 %2251
        %vm2253 = vcmp.eq.f32.partialorder %v2250, %v2252
        %v2254 = vsel %vm2253, %v2249, inf
        %2255 = vmin.xlane.f32.xlu0 %v2254
        %v2256 = vpop.xlane.xlu0 %2255
        %v2257 = vcvt.f32.s32 %v2256
        %v2258 = vcvt.f32.s32 %v2252
        %v2259 = vshll.u32 %v2258, 16
        %v2260 = vadd.s32 %v2259, %v2257
        %vm2261 = vcmp.lt.s32.totalorder %v1847, %v1848
        %v2262 = vsel %vm2261, %v1847, %v1848
        %v2263 = vand.u32 %v2262, 65535
        %v2264 = vshra.s32 %v2262, 16
        %v2265 = vcvt.s32.f32 %v2263
        %v2266 = vcvt.s32.f32 %v2264
        %2267 = vmin.xlane.f32.xlu0 %v2266
        %v2268 = vpop.xlane.xlu0 %2267
        %vm2269 = vcmp.eq.f32.partialorder %v2266, %v2268
        %v2270 = vsel %vm2269, %v2265, inf
        %2271 = vmin.xlane.f32.xlu0 %v2270
        %v2272 = vpop.xlane.xlu0 %2271
        %v2273 = vcvt.f32.s32 %v2272
        %v2274 = vcvt.f32.s32 %v2268
        %v2275 = vshll.u32 %v2274, 16
        %v2276 = vadd.s32 %v2275, %v2273
        %vm2277 = vcmp.lt.s32.totalorder %v1849, %v1850
        %v2278 = vsel %vm2277, %v1849, %v1850
        %v2279 = vand.u32 %v2278, 65535
        %v2280 = vshra.s32 %v2278, 16
        %v2281 = vcvt.s32.f32 %v2279
        %v2282 = vcvt.s32.f32 %v2280
        %2283 = vmin.xlane.f32.xlu0 %v2282
        %v2284 = vpop.xlane.xlu0 %2283
        %vm2285 = vcmp.eq.f32.partialorder %v2282, %v2284
        %v2286 = vsel %vm2285, %v2281, inf
        %2287 = vmin.xlane.f32.xlu0 %v2286
        %v2288 = vpop.xlane.xlu0 %2287
        %v2289 = vcvt.f32.s32 %v2288
        %v2290 = vcvt.f32.s32 %v2284
        %v2291 = vshll.u32 %v2290, 16
        %v2292 = vadd.s32 %v2291, %v2289
        %vm2293 = vcmp.lt.s32.totalorder %v1851, %v1852
        %v2294 = vsel %vm2293, %v1851, %v1852
        %v2295 = vand.u32 %v2294, 65535
        %v2296 = vshra.s32 %v2294, 16
        %v2297 = vcvt.s32.f32 %v2295
        %v2298 = vcvt.s32.f32 %v2296
        %2299 = vmin.xlane.f32.xlu0 %v2298
        %v2300 = vpop.xlane.xlu0 %2299
        %vm2301 = vcmp.eq.f32.partialorder %v2298, %v2300
        %v2302 = vsel %vm2301, %v2297, inf
        %2303 = vmin.xlane.f32.xlu0 %v2302
        %v2304 = vpop.xlane.xlu0 %2303
        %v2305 = vcvt.f32.s32 %v2304
        %v2306 = vcvt.f32.s32 %v2300
        %v2307 = vshll.u32 %v2306, 16
        %v2308 = vadd.s32 %v2307, %v2305
        %vm2309 = vcmp.lt.s32.totalorder %v1853, %v1854
        %v2310 = vsel %vm2309, %v1853, %v1854
        %v2311 = vand.u32 %v2310, 65535
        %v2312 = vshra.s32 %v2310, 16
        %v2313 = vcvt.s32.f32 %v2311
        %v2314 = vcvt.s32.f32 %v2312
        %2315 = vmin.xlane.f32.xlu0 %v2314
        %v2316 = vpop.xlane.xlu0 %2315
        %vm2317 = vcmp.eq.f32.partialorder %v2314, %v2316
        %v2318 = vsel %vm2317, %v2313, inf
        %2319 = vmin.xlane.f32.xlu0 %v2318
        %v2320 = vpop.xlane.xlu0 %2319
        %v2321 = vcvt.f32.s32 %v2320
        %v2322 = vcvt.f32.s32 %v2316
        %v2323 = vshll.u32 %v2322, 16
        %v2324 = vadd.s32 %v2323, %v2321
        %vm2325 = vcmp.lt.s32.totalorder %v1855, %v1856
        %v2326 = vsel %vm2325, %v1855, %v1856
        %v2327 = vand.u32 %v2326, 65535
        %v2328 = vshra.s32 %v2326, 16
        %v2329 = vcvt.s32.f32 %v2327
        %v2330 = vcvt.s32.f32 %v2328
        %2331 = vmin.xlane.f32.xlu0 %v2330
        %v2332 = vpop.xlane.xlu0 %2331
        %vm2333 = vcmp.eq.f32.partialorder %v2330, %v2332
        %v2334 = vsel %vm2333, %v2329, inf
        %2335 = vmin.xlane.f32.xlu0 %v2334
        %v2336 = vpop.xlane.xlu0 %2335
        %v2337 = vcvt.f32.s32 %v2336
        %v2338 = vcvt.f32.s32 %v2332
        %v2339 = vshll.u32 %v2338, 16
        %v2340 = vadd.s32 %v2339, %v2337
        %vm2341 = vcmp.lt.s32.totalorder %v1857, %v1858
        %v2342 = vsel %vm2341, %v1857, %v1858
        %v2343 = vand.u32 %v2342, 65535
        %v2344 = vshra.s32 %v2342, 16
        %v2345 = vcvt.s32.f32 %v2343
        %v2346 = vcvt.s32.f32 %v2344
        %2347 = vmin.xlane.f32.xlu0 %v2346
        %v2348 = vpop.xlane.xlu0 %2347
        %vm2349 = vcmp.eq.f32.partialorder %v2346, %v2348
        %v2350 = vsel %vm2349, %v2345, inf
        %2351 = vmin.xlane.f32.xlu0 %v2350
        %v2352 = vpop.xlane.xlu0 %2351
        %v2353 = vcvt.f32.s32 %v2352
        %v2354 = vcvt.f32.s32 %v2348
        %v2355 = vshll.u32 %v2354, 16
        %v2356 = vadd.s32 %v2355, %v2353
        %vm2357 = vcmp.lt.s32.totalorder %v1859, %v1860
        %v2358 = vsel %vm2357, %v1859, %v1860
        %v2359 = vand.u32 %v2358, 65535
        %v2360 = vshra.s32 %v2358, 16
        %v2361 = vcvt.s32.f32 %v2359
        %v2362 = vcvt.s32.f32 %v2360
        %2363 = vmin.xlane.f32.xlu0 %v2362
        %v2364 = vpop.xlane.xlu0 %2363
        %vm2365 = vcmp.eq.f32.partialorder %v2362, %v2364
        %v2366 = vsel %vm2365, %v2361, inf
        %2367 = vmin.xlane.f32.xlu0 %v2366
        %v2368 = vpop.xlane.xlu0 %2367
        %v2369 = vcvt.f32.s32 %v2368
        %v2370 = vcvt.f32.s32 %v2364
        %v2371 = vshll.u32 %v2370, 16
        %v2372 = vadd.s32 %v2371, %v2369
        %vm2373 = vcmp.eq.s32.totalorder %v707, %v1876
        %vm2374 = vcmp.eq.s32.totalorder %v708, %v1876
        %vm2375 = vcmp.eq.s32.totalorder %v707, %v1892
        %vm2376 = vcmp.eq.s32.totalorder %v708, %v1892
        %vm2377 = vcmp.eq.s32.totalorder %v707, %v1908
        %vm2378 = vcmp.eq.s32.totalorder %v708, %v1908
        %vm2379 = vcmp.eq.s32.totalorder %v707, %v1924
        %vm2380 = vcmp.eq.s32.totalorder %v708, %v1924
        %vm2381 = vcmp.eq.s32.totalorder %v707, %v1940
        %vm2382 = vcmp.eq.s32.totalorder %v708, %v1940
        %vm2383 = vcmp.eq.s32.totalorder %v707, %v1956
        %vm2384 = vcmp.eq.s32.totalorder %v708, %v1956
        %vm2385 = vcmp.eq.s32.totalorder %v707, %v1972
        %vm2386 = vcmp.eq.s32.totalorder %v708, %v1972
        %vm2387 = vcmp.eq.s32.totalorder %v707, %v1988
        %vm2388 = vcmp.eq.s32.totalorder %v708, %v1988
        %vm2389 = vcmp.eq.s32.totalorder %v707, %v2004
        %vm2390 = vcmp.eq.s32.totalorder %v708, %v2004
        %vm2391 = vcmp.eq.s32.totalorder %v707, %v2020
        %vm2392 = vcmp.eq.s32.totalorder %v708, %v2020
        %vm2393 = vcmp.eq.s32.totalorder %v707, %v2036
        %vm2394 = vcmp.eq.s32.totalorder %v708, %v2036
        %vm2395 = vcmp.eq.s32.totalorder %v707, %v2052
        %vm2396 = vcmp.eq.s32.totalorder %v708, %v2052
        %vm2397 = vcmp.eq.s32.totalorder %v707, %v2068
        %vm2398 = vcmp.eq.s32.totalorder %v708, %v2068
        %vm2399 = vcmp.eq.s32.totalorder %v707, %v2084
        %vm2400 = vcmp.eq.s32.totalorder %v708, %v2084
        %vm2401 = vcmp.eq.s32.totalorder %v707, %v2100
        %vm2402 = vcmp.eq.s32.totalorder %v708, %v2100
        %vm2403 = vcmp.eq.s32.totalorder %v707, %v2116
        %vm2404 = vcmp.eq.s32.totalorder %v708, %v2116
        %vm2405 = vcmp.eq.s32.totalorder %v707, %v2132
        %vm2406 = vcmp.eq.s32.totalorder %v708, %v2132
        %vm2407 = vcmp.eq.s32.totalorder %v707, %v2148
        %vm2408 = vcmp.eq.s32.totalorder %v708, %v2148
        %vm2409 = vcmp.eq.s32.totalorder %v707, %v2164
        %vm2410 = vcmp.eq.s32.totalorder %v708, %v2164
        %vm2411 = vcmp.eq.s32.totalorder %v707, %v2180
        %vm2412 = vcmp.eq.s32.totalorder %v708, %v2180
        %vm2413 = vcmp.eq.s32.totalorder %v707, %v2196
        %vm2414 = vcmp.eq.s32.totalorder %v708, %v2196
        %vm2415 = vcmp.eq.s32.totalorder %v707, %v2212
        %vm2416 = vcmp.eq.s32.totalorder %v708, %v2212
        %vm2417 = vcmp.eq.s32.totalorder %v707, %v2228
        %vm2418 = vcmp.eq.s32.totalorder %v708, %v2228
        %vm2419 = vcmp.eq.s32.totalorder %v707, %v2244
        %vm2420 = vcmp.eq.s32.totalorder %v708, %v2244
        %vm2421 = vcmp.eq.s32.totalorder %v707, %v2260
        %vm2422 = vcmp.eq.s32.totalorder %v708, %v2260
        %vm2423 = vcmp.eq.s32.totalorder %v707, %v2276
        %vm2424 = vcmp.eq.s32.totalorder %v708, %v2276
        %vm2425 = vcmp.eq.s32.totalorder %v707, %v2292
        %vm2426 = vcmp.eq.s32.totalorder %v708, %v2292
        %vm2427 = vcmp.eq.s32.totalorder %v707, %v2308
        %vm2428 = vcmp.eq.s32.totalorder %v708, %v2308
        %vm2429 = vcmp.eq.s32.totalorder %v707, %v2324
        %vm2430 = vcmp.eq.s32.totalorder %v708, %v2324
        %vm2431 = vcmp.eq.s32.totalorder %v707, %v2340
        %vm2432 = vcmp.eq.s32.totalorder %v708, %v2340
        %vm2433 = vcmp.eq.s32.totalorder %v707, %v2356
        %vm2434 = vcmp.eq.s32.totalorder %v708, %v2356
        %vm2435 = vcmp.eq.s32.totalorder %v707, %v2372
        %vm2436 = vcmp.eq.s32.totalorder %v708, %v2372
        %v2437 = vsub.f32 %v1639, %v711
        %v2438 = vsub.f32 %v1642, %v714
        %v2439 = vsub.f32 %v1645, %v717
        %v2440 = vsub.f32 %v1648, %v720
        %v2441 = vsub.f32 %v1651, %v723
        %v2442 = vsub.f32 %v1654, %v726
        %v2443 = vsub.f32 %v1657, %v729
        %v2444 = vsub.f32 %v1660, %v732
        %v2445 = vsub.f32 %v1663, %v735
        %v2446 = vsub.f32 %v1666, %v738
        %v2447 = vsub.f32 %v1669, %v741
        %v2448 = vsub.f32 %v1672, %v744
        %v2449 = vsub.f32 %v1675, %v747
        %v2450 = vsub.f32 %v1678, %v750
        %v2451 = vsub.f32 %v1681, %v753
        %v2452 = vsub.f32 %v1684, %v756
        %v2453 = vsub.f32 %v1687, %v759
        %v2454 = vsub.f32 %v1690, %v762
        %v2455 = vsub.f32 %v1693, %v765
        %v2456 = vsub.f32 %v1696, %v768
        %v2457 = vsub.f32 %v1699, %v771
        %v2458 = vsub.f32 %v1702, %v774
        %v2459 = vsub.f32 %v1705, %v777
        %v2460 = vsub.f32 %v1708, %v780
        %v2461 = vsub.f32 %v1711, %v783
        %v2462 = vsub.f32 %v1714, %v786
        %v2463 = vsub.f32 %v1717, %v789
        %v2464 = vsub.f32 %v1720, %v792
        %v2465 = vsub.f32 %v1723, %v795
        %v2466 = vsub.f32 %v1726, %v798
        %v2467 = vsub.f32 %v1729, %v801
        %v2468 = vsub.f32 %v1732, %v804
        %v2469 = vmul.f32 %v2437, 1.442695
        %v2470 = vpow.pop %v2469
        %v2471 = vmul.f32 %v2438, 1.442695
        %v2472 = vpow.pop %v2471
        %v2473 = vmul.f32 %v2439, 1.442695
        %v2474 = vpow.pop %v2473
        %v2475 = vmul.f32 %v2440, 1.442695
        %v2476 = vpow.pop %v2475
        %v2477 = vmul.f32 %v2441, 1.442695
        %v2478 = vpow.pop %v2477
        %v2479 = vmul.f32 %v2442, 1.442695
        %v2480 = vpow.pop %v2479
        %v2481 = vmul.f32 %v2443, 1.442695
        %v2482 = vpow.pop %v2481
        %v2483 = vmul.f32 %v2444, 1.442695
        %v2484 = vpow.pop %v2483
        %v2485 = vmul.f32 %v2445, 1.442695
        %v2486 = vpow.pop %v2485
        %v2487 = vmul.f32 %v2446, 1.442695
        %v2488 = vpow.pop %v2487
        %v2489 = vmul.f32 %v2447, 1.442695
        %v2490 = vpow.pop %v2489
        %v2491 = vmul.f32 %v2448, 1.442695
        %v2492 = vpow.pop %v2491
        %v2493 = vmul.f32 %v2449, 1.442695
        %v2494 = vpow.pop %v2493
        %v2495 = vmul.f32 %v2450, 1.442695
        %v2496 = vpow.pop %v2495
        %v2497 = vmul.f32 %v2451, 1.442695
        %v2498 = vpow.pop %v2497
        %v2499 = vmul.f32 %v2452, 1.442695
        %v2500 = vpow.pop %v2499
        %v2501 = vmul.f32 %v2453, 1.442695
        %v2502 = vpow.pop %v2501
        %v2503 = vmul.f32 %v2454, 1.442695
        %v2504 = vpow.pop %v2503
        %v2505 = vmul.f32 %v2455, 1.442695
        %v2506 = vpow.pop %v2505
        %v2507 = vmul.f32 %v2456, 1.442695
        %v2508 = vpow.pop %v2507
        %v2509 = vmul.f32 %v2457, 1.442695
        %v2510 = vpow.pop %v2509
        %v2511 = vmul.f32 %v2458, 1.442695
        %v2512 = vpow.pop %v2511
        %v2513 = vmul.f32 %v2459, 1.442695
        %v2514 = vpow.pop %v2513
        %v2515 = vmul.f32 %v2460, 1.442695
        %v2516 = vpow.pop %v2515
        %v2517 = vmul.f32 %v2461, 1.442695
        %v2518 = vpow.pop %v2517
        %v2519 = vmul.f32 %v2462, 1.442695
        %v2520 = vpow.pop %v2519
        %v2521 = vmul.f32 %v2463, 1.442695
        %v2522 = vpow.pop %v2521
        %v2523 = vmul.f32 %v2464, 1.442695
        %v2524 = vpow.pop %v2523
        %v2525 = vmul.f32 %v2465, 1.442695
        %v2526 = vpow.pop %v2525
        %v2527 = vmul.f32 %v2466, 1.442695
        %v2528 = vpow.pop %v2527
        %v2529 = vmul.f32 %v2467, 1.442695
        %v2530 = vpow.pop %v2529
        %v2531 = vmul.f32 %v2468, 1.442695
        %v2532 = vpow.pop %v2531
        %v2533 = vsel %vm2373, %v2470, %v1509
        %v2534 = vsel %vm2374, %v2470, %v1510
        %v2535 = vsel %vm2375, %v2472, %v1511
        %v2536 = vsel %vm2376, %v2472, %v1512
        %v2537 = vsel %vm2377, %v2474, %v1513
        %v2538 = vsel %vm2378, %v2474, %v1514
        %v2539 = vsel %vm2379, %v2476, %v1515
        %v2540 = vsel %vm2380, %v2476, %v1516
        %v2541 = vsel %vm2381, %v2478, %v1517
        %v2542 = vsel %vm2382, %v2478, %v1518
        %v2543 = vsel %vm2383, %v2480, %v1519
        %v2544 = vsel %vm2384, %v2480, %v1520
        %v2545 = vsel %vm2385, %v2482, %v1521
        %v2546 = vsel %vm2386, %v2482, %v1522
        %v2547 = vsel %vm2387, %v2484, %v1523
        %v2548 = vsel %vm2388, %v2484, %v1524
        %v2549 = vsel %vm2389, %v2486, %v1525
        %v2550 = vsel %vm2390, %v2486, %v1526
        %v2551 = vsel %vm2391, %v2488, %v1527
        %v2552 = vsel %vm2392, %v2488, %v1528
        %v2553 = vsel %vm2393, %v2490, %v1529
        %v2554 = vsel %vm2394, %v2490, %v1530
        %v2555 = vsel %vm2395, %v2492, %v1531
        %v2556 = vsel %vm2396, %v2492, %v1532
        %v2557 = vsel %vm2397, %v2494, %v1533
        %v2558 = vsel %vm2398, %v2494, %v1534
        %v2559 = vsel %vm2399, %v2496, %v1535
        %v2560 = vsel %vm2400, %v2496, %v1536
        %v2561 = vsel %vm2401, %v2498, %v1537
        %v2562 = vsel %vm2402, %v2498, %v1538
        %v2563 = vsel %vm2403, %v2500, %v1539
        %v2564 = vsel %vm2404, %v2500, %v1540
        %v2565 = vsel %vm2405, %v2502, %v1541
        %v2566 = vsel %vm2406, %v2502, %v1542
        %v2567 = vsel %vm2407, %v2504, %v1543
        %v2568 = vsel %vm2408, %v2504, %v1544
        %v2569 = vsel %vm2409, %v2506, %v1545
        %v2570 = vsel %vm2410, %v2506, %v1546
        %v2571 = vsel %vm2411, %v2508, %v1547
        %v2572 = vsel %vm2412, %v2508, %v1548
        %v2573 = vsel %vm2413, %v2510, %v1549
        %v2574 = vsel %vm2414, %v2510, %v1550
        %v2575 = vsel %vm2415, %v2512, %v1551
        %v2576 = vsel %vm2416, %v2512, %v1552
        %v2577 = vsel %vm2417, %v2514, %v1553
        %v2578 = vsel %vm2418, %v2514, %v1554
        %v2579 = vsel %vm2419, %v2516, %v1555
        %v2580 = vsel %vm2420, %v2516, %v1556
        %v2581 = vsel %vm2421, %v2518, %v1557
        %v2582 = vsel %vm2422, %v2518, %v1558
        %v2583 = vsel %vm2423, %v2520, %v1559
        %v2584 = vsel %vm2424, %v2520, %v1560
        %v2585 = vsel %vm2425, %v2522, %v1561
        %v2586 = vsel %vm2426, %v2522, %v1562
        %v2587 = vsel %vm2427, %v2524, %v1563
        %v2588 = vsel %vm2428, %v2524, %v1564
        %v2589 = vsel %vm2429, %v2526, %v1565
        %v2590 = vsel %vm2430, %v2526, %v1566
        %v2591 = vsel %vm2431, %v2528, %v1567
        %v2592 = vsel %vm2432, %v2528, %v1568
        %v2593 = vsel %vm2433, %v2530, %v1569
        %v2594 = vsel %vm2434, %v2530, %v1570
        %v2595 = vsel %vm2435, %v2532, %v1571
        %v2596 = vsel %vm2436, %v2532, %v1572
        %v2597 = vsel %vm2373, -1e+30, %v1573
        %v2598 = vsel %vm2374, -1e+30, %v1574
        %v2599 = vsel %vm2375, -1e+30, %v1575
        %v2600 = vsel %vm2376, -1e+30, %v1576
        %v2601 = vsel %vm2377, -1e+30, %v1577
        %v2602 = vsel %vm2378, -1e+30, %v1578
        %v2603 = vsel %vm2379, -1e+30, %v1579
        %v2604 = vsel %vm2380, -1e+30, %v1580
        %v2605 = vsel %vm2381, -1e+30, %v1581
        %v2606 = vsel %vm2382, -1e+30, %v1582
        %v2607 = vsel %vm2383, -1e+30, %v1583
        %v2608 = vsel %vm2384, -1e+30, %v1584
        %v2609 = vsel %vm2385, -1e+30, %v1585
        %v2610 = vsel %vm2386, -1e+30, %v1586
        %v2611 = vsel %vm2387, -1e+30, %v1587
        %v2612 = vsel %vm2388, -1e+30, %v1588
        %v2613 = vsel %vm2389, -1e+30, %v1589
        %v2614 = vsel %vm2390, -1e+30, %v1590
        %v2615 = vsel %vm2391, -1e+30, %v1591
        %v2616 = vsel %vm2392, -1e+30, %v1592
        %v2617 = vsel %vm2393, -1e+30, %v1593
        %v2618 = vsel %vm2394, -1e+30, %v1594
        %v2619 = vsel %vm2395, -1e+30, %v1595
        %v2620 = vsel %vm2396, -1e+30, %v1596
        %v2621 = vsel %vm2397, -1e+30, %v1597
        %v2622 = vsel %vm2398, -1e+30, %v1598
        %v2623 = vsel %vm2399, -1e+30, %v1599
        %v2624 = vsel %vm2400, -1e+30, %v1600
        %v2625 = vsel %vm2401, -1e+30, %v1601
        %v2626 = vsel %vm2402, -1e+30, %v1602
        %v2627 = vsel %vm2403, -1e+30, %v1603
        %v2628 = vsel %vm2404, -1e+30, %v1604
        %v2629 = vsel %vm2405, -1e+30, %v1605
        %v2630 = vsel %vm2406, -1e+30, %v1606
        %v2631 = vsel %vm2407, -1e+30, %v1607
        %v2632 = vsel %vm2408, -1e+30, %v1608
        %v2633 = vsel %vm2409, -1e+30, %v1609
        %v2634 = vsel %vm2410, -1e+30, %v1610
        %v2635 = vsel %vm2411, -1e+30, %v1611
        %v2636 = vsel %vm2412, -1e+30, %v1612
        %v2637 = vsel %vm2413, -1e+30, %v1613
        %v2638 = vsel %vm2414, -1e+30, %v1614
        %v2639 = vsel %vm2415, -1e+30, %v1615
        %v2640 = vsel %vm2416, -1e+30, %v1616
        %v2641 = vsel %vm2417, -1e+30, %v1617
        %v2642 = vsel %vm2418, -1e+30, %v1618
        %v2643 = vsel %vm2419, -1e+30, %v1619
        %v2644 = vsel %vm2420, -1e+30, %v1620
        %v2645 = vsel %vm2421, -1e+30, %v1621
        %v2646 = vsel %vm2422, -1e+30, %v1622
        %v2647 = vsel %vm2423, -1e+30, %v1623
        %v2648 = vsel %vm2424, -1e+30, %v1624
        %v2649 = vsel %vm2425, -1e+30, %v1625
        %v2650 = vsel %vm2426, -1e+30, %v1626
        %v2651 = vsel %vm2427, -1e+30, %v1627
        %v2652 = vsel %vm2428, -1e+30, %v1628
        %v2653 = vsel %vm2429, -1e+30, %v1629
        %v2654 = vsel %vm2430, -1e+30, %v1630
        %v2655 = vsel %vm2431, -1e+30, %v1631
        %v2656 = vsel %vm2432, -1e+30, %v1632
        %v2657 = vsel %vm2433, -1e+30, %v1633
        %v2658 = vsel %vm2434, -1e+30, %v1634
        %v2659 = vsel %vm2435, -1e+30, %v1635
        %v2660 = vsel %vm2436, -1e+30, %v1636
        %v2661 = vmax.f32 %v2597, %v2598
        %2662 = vmax.xlane.f32.xlu0 %v2661
        %v2663 = vpop.xlane.xlu0 %2662
        %v2664 = vmax.f32 %v2599, %v2600
        %2665 = vmax.xlane.f32.xlu0 %v2664
        %v2666 = vpop.xlane.xlu0 %2665
        %v2667 = vmax.f32 %v2601, %v2602
        %2668 = vmax.xlane.f32.xlu0 %v2667
        %v2669 = vpop.xlane.xlu0 %2668
        %v2670 = vmax.f32 %v2603, %v2604
        %2671 = vmax.xlane.f32.xlu0 %v2670
        %v2672 = vpop.xlane.xlu0 %2671
        %v2673 = vmax.f32 %v2605, %v2606
        %2674 = vmax.xlane.f32.xlu0 %v2673
        %v2675 = vpop.xlane.xlu0 %2674
        %v2676 = vmax.f32 %v2607, %v2608
        %2677 = vmax.xlane.f32.xlu0 %v2676
        %v2678 = vpop.xlane.xlu0 %2677
        %v2679 = vmax.f32 %v2609, %v2610
        %2680 = vmax.xlane.f32.xlu0 %v2679
        %v2681 = vpop.xlane.xlu0 %2680
        %v2682 = vmax.f32 %v2611, %v2612
        %2683 = vmax.xlane.f32.xlu0 %v2682
        %v2684 = vpop.xlane.xlu0 %2683
        %v2685 = vmax.f32 %v2613, %v2614
        %2686 = vmax.xlane.f32.xlu0 %v2685
        %v2687 = vpop.xlane.xlu0 %2686
        %v2688 = vmax.f32 %v2615, %v2616
        %2689 = vmax.xlane.f32.xlu0 %v2688
        %v2690 = vpop.xlane.xlu0 %2689
        %v2691 = vmax.f32 %v2617, %v2618
        %2692 = vmax.xlane.f32.xlu0 %v2691
        %v2693 = vpop.xlane.xlu0 %2692
        %v2694 = vmax.f32 %v2619, %v2620
        %2695 = vmax.xlane.f32.xlu0 %v2694
        %v2696 = vpop.xlane.xlu0 %2695
        %v2697 = vmax.f32 %v2621, %v2622
        %2698 = vmax.xlane.f32.xlu0 %v2697
        %v2699 = vpop.xlane.xlu0 %2698
        %v2700 = vmax.f32 %v2623, %v2624
        %2701 = vmax.xlane.f32.xlu0 %v2700
        %v2702 = vpop.xlane.xlu0 %2701
        %v2703 = vmax.f32 %v2625, %v2626
        %2704 = vmax.xlane.f32.xlu0 %v2703
        %v2705 = vpop.xlane.xlu0 %2704
        %v2706 = vmax.f32 %v2627, %v2628
        %2707 = vmax.xlane.f32.xlu0 %v2706
        %v2708 = vpop.xlane.xlu0 %2707
        %v2709 = vmax.f32 %v2629, %v2630
        %2710 = vmax.xlane.f32.xlu0 %v2709
        %v2711 = vpop.xlane.xlu0 %2710
        %v2712 = vmax.f32 %v2631, %v2632
        %2713 = vmax.xlane.f32.xlu0 %v2712
        %v2714 = vpop.xlane.xlu0 %2713
        %v2715 = vmax.f32 %v2633, %v2634
        %2716 = vmax.xlane.f32.xlu0 %v2715
        %v2717 = vpop.xlane.xlu0 %2716
        %v2718 = vmax.f32 %v2635, %v2636
        %2719 = vmax.xlane.f32.xlu0 %v2718
        %v2720 = vpop.xlane.xlu0 %2719
        %v2721 = vmax.f32 %v2637, %v2638
        %2722 = vmax.xlane.f32.xlu0 %v2721
        %v2723 = vpop.xlane.xlu0 %2722
        %v2724 = vmax.f32 %v2639, %v2640
        %2725 = vmax.xlane.f32.xlu0 %v2724
        %v2726 = vpop.xlane.xlu0 %2725
        %v2727 = vmax.f32 %v2641, %v2642
        %2728 = vmax.xlane.f32.xlu0 %v2727
        %v2729 = vpop.xlane.xlu0 %2728
        %v2730 = vmax.f32 %v2643, %v2644
        %2731 = vmax.xlane.f32.xlu0 %v2730
        %v2732 = vpop.xlane.xlu0 %2731
        %v2733 = vmax.f32 %v2645, %v2646
        %2734 = vmax.xlane.f32.xlu0 %v2733
        %v2735 = vpop.xlane.xlu0 %2734
        %v2736 = vmax.f32 %v2647, %v2648
        %2737 = vmax.xlane.f32.xlu0 %v2736
        %v2738 = vpop.xlane.xlu0 %2737
        %v2739 = vmax.f32 %v2649, %v2650
        %2740 = vmax.xlane.f32.xlu0 %v2739
        %v2741 = vpop.xlane.xlu0 %2740
        %v2742 = vmax.f32 %v2651, %v2652
        %2743 = vmax.xlane.f32.xlu0 %v2742
        %v2744 = vpop.xlane.xlu0 %2743
        %v2745 = vmax.f32 %v2653, %v2654
        %2746 = vmax.xlane.f32.xlu0 %v2745
        %v2747 = vpop.xlane.xlu0 %2746
        %v2748 = vmax.f32 %v2655, %v2656
        %2749 = vmax.xlane.f32.xlu0 %v2748
        %v2750 = vpop.xlane.xlu0 %2749
        %v2751 = vmax.f32 %v2657, %v2658
        %2752 = vmax.xlane.f32.xlu0 %v2751
        %v2753 = vpop.xlane.xlu0 %2752
        %v2754 = vmax.f32 %v2659, %v2660
        %2755 = vmax.xlane.f32.xlu0 %v2754
        %v2756 = vpop.xlane.xlu0 %2755
        %vm2757 = vcmp.eq.f32.partialorder %v2597, %v2663
        %vm2758 = vcmp.eq.f32.partialorder %v2598, %v2663
        %vm2759 = vcmp.eq.f32.partialorder %v2599, %v2666
        %vm2760 = vcmp.eq.f32.partialorder %v2600, %v2666
        %vm2761 = vcmp.eq.f32.partialorder %v2601, %v2669
        %vm2762 = vcmp.eq.f32.partialorder %v2602, %v2669
        %vm2763 = vcmp.eq.f32.partialorder %v2603, %v2672
        %vm2764 = vcmp.eq.f32.partialorder %v2604, %v2672
        %vm2765 = vcmp.eq.f32.partialorder %v2605, %v2675
        %vm2766 = vcmp.eq.f32.partialorder %v2606, %v2675
        %vm2767 = vcmp.eq.f32.partialorder %v2607, %v2678
        %vm2768 = vcmp.eq.f32.partialorder %v2608, %v2678
        %vm2769 = vcmp.eq.f32.partialorder %v2609, %v2681
        %vm2770 = vcmp.eq.f32.partialorder %v2610, %v2681
        %vm2771 = vcmp.eq.f32.partialorder %v2611, %v2684
        %vm2772 = vcmp.eq.f32.partialorder %v2612, %v2684
        %vm2773 = vcmp.eq.f32.partialorder %v2613, %v2687
        %vm2774 = vcmp.eq.f32.partialorder %v2614, %v2687
        %vm2775 = vcmp.eq.f32.partialorder %v2615, %v2690
        %vm2776 = vcmp.eq.f32.partialorder %v2616, %v2690
        %vm2777 = vcmp.eq.f32.partialorder %v2617, %v2693
        %vm2778 = vcmp.eq.f32.partialorder %v2618, %v2693
        %vm2779 = vcmp.eq.f32.partialorder %v2619, %v2696
        %vm2780 = vcmp.eq.f32.partialorder %v2620, %v2696
        %vm2781 = vcmp.eq.f32.partialorder %v2621, %v2699
        %vm2782 = vcmp.eq.f32.partialorder %v2622, %v2699
        %vm2783 = vcmp.eq.f32.partialorder %v2623, %v2702
        %vm2784 = vcmp.eq.f32.partialorder %v2624, %v2702
        %vm2785 = vcmp.eq.f32.partialorder %v2625, %v2705
        %vm2786 = vcmp.eq.f32.partialorder %v2626, %v2705
        %vm2787 = vcmp.eq.f32.partialorder %v2627, %v2708
        %vm2788 = vcmp.eq.f32.partialorder %v2628, %v2708
        %vm2789 = vcmp.eq.f32.partialorder %v2629, %v2711
        %vm2790 = vcmp.eq.f32.partialorder %v2630, %v2711
        %vm2791 = vcmp.eq.f32.partialorder %v2631, %v2714
        %vm2792 = vcmp.eq.f32.partialorder %v2632, %v2714
        %vm2793 = vcmp.eq.f32.partialorder %v2633, %v2717
        %vm2794 = vcmp.eq.f32.partialorder %v2634, %v2717
        %vm2795 = vcmp.eq.f32.partialorder %v2635, %v2720
        %vm2796 = vcmp.eq.f32.partialorder %v2636, %v2720
        %vm2797 = vcmp.eq.f32.partialorder %v2637, %v2723
        %vm2798 = vcmp.eq.f32.partialorder %v2638, %v2723
        %vm2799 = vcmp.eq.f32.partialorder %v2639, %v2726
        %vm2800 = vcmp.eq.f32.partialorder %v2640, %v2726
        %vm2801 = vcmp.eq.f32.partialorder %v2641, %v2729
        %vm2802 = vcmp.eq.f32.partialorder %v2642, %v2729
        %vm2803 = vcmp.eq.f32.partialorder %v2643, %v2732
        %vm2804 = vcmp.eq.f32.partialorder %v2644, %v2732
        %vm2805 = vcmp.eq.f32.partialorder %v2645, %v2735
        %vm2806 = vcmp.eq.f32.partialorder %v2646, %v2735
        %vm2807 = vcmp.eq.f32.partialorder %v2647, %v2738
        %vm2808 = vcmp.eq.f32.partialorder %v2648, %v2738
        %vm2809 = vcmp.eq.f32.partialorder %v2649, %v2741
        %vm2810 = vcmp.eq.f32.partialorder %v2650, %v2741
        %vm2811 = vcmp.eq.f32.partialorder %v2651, %v2744
        %vm2812 = vcmp.eq.f32.partialorder %v2652, %v2744
        %vm2813 = vcmp.eq.f32.partialorder %v2653, %v2747
        %vm2814 = vcmp.eq.f32.partialorder %v2654, %v2747
        %vm2815 = vcmp.eq.f32.partialorder %v2655, %v2750
        %vm2816 = vcmp.eq.f32.partialorder %v2656, %v2750
        %vm2817 = vcmp.eq.f32.partialorder %v2657, %v2753
        %vm2818 = vcmp.eq.f32.partialorder %v2658, %v2753
        %vm2819 = vcmp.eq.f32.partialorder %v2659, %v2756
        %vm2820 = vcmp.eq.f32.partialorder %v2660, %v2756
        %v2821 = vsel %vm2757, %v707, 256
        %v2822 = vsel %vm2758, %v708, 256
        %v2823 = vsel %vm2759, %v707, 256
        %v2824 = vsel %vm2760, %v708, 256
        %v2825 = vsel %vm2761, %v707, 256
        %v2826 = vsel %vm2762, %v708, 256
        %v2827 = vsel %vm2763, %v707, 256
        %v2828 = vsel %vm2764, %v708, 256
        %v2829 = vsel %vm2765, %v707, 256
        %v2830 = vsel %vm2766, %v708, 256
        %v2831 = vsel %vm2767, %v707, 256
        %v2832 = vsel %vm2768, %v708, 256
        %v2833 = vsel %vm2769, %v707, 256
        %v2834 = vsel %vm2770, %v708, 256
        %v2835 = vsel %vm2771, %v707, 256
        %v2836 = vsel %vm2772, %v708, 256
        %v2837 = vsel %vm2773, %v707, 256
        %v2838 = vsel %vm2774, %v708, 256
        %v2839 = vsel %vm2775, %v707, 256
        %v2840 = vsel %vm2776, %v708, 256
        %v2841 = vsel %vm2777, %v707, 256
        %v2842 = vsel %vm2778, %v708, 256
        %v2843 = vsel %vm2779, %v707, 256
        %v2844 = vsel %vm2780, %v708, 256
        %v2845 = vsel %vm2781, %v707, 256
        %v2846 = vsel %vm2782, %v708, 256
        %v2847 = vsel %vm2783, %v707, 256
        %v2848 = vsel %vm2784, %v708, 256
        %v2849 = vsel %vm2785, %v707, 256
        %v2850 = vsel %vm2786, %v708, 256
        %v2851 = vsel %vm2787, %v707, 256
        %v2852 = vsel %vm2788, %v708, 256
        %v2853 = vsel %vm2789, %v707, 256
        %v2854 = vsel %vm2790, %v708, 256
        %v2855 = vsel %vm2791, %v707, 256
        %v2856 = vsel %vm2792, %v708, 256
        %v2857 = vsel %vm2793, %v707, 256
        %v2858 = vsel %vm2794, %v708, 256
        %v2859 = vsel %vm2795, %v707, 256
        %v2860 = vsel %vm2796, %v708, 256
        %v2861 = vsel %vm2797, %v707, 256
        %v2862 = vsel %vm2798, %v708, 256
        %v2863 = vsel %vm2799, %v707, 256
        %v2864 = vsel %vm2800, %v708, 256
        %v2865 = vsel %vm2801, %v707, 256
        %v2866 = vsel %vm2802, %v708, 256
        %v2867 = vsel %vm2803, %v707, 256
        %v2868 = vsel %vm2804, %v708, 256
        %v2869 = vsel %vm2805, %v707, 256
        %v2870 = vsel %vm2806, %v708, 256
        %v2871 = vsel %vm2807, %v707, 256
        %v2872 = vsel %vm2808, %v708, 256
        %v2873 = vsel %vm2809, %v707, 256
        %v2874 = vsel %vm2810, %v708, 256
        %v2875 = vsel %vm2811, %v707, 256
        %v2876 = vsel %vm2812, %v708, 256
        %v2877 = vsel %vm2813, %v707, 256
        %v2878 = vsel %vm2814, %v708, 256
        %v2879 = vsel %vm2815, %v707, 256
        %v2880 = vsel %vm2816, %v708, 256
        %v2881 = vsel %vm2817, %v707, 256
        %v2882 = vsel %vm2818, %v708, 256
        %v2883 = vsel %vm2819, %v707, 256
        %v2884 = vsel %vm2820, %v708, 256
        %vm2885 = vcmp.lt.s32.totalorder %v2821, %v2822
        %v2886 = vsel %vm2885, %v2821, %v2822
        %v2887 = vand.u32 %v2886, 65535
        %v2888 = vshra.s32 %v2886, 16
        %v2889 = vcvt.s32.f32 %v2887
        %v2890 = vcvt.s32.f32 %v2888
        %2891 = vmin.xlane.f32.xlu0 %v2890
        %v2892 = vpop.xlane.xlu0 %2891
        %vm2893 = vcmp.eq.f32.partialorder %v2890, %v2892
        %v2894 = vsel %vm2893, %v2889, inf
        %2895 = vmin.xlane.f32.xlu0 %v2894
        %v2896 = vpop.xlane.xlu0 %2895
        %v2897 = vcvt.f32.s32 %v2896
        %v2898 = vcvt.f32.s32 %v2892
        %v2899 = vshll.u32 %v2898, 16
        %v2900 = vadd.s32 %v2899, %v2897
        %vm2901 = vcmp.lt.s32.totalorder %v2823, %v2824
        %v2902 = vsel %vm2901, %v2823, %v2824
        %v2903 = vand.u32 %v2902, 65535
        %v2904 = vshra.s32 %v2902, 16
        %v2905 = vcvt.s32.f32 %v2903
        %v2906 = vcvt.s32.f32 %v2904
        %2907 = vmin.xlane.f32.xlu0 %v2906
        %v2908 = vpop.xlane.xlu0 %2907
        %vm2909 = vcmp.eq.f32.partialorder %v2906, %v2908
        %v2910 = vsel %vm2909, %v2905, inf
        %2911 = vmin.xlane.f32.xlu0 %v2910
        %v2912 = vpop.xlane.xlu0 %2911
        %v2913 = vcvt.f32.s32 %v2912
        %v2914 = vcvt.f32.s32 %v2908
        %v2915 = vshll.u32 %v2914, 16
        %v2916 = vadd.s32 %v2915, %v2913
        %vm2917 = vcmp.lt.s32.totalorder %v2825, %v2826
        %v2918 = vsel %vm2917, %v2825, %v2826
        %v2919 = vand.u32 %v2918, 65535
        %v2920 = vshra.s32 %v2918, 16
        %v2921 = vcvt.s32.f32 %v2919
        %v2922 = vcvt.s32.f32 %v2920
        %2923 = vmin.xlane.f32.xlu0 %v2922
        %v2924 = vpop.xlane.xlu0 %2923
        %vm2925 = vcmp.eq.f32.partialorder %v2922, %v2924
        %v2926 = vsel %vm2925, %v2921, inf
        %2927 = vmin.xlane.f32.xlu0 %v2926
        %v2928 = vpop.xlane.xlu0 %2927
        %v2929 = vcvt.f32.s32 %v2928
        %v2930 = vcvt.f32.s32 %v2924
        %v2931 = vshll.u32 %v2930, 16
        %v2932 = vadd.s32 %v2931, %v2929
        %vm2933 = vcmp.lt.s32.totalorder %v2827, %v2828
        %v2934 = vsel %vm2933, %v2827, %v2828
        %v2935 = vand.u32 %v2934, 65535
        %v2936 = vshra.s32 %v2934, 16
        %v2937 = vcvt.s32.f32 %v2935
        %v2938 = vcvt.s32.f32 %v2936
        %2939 = vmin.xlane.f32.xlu0 %v2938
        %v2940 = vpop.xlane.xlu0 %2939
        %vm2941 = vcmp.eq.f32.partialorder %v2938, %v2940
        %v2942 = vsel %vm2941, %v2937, inf
        %2943 = vmin.xlane.f32.xlu0 %v2942
        %v2944 = vpop.xlane.xlu0 %2943
        %v2945 = vcvt.f32.s32 %v2944
        %v2946 = vcvt.f32.s32 %v2940
        %v2947 = vshll.u32 %v2946, 16
        %v2948 = vadd.s32 %v2947, %v2945
        %vm2949 = vcmp.lt.s32.totalorder %v2829, %v2830
        %v2950 = vsel %vm2949, %v2829, %v2830
        %v2951 = vand.u32 %v2950, 65535
        %v2952 = vshra.s32 %v2950, 16
        %v2953 = vcvt.s32.f32 %v2951
        %v2954 = vcvt.s32.f32 %v2952
        %2955 = vmin.xlane.f32.xlu0 %v2954
        %v2956 = vpop.xlane.xlu0 %2955
        %vm2957 = vcmp.eq.f32.partialorder %v2954, %v2956
        %v2958 = vsel %vm2957, %v2953, inf
        %2959 = vmin.xlane.f32.xlu0 %v2958
        %v2960 = vpop.xlane.xlu0 %2959
        %v2961 = vcvt.f32.s32 %v2960
        %v2962 = vcvt.f32.s32 %v2956
        %v2963 = vshll.u32 %v2962, 16
        %v2964 = vadd.s32 %v2963, %v2961
        %vm2965 = vcmp.lt.s32.totalorder %v2831, %v2832
        %v2966 = vsel %vm2965, %v2831, %v2832
        %v2967 = vand.u32 %v2966, 65535
        %v2968 = vshra.s32 %v2966, 16
        %v2969 = vcvt.s32.f32 %v2967
        %v2970 = vcvt.s32.f32 %v2968
        %2971 = vmin.xlane.f32.xlu0 %v2970
        %v2972 = vpop.xlane.xlu0 %2971
        %vm2973 = vcmp.eq.f32.partialorder %v2970, %v2972
        %v2974 = vsel %vm2973, %v2969, inf
        %2975 = vmin.xlane.f32.xlu0 %v2974
        %v2976 = vpop.xlane.xlu0 %2975
        %v2977 = vcvt.f32.s32 %v2976
        %v2978 = vcvt.f32.s32 %v2972
        %v2979 = vshll.u32 %v2978, 16
        %v2980 = vadd.s32 %v2979, %v2977
        %vm2981 = vcmp.lt.s32.totalorder %v2833, %v2834
        %v2982 = vsel %vm2981, %v2833, %v2834
        %v2983 = vand.u32 %v2982, 65535
        %v2984 = vshra.s32 %v2982, 16
        %v2985 = vcvt.s32.f32 %v2983
        %v2986 = vcvt.s32.f32 %v2984
        %2987 = vmin.xlane.f32.xlu0 %v2986
        %v2988 = vpop.xlane.xlu0 %2987
        %vm2989 = vcmp.eq.f32.partialorder %v2986, %v2988
        %v2990 = vsel %vm2989, %v2985, inf
        %2991 = vmin.xlane.f32.xlu0 %v2990
        %v2992 = vpop.xlane.xlu0 %2991
        %v2993 = vcvt.f32.s32 %v2992
        %v2994 = vcvt.f32.s32 %v2988
        %v2995 = vshll.u32 %v2994, 16
        %v2996 = vadd.s32 %v2995, %v2993
        %vm2997 = vcmp.lt.s32.totalorder %v2835, %v2836
        %v2998 = vsel %vm2997, %v2835, %v2836
        %v2999 = vand.u32 %v2998, 65535
        %v3000 = vshra.s32 %v2998, 16
        %v3001 = vcvt.s32.f32 %v2999
        %v3002 = vcvt.s32.f32 %v3000
        %3003 = vmin.xlane.f32.xlu0 %v3002
        %v3004 = vpop.xlane.xlu0 %3003
        %vm3005 = vcmp.eq.f32.partialorder %v3002, %v3004
        %v3006 = vsel %vm3005, %v3001, inf
        %3007 = vmin.xlane.f32.xlu0 %v3006
        %v3008 = vpop.xlane.xlu0 %3007
        %v3009 = vcvt.f32.s32 %v3008
        %v3010 = vcvt.f32.s32 %v3004
        %v3011 = vshll.u32 %v3010, 16
        %v3012 = vadd.s32 %v3011, %v3009
        %vm3013 = vcmp.lt.s32.totalorder %v2837, %v2838
        %v3014 = vsel %vm3013, %v2837, %v2838
        %v3015 = vand.u32 %v3014, 65535
        %v3016 = vshra.s32 %v3014, 16
        %v3017 = vcvt.s32.f32 %v3015
        %v3018 = vcvt.s32.f32 %v3016
        %3019 = vmin.xlane.f32.xlu0 %v3018
        %v3020 = vpop.xlane.xlu0 %3019
        %vm3021 = vcmp.eq.f32.partialorder %v3018, %v3020
        %v3022 = vsel %vm3021, %v3017, inf
        %3023 = vmin.xlane.f32.xlu0 %v3022
        %v3024 = vpop.xlane.xlu0 %3023
        %v3025 = vcvt.f32.s32 %v3024
        %v3026 = vcvt.f32.s32 %v3020
        %v3027 = vshll.u32 %v3026, 16
        %v3028 = vadd.s32 %v3027, %v3025
        %vm3029 = vcmp.lt.s32.totalorder %v2839, %v2840
        %v3030 = vsel %vm3029, %v2839, %v2840
        %v3031 = vand.u32 %v3030, 65535
        %v3032 = vshra.s32 %v3030, 16
        %v3033 = vcvt.s32.f32 %v3031
        %v3034 = vcvt.s32.f32 %v3032
        %3035 = vmin.xlane.f32.xlu0 %v3034
        %v3036 = vpop.xlane.xlu0 %3035
        %vm3037 = vcmp.eq.f32.partialorder %v3034, %v3036
        %v3038 = vsel %vm3037, %v3033, inf
        %3039 = vmin.xlane.f32.xlu0 %v3038
        %v3040 = vpop.xlane.xlu0 %3039
        %v3041 = vcvt.f32.s32 %v3040
        %v3042 = vcvt.f32.s32 %v3036
        %v3043 = vshll.u32 %v3042, 16
        %v3044 = vadd.s32 %v3043, %v3041
        %vm3045 = vcmp.lt.s32.totalorder %v2841, %v2842
        %v3046 = vsel %vm3045, %v2841, %v2842
        %v3047 = vand.u32 %v3046, 65535
        %v3048 = vshra.s32 %v3046, 16
        %v3049 = vcvt.s32.f32 %v3047
        %v3050 = vcvt.s32.f32 %v3048
        %3051 = vmin.xlane.f32.xlu0 %v3050
        %v3052 = vpop.xlane.xlu0 %3051
        %vm3053 = vcmp.eq.f32.partialorder %v3050, %v3052
        %v3054 = vsel %vm3053, %v3049, inf
        %3055 = vmin.xlane.f32.xlu0 %v3054
        %v3056 = vpop.xlane.xlu0 %3055
        %v3057 = vcvt.f32.s32 %v3056
        %v3058 = vcvt.f32.s32 %v3052
        %v3059 = vshll.u32 %v3058, 16
        %v3060 = vadd.s32 %v3059, %v3057
        %vm3061 = vcmp.lt.s32.totalorder %v2843, %v2844
        %v3062 = vsel %vm3061, %v2843, %v2844
        %v3063 = vand.u32 %v3062, 65535
        %v3064 = vshra.s32 %v3062, 16
        %v3065 = vcvt.s32.f32 %v3063
        %v3066 = vcvt.s32.f32 %v3064
        %3067 = vmin.xlane.f32.xlu0 %v3066
        %v3068 = vpop.xlane.xlu0 %3067
        %vm3069 = vcmp.eq.f32.partialorder %v3066, %v3068
        %v3070 = vsel %vm3069, %v3065, inf
        %3071 = vmin.xlane.f32.xlu0 %v3070
        %v3072 = vpop.xlane.xlu0 %3071
        %v3073 = vcvt.f32.s32 %v3072
        %v3074 = vcvt.f32.s32 %v3068
        %v3075 = vshll.u32 %v3074, 16
        %v3076 = vadd.s32 %v3075, %v3073
        %vm3077 = vcmp.lt.s32.totalorder %v2845, %v2846
        %v3078 = vsel %vm3077, %v2845, %v2846
        %v3079 = vand.u32 %v3078, 65535
        %v3080 = vshra.s32 %v3078, 16
        %v3081 = vcvt.s32.f32 %v3079
        %v3082 = vcvt.s32.f32 %v3080
        %3083 = vmin.xlane.f32.xlu0 %v3082
        %v3084 = vpop.xlane.xlu0 %3083
        %vm3085 = vcmp.eq.f32.partialorder %v3082, %v3084
        %v3086 = vsel %vm3085, %v3081, inf
        %3087 = vmin.xlane.f32.xlu0 %v3086
        %v3088 = vpop.xlane.xlu0 %3087
        %v3089 = vcvt.f32.s32 %v3088
        %v3090 = vcvt.f32.s32 %v3084
        %v3091 = vshll.u32 %v3090, 16
        %v3092 = vadd.s32 %v3091, %v3089
        %vm3093 = vcmp.lt.s32.totalorder %v2847, %v2848
        %v3094 = vsel %vm3093, %v2847, %v2848
        %v3095 = vand.u32 %v3094, 65535
        %v3096 = vshra.s32 %v3094, 16
        %v3097 = vcvt.s32.f32 %v3095
        %v3098 = vcvt.s32.f32 %v3096
        %3099 = vmin.xlane.f32.xlu0 %v3098
        %v3100 = vpop.xlane.xlu0 %3099
        %vm3101 = vcmp.eq.f32.partialorder %v3098, %v3100
        %v3102 = vsel %vm3101, %v3097, inf
        %3103 = vmin.xlane.f32.xlu0 %v3102
        %v3104 = vpop.xlane.xlu0 %3103
        %v3105 = vcvt.f32.s32 %v3104
        %v3106 = vcvt.f32.s32 %v3100
        %v3107 = vshll.u32 %v3106, 16
        %v3108 = vadd.s32 %v3107, %v3105
        %vm3109 = vcmp.lt.s32.totalorder %v2849, %v2850
        %v3110 = vsel %vm3109, %v2849, %v2850
        %v3111 = vand.u32 %v3110, 65535
        %v3112 = vshra.s32 %v3110, 16
        %v3113 = vcvt.s32.f32 %v3111
        %v3114 = vcvt.s32.f32 %v3112
        %3115 = vmin.xlane.f32.xlu0 %v3114
        %v3116 = vpop.xlane.xlu0 %3115
        %vm3117 = vcmp.eq.f32.partialorder %v3114, %v3116
        %v3118 = vsel %vm3117, %v3113, inf
        %3119 = vmin.xlane.f32.xlu0 %v3118
        %v3120 = vpop.xlane.xlu0 %3119
        %v3121 = vcvt.f32.s32 %v3120
        %v3122 = vcvt.f32.s32 %v3116
        %v3123 = vshll.u32 %v3122, 16
        %v3124 = vadd.s32 %v3123, %v3121
        %vm3125 = vcmp.lt.s32.totalorder %v2851, %v2852
        %v3126 = vsel %vm3125, %v2851, %v2852
        %v3127 = vand.u32 %v3126, 65535
        %v3128 = vshra.s32 %v3126, 16
        %v3129 = vcvt.s32.f32 %v3127
        %v3130 = vcvt.s32.f32 %v3128
        %3131 = vmin.xlane.f32.xlu0 %v3130
        %v3132 = vpop.xlane.xlu0 %3131
        %vm3133 = vcmp.eq.f32.partialorder %v3130, %v3132
        %v3134 = vsel %vm3133, %v3129, inf
        %3135 = vmin.xlane.f32.xlu0 %v3134
        %v3136 = vpop.xlane.xlu0 %3135
        %v3137 = vcvt.f32.s32 %v3136
        %v3138 = vcvt.f32.s32 %v3132
        %v3139 = vshll.u32 %v3138, 16
        %v3140 = vadd.s32 %v3139, %v3137
        %vm3141 = vcmp.lt.s32.totalorder %v2853, %v2854
        %v3142 = vsel %vm3141, %v2853, %v2854
        %v3143 = vand.u32 %v3142, 65535
        %v3144 = vshra.s32 %v3142, 16
        %v3145 = vcvt.s32.f32 %v3143
        %v3146 = vcvt.s32.f32 %v3144
        %3147 = vmin.xlane.f32.xlu0 %v3146
        %v3148 = vpop.xlane.xlu0 %3147
        %vm3149 = vcmp.eq.f32.partialorder %v3146, %v3148
        %v3150 = vsel %vm3149, %v3145, inf
        %3151 = vmin.xlane.f32.xlu0 %v3150
        %v3152 = vpop.xlane.xlu0 %3151
        %v3153 = vcvt.f32.s32 %v3152
        %v3154 = vcvt.f32.s32 %v3148
        %v3155 = vshll.u32 %v3154, 16
        %v3156 = vadd.s32 %v3155, %v3153
        %vm3157 = vcmp.lt.s32.totalorder %v2855, %v2856
        %v3158 = vsel %vm3157, %v2855, %v2856
        %v3159 = vand.u32 %v3158, 65535
        %v3160 = vshra.s32 %v3158, 16
        %v3161 = vcvt.s32.f32 %v3159
        %v3162 = vcvt.s32.f32 %v3160
        %3163 = vmin.xlane.f32.xlu0 %v3162
        %v3164 = vpop.xlane.xlu0 %3163
        %vm3165 = vcmp.eq.f32.partialorder %v3162, %v3164
        %v3166 = vsel %vm3165, %v3161, inf
        %3167 = vmin.xlane.f32.xlu0 %v3166
        %v3168 = vpop.xlane.xlu0 %3167
        %v3169 = vcvt.f32.s32 %v3168
        %v3170 = vcvt.f32.s32 %v3164
        %v3171 = vshll.u32 %v3170, 16
        %v3172 = vadd.s32 %v3171, %v3169
        %vm3173 = vcmp.lt.s32.totalorder %v2857, %v2858
        %v3174 = vsel %vm3173, %v2857, %v2858
        %v3175 = vand.u32 %v3174, 65535
        %v3176 = vshra.s32 %v3174, 16
        %v3177 = vcvt.s32.f32 %v3175
        %v3178 = vcvt.s32.f32 %v3176
        %3179 = vmin.xlane.f32.xlu0 %v3178
        %v3180 = vpop.xlane.xlu0 %3179
        %vm3181 = vcmp.eq.f32.partialorder %v3178, %v3180
        %v3182 = vsel %vm3181, %v3177, inf
        %3183 = vmin.xlane.f32.xlu0 %v3182
        %v3184 = vpop.xlane.xlu0 %3183
        %v3185 = vcvt.f32.s32 %v3184
        %v3186 = vcvt.f32.s32 %v3180
        %v3187 = vshll.u32 %v3186, 16
        %v3188 = vadd.s32 %v3187, %v3185
        %vm3189 = vcmp.lt.s32.totalorder %v2859, %v2860
        %v3190 = vsel %vm3189, %v2859, %v2860
        %v3191 = vand.u32 %v3190, 65535
        %v3192 = vshra.s32 %v3190, 16
        %v3193 = vcvt.s32.f32 %v3191
        %v3194 = vcvt.s32.f32 %v3192
        %3195 = vmin.xlane.f32.xlu0 %v3194
        %v3196 = vpop.xlane.xlu0 %3195
        %vm3197 = vcmp.eq.f32.partialorder %v3194, %v3196
        %v3198 = vsel %vm3197, %v3193, inf
        %3199 = vmin.xlane.f32.xlu0 %v3198
        %v3200 = vpop.xlane.xlu0 %3199
        %v3201 = vcvt.f32.s32 %v3200
        %v3202 = vcvt.f32.s32 %v3196
        %v3203 = vshll.u32 %v3202, 16
        %v3204 = vadd.s32 %v3203, %v3201
        %vm3205 = vcmp.lt.s32.totalorder %v2861, %v2862
        %v3206 = vsel %vm3205, %v2861, %v2862
        %v3207 = vand.u32 %v3206, 65535
        %v3208 = vshra.s32 %v3206, 16
        %v3209 = vcvt.s32.f32 %v3207
        %v3210 = vcvt.s32.f32 %v3208
        %3211 = vmin.xlane.f32.xlu0 %v3210
        %v3212 = vpop.xlane.xlu0 %3211
        %vm3213 = vcmp.eq.f32.partialorder %v3210, %v3212
        %v3214 = vsel %vm3213, %v3209, inf
        %3215 = vmin.xlane.f32.xlu0 %v3214
        %v3216 = vpop.xlane.xlu0 %3215
        %v3217 = vcvt.f32.s32 %v3216
        %v3218 = vcvt.f32.s32 %v3212
        %v3219 = vshll.u32 %v3218, 16
        %v3220 = vadd.s32 %v3219, %v3217
        %vm3221 = vcmp.lt.s32.totalorder %v2863, %v2864
        %v3222 = vsel %vm3221, %v2863, %v2864
        %v3223 = vand.u32 %v3222, 65535
        %v3224 = vshra.s32 %v3222, 16
        %v3225 = vcvt.s32.f32 %v3223
        %v3226 = vcvt.s32.f32 %v3224
        %3227 = vmin.xlane.f32.xlu0 %v3226
        %v3228 = vpop.xlane.xlu0 %3227
        %vm3229 = vcmp.eq.f32.partialorder %v3226, %v3228
        %v3230 = vsel %vm3229, %v3225, inf
        %3231 = vmin.xlane.f32.xlu0 %v3230
        %v3232 = vpop.xlane.xlu0 %3231
        %v3233 = vcvt.f32.s32 %v3232
        %v3234 = vcvt.f32.s32 %v3228
        %v3235 = vshll.u32 %v3234, 16
        %v3236 = vadd.s32 %v3235, %v3233
        %vm3237 = vcmp.lt.s32.totalorder %v2865, %v2866
        %v3238 = vsel %vm3237, %v2865, %v2866
        %v3239 = vand.u32 %v3238, 65535
        %v3240 = vshra.s32 %v3238, 16
        %v3241 = vcvt.s32.f32 %v3239
        %v3242 = vcvt.s32.f32 %v3240
        %3243 = vmin.xlane.f32.xlu0 %v3242
        %v3244 = vpop.xlane.xlu0 %3243
        %vm3245 = vcmp.eq.f32.partialorder %v3242, %v3244
        %v3246 = vsel %vm3245, %v3241, inf
        %3247 = vmin.xlane.f32.xlu0 %v3246
        %v3248 = vpop.xlane.xlu0 %3247
        %v3249 = vcvt.f32.s32 %v3248
        %v3250 = vcvt.f32.s32 %v3244
        %v3251 = vshll.u32 %v3250, 16
        %v3252 = vadd.s32 %v3251, %v3249
        %vm3253 = vcmp.lt.s32.totalorder %v2867, %v2868
        %v3254 = vsel %vm3253, %v2867, %v2868
        %v3255 = vand.u32 %v3254, 65535
        %v3256 = vshra.s32 %v3254, 16
        %v3257 = vcvt.s32.f32 %v3255
        %v3258 = vcvt.s32.f32 %v3256
        %3259 = vmin.xlane.f32.xlu0 %v3258
        %v3260 = vpop.xlane.xlu0 %3259
        %vm3261 = vcmp.eq.f32.partialorder %v3258, %v3260
        %v3262 = vsel %vm3261, %v3257, inf
        %3263 = vmin.xlane.f32.xlu0 %v3262
        %v3264 = vpop.xlane.xlu0 %3263
        %v3265 = vcvt.f32.s32 %v3264
        %v3266 = vcvt.f32.s32 %v3260
        %v3267 = vshll.u32 %v3266, 16
        %v3268 = vadd.s32 %v3267, %v3265
        %vm3269 = vcmp.lt.s32.totalorder %v2869, %v2870
        %v3270 = vsel %vm3269, %v2869, %v2870
        %v3271 = vand.u32 %v3270, 65535
        %v3272 = vshra.s32 %v3270, 16
        %v3273 = vcvt.s32.f32 %v3271
        %v3274 = vcvt.s32.f32 %v3272
        %3275 = vmin.xlane.f32.xlu0 %v3274
        %v3276 = vpop.xlane.xlu0 %3275
        %vm3277 = vcmp.eq.f32.partialorder %v3274, %v3276
        %v3278 = vsel %vm3277, %v3273, inf
        %3279 = vmin.xlane.f32.xlu0 %v3278
        %v3280 = vpop.xlane.xlu0 %3279
        %v3281 = vcvt.f32.s32 %v3280
        %v3282 = vcvt.f32.s32 %v3276
        %v3283 = vshll.u32 %v3282, 16
        %v3284 = vadd.s32 %v3283, %v3281
        %vm3285 = vcmp.lt.s32.totalorder %v2871, %v2872
        %v3286 = vsel %vm3285, %v2871, %v2872
        %v3287 = vand.u32 %v3286, 65535
        %v3288 = vshra.s32 %v3286, 16
        %v3289 = vcvt.s32.f32 %v3287
        %v3290 = vcvt.s32.f32 %v3288
        %3291 = vmin.xlane.f32.xlu0 %v3290
        %v3292 = vpop.xlane.xlu0 %3291
        %vm3293 = vcmp.eq.f32.partialorder %v3290, %v3292
        %v3294 = vsel %vm3293, %v3289, inf
        %3295 = vmin.xlane.f32.xlu0 %v3294
        %v3296 = vpop.xlane.xlu0 %3295
        %v3297 = vcvt.f32.s32 %v3296
        %v3298 = vcvt.f32.s32 %v3292
        %v3299 = vshll.u32 %v3298, 16
        %v3300 = vadd.s32 %v3299, %v3297
        %vm3301 = vcmp.lt.s32.totalorder %v2873, %v2874
        %v3302 = vsel %vm3301, %v2873, %v2874
        %v3303 = vand.u32 %v3302, 65535
        %v3304 = vshra.s32 %v3302, 16
        %v3305 = vcvt.s32.f32 %v3303
        %v3306 = vcvt.s32.f32 %v3304
        %3307 = vmin.xlane.f32.xlu0 %v3306
        %v3308 = vpop.xlane.xlu0 %3307
        %vm3309 = vcmp.eq.f32.partialorder %v3306, %v3308
        %v3310 = vsel %vm3309, %v3305, inf
        %3311 = vmin.xlane.f32.xlu0 %v3310
        %v3312 = vpop.xlane.xlu0 %3311
        %v3313 = vcvt.f32.s32 %v3312
        %v3314 = vcvt.f32.s32 %v3308
        %v3315 = vshll.u32 %v3314, 16
        %v3316 = vadd.s32 %v3315, %v3313
        %vm3317 = vcmp.lt.s32.totalorder %v2875, %v2876
        %v3318 = vsel %vm3317, %v2875, %v2876
        %v3319 = vand.u32 %v3318, 65535
        %v3320 = vshra.s32 %v3318, 16
        %v3321 = vcvt.s32.f32 %v3319
        %v3322 = vcvt.s32.f32 %v3320
        %3323 = vmin.xlane.f32.xlu0 %v3322
        %v3324 = vpop.xlane.xlu0 %3323
        %vm3325 = vcmp.eq.f32.partialorder %v3322, %v3324
        %v3326 = vsel %vm3325, %v3321, inf
        %3327 = vmin.xlane.f32.xlu0 %v3326
        %v3328 = vpop.xlane.xlu0 %3327
        %v3329 = vcvt.f32.s32 %v3328
        %v3330 = vcvt.f32.s32 %v3324
        %v3331 = vshll.u32 %v3330, 16
        %v3332 = vadd.s32 %v3331, %v3329
        %vm3333 = vcmp.lt.s32.totalorder %v2877, %v2878
        %v3334 = vsel %vm3333, %v2877, %v2878
        %v3335 = vand.u32 %v3334, 65535
        %v3336 = vshra.s32 %v3334, 16
        %v3337 = vcvt.s32.f32 %v3335
        %v3338 = vcvt.s32.f32 %v3336
        %3339 = vmin.xlane.f32.xlu0 %v3338
        %v3340 = vpop.xlane.xlu0 %3339
        %vm3341 = vcmp.eq.f32.partialorder %v3338, %v3340
        %v3342 = vsel %vm3341, %v3337, inf
        %3343 = vmin.xlane.f32.xlu0 %v3342
        %v3344 = vpop.xlane.xlu0 %3343
        %v3345 = vcvt.f32.s32 %v3344
        %v3346 = vcvt.f32.s32 %v3340
        %v3347 = vshll.u32 %v3346, 16
        %v3348 = vadd.s32 %v3347, %v3345
        %vm3349 = vcmp.lt.s32.totalorder %v2879, %v2880
        %v3350 = vsel %vm3349, %v2879, %v2880
        %v3351 = vand.u32 %v3350, 65535
        %v3352 = vshra.s32 %v3350, 16
        %v3353 = vcvt.s32.f32 %v3351
        %v3354 = vcvt.s32.f32 %v3352
        %3355 = vmin.xlane.f32.xlu0 %v3354
        %v3356 = vpop.xlane.xlu0 %3355
        %vm3357 = vcmp.eq.f32.partialorder %v3354, %v3356
        %v3358 = vsel %vm3357, %v3353, inf
        %3359 = vmin.xlane.f32.xlu0 %v3358
        %v3360 = vpop.xlane.xlu0 %3359
        %v3361 = vcvt.f32.s32 %v3360
        %v3362 = vcvt.f32.s32 %v3356
        %v3363 = vshll.u32 %v3362, 16
        %v3364 = vadd.s32 %v3363, %v3361
        %vm3365 = vcmp.lt.s32.totalorder %v2881, %v2882
        %v3366 = vsel %vm3365, %v2881, %v2882
        %v3367 = vand.u32 %v3366, 65535
        %v3368 = vshra.s32 %v3366, 16
        %v3369 = vcvt.s32.f32 %v3367
        %v3370 = vcvt.s32.f32 %v3368
        %3371 = vmin.xlane.f32.xlu0 %v3370
        %v3372 = vpop.xlane.xlu0 %3371
        %vm3373 = vcmp.eq.f32.partialorder %v3370, %v3372
        %v3374 = vsel %vm3373, %v3369, inf
        %3375 = vmin.xlane.f32.xlu0 %v3374
        %v3376 = vpop.xlane.xlu0 %3375
        %v3377 = vcvt.f32.s32 %v3376
        %v3378 = vcvt.f32.s32 %v3372
        %v3379 = vshll.u32 %v3378, 16
        %v3380 = vadd.s32 %v3379, %v3377
        %vm3381 = vcmp.lt.s32.totalorder %v2883, %v2884
        %v3382 = vsel %vm3381, %v2883, %v2884
        %v3383 = vand.u32 %v3382, 65535
        %v3384 = vshra.s32 %v3382, 16
        %v3385 = vcvt.s32.f32 %v3383
        %v3386 = vcvt.s32.f32 %v3384
        %3387 = vmin.xlane.f32.xlu0 %v3386
        %v3388 = vpop.xlane.xlu0 %3387
        %vm3389 = vcmp.eq.f32.partialorder %v3386, %v3388
        %v3390 = vsel %vm3389, %v3385, inf
        %3391 = vmin.xlane.f32.xlu0 %v3390
        %v3392 = vpop.xlane.xlu0 %3391
        %v3393 = vcvt.f32.s32 %v3392
        %v3394 = vcvt.f32.s32 %v3388
        %v3395 = vshll.u32 %v3394, 16
        %v3396 = vadd.s32 %v3395, %v3393
        %vm3397 = vcmp.eq.s32.totalorder %v707, %v2900
        %vm3398 = vcmp.eq.s32.totalorder %v708, %v2900
        %vm3399 = vcmp.eq.s32.totalorder %v707, %v2916
        %vm3400 = vcmp.eq.s32.totalorder %v708, %v2916
        %vm3401 = vcmp.eq.s32.totalorder %v707, %v2932
        %vm3402 = vcmp.eq.s32.totalorder %v708, %v2932
        %vm3403 = vcmp.eq.s32.totalorder %v707, %v2948
        %vm3404 = vcmp.eq.s32.totalorder %v708, %v2948
        %vm3405 = vcmp.eq.s32.totalorder %v707, %v2964
        %vm3406 = vcmp.eq.s32.totalorder %v708, %v2964
        %vm3407 = vcmp.eq.s32.totalorder %v707, %v2980
        %vm3408 = vcmp.eq.s32.totalorder %v708, %v2980
        %vm3409 = vcmp.eq.s32.totalorder %v707, %v2996
        %vm3410 = vcmp.eq.s32.totalorder %v708, %v2996
        %vm3411 = vcmp.eq.s32.totalorder %v707, %v3012
        %vm3412 = vcmp.eq.s32.totalorder %v708, %v3012
        %vm3413 = vcmp.eq.s32.totalorder %v707, %v3028
        %vm3414 = vcmp.eq.s32.totalorder %v708, %v3028
        %vm3415 = vcmp.eq.s32.totalorder %v707, %v3044
        %vm3416 = vcmp.eq.s32.totalorder %v708, %v3044
        %vm3417 = vcmp.eq.s32.totalorder %v707, %v3060
        %vm3418 = vcmp.eq.s32.totalorder %v708, %v3060
        %vm3419 = vcmp.eq.s32.totalorder %v707, %v3076
        %vm3420 = vcmp.eq.s32.totalorder %v708, %v3076
        %vm3421 = vcmp.eq.s32.totalorder %v707, %v3092
        %vm3422 = vcmp.eq.s32.totalorder %v708, %v3092
        %vm3423 = vcmp.eq.s32.totalorder %v707, %v3108
        %vm3424 = vcmp.eq.s32.totalorder %v708, %v3108
        %vm3425 = vcmp.eq.s32.totalorder %v707, %v3124
        %vm3426 = vcmp.eq.s32.totalorder %v708, %v3124
        %vm3427 = vcmp.eq.s32.totalorder %v707, %v3140
        %vm3428 = vcmp.eq.s32.totalorder %v708, %v3140
        %vm3429 = vcmp.eq.s32.totalorder %v707, %v3156
        %vm3430 = vcmp.eq.s32.totalorder %v708, %v3156
        %vm3431 = vcmp.eq.s32.totalorder %v707, %v3172
        %vm3432 = vcmp.eq.s32.totalorder %v708, %v3172
        %vm3433 = vcmp.eq.s32.totalorder %v707, %v3188
        %vm3434 = vcmp.eq.s32.totalorder %v708, %v3188
        %vm3435 = vcmp.eq.s32.totalorder %v707, %v3204
        %vm3436 = vcmp.eq.s32.totalorder %v708, %v3204
        %vm3437 = vcmp.eq.s32.totalorder %v707, %v3220
        %vm3438 = vcmp.eq.s32.totalorder %v708, %v3220
        %vm3439 = vcmp.eq.s32.totalorder %v707, %v3236
        %vm3440 = vcmp.eq.s32.totalorder %v708, %v3236
        %vm3441 = vcmp.eq.s32.totalorder %v707, %v3252
        %vm3442 = vcmp.eq.s32.totalorder %v708, %v3252
        %vm3443 = vcmp.eq.s32.totalorder %v707, %v3268
        %vm3444 = vcmp.eq.s32.totalorder %v708, %v3268
        %vm3445 = vcmp.eq.s32.totalorder %v707, %v3284
        %vm3446 = vcmp.eq.s32.totalorder %v708, %v3284
        %vm3447 = vcmp.eq.s32.totalorder %v707, %v3300
        %vm3448 = vcmp.eq.s32.totalorder %v708, %v3300
        %vm3449 = vcmp.eq.s32.totalorder %v707, %v3316
        %vm3450 = vcmp.eq.s32.totalorder %v708, %v3316
        %vm3451 = vcmp.eq.s32.totalorder %v707, %v3332
        %vm3452 = vcmp.eq.s32.totalorder %v708, %v3332
        %vm3453 = vcmp.eq.s32.totalorder %v707, %v3348
        %vm3454 = vcmp.eq.s32.totalorder %v708, %v3348
        %vm3455 = vcmp.eq.s32.totalorder %v707, %v3364
        %vm3456 = vcmp.eq.s32.totalorder %v708, %v3364
        %vm3457 = vcmp.eq.s32.totalorder %v707, %v3380
        %vm3458 = vcmp.eq.s32.totalorder %v708, %v3380
        %vm3459 = vcmp.eq.s32.totalorder %v707, %v3396
        %vm3460 = vcmp.eq.s32.totalorder %v708, %v3396
        %v3461 = vsub.f32 %v2663, %v711
        %v3462 = vsub.f32 %v2666, %v714
        %v3463 = vsub.f32 %v2669, %v717
        %v3464 = vsub.f32 %v2672, %v720
        %v3465 = vsub.f32 %v2675, %v723
        %v3466 = vsub.f32 %v2678, %v726
        %v3467 = vsub.f32 %v2681, %v729
        %v3468 = vsub.f32 %v2684, %v732
        %v3469 = vsub.f32 %v2687, %v735
        %v3470 = vsub.f32 %v2690, %v738
        %v3471 = vsub.f32 %v2693, %v741
        %v3472 = vsub.f32 %v2696, %v744
        %v3473 = vsub.f32 %v2699, %v747
        %v3474 = vsub.f32 %v2702, %v750
        %v3475 = vsub.f32 %v2705, %v753
        %v3476 = vsub.f32 %v2708, %v756
        %v3477 = vsub.f32 %v2711, %v759
        %v3478 = vsub.f32 %v2714, %v762
        %v3479 = vsub.f32 %v2717, %v765
        %v3480 = vsub.f32 %v2720, %v768
        %v3481 = vsub.f32 %v2723, %v771
        %v3482 = vsub.f32 %v2726, %v774
        %v3483 = vsub.f32 %v2729, %v777
        %v3484 = vsub.f32 %v2732, %v780
        %v3485 = vsub.f32 %v2735, %v783
        %v3486 = vsub.f32 %v2738, %v786
        %v3487 = vsub.f32 %v2741, %v789
        %v3488 = vsub.f32 %v2744, %v792
        %v3489 = vsub.f32 %v2747, %v795
        %v3490 = vsub.f32 %v2750, %v798
        %v3491 = vsub.f32 %v2753, %v801
        %v3492 = vsub.f32 %v2756, %v804
        %v3493 = vmul.f32 %v3461, 1.442695
        %v3494 = vpow.pop %v3493
        %v3495 = vmul.f32 %v3462, 1.442695
        %v3496 = vpow.pop %v3495
        %v3497 = vmul.f32 %v3463, 1.442695
        %v3498 = vpow.pop %v3497
        %v3499 = vmul.f32 %v3464, 1.442695
        %v3500 = vpow.pop %v3499
        %v3501 = vmul.f32 %v3465, 1.442695
        %v3502 = vpow.pop %v3501
        %v3503 = vmul.f32 %v3466, 1.442695
        %v3504 = vpow.pop %v3503
        %v3505 = vmul.f32 %v3467, 1.442695
        %v3506 = vpow.pop %v3505
        %v3507 = vmul.f32 %v3468, 1.442695
        %v3508 = vpow.pop %v3507
        %v3509 = vmul.f32 %v3469, 1.442695
        %v3510 = vpow.pop %v3509
        %v3511 = vmul.f32 %v3470, 1.442695
        %v3512 = vpow.pop %v3511
        %v3513 = vmul.f32 %v3471, 1.442695
        %v3514 = vpow.pop %v3513
        %v3515 = vmul.f32 %v3472, 1.442695
        %v3516 = vpow.pop %v3515
        %v3517 = vmul.f32 %v3473, 1.442695
        %v3518 = vpow.pop %v3517
        %v3519 = vmul.f32 %v3474, 1.442695
        %v3520 = vpow.pop %v3519
        %v3521 = vmul.f32 %v3475, 1.442695
        %v3522 = vpow.pop %v3521
        %v3523 = vmul.f32 %v3476, 1.442695
        %v3524 = vpow.pop %v3523
        %v3525 = vmul.f32 %v3477, 1.442695
        %v3526 = vpow.pop %v3525
        %v3527 = vmul.f32 %v3478, 1.442695
        %v3528 = vpow.pop %v3527
        %v3529 = vmul.f32 %v3479, 1.442695
        %v3530 = vpow.pop %v3529
        %v3531 = vmul.f32 %v3480, 1.442695
        %v3532 = vpow.pop %v3531
        %v3533 = vmul.f32 %v3481, 1.442695
        %v3534 = vpow.pop %v3533
        %v3535 = vmul.f32 %v3482, 1.442695
        %v3536 = vpow.pop %v3535
        %v3537 = vmul.f32 %v3483, 1.442695
        %v3538 = vpow.pop %v3537
        %v3539 = vmul.f32 %v3484, 1.442695
        %v3540 = vpow.pop %v3539
        %v3541 = vmul.f32 %v3485, 1.442695
        %v3542 = vpow.pop %v3541
        %v3543 = vmul.f32 %v3486, 1.442695
        %v3544 = vpow.pop %v3543
        %v3545 = vmul.f32 %v3487, 1.442695
        %v3546 = vpow.pop %v3545
        %v3547 = vmul.f32 %v3488, 1.442695
        %v3548 = vpow.pop %v3547
        %v3549 = vmul.f32 %v3489, 1.442695
        %v3550 = vpow.pop %v3549
        %v3551 = vmul.f32 %v3490, 1.442695
        %v3552 = vpow.pop %v3551
        %v3553 = vmul.f32 %v3491, 1.442695
        %v3554 = vpow.pop %v3553
        %v3555 = vmul.f32 %v3492, 1.442695
        %v3556 = vpow.pop %v3555
        %v3557 = vsel %vm3397, %v3494, %v2533
        %v3558 = vsel %vm3398, %v3494, %v2534
        %v3559 = vsel %vm3399, %v3496, %v2535
        %v3560 = vsel %vm3400, %v3496, %v2536
        %v3561 = vsel %vm3401, %v3498, %v2537
        %v3562 = vsel %vm3402, %v3498, %v2538
        %v3563 = vsel %vm3403, %v3500, %v2539
        %v3564 = vsel %vm3404, %v3500, %v2540
        %v3565 = vsel %vm3405, %v3502, %v2541
        %v3566 = vsel %vm3406, %v3502, %v2542
        %v3567 = vsel %vm3407, %v3504, %v2543
        %v3568 = vsel %vm3408, %v3504, %v2544
        %v3569 = vsel %vm3409, %v3506, %v2545
        %v3570 = vsel %vm3410, %v3506, %v2546
        %v3571 = vsel %vm3411, %v3508, %v2547
        %v3572 = vsel %vm3412, %v3508, %v2548
        %v3573 = vsel %vm3413, %v3510, %v2549
        %v3574 = vsel %vm3414, %v3510, %v2550
        %v3575 = vsel %vm3415, %v3512, %v2551
        %v3576 = vsel %vm3416, %v3512, %v2552
        %v3577 = vsel %vm3417, %v3514, %v2553
        %v3578 = vsel %vm3418, %v3514, %v2554
        %v3579 = vsel %vm3419, %v3516, %v2555
        %v3580 = vsel %vm3420, %v3516, %v2556
        %v3581 = vsel %vm3421, %v3518, %v2557
        %v3582 = vsel %vm3422, %v3518, %v2558
        %v3583 = vsel %vm3423, %v3520, %v2559
        %v3584 = vsel %vm3424, %v3520, %v2560
        %v3585 = vsel %vm3425, %v3522, %v2561
        %v3586 = vsel %vm3426, %v3522, %v2562
        %v3587 = vsel %vm3427, %v3524, %v2563
        %v3588 = vsel %vm3428, %v3524, %v2564
        %v3589 = vsel %vm3429, %v3526, %v2565
        %v3590 = vsel %vm3430, %v3526, %v2566
        %v3591 = vsel %vm3431, %v3528, %v2567
        %v3592 = vsel %vm3432, %v3528, %v2568
        %v3593 = vsel %vm3433, %v3530, %v2569
        %v3594 = vsel %vm3434, %v3530, %v2570
        %v3595 = vsel %vm3435, %v3532, %v2571
        %v3596 = vsel %vm3436, %v3532, %v2572
        %v3597 = vsel %vm3437, %v3534, %v2573
        %v3598 = vsel %vm3438, %v3534, %v2574
        %v3599 = vsel %vm3439, %v3536, %v2575
        %v3600 = vsel %vm3440, %v3536, %v2576
        %v3601 = vsel %vm3441, %v3538, %v2577
        %v3602 = vsel %vm3442, %v3538, %v2578
        %v3603 = vsel %vm3443, %v3540, %v2579
        %v3604 = vsel %vm3444, %v3540, %v2580
        %v3605 = vsel %vm3445, %v3542, %v2581
        %v3606 = vsel %vm3446, %v3542, %v2582
        %v3607 = vsel %vm3447, %v3544, %v2583
        %v3608 = vsel %vm3448, %v3544, %v2584
        %v3609 = vsel %vm3449, %v3546, %v2585
        %v3610 = vsel %vm3450, %v3546, %v2586
        %v3611 = vsel %vm3451, %v3548, %v2587
        %v3612 = vsel %vm3452, %v3548, %v2588
        %v3613 = vsel %vm3453, %v3550, %v2589
        %v3614 = vsel %vm3454, %v3550, %v2590
        %v3615 = vsel %vm3455, %v3552, %v2591
        %v3616 = vsel %vm3456, %v3552, %v2592
        %v3617 = vsel %vm3457, %v3554, %v2593
        %v3618 = vsel %vm3458, %v3554, %v2594
        %v3619 = vsel %vm3459, %v3556, %v2595
        %v3620 = vsel %vm3460, %v3556, %v2596
        %v3621 = vsel %vm3397, -1e+30, %v2597
        %v3622 = vsel %vm3398, -1e+30, %v2598
        %v3623 = vsel %vm3399, -1e+30, %v2599
        %v3624 = vsel %vm3400, -1e+30, %v2600
        %v3625 = vsel %vm3401, -1e+30, %v2601
        %v3626 = vsel %vm3402, -1e+30, %v2602
        %v3627 = vsel %vm3403, -1e+30, %v2603
        %v3628 = vsel %vm3404, -1e+30, %v2604
        %v3629 = vsel %vm3405, -1e+30, %v2605
        %v3630 = vsel %vm3406, -1e+30, %v2606
        %v3631 = vsel %vm3407, -1e+30, %v2607
        %v3632 = vsel %vm3408, -1e+30, %v2608
        %v3633 = vsel %vm3409, -1e+30, %v2609
        %v3634 = vsel %vm3410, -1e+30, %v2610
        %v3635 = vsel %vm3411, -1e+30, %v2611
        %v3636 = vsel %vm3412, -1e+30, %v2612
        %v3637 = vsel %vm3413, -1e+30, %v2613
        %v3638 = vsel %vm3414, -1e+30, %v2614
        %v3639 = vsel %vm3415, -1e+30, %v2615
        %v3640 = vsel %vm3416, -1e+30, %v2616
        %v3641 = vsel %vm3417, -1e+30, %v2617
        %v3642 = vsel %vm3418, -1e+30, %v2618
        %v3643 = vsel %vm3419, -1e+30, %v2619
        %v3644 = vsel %vm3420, -1e+30, %v2620
        %v3645 = vsel %vm3421, -1e+30, %v2621
        %v3646 = vsel %vm3422, -1e+30, %v2622
        %v3647 = vsel %vm3423, -1e+30, %v2623
        %v3648 = vsel %vm3424, -1e+30, %v2624
        %v3649 = vsel %vm3425, -1e+30, %v2625
        %v3650 = vsel %vm3426, -1e+30, %v2626
        %v3651 = vsel %vm3427, -1e+30, %v2627
        %v3652 = vsel %vm3428, -1e+30, %v2628
        %v3653 = vsel %vm3429, -1e+30, %v2629
        %v3654 = vsel %vm3430, -1e+30, %v2630
        %v3655 = vsel %vm3431, -1e+30, %v2631
        %v3656 = vsel %vm3432, -1e+30, %v2632
        %v3657 = vsel %vm3433, -1e+30, %v2633
        %v3658 = vsel %vm3434, -1e+30, %v2634
        %v3659 = vsel %vm3435, -1e+30, %v2635
        %v3660 = vsel %vm3436, -1e+30, %v2636
        %v3661 = vsel %vm3437, -1e+30, %v2637
        %v3662 = vsel %vm3438, -1e+30, %v2638
        %v3663 = vsel %vm3439, -1e+30, %v2639
        %v3664 = vsel %vm3440, -1e+30, %v2640
        %v3665 = vsel %vm3441, -1e+30, %v2641
        %v3666 = vsel %vm3442, -1e+30, %v2642
        %v3667 = vsel %vm3443, -1e+30, %v2643
        %v3668 = vsel %vm3444, -1e+30, %v2644
        %v3669 = vsel %vm3445, -1e+30, %v2645
        %v3670 = vsel %vm3446, -1e+30, %v2646
        %v3671 = vsel %vm3447, -1e+30, %v2647
        %v3672 = vsel %vm3448, -1e+30, %v2648
        %v3673 = vsel %vm3449, -1e+30, %v2649
        %v3674 = vsel %vm3450, -1e+30, %v2650
        %v3675 = vsel %vm3451, -1e+30, %v2651
        %v3676 = vsel %vm3452, -1e+30, %v2652
        %v3677 = vsel %vm3453, -1e+30, %v2653
        %v3678 = vsel %vm3454, -1e+30, %v2654
        %v3679 = vsel %vm3455, -1e+30, %v2655
        %v3680 = vsel %vm3456, -1e+30, %v2656
        %v3681 = vsel %vm3457, -1e+30, %v2657
        %v3682 = vsel %vm3458, -1e+30, %v2658
        %v3683 = vsel %vm3459, -1e+30, %v2659
        %v3684 = vsel %vm3460, -1e+30, %v2660
        %v3685 = vmax.f32 %v3621, %v3622
        %3686 = vmax.xlane.f32.xlu0 %v3685
        %v3687 = vpop.xlane.xlu0 %3686
        %v3688 = vmax.f32 %v3623, %v3624
        %3689 = vmax.xlane.f32.xlu0 %v3688
        %v3690 = vpop.xlane.xlu0 %3689
        %v3691 = vmax.f32 %v3625, %v3626
        %3692 = vmax.xlane.f32.xlu0 %v3691
        %v3693 = vpop.xlane.xlu0 %3692
        %v3694 = vmax.f32 %v3627, %v3628
        %3695 = vmax.xlane.f32.xlu0 %v3694
        %v3696 = vpop.xlane.xlu0 %3695
        %v3697 = vmax.f32 %v3629, %v3630
        %3698 = vmax.xlane.f32.xlu0 %v3697
        %v3699 = vpop.xlane.xlu0 %3698
        %v3700 = vmax.f32 %v3631, %v3632
        %3701 = vmax.xlane.f32.xlu0 %v3700
        %v3702 = vpop.xlane.xlu0 %3701
        %v3703 = vmax.f32 %v3633, %v3634
        %3704 = vmax.xlane.f32.xlu0 %v3703
        %v3705 = vpop.xlane.xlu0 %3704
        %v3706 = vmax.f32 %v3635, %v3636
        %3707 = vmax.xlane.f32.xlu0 %v3706
        %v3708 = vpop.xlane.xlu0 %3707
        %v3709 = vmax.f32 %v3637, %v3638
        %3710 = vmax.xlane.f32.xlu0 %v3709
        %v3711 = vpop.xlane.xlu0 %3710
        %v3712 = vmax.f32 %v3639, %v3640
        %3713 = vmax.xlane.f32.xlu0 %v3712
        %v3714 = vpop.xlane.xlu0 %3713
        %v3715 = vmax.f32 %v3641, %v3642
        %3716 = vmax.xlane.f32.xlu0 %v3715
        %v3717 = vpop.xlane.xlu0 %3716
        %v3718 = vmax.f32 %v3643, %v3644
        %3719 = vmax.xlane.f32.xlu0 %v3718
        %v3720 = vpop.xlane.xlu0 %3719
        %v3721 = vmax.f32 %v3645, %v3646
        %3722 = vmax.xlane.f32.xlu0 %v3721
        %v3723 = vpop.xlane.xlu0 %3722
        %v3724 = vmax.f32 %v3647, %v3648
        %3725 = vmax.xlane.f32.xlu0 %v3724
        %v3726 = vpop.xlane.xlu0 %3725
        %v3727 = vmax.f32 %v3649, %v3650
        %3728 = vmax.xlane.f32.xlu0 %v3727
        %v3729 = vpop.xlane.xlu0 %3728
        %v3730 = vmax.f32 %v3651, %v3652
        %3731 = vmax.xlane.f32.xlu0 %v3730
        %v3732 = vpop.xlane.xlu0 %3731
        %v3733 = vmax.f32 %v3653, %v3654
        %3734 = vmax.xlane.f32.xlu0 %v3733
        %v3735 = vpop.xlane.xlu0 %3734
        %v3736 = vmax.f32 %v3655, %v3656
        %3737 = vmax.xlane.f32.xlu0 %v3736
        %v3738 = vpop.xlane.xlu0 %3737
        %v3739 = vmax.f32 %v3657, %v3658
        %3740 = vmax.xlane.f32.xlu0 %v3739
        %v3741 = vpop.xlane.xlu0 %3740
        %v3742 = vmax.f32 %v3659, %v3660
        %3743 = vmax.xlane.f32.xlu0 %v3742
        %v3744 = vpop.xlane.xlu0 %3743
        %v3745 = vmax.f32 %v3661, %v3662
        %3746 = vmax.xlane.f32.xlu0 %v3745
        %v3747 = vpop.xlane.xlu0 %3746
        %v3748 = vmax.f32 %v3663, %v3664
        %3749 = vmax.xlane.f32.xlu0 %v3748
        %v3750 = vpop.xlane.xlu0 %3749
        %v3751 = vmax.f32 %v3665, %v3666
        %3752 = vmax.xlane.f32.xlu0 %v3751
        %v3753 = vpop.xlane.xlu0 %3752
        %v3754 = vmax.f32 %v3667, %v3668
        %3755 = vmax.xlane.f32.xlu0 %v3754
        %v3756 = vpop.xlane.xlu0 %3755
        %v3757 = vmax.f32 %v3669, %v3670
        %3758 = vmax.xlane.f32.xlu0 %v3757
        %v3759 = vpop.xlane.xlu0 %3758
        %v3760 = vmax.f32 %v3671, %v3672
        %3761 = vmax.xlane.f32.xlu0 %v3760
        %v3762 = vpop.xlane.xlu0 %3761
        %v3763 = vmax.f32 %v3673, %v3674
        %3764 = vmax.xlane.f32.xlu0 %v3763
        %v3765 = vpop.xlane.xlu0 %3764
        %v3766 = vmax.f32 %v3675, %v3676
        %3767 = vmax.xlane.f32.xlu0 %v3766
        %v3768 = vpop.xlane.xlu0 %3767
        %v3769 = vmax.f32 %v3677, %v3678
        %3770 = vmax.xlane.f32.xlu0 %v3769
        %v3771 = vpop.xlane.xlu0 %3770
        %v3772 = vmax.f32 %v3679, %v3680
        %3773 = vmax.xlane.f32.xlu0 %v3772
        %v3774 = vpop.xlane.xlu0 %3773
        %v3775 = vmax.f32 %v3681, %v3682
        %3776 = vmax.xlane.f32.xlu0 %v3775
        %v3777 = vpop.xlane.xlu0 %3776
        %v3778 = vmax.f32 %v3683, %v3684
        %3779 = vmax.xlane.f32.xlu0 %v3778
        %v3780 = vpop.xlane.xlu0 %3779
        %vm3781 = vcmp.eq.f32.partialorder %v3621, %v3687
        %vm3782 = vcmp.eq.f32.partialorder %v3622, %v3687
        %vm3783 = vcmp.eq.f32.partialorder %v3623, %v3690
        %vm3784 = vcmp.eq.f32.partialorder %v3624, %v3690
        %vm3785 = vcmp.eq.f32.partialorder %v3625, %v3693
        %vm3786 = vcmp.eq.f32.partialorder %v3626, %v3693
        %vm3787 = vcmp.eq.f32.partialorder %v3627, %v3696
        %vm3788 = vcmp.eq.f32.partialorder %v3628, %v3696
        %vm3789 = vcmp.eq.f32.partialorder %v3629, %v3699
        %vm3790 = vcmp.eq.f32.partialorder %v3630, %v3699
        %vm3791 = vcmp.eq.f32.partialorder %v3631, %v3702
        %vm3792 = vcmp.eq.f32.partialorder %v3632, %v3702
        %vm3793 = vcmp.eq.f32.partialorder %v3633, %v3705
        %vm3794 = vcmp.eq.f32.partialorder %v3634, %v3705
        %vm3795 = vcmp.eq.f32.partialorder %v3635, %v3708
        %vm3796 = vcmp.eq.f32.partialorder %v3636, %v3708
        %vm3797 = vcmp.eq.f32.partialorder %v3637, %v3711
        %vm3798 = vcmp.eq.f32.partialorder %v3638, %v3711
        %vm3799 = vcmp.eq.f32.partialorder %v3639, %v3714
        %vm3800 = vcmp.eq.f32.partialorder %v3640, %v3714
        %vm3801 = vcmp.eq.f32.partialorder %v3641, %v3717
        %vm3802 = vcmp.eq.f32.partialorder %v3642, %v3717
        %vm3803 = vcmp.eq.f32.partialorder %v3643, %v3720
        %vm3804 = vcmp.eq.f32.partialorder %v3644, %v3720
        %vm3805 = vcmp.eq.f32.partialorder %v3645, %v3723
        %vm3806 = vcmp.eq.f32.partialorder %v3646, %v3723
        %vm3807 = vcmp.eq.f32.partialorder %v3647, %v3726
        %vm3808 = vcmp.eq.f32.partialorder %v3648, %v3726
        %vm3809 = vcmp.eq.f32.partialorder %v3649, %v3729
        %vm3810 = vcmp.eq.f32.partialorder %v3650, %v3729
        %vm3811 = vcmp.eq.f32.partialorder %v3651, %v3732
        %vm3812 = vcmp.eq.f32.partialorder %v3652, %v3732
        %vm3813 = vcmp.eq.f32.partialorder %v3653, %v3735
        %vm3814 = vcmp.eq.f32.partialorder %v3654, %v3735
        %vm3815 = vcmp.eq.f32.partialorder %v3655, %v3738
        %vm3816 = vcmp.eq.f32.partialorder %v3656, %v3738
        %vm3817 = vcmp.eq.f32.partialorder %v3657, %v3741
        %vm3818 = vcmp.eq.f32.partialorder %v3658, %v3741
        %vm3819 = vcmp.eq.f32.partialorder %v3659, %v3744
        %vm3820 = vcmp.eq.f32.partialorder %v3660, %v3744
        %vm3821 = vcmp.eq.f32.partialorder %v3661, %v3747
        %vm3822 = vcmp.eq.f32.partialorder %v3662, %v3747
        %vm3823 = vcmp.eq.f32.partialorder %v3663, %v3750
        %vm3824 = vcmp.eq.f32.partialorder %v3664, %v3750
        %vm3825 = vcmp.eq.f32.partialorder %v3665, %v3753
        %vm3826 = vcmp.eq.f32.partialorder %v3666, %v3753
        %vm3827 = vcmp.eq.f32.partialorder %v3667, %v3756
        %vm3828 = vcmp.eq.f32.partialorder %v3668, %v3756
        %vm3829 = vcmp.eq.f32.partialorder %v3669, %v3759
        %vm3830 = vcmp.eq.f32.partialorder %v3670, %v3759
        %vm3831 = vcmp.eq.f32.partialorder %v3671, %v3762
        %vm3832 = vcmp.eq.f32.partialorder %v3672, %v3762
        %vm3833 = vcmp.eq.f32.partialorder %v3673, %v3765
        %vm3834 = vcmp.eq.f32.partialorder %v3674, %v3765
        %vm3835 = vcmp.eq.f32.partialorder %v3675, %v3768
        %vm3836 = vcmp.eq.f32.partialorder %v3676, %v3768
        %vm3837 = vcmp.eq.f32.partialorder %v3677, %v3771
        %vm3838 = vcmp.eq.f32.partialorder %v3678, %v3771
        %vm3839 = vcmp.eq.f32.partialorder %v3679, %v3774
        %vm3840 = vcmp.eq.f32.partialorder %v3680, %v3774
        %vm3841 = vcmp.eq.f32.partialorder %v3681, %v3777
        %vm3842 = vcmp.eq.f32.partialorder %v3682, %v3777
        %vm3843 = vcmp.eq.f32.partialorder %v3683, %v3780
        %vm3844 = vcmp.eq.f32.partialorder %v3684, %v3780
        %v3845 = vsel %vm3781, %v707, 256
        %v3846 = vsel %vm3782, %v708, 256
        %v3847 = vsel %vm3783, %v707, 256
        %v3848 = vsel %vm3784, %v708, 256
        %v3849 = vsel %vm3785, %v707, 256
        %v3850 = vsel %vm3786, %v708, 256
        %v3851 = vsel %vm3787, %v707, 256
        %v3852 = vsel %vm3788, %v708, 256
        %v3853 = vsel %vm3789, %v707, 256
        %v3854 = vsel %vm3790, %v708, 256
        %v3855 = vsel %vm3791, %v707, 256
        %v3856 = vsel %vm3792, %v708, 256
        %v3857 = vsel %vm3793, %v707, 256
        %v3858 = vsel %vm3794, %v708, 256
        %v3859 = vsel %vm3795, %v707, 256
        %v3860 = vsel %vm3796, %v708, 256
        %v3861 = vsel %vm3797, %v707, 256
        %v3862 = vsel %vm3798, %v708, 256
        %v3863 = vsel %vm3799, %v707, 256
        %v3864 = vsel %vm3800, %v708, 256
        %v3865 = vsel %vm3801, %v707, 256
        %v3866 = vsel %vm3802, %v708, 256
        %v3867 = vsel %vm3803, %v707, 256
        %v3868 = vsel %vm3804, %v708, 256
        %v3869 = vsel %vm3805, %v707, 256
        %v3870 = vsel %vm3806, %v708, 256
        %v3871 = vsel %vm3807, %v707, 256
        %v3872 = vsel %vm3808, %v708, 256
        %v3873 = vsel %vm3809, %v707, 256
        %v3874 = vsel %vm3810, %v708, 256
        %v3875 = vsel %vm3811, %v707, 256
        %v3876 = vsel %vm3812, %v708, 256
        %v3877 = vsel %vm3813, %v707, 256
        %v3878 = vsel %vm3814, %v708, 256
        %v3879 = vsel %vm3815, %v707, 256
        %v3880 = vsel %vm3816, %v708, 256
        %v3881 = vsel %vm3817, %v707, 256
        %v3882 = vsel %vm3818, %v708, 256
        %v3883 = vsel %vm3819, %v707, 256
        %v3884 = vsel %vm3820, %v708, 256
        %v3885 = vsel %vm3821, %v707, 256
        %v3886 = vsel %vm3822, %v708, 256
        %v3887 = vsel %vm3823, %v707, 256
        %v3888 = vsel %vm3824, %v708, 256
        %v3889 = vsel %vm3825, %v707, 256
        %v3890 = vsel %vm3826, %v708, 256
        %v3891 = vsel %vm3827, %v707, 256
        %v3892 = vsel %vm3828, %v708, 256
        %v3893 = vsel %vm3829, %v707, 256
        %v3894 = vsel %vm3830, %v708, 256
        %v3895 = vsel %vm3831, %v707, 256
        %v3896 = vsel %vm3832, %v708, 256
        %v3897 = vsel %vm3833, %v707, 256
        %v3898 = vsel %vm3834, %v708, 256
        %v3899 = vsel %vm3835, %v707, 256
        %v3900 = vsel %vm3836, %v708, 256
        %v3901 = vsel %vm3837, %v707, 256
        %v3902 = vsel %vm3838, %v708, 256
        %v3903 = vsel %vm3839, %v707, 256
        %v3904 = vsel %vm3840, %v708, 256
        %v3905 = vsel %vm3841, %v707, 256
        %v3906 = vsel %vm3842, %v708, 256
        %v3907 = vsel %vm3843, %v707, 256
        %v3908 = vsel %vm3844, %v708, 256
        %vm3909 = vcmp.lt.s32.totalorder %v3845, %v3846
        %v3910 = vsel %vm3909, %v3845, %v3846
        %v3911 = vand.u32 %v3910, 65535
        %v3912 = vshra.s32 %v3910, 16
        %v3913 = vcvt.s32.f32 %v3911
        %v3914 = vcvt.s32.f32 %v3912
        %3915 = vmin.xlane.f32.xlu0 %v3914
        %v3916 = vpop.xlane.xlu0 %3915
        %vm3917 = vcmp.eq.f32.partialorder %v3914, %v3916
        %v3918 = vsel %vm3917, %v3913, inf
        %3919 = vmin.xlane.f32.xlu0 %v3918
        %v3920 = vpop.xlane.xlu0 %3919
        %v3921 = vcvt.f32.s32 %v3920
        %v3922 = vcvt.f32.s32 %v3916
        %v3923 = vshll.u32 %v3922, 16
        %v3924 = vadd.s32 %v3923, %v3921
        %vm3925 = vcmp.lt.s32.totalorder %v3847, %v3848
        %v3926 = vsel %vm3925, %v3847, %v3848
        %v3927 = vand.u32 %v3926, 65535
        %v3928 = vshra.s32 %v3926, 16
        %v3929 = vcvt.s32.f32 %v3927
        %v3930 = vcvt.s32.f32 %v3928
        %3931 = vmin.xlane.f32.xlu0 %v3930
        %v3932 = vpop.xlane.xlu0 %3931
        %vm3933 = vcmp.eq.f32.partialorder %v3930, %v3932
        %v3934 = vsel %vm3933, %v3929, inf
        %3935 = vmin.xlane.f32.xlu0 %v3934
        %v3936 = vpop.xlane.xlu0 %3935
        %v3937 = vcvt.f32.s32 %v3936
        %v3938 = vcvt.f32.s32 %v3932
        %v3939 = vshll.u32 %v3938, 16
        %v3940 = vadd.s32 %v3939, %v3937
        %vm3941 = vcmp.lt.s32.totalorder %v3849, %v3850
        %v3942 = vsel %vm3941, %v3849, %v3850
        %v3943 = vand.u32 %v3942, 65535
        %v3944 = vshra.s32 %v3942, 16
        %v3945 = vcvt.s32.f32 %v3943
        %v3946 = vcvt.s32.f32 %v3944
        %3947 = vmin.xlane.f32.xlu0 %v3946
        %v3948 = vpop.xlane.xlu0 %3947
        %vm3949 = vcmp.eq.f32.partialorder %v3946, %v3948
        %v3950 = vsel %vm3949, %v3945, inf
        %3951 = vmin.xlane.f32.xlu0 %v3950
        %v3952 = vpop.xlane.xlu0 %3951
        %v3953 = vcvt.f32.s32 %v3952
        %v3954 = vcvt.f32.s32 %v3948
        %v3955 = vshll.u32 %v3954, 16
        %v3956 = vadd.s32 %v3955, %v3953
        %vm3957 = vcmp.lt.s32.totalorder %v3851, %v3852
        %v3958 = vsel %vm3957, %v3851, %v3852
        %v3959 = vand.u32 %v3958, 65535
        %v3960 = vshra.s32 %v3958, 16
        %v3961 = vcvt.s32.f32 %v3959
        %v3962 = vcvt.s32.f32 %v3960
        %3963 = vmin.xlane.f32.xlu0 %v3962
        %v3964 = vpop.xlane.xlu0 %3963
        %vm3965 = vcmp.eq.f32.partialorder %v3962, %v3964
        %v3966 = vsel %vm3965, %v3961, inf
        %3967 = vmin.xlane.f32.xlu0 %v3966
        %v3968 = vpop.xlane.xlu0 %3967
        %v3969 = vcvt.f32.s32 %v3968
        %v3970 = vcvt.f32.s32 %v3964
        %v3971 = vshll.u32 %v3970, 16
        %v3972 = vadd.s32 %v3971, %v3969
        %vm3973 = vcmp.lt.s32.totalorder %v3853, %v3854
        %v3974 = vsel %vm3973, %v3853, %v3854
        %v3975 = vand.u32 %v3974, 65535
        %v3976 = vshra.s32 %v3974, 16
        %v3977 = vcvt.s32.f32 %v3975
        %v3978 = vcvt.s32.f32 %v3976
        %3979 = vmin.xlane.f32.xlu0 %v3978
        %v3980 = vpop.xlane.xlu0 %3979
        %vm3981 = vcmp.eq.f32.partialorder %v3978, %v3980
        %v3982 = vsel %vm3981, %v3977, inf
        %3983 = vmin.xlane.f32.xlu0 %v3982
        %v3984 = vpop.xlane.xlu0 %3983
        %v3985 = vcvt.f32.s32 %v3984
        %v3986 = vcvt.f32.s32 %v3980
        %v3987 = vshll.u32 %v3986, 16
        %v3988 = vadd.s32 %v3987, %v3985
        %vm3989 = vcmp.lt.s32.totalorder %v3855, %v3856
        %v3990 = vsel %vm3989, %v3855, %v3856
        %v3991 = vand.u32 %v3990, 65535
        %v3992 = vshra.s32 %v3990, 16
        %v3993 = vcvt.s32.f32 %v3991
        %v3994 = vcvt.s32.f32 %v3992
        %3995 = vmin.xlane.f32.xlu0 %v3994
        %v3996 = vpop.xlane.xlu0 %3995
        %vm3997 = vcmp.eq.f32.partialorder %v3994, %v3996
        %v3998 = vsel %vm3997, %v3993, inf
        %3999 = vmin.xlane.f32.xlu0 %v3998
        %v4000 = vpop.xlane.xlu0 %3999
        %v4001 = vcvt.f32.s32 %v4000
        %v4002 = vcvt.f32.s32 %v3996
        %v4003 = vshll.u32 %v4002, 16
        %v4004 = vadd.s32 %v4003, %v4001
        %vm4005 = vcmp.lt.s32.totalorder %v3857, %v3858
        %v4006 = vsel %vm4005, %v3857, %v3858
        %v4007 = vand.u32 %v4006, 65535
        %v4008 = vshra.s32 %v4006, 16
        %v4009 = vcvt.s32.f32 %v4007
        %v4010 = vcvt.s32.f32 %v4008
        %4011 = vmin.xlane.f32.xlu0 %v4010
        %v4012 = vpop.xlane.xlu0 %4011
        %vm4013 = vcmp.eq.f32.partialorder %v4010, %v4012
        %v4014 = vsel %vm4013, %v4009, inf
        %4015 = vmin.xlane.f32.xlu0 %v4014
        %v4016 = vpop.xlane.xlu0 %4015
        %v4017 = vcvt.f32.s32 %v4016
        %v4018 = vcvt.f32.s32 %v4012
        %v4019 = vshll.u32 %v4018, 16
        %v4020 = vadd.s32 %v4019, %v4017
        %vm4021 = vcmp.lt.s32.totalorder %v3859, %v3860
        %v4022 = vsel %vm4021, %v3859, %v3860
        %v4023 = vand.u32 %v4022, 65535
        %v4024 = vshra.s32 %v4022, 16
        %v4025 = vcvt.s32.f32 %v4023
        %v4026 = vcvt.s32.f32 %v4024
        %4027 = vmin.xlane.f32.xlu0 %v4026
        %v4028 = vpop.xlane.xlu0 %4027
        %vm4029 = vcmp.eq.f32.partialorder %v4026, %v4028
        %v4030 = vsel %vm4029, %v4025, inf
        %4031 = vmin.xlane.f32.xlu0 %v4030
        %v4032 = vpop.xlane.xlu0 %4031
        %v4033 = vcvt.f32.s32 %v4032
        %v4034 = vcvt.f32.s32 %v4028
        %v4035 = vshll.u32 %v4034, 16
        %v4036 = vadd.s32 %v4035, %v4033
        %vm4037 = vcmp.lt.s32.totalorder %v3861, %v3862
        %v4038 = vsel %vm4037, %v3861, %v3862
        %v4039 = vand.u32 %v4038, 65535
        %v4040 = vshra.s32 %v4038, 16
        %v4041 = vcvt.s32.f32 %v4039
        %v4042 = vcvt.s32.f32 %v4040
        %4043 = vmin.xlane.f32.xlu0 %v4042
        %v4044 = vpop.xlane.xlu0 %4043
        %vm4045 = vcmp.eq.f32.partialorder %v4042, %v4044
        %v4046 = vsel %vm4045, %v4041, inf
        %4047 = vmin.xlane.f32.xlu0 %v4046
        %v4048 = vpop.xlane.xlu0 %4047
        %v4049 = vcvt.f32.s32 %v4048
        %v4050 = vcvt.f32.s32 %v4044
        %v4051 = vshll.u32 %v4050, 16
        %v4052 = vadd.s32 %v4051, %v4049
        %vm4053 = vcmp.lt.s32.totalorder %v3863, %v3864
        %v4054 = vsel %vm4053, %v3863, %v3864
        %v4055 = vand.u32 %v4054, 65535
        %v4056 = vshra.s32 %v4054, 16
        %v4057 = vcvt.s32.f32 %v4055
        %v4058 = vcvt.s32.f32 %v4056
        %4059 = vmin.xlane.f32.xlu0 %v4058
        %v4060 = vpop.xlane.xlu0 %4059
        %vm4061 = vcmp.eq.f32.partialorder %v4058, %v4060
        %v4062 = vsel %vm4061, %v4057, inf
        %4063 = vmin.xlane.f32.xlu0 %v4062
        %v4064 = vpop.xlane.xlu0 %4063
        %v4065 = vcvt.f32.s32 %v4064
        %v4066 = vcvt.f32.s32 %v4060
        %v4067 = vshll.u32 %v4066, 16
        %v4068 = vadd.s32 %v4067, %v4065
        %vm4069 = vcmp.lt.s32.totalorder %v3865, %v3866
        %v4070 = vsel %vm4069, %v3865, %v3866
        %v4071 = vand.u32 %v4070, 65535
        %v4072 = vshra.s32 %v4070, 16
        %v4073 = vcvt.s32.f32 %v4071
        %v4074 = vcvt.s32.f32 %v4072
        %4075 = vmin.xlane.f32.xlu0 %v4074
        %v4076 = vpop.xlane.xlu0 %4075
        %vm4077 = vcmp.eq.f32.partialorder %v4074, %v4076
        %v4078 = vsel %vm4077, %v4073, inf
        %4079 = vmin.xlane.f32.xlu0 %v4078
        %v4080 = vpop.xlane.xlu0 %4079
        %v4081 = vcvt.f32.s32 %v4080
        %v4082 = vcvt.f32.s32 %v4076
        %v4083 = vshll.u32 %v4082, 16
        %v4084 = vadd.s32 %v4083, %v4081
        %vm4085 = vcmp.lt.s32.totalorder %v3867, %v3868
        %v4086 = vsel %vm4085, %v3867, %v3868
        %v4087 = vand.u32 %v4086, 65535
        %v4088 = vshra.s32 %v4086, 16
        %v4089 = vcvt.s32.f32 %v4087
        %v4090 = vcvt.s32.f32 %v4088
        %4091 = vmin.xlane.f32.xlu0 %v4090
        %v4092 = vpop.xlane.xlu0 %4091
        %vm4093 = vcmp.eq.f32.partialorder %v4090, %v4092
        %v4094 = vsel %vm4093, %v4089, inf
        %4095 = vmin.xlane.f32.xlu0 %v4094
        %v4096 = vpop.xlane.xlu0 %4095
        %v4097 = vcvt.f32.s32 %v4096
        %v4098 = vcvt.f32.s32 %v4092
        %v4099 = vshll.u32 %v4098, 16
        %v4100 = vadd.s32 %v4099, %v4097
        %vm4101 = vcmp.lt.s32.totalorder %v3869, %v3870
        %v4102 = vsel %vm4101, %v3869, %v3870
        %v4103 = vand.u32 %v4102, 65535
        %v4104 = vshra.s32 %v4102, 16
        %v4105 = vcvt.s32.f32 %v4103
        %v4106 = vcvt.s32.f32 %v4104
        %4107 = vmin.xlane.f32.xlu0 %v4106
        %v4108 = vpop.xlane.xlu0 %4107
        %vm4109 = vcmp.eq.f32.partialorder %v4106, %v4108
        %v4110 = vsel %vm4109, %v4105, inf
        %4111 = vmin.xlane.f32.xlu0 %v4110
        %v4112 = vpop.xlane.xlu0 %4111
        %v4113 = vcvt.f32.s32 %v4112
        %v4114 = vcvt.f32.s32 %v4108
        %v4115 = vshll.u32 %v4114, 16
        %v4116 = vadd.s32 %v4115, %v4113
        %vm4117 = vcmp.lt.s32.totalorder %v3871, %v3872
        %v4118 = vsel %vm4117, %v3871, %v3872
        %v4119 = vand.u32 %v4118, 65535
        %v4120 = vshra.s32 %v4118, 16
        %v4121 = vcvt.s32.f32 %v4119
        %v4122 = vcvt.s32.f32 %v4120
        %4123 = vmin.xlane.f32.xlu0 %v4122
        %v4124 = vpop.xlane.xlu0 %4123
        %vm4125 = vcmp.eq.f32.partialorder %v4122, %v4124
        %v4126 = vsel %vm4125, %v4121, inf
        %4127 = vmin.xlane.f32.xlu0 %v4126
        %v4128 = vpop.xlane.xlu0 %4127
        %v4129 = vcvt.f32.s32 %v4128
        %v4130 = vcvt.f32.s32 %v4124
        %v4131 = vshll.u32 %v4130, 16
        %v4132 = vadd.s32 %v4131, %v4129
        %vm4133 = vcmp.lt.s32.totalorder %v3873, %v3874
        %v4134 = vsel %vm4133, %v3873, %v3874
        %v4135 = vand.u32 %v4134, 65535
        %v4136 = vshra.s32 %v4134, 16
        %v4137 = vcvt.s32.f32 %v4135
        %v4138 = vcvt.s32.f32 %v4136
        %4139 = vmin.xlane.f32.xlu0 %v4138
        %v4140 = vpop.xlane.xlu0 %4139
        %vm4141 = vcmp.eq.f32.partialorder %v4138, %v4140
        %v4142 = vsel %vm4141, %v4137, inf
        %4143 = vmin.xlane.f32.xlu0 %v4142
        %v4144 = vpop.xlane.xlu0 %4143
        %v4145 = vcvt.f32.s32 %v4144
        %v4146 = vcvt.f32.s32 %v4140
        %v4147 = vshll.u32 %v4146, 16
        %v4148 = vadd.s32 %v4147, %v4145
        %vm4149 = vcmp.lt.s32.totalorder %v3875, %v3876
        %v4150 = vsel %vm4149, %v3875, %v3876
        %v4151 = vand.u32 %v4150, 65535
        %v4152 = vshra.s32 %v4150, 16
        %v4153 = vcvt.s32.f32 %v4151
        %v4154 = vcvt.s32.f32 %v4152
        %4155 = vmin.xlane.f32.xlu0 %v4154
        %v4156 = vpop.xlane.xlu0 %4155
        %vm4157 = vcmp.eq.f32.partialorder %v4154, %v4156
        %v4158 = vsel %vm4157, %v4153, inf
        %4159 = vmin.xlane.f32.xlu0 %v4158
        %v4160 = vpop.xlane.xlu0 %4159
        %v4161 = vcvt.f32.s32 %v4160
        %v4162 = vcvt.f32.s32 %v4156
        %v4163 = vshll.u32 %v4162, 16
        %v4164 = vadd.s32 %v4163, %v4161
        %vm4165 = vcmp.lt.s32.totalorder %v3877, %v3878
        %v4166 = vsel %vm4165, %v3877, %v3878
        %v4167 = vand.u32 %v4166, 65535
        %v4168 = vshra.s32 %v4166, 16
        %v4169 = vcvt.s32.f32 %v4167
        %v4170 = vcvt.s32.f32 %v4168
        %4171 = vmin.xlane.f32.xlu0 %v4170
        %v4172 = vpop.xlane.xlu0 %4171
        %vm4173 = vcmp.eq.f32.partialorder %v4170, %v4172
        %v4174 = vsel %vm4173, %v4169, inf
        %4175 = vmin.xlane.f32.xlu0 %v4174
        %v4176 = vpop.xlane.xlu0 %4175
        %v4177 = vcvt.f32.s32 %v4176
        %v4178 = vcvt.f32.s32 %v4172
        %v4179 = vshll.u32 %v4178, 16
        %v4180 = vadd.s32 %v4179, %v4177
        %vm4181 = vcmp.lt.s32.totalorder %v3879, %v3880
        %v4182 = vsel %vm4181, %v3879, %v3880
        %v4183 = vand.u32 %v4182, 65535
        %v4184 = vshra.s32 %v4182, 16
        %v4185 = vcvt.s32.f32 %v4183
        %v4186 = vcvt.s32.f32 %v4184
        %4187 = vmin.xlane.f32.xlu0 %v4186
        %v4188 = vpop.xlane.xlu0 %4187
        %vm4189 = vcmp.eq.f32.partialorder %v4186, %v4188
        %v4190 = vsel %vm4189, %v4185, inf
        %4191 = vmin.xlane.f32.xlu0 %v4190
        %v4192 = vpop.xlane.xlu0 %4191
        %v4193 = vcvt.f32.s32 %v4192
        %v4194 = vcvt.f32.s32 %v4188
        %v4195 = vshll.u32 %v4194, 16
        %v4196 = vadd.s32 %v4195, %v4193
        %vm4197 = vcmp.lt.s32.totalorder %v3881, %v3882
        %v4198 = vsel %vm4197, %v3881, %v3882
        %v4199 = vand.u32 %v4198, 65535
        %v4200 = vshra.s32 %v4198, 16
        %v4201 = vcvt.s32.f32 %v4199
        %v4202 = vcvt.s32.f32 %v4200
        %4203 = vmin.xlane.f32.xlu0 %v4202
        %v4204 = vpop.xlane.xlu0 %4203
        %vm4205 = vcmp.eq.f32.partialorder %v4202, %v4204
        %v4206 = vsel %vm4205, %v4201, inf
        %4207 = vmin.xlane.f32.xlu0 %v4206
        %v4208 = vpop.xlane.xlu0 %4207
        %v4209 = vcvt.f32.s32 %v4208
        %v4210 = vcvt.f32.s32 %v4204
        %v4211 = vshll.u32 %v4210, 16
        %v4212 = vadd.s32 %v4211, %v4209
        %vm4213 = vcmp.lt.s32.totalorder %v3883, %v3884
        %v4214 = vsel %vm4213, %v3883, %v3884
        %v4215 = vand.u32 %v4214, 65535
        %v4216 = vshra.s32 %v4214, 16
        %v4217 = vcvt.s32.f32 %v4215
        %v4218 = vcvt.s32.f32 %v4216
        %4219 = vmin.xlane.f32.xlu0 %v4218
        %v4220 = vpop.xlane.xlu0 %4219
        %vm4221 = vcmp.eq.f32.partialorder %v4218, %v4220
        %v4222 = vsel %vm4221, %v4217, inf
        %4223 = vmin.xlane.f32.xlu0 %v4222
        %v4224 = vpop.xlane.xlu0 %4223
        %v4225 = vcvt.f32.s32 %v4224
        %v4226 = vcvt.f32.s32 %v4220
        %v4227 = vshll.u32 %v4226, 16
        %v4228 = vadd.s32 %v4227, %v4225
        %vm4229 = vcmp.lt.s32.totalorder %v3885, %v3886
        %v4230 = vsel %vm4229, %v3885, %v3886
        %v4231 = vand.u32 %v4230, 65535
        %v4232 = vshra.s32 %v4230, 16
        %v4233 = vcvt.s32.f32 %v4231
        %v4234 = vcvt.s32.f32 %v4232
        %4235 = vmin.xlane.f32.xlu0 %v4234
        %v4236 = vpop.xlane.xlu0 %4235
        %vm4237 = vcmp.eq.f32.partialorder %v4234, %v4236
        %v4238 = vsel %vm4237, %v4233, inf
        %4239 = vmin.xlane.f32.xlu0 %v4238
        %v4240 = vpop.xlane.xlu0 %4239
        %v4241 = vcvt.f32.s32 %v4240
        %v4242 = vcvt.f32.s32 %v4236
        %v4243 = vshll.u32 %v4242, 16
        %v4244 = vadd.s32 %v4243, %v4241
        %vm4245 = vcmp.lt.s32.totalorder %v3887, %v3888
        %v4246 = vsel %vm4245, %v3887, %v3888
        %v4247 = vand.u32 %v4246, 65535
        %v4248 = vshra.s32 %v4246, 16
        %v4249 = vcvt.s32.f32 %v4247
        %v4250 = vcvt.s32.f32 %v4248
        %4251 = vmin.xlane.f32.xlu0 %v4250
        %v4252 = vpop.xlane.xlu0 %4251
        %vm4253 = vcmp.eq.f32.partialorder %v4250, %v4252
        %v4254 = vsel %vm4253, %v4249, inf
        %4255 = vmin.xlane.f32.xlu0 %v4254
        %v4256 = vpop.xlane.xlu0 %4255
        %v4257 = vcvt.f32.s32 %v4256
        %v4258 = vcvt.f32.s32 %v4252
        %v4259 = vshll.u32 %v4258, 16
        %v4260 = vadd.s32 %v4259, %v4257
        %vm4261 = vcmp.lt.s32.totalorder %v3889, %v3890
        %v4262 = vsel %vm4261, %v3889, %v3890
        %v4263 = vand.u32 %v4262, 65535
        %v4264 = vshra.s32 %v4262, 16
        %v4265 = vcvt.s32.f32 %v4263
        %v4266 = vcvt.s32.f32 %v4264
        %4267 = vmin.xlane.f32.xlu0 %v4266
        %v4268 = vpop.xlane.xlu0 %4267
        %vm4269 = vcmp.eq.f32.partialorder %v4266, %v4268
        %v4270 = vsel %vm4269, %v4265, inf
        %4271 = vmin.xlane.f32.xlu0 %v4270
        %v4272 = vpop.xlane.xlu0 %4271
        %v4273 = vcvt.f32.s32 %v4272
        %v4274 = vcvt.f32.s32 %v4268
        %v4275 = vshll.u32 %v4274, 16
        %v4276 = vadd.s32 %v4275, %v4273
        %vm4277 = vcmp.lt.s32.totalorder %v3891, %v3892
        %v4278 = vsel %vm4277, %v3891, %v3892
        %v4279 = vand.u32 %v4278, 65535
        %v4280 = vshra.s32 %v4278, 16
        %v4281 = vcvt.s32.f32 %v4279
        %v4282 = vcvt.s32.f32 %v4280
        %4283 = vmin.xlane.f32.xlu0 %v4282
        %v4284 = vpop.xlane.xlu0 %4283
        %vm4285 = vcmp.eq.f32.partialorder %v4282, %v4284
        %v4286 = vsel %vm4285, %v4281, inf
        %4287 = vmin.xlane.f32.xlu0 %v4286
        %v4288 = vpop.xlane.xlu0 %4287
        %v4289 = vcvt.f32.s32 %v4288
        %v4290 = vcvt.f32.s32 %v4284
        %v4291 = vshll.u32 %v4290, 16
        %v4292 = vadd.s32 %v4291, %v4289
        %vm4293 = vcmp.lt.s32.totalorder %v3893, %v3894
        %v4294 = vsel %vm4293, %v3893, %v3894
        %v4295 = vand.u32 %v4294, 65535
        %v4296 = vshra.s32 %v4294, 16
        %v4297 = vcvt.s32.f32 %v4295
        %v4298 = vcvt.s32.f32 %v4296
        %4299 = vmin.xlane.f32.xlu0 %v4298
        %v4300 = vpop.xlane.xlu0 %4299
        %vm4301 = vcmp.eq.f32.partialorder %v4298, %v4300
        %v4302 = vsel %vm4301, %v4297, inf
        %4303 = vmin.xlane.f32.xlu0 %v4302
        %v4304 = vpop.xlane.xlu0 %4303
        %v4305 = vcvt.f32.s32 %v4304
        %v4306 = vcvt.f32.s32 %v4300
        %v4307 = vshll.u32 %v4306, 16
        %v4308 = vadd.s32 %v4307, %v4305
        %vm4309 = vcmp.lt.s32.totalorder %v3895, %v3896
        %v4310 = vsel %vm4309, %v3895, %v3896
        %v4311 = vand.u32 %v4310, 65535
        %v4312 = vshra.s32 %v4310, 16
        %v4313 = vcvt.s32.f32 %v4311
        %v4314 = vcvt.s32.f32 %v4312
        %4315 = vmin.xlane.f32.xlu0 %v4314
        %v4316 = vpop.xlane.xlu0 %4315
        %vm4317 = vcmp.eq.f32.partialorder %v4314, %v4316
        %v4318 = vsel %vm4317, %v4313, inf
        %4319 = vmin.xlane.f32.xlu0 %v4318
        %v4320 = vpop.xlane.xlu0 %4319
        %v4321 = vcvt.f32.s32 %v4320
        %v4322 = vcvt.f32.s32 %v4316
        %v4323 = vshll.u32 %v4322, 16
        %v4324 = vadd.s32 %v4323, %v4321
        %vm4325 = vcmp.lt.s32.totalorder %v3897, %v3898
        %v4326 = vsel %vm4325, %v3897, %v3898
        %v4327 = vand.u32 %v4326, 65535
        %v4328 = vshra.s32 %v4326, 16
        %v4329 = vcvt.s32.f32 %v4327
        %v4330 = vcvt.s32.f32 %v4328
        %4331 = vmin.xlane.f32.xlu0 %v4330
        %v4332 = vpop.xlane.xlu0 %4331
        %vm4333 = vcmp.eq.f32.partialorder %v4330, %v4332
        %v4334 = vsel %vm4333, %v4329, inf
        %4335 = vmin.xlane.f32.xlu0 %v4334
        %v4336 = vpop.xlane.xlu0 %4335
        %v4337 = vcvt.f32.s32 %v4336
        %v4338 = vcvt.f32.s32 %v4332
        %v4339 = vshll.u32 %v4338, 16
        %v4340 = vadd.s32 %v4339, %v4337
        %vm4341 = vcmp.lt.s32.totalorder %v3899, %v3900
        %v4342 = vsel %vm4341, %v3899, %v3900
        %v4343 = vand.u32 %v4342, 65535
        %v4344 = vshra.s32 %v4342, 16
        %v4345 = vcvt.s32.f32 %v4343
        %v4346 = vcvt.s32.f32 %v4344
        %4347 = vmin.xlane.f32.xlu0 %v4346
        %v4348 = vpop.xlane.xlu0 %4347
        %vm4349 = vcmp.eq.f32.partialorder %v4346, %v4348
        %v4350 = vsel %vm4349, %v4345, inf
        %4351 = vmin.xlane.f32.xlu0 %v4350
        %v4352 = vpop.xlane.xlu0 %4351
        %v4353 = vcvt.f32.s32 %v4352
        %v4354 = vcvt.f32.s32 %v4348
        %v4355 = vshll.u32 %v4354, 16
        %v4356 = vadd.s32 %v4355, %v4353
        %vm4357 = vcmp.lt.s32.totalorder %v3901, %v3902
        %v4358 = vsel %vm4357, %v3901, %v3902
        %v4359 = vand.u32 %v4358, 65535
        %v4360 = vshra.s32 %v4358, 16
        %v4361 = vcvt.s32.f32 %v4359
        %v4362 = vcvt.s32.f32 %v4360
        %4363 = vmin.xlane.f32.xlu0 %v4362
        %v4364 = vpop.xlane.xlu0 %4363
        %vm4365 = vcmp.eq.f32.partialorder %v4362, %v4364
        %v4366 = vsel %vm4365, %v4361, inf
        %4367 = vmin.xlane.f32.xlu0 %v4366
        %v4368 = vpop.xlane.xlu0 %4367
        %v4369 = vcvt.f32.s32 %v4368
        %v4370 = vcvt.f32.s32 %v4364
        %v4371 = vshll.u32 %v4370, 16
        %v4372 = vadd.s32 %v4371, %v4369
        %vm4373 = vcmp.lt.s32.totalorder %v3903, %v3904
        %v4374 = vsel %vm4373, %v3903, %v3904
        %v4375 = vand.u32 %v4374, 65535
        %v4376 = vshra.s32 %v4374, 16
        %v4377 = vcvt.s32.f32 %v4375
        %v4378 = vcvt.s32.f32 %v4376
        %4379 = vmin.xlane.f32.xlu0 %v4378
        %v4380 = vpop.xlane.xlu0 %4379
        %vm4381 = vcmp.eq.f32.partialorder %v4378, %v4380
        %v4382 = vsel %vm4381, %v4377, inf
        %4383 = vmin.xlane.f32.xlu0 %v4382
        %v4384 = vpop.xlane.xlu0 %4383
        %v4385 = vcvt.f32.s32 %v4384
        %v4386 = vcvt.f32.s32 %v4380
        %v4387 = vshll.u32 %v4386, 16
        %v4388 = vadd.s32 %v4387, %v4385
        %vm4389 = vcmp.lt.s32.totalorder %v3905, %v3906
        %v4390 = vsel %vm4389, %v3905, %v3906
        %v4391 = vand.u32 %v4390, 65535
        %v4392 = vshra.s32 %v4390, 16
        %v4393 = vcvt.s32.f32 %v4391
        %v4394 = vcvt.s32.f32 %v4392
        %4395 = vmin.xlane.f32.xlu0 %v4394
        %v4396 = vpop.xlane.xlu0 %4395
        %vm4397 = vcmp.eq.f32.partialorder %v4394, %v4396
        %v4398 = vsel %vm4397, %v4393, inf
        %4399 = vmin.xlane.f32.xlu0 %v4398
        %v4400 = vpop.xlane.xlu0 %4399
        %v4401 = vcvt.f32.s32 %v4400
        %v4402 = vcvt.f32.s32 %v4396
        %v4403 = vshll.u32 %v4402, 16
        %v4404 = vadd.s32 %v4403, %v4401
        %vm4405 = vcmp.lt.s32.totalorder %v3907, %v3908
        %v4406 = vsel %vm4405, %v3907, %v3908
        %v4407 = vand.u32 %v4406, 65535
        %v4408 = vshra.s32 %v4406, 16
        %v4409 = vcvt.s32.f32 %v4407
        %v4410 = vcvt.s32.f32 %v4408
        %4411 = vmin.xlane.f32.xlu0 %v4410
        %v4412 = vpop.xlane.xlu0 %4411
        %vm4413 = vcmp.eq.f32.partialorder %v4410, %v4412
        %v4414 = vsel %vm4413, %v4409, inf
        %4415 = vmin.xlane.f32.xlu0 %v4414
        %v4416 = vpop.xlane.xlu0 %4415
        %v4417 = vcvt.f32.s32 %v4416
        %v4418 = vcvt.f32.s32 %v4412
        %v4419 = vshll.u32 %v4418, 16
        %v4420 = vadd.s32 %v4419, %v4417
        %vm4421 = vcmp.eq.s32.totalorder %v707, %v3924
        %vm4422 = vcmp.eq.s32.totalorder %v708, %v3924
        %vm4423 = vcmp.eq.s32.totalorder %v707, %v3940
        %vm4424 = vcmp.eq.s32.totalorder %v708, %v3940
        %vm4425 = vcmp.eq.s32.totalorder %v707, %v3956
        %vm4426 = vcmp.eq.s32.totalorder %v708, %v3956
        %vm4427 = vcmp.eq.s32.totalorder %v707, %v3972
        %vm4428 = vcmp.eq.s32.totalorder %v708, %v3972
        %vm4429 = vcmp.eq.s32.totalorder %v707, %v3988
        %vm4430 = vcmp.eq.s32.totalorder %v708, %v3988
        %vm4431 = vcmp.eq.s32.totalorder %v707, %v4004
        %vm4432 = vcmp.eq.s32.totalorder %v708, %v4004
        %vm4433 = vcmp.eq.s32.totalorder %v707, %v4020
        %vm4434 = vcmp.eq.s32.totalorder %v708, %v4020
        %vm4435 = vcmp.eq.s32.totalorder %v707, %v4036
        %vm4436 = vcmp.eq.s32.totalorder %v708, %v4036
        %vm4437 = vcmp.eq.s32.totalorder %v707, %v4052
        %vm4438 = vcmp.eq.s32.totalorder %v708, %v4052
        %vm4439 = vcmp.eq.s32.totalorder %v707, %v4068
        %vm4440 = vcmp.eq.s32.totalorder %v708, %v4068
        %vm4441 = vcmp.eq.s32.totalorder %v707, %v4084
        %vm4442 = vcmp.eq.s32.totalorder %v708, %v4084
        %vm4443 = vcmp.eq.s32.totalorder %v707, %v4100
        %vm4444 = vcmp.eq.s32.totalorder %v708, %v4100
        %vm4445 = vcmp.eq.s32.totalorder %v707, %v4116
        %vm4446 = vcmp.eq.s32.totalorder %v708, %v4116
        %vm4447 = vcmp.eq.s32.totalorder %v707, %v4132
        %vm4448 = vcmp.eq.s32.totalorder %v708, %v4132
        %vm4449 = vcmp.eq.s32.totalorder %v707, %v4148
        %vm4450 = vcmp.eq.s32.totalorder %v708, %v4148
        %vm4451 = vcmp.eq.s32.totalorder %v707, %v4164
        %vm4452 = vcmp.eq.s32.totalorder %v708, %v4164
        %vm4453 = vcmp.eq.s32.totalorder %v707, %v4180
        %vm4454 = vcmp.eq.s32.totalorder %v708, %v4180
        %vm4455 = vcmp.eq.s32.totalorder %v707, %v4196
        %vm4456 = vcmp.eq.s32.totalorder %v708, %v4196
        %vm4457 = vcmp.eq.s32.totalorder %v707, %v4212
        %vm4458 = vcmp.eq.s32.totalorder %v708, %v4212
        %vm4459 = vcmp.eq.s32.totalorder %v707, %v4228
        %vm4460 = vcmp.eq.s32.totalorder %v708, %v4228
        %vm4461 = vcmp.eq.s32.totalorder %v707, %v4244
        %vm4462 = vcmp.eq.s32.totalorder %v708, %v4244
        %vm4463 = vcmp.eq.s32.totalorder %v707, %v4260
        %vm4464 = vcmp.eq.s32.totalorder %v708, %v4260
        %vm4465 = vcmp.eq.s32.totalorder %v707, %v4276
        %vm4466 = vcmp.eq.s32.totalorder %v708, %v4276
        %vm4467 = vcmp.eq.s32.totalorder %v707, %v4292
        %vm4468 = vcmp.eq.s32.totalorder %v708, %v4292
        %vm4469 = vcmp.eq.s32.totalorder %v707, %v4308
        %vm4470 = vcmp.eq.s32.totalorder %v708, %v4308
        %vm4471 = vcmp.eq.s32.totalorder %v707, %v4324
        %vm4472 = vcmp.eq.s32.totalorder %v708, %v4324
        %vm4473 = vcmp.eq.s32.totalorder %v707, %v4340
        %vm4474 = vcmp.eq.s32.totalorder %v708, %v4340
        %vm4475 = vcmp.eq.s32.totalorder %v707, %v4356
        %vm4476 = vcmp.eq.s32.totalorder %v708, %v4356
        %vm4477 = vcmp.eq.s32.totalorder %v707, %v4372
        %vm4478 = vcmp.eq.s32.totalorder %v708, %v4372
        %vm4479 = vcmp.eq.s32.totalorder %v707, %v4388
        %vm4480 = vcmp.eq.s32.totalorder %v708, %v4388
        %vm4481 = vcmp.eq.s32.totalorder %v707, %v4404
        %vm4482 = vcmp.eq.s32.totalorder %v708, %v4404
        %vm4483 = vcmp.eq.s32.totalorder %v707, %v4420
        %vm4484 = vcmp.eq.s32.totalorder %v708, %v4420
        %v4485 = vsub.f32 %v3687, %v711
        %v4486 = vsub.f32 %v3690, %v714
        %v4487 = vsub.f32 %v3693, %v717
        %v4488 = vsub.f32 %v3696, %v720
        %v4489 = vsub.f32 %v3699, %v723
        %v4490 = vsub.f32 %v3702, %v726
        %v4491 = vsub.f32 %v3705, %v729
        %v4492 = vsub.f32 %v3708, %v732
        %v4493 = vsub.f32 %v3711, %v735
        %v4494 = vsub.f32 %v3714, %v738
        %v4495 = vsub.f32 %v3717, %v741
        %v4496 = vsub.f32 %v3720, %v744
        %v4497 = vsub.f32 %v3723, %v747
        %v4498 = vsub.f32 %v3726, %v750
        %v4499 = vsub.f32 %v3729, %v753
        %v4500 = vsub.f32 %v3732, %v756
        %v4501 = vsub.f32 %v3735, %v759
        %v4502 = vsub.f32 %v3738, %v762
        %v4503 = vsub.f32 %v3741, %v765
        %v4504 = vsub.f32 %v3744, %v768
        %v4505 = vsub.f32 %v3747, %v771
        %v4506 = vsub.f32 %v3750, %v774
        %v4507 = vsub.f32 %v3753, %v777
        %v4508 = vsub.f32 %v3756, %v780
        %v4509 = vsub.f32 %v3759, %v783
        %v4510 = vsub.f32 %v3762, %v786
        %v4511 = vsub.f32 %v3765, %v789
        %v4512 = vsub.f32 %v3768, %v792
        %v4513 = vsub.f32 %v3771, %v795
        %v4514 = vsub.f32 %v3774, %v798
        %v4515 = vsub.f32 %v3777, %v801
        %v4516 = vsub.f32 %v3780, %v804
        %v4517 = vmul.f32 %v4485, 1.442695
        %v4518 = vpow.pop %v4517
        %v4519 = vmul.f32 %v4486, 1.442695
        %v4520 = vpow.pop %v4519
        %v4521 = vmul.f32 %v4487, 1.442695
        %v4522 = vpow.pop %v4521
        %v4523 = vmul.f32 %v4488, 1.442695
        %v4524 = vpow.pop %v4523
        %v4525 = vmul.f32 %v4489, 1.442695
        %v4526 = vpow.pop %v4525
        %v4527 = vmul.f32 %v4490, 1.442695
        %v4528 = vpow.pop %v4527
        %v4529 = vmul.f32 %v4491, 1.442695
        %v4530 = vpow.pop %v4529
        %v4531 = vmul.f32 %v4492, 1.442695
        %v4532 = vpow.pop %v4531
        %v4533 = vmul.f32 %v4493, 1.442695
        %v4534 = vpow.pop %v4533
        %v4535 = vmul.f32 %v4494, 1.442695
        %v4536 = vpow.pop %v4535
        %v4537 = vmul.f32 %v4495, 1.442695
        %v4538 = vpow.pop %v4537
        %v4539 = vmul.f32 %v4496, 1.442695
        %v4540 = vpow.pop %v4539
        %v4541 = vmul.f32 %v4497, 1.442695
        %v4542 = vpow.pop %v4541
        %v4543 = vmul.f32 %v4498, 1.442695
        %v4544 = vpow.pop %v4543
        %v4545 = vmul.f32 %v4499, 1.442695
        %v4546 = vpow.pop %v4545
        %v4547 = vmul.f32 %v4500, 1.442695
        %v4548 = vpow.pop %v4547
        %v4549 = vmul.f32 %v4501, 1.442695
        %v4550 = vpow.pop %v4549
        %v4551 = vmul.f32 %v4502, 1.442695
        %v4552 = vpow.pop %v4551
        %v4553 = vmul.f32 %v4503, 1.442695
        %v4554 = vpow.pop %v4553
        %v4555 = vmul.f32 %v4504, 1.442695
        %v4556 = vpow.pop %v4555
        %v4557 = vmul.f32 %v4505, 1.442695
        %v4558 = vpow.pop %v4557
        %v4559 = vmul.f32 %v4506, 1.442695
        %v4560 = vpow.pop %v4559
        %v4561 = vmul.f32 %v4507, 1.442695
        %v4562 = vpow.pop %v4561
        %v4563 = vmul.f32 %v4508, 1.442695
        %v4564 = vpow.pop %v4563
        %v4565 = vmul.f32 %v4509, 1.442695
        %v4566 = vpow.pop %v4565
        %v4567 = vmul.f32 %v4510, 1.442695
        %v4568 = vpow.pop %v4567
        %v4569 = vmul.f32 %v4511, 1.442695
        %v4570 = vpow.pop %v4569
        %v4571 = vmul.f32 %v4512, 1.442695
        %v4572 = vpow.pop %v4571
        %v4573 = vmul.f32 %v4513, 1.442695
        %v4574 = vpow.pop %v4573
        %v4575 = vmul.f32 %v4514, 1.442695
        %v4576 = vpow.pop %v4575
        %v4577 = vmul.f32 %v4515, 1.442695
        %v4578 = vpow.pop %v4577
        %v4579 = vmul.f32 %v4516, 1.442695
        %v4580 = vpow.pop %v4579
        %v4581 = vsel %vm4421, %v4518, %v3557
        %v4582 = vsel %vm4422, %v4518, %v3558
        %v4583 = vsel %vm4423, %v4520, %v3559
        %v4584 = vsel %vm4424, %v4520, %v3560
        %v4585 = vsel %vm4425, %v4522, %v3561
        %v4586 = vsel %vm4426, %v4522, %v3562
        %v4587 = vsel %vm4427, %v4524, %v3563
        %v4588 = vsel %vm4428, %v4524, %v3564
        %v4589 = vsel %vm4429, %v4526, %v3565
        %v4590 = vsel %vm4430, %v4526, %v3566
        %v4591 = vsel %vm4431, %v4528, %v3567
        %v4592 = vsel %vm4432, %v4528, %v3568
        %v4593 = vsel %vm4433, %v4530, %v3569
        %v4594 = vsel %vm4434, %v4530, %v3570
        %v4595 = vsel %vm4435, %v4532, %v3571
        %v4596 = vsel %vm4436, %v4532, %v3572
        %v4597 = vsel %vm4437, %v4534, %v3573
        %v4598 = vsel %vm4438, %v4534, %v3574
        %v4599 = vsel %vm4439, %v4536, %v3575
        %v4600 = vsel %vm4440, %v4536, %v3576
        %v4601 = vsel %vm4441, %v4538, %v3577
        %v4602 = vsel %vm4442, %v4538, %v3578
        %v4603 = vsel %vm4443, %v4540, %v3579
        %v4604 = vsel %vm4444, %v4540, %v3580
        %v4605 = vsel %vm4445, %v4542, %v3581
        %v4606 = vsel %vm4446, %v4542, %v3582
        %v4607 = vsel %vm4447, %v4544, %v3583
        %v4608 = vsel %vm4448, %v4544, %v3584
        %v4609 = vsel %vm4449, %v4546, %v3585
        %v4610 = vsel %vm4450, %v4546, %v3586
        %v4611 = vsel %vm4451, %v4548, %v3587
        %v4612 = vsel %vm4452, %v4548, %v3588
        %v4613 = vsel %vm4453, %v4550, %v3589
        %v4614 = vsel %vm4454, %v4550, %v3590
        %v4615 = vsel %vm4455, %v4552, %v3591
        %v4616 = vsel %vm4456, %v4552, %v3592
        %v4617 = vsel %vm4457, %v4554, %v3593
        %v4618 = vsel %vm4458, %v4554, %v3594
        %v4619 = vsel %vm4459, %v4556, %v3595
        %v4620 = vsel %vm4460, %v4556, %v3596
        %v4621 = vsel %vm4461, %v4558, %v3597
        %v4622 = vsel %vm4462, %v4558, %v3598
        %v4623 = vsel %vm4463, %v4560, %v3599
        %v4624 = vsel %vm4464, %v4560, %v3600
        %v4625 = vsel %vm4465, %v4562, %v3601
        %v4626 = vsel %vm4466, %v4562, %v3602
        %v4627 = vsel %vm4467, %v4564, %v3603
        %v4628 = vsel %vm4468, %v4564, %v3604
        %v4629 = vsel %vm4469, %v4566, %v3605
        %v4630 = vsel %vm4470, %v4566, %v3606
        %v4631 = vsel %vm4471, %v4568, %v3607
        %v4632 = vsel %vm4472, %v4568, %v3608
        %v4633 = vsel %vm4473, %v4570, %v3609
        %v4634 = vsel %vm4474, %v4570, %v3610
        %v4635 = vsel %vm4475, %v4572, %v3611
        %v4636 = vsel %vm4476, %v4572, %v3612
        %v4637 = vsel %vm4477, %v4574, %v3613
        %v4638 = vsel %vm4478, %v4574, %v3614
        %v4639 = vsel %vm4479, %v4576, %v3615
        %v4640 = vsel %vm4480, %v4576, %v3616
        %v4641 = vsel %vm4481, %v4578, %v3617
        %v4642 = vsel %vm4482, %v4578, %v3618
        %v4643 = vsel %vm4483, %v4580, %v3619
        %v4644 = vsel %vm4484, %v4580, %v3620
        %v4645 = vsel %vm4421, -1e+30, %v3621
        %v4646 = vsel %vm4422, -1e+30, %v3622
        %v4647 = vsel %vm4423, -1e+30, %v3623
        %v4648 = vsel %vm4424, -1e+30, %v3624
        %v4649 = vsel %vm4425, -1e+30, %v3625
        %v4650 = vsel %vm4426, -1e+30, %v3626
        %v4651 = vsel %vm4427, -1e+30, %v3627
        %v4652 = vsel %vm4428, -1e+30, %v3628
        %v4653 = vsel %vm4429, -1e+30, %v3629
        %v4654 = vsel %vm4430, -1e+30, %v3630
        %v4655 = vsel %vm4431, -1e+30, %v3631
        %v4656 = vsel %vm4432, -1e+30, %v3632
        %v4657 = vsel %vm4433, -1e+30, %v3633
        %v4658 = vsel %vm4434, -1e+30, %v3634
        %v4659 = vsel %vm4435, -1e+30, %v3635
        %v4660 = vsel %vm4436, -1e+30, %v3636
        %v4661 = vsel %vm4437, -1e+30, %v3637
        %v4662 = vsel %vm4438, -1e+30, %v3638
        %v4663 = vsel %vm4439, -1e+30, %v3639
        %v4664 = vsel %vm4440, -1e+30, %v3640
        %v4665 = vsel %vm4441, -1e+30, %v3641
        %v4666 = vsel %vm4442, -1e+30, %v3642
        %v4667 = vsel %vm4443, -1e+30, %v3643
        %v4668 = vsel %vm4444, -1e+30, %v3644
        %v4669 = vsel %vm4445, -1e+30, %v3645
        %v4670 = vsel %vm4446, -1e+30, %v3646
        %v4671 = vsel %vm4447, -1e+30, %v3647
        %v4672 = vsel %vm4448, -1e+30, %v3648
        %v4673 = vsel %vm4449, -1e+30, %v3649
        %v4674 = vsel %vm4450, -1e+30, %v3650
        %v4675 = vsel %vm4451, -1e+30, %v3651
        %v4676 = vsel %vm4452, -1e+30, %v3652
        %v4677 = vsel %vm4453, -1e+30, %v3653
        %v4678 = vsel %vm4454, -1e+30, %v3654
        %v4679 = vsel %vm4455, -1e+30, %v3655
        %v4680 = vsel %vm4456, -1e+30, %v3656
        %v4681 = vsel %vm4457, -1e+30, %v3657
        %v4682 = vsel %vm4458, -1e+30, %v3658
        %v4683 = vsel %vm4459, -1e+30, %v3659
        %v4684 = vsel %vm4460, -1e+30, %v3660
        %v4685 = vsel %vm4461, -1e+30, %v3661
        %v4686 = vsel %vm4462, -1e+30, %v3662
        %v4687 = vsel %vm4463, -1e+30, %v3663
        %v4688 = vsel %vm4464, -1e+30, %v3664
        %v4689 = vsel %vm4465, -1e+30, %v3665
        %v4690 = vsel %vm4466, -1e+30, %v3666
        %v4691 = vsel %vm4467, -1e+30, %v3667
        %v4692 = vsel %vm4468, -1e+30, %v3668
        %v4693 = vsel %vm4469, -1e+30, %v3669
        %v4694 = vsel %vm4470, -1e+30, %v3670
        %v4695 = vsel %vm4471, -1e+30, %v3671
        %v4696 = vsel %vm4472, -1e+30, %v3672
        %v4697 = vsel %vm4473, -1e+30, %v3673
        %v4698 = vsel %vm4474, -1e+30, %v3674
        %v4699 = vsel %vm4475, -1e+30, %v3675
        %v4700 = vsel %vm4476, -1e+30, %v3676
        %v4701 = vsel %vm4477, -1e+30, %v3677
        %v4702 = vsel %vm4478, -1e+30, %v3678
        %v4703 = vsel %vm4479, -1e+30, %v3679
        %v4704 = vsel %vm4480, -1e+30, %v3680
        %v4705 = vsel %vm4481, -1e+30, %v3681
        %v4706 = vsel %vm4482, -1e+30, %v3682
        %v4707 = vsel %vm4483, -1e+30, %v3683
        %v4708 = vsel %vm4484, -1e+30, %v3684
        %v4709 = vmax.f32 %v4645, %v4646
        %4710 = vmax.xlane.f32.xlu0 %v4709
        %v4711 = vpop.xlane.xlu0 %4710
        %v4712 = vmax.f32 %v4647, %v4648
        %4713 = vmax.xlane.f32.xlu0 %v4712
        %v4714 = vpop.xlane.xlu0 %4713
        %v4715 = vmax.f32 %v4649, %v4650
        %4716 = vmax.xlane.f32.xlu0 %v4715
        %v4717 = vpop.xlane.xlu0 %4716
        %v4718 = vmax.f32 %v4651, %v4652
        %4719 = vmax.xlane.f32.xlu0 %v4718
        %v4720 = vpop.xlane.xlu0 %4719
        %v4721 = vmax.f32 %v4653, %v4654
        %4722 = vmax.xlane.f32.xlu0 %v4721
        %v4723 = vpop.xlane.xlu0 %4722
        %v4724 = vmax.f32 %v4655, %v4656
        %4725 = vmax.xlane.f32.xlu0 %v4724
        %v4726 = vpop.xlane.xlu0 %4725
        %v4727 = vmax.f32 %v4657, %v4658
        %4728 = vmax.xlane.f32.xlu0 %v4727
        %v4729 = vpop.xlane.xlu0 %4728
        %v4730 = vmax.f32 %v4659, %v4660
        %4731 = vmax.xlane.f32.xlu0 %v4730
        %v4732 = vpop.xlane.xlu0 %4731
        %v4733 = vmax.f32 %v4661, %v4662
        %4734 = vmax.xlane.f32.xlu0 %v4733
        %v4735 = vpop.xlane.xlu0 %4734
        %v4736 = vmax.f32 %v4663, %v4664
        %4737 = vmax.xlane.f32.xlu0 %v4736
        %v4738 = vpop.xlane.xlu0 %4737
        %v4739 = vmax.f32 %v4665, %v4666
        %4740 = vmax.xlane.f32.xlu0 %v4739
        %v4741 = vpop.xlane.xlu0 %4740
        %v4742 = vmax.f32 %v4667, %v4668
        %4743 = vmax.xlane.f32.xlu0 %v4742
        %v4744 = vpop.xlane.xlu0 %4743
        %v4745 = vmax.f32 %v4669, %v4670
        %4746 = vmax.xlane.f32.xlu0 %v4745
        %v4747 = vpop.xlane.xlu0 %4746
        %v4748 = vmax.f32 %v4671, %v4672
        %4749 = vmax.xlane.f32.xlu0 %v4748
        %v4750 = vpop.xlane.xlu0 %4749
        %v4751 = vmax.f32 %v4673, %v4674
        %4752 = vmax.xlane.f32.xlu0 %v4751
        %v4753 = vpop.xlane.xlu0 %4752
        %v4754 = vmax.f32 %v4675, %v4676
        %4755 = vmax.xlane.f32.xlu0 %v4754
        %v4756 = vpop.xlane.xlu0 %4755
        %v4757 = vmax.f32 %v4677, %v4678
        %4758 = vmax.xlane.f32.xlu0 %v4757
        %v4759 = vpop.xlane.xlu0 %4758
        %v4760 = vmax.f32 %v4679, %v4680
        %4761 = vmax.xlane.f32.xlu0 %v4760
        %v4762 = vpop.xlane.xlu0 %4761
        %v4763 = vmax.f32 %v4681, %v4682
        %4764 = vmax.xlane.f32.xlu0 %v4763
        %v4765 = vpop.xlane.xlu0 %4764
        %v4766 = vmax.f32 %v4683, %v4684
        %4767 = vmax.xlane.f32.xlu0 %v4766
        %v4768 = vpop.xlane.xlu0 %4767
        %v4769 = vmax.f32 %v4685, %v4686
        %4770 = vmax.xlane.f32.xlu0 %v4769
        %v4771 = vpop.xlane.xlu0 %4770
        %v4772 = vmax.f32 %v4687, %v4688
        %4773 = vmax.xlane.f32.xlu0 %v4772
        %v4774 = vpop.xlane.xlu0 %4773
        %v4775 = vmax.f32 %v4689, %v4690
        %4776 = vmax.xlane.f32.xlu0 %v4775
        %v4777 = vpop.xlane.xlu0 %4776
        %v4778 = vmax.f32 %v4691, %v4692
        %4779 = vmax.xlane.f32.xlu0 %v4778
        %v4780 = vpop.xlane.xlu0 %4779
        %v4781 = vmax.f32 %v4693, %v4694
        %4782 = vmax.xlane.f32.xlu0 %v4781
        %v4783 = vpop.xlane.xlu0 %4782
        %v4784 = vmax.f32 %v4695, %v4696
        %4785 = vmax.xlane.f32.xlu0 %v4784
        %v4786 = vpop.xlane.xlu0 %4785
        %v4787 = vmax.f32 %v4697, %v4698
        %4788 = vmax.xlane.f32.xlu0 %v4787
        %v4789 = vpop.xlane.xlu0 %4788
        %v4790 = vmax.f32 %v4699, %v4700
        %4791 = vmax.xlane.f32.xlu0 %v4790
        %v4792 = vpop.xlane.xlu0 %4791
        %v4793 = vmax.f32 %v4701, %v4702
        %4794 = vmax.xlane.f32.xlu0 %v4793
        %v4795 = vpop.xlane.xlu0 %4794
        %v4796 = vmax.f32 %v4703, %v4704
        %4797 = vmax.xlane.f32.xlu0 %v4796
        %v4798 = vpop.xlane.xlu0 %4797
        %v4799 = vmax.f32 %v4705, %v4706
        %4800 = vmax.xlane.f32.xlu0 %v4799
        %v4801 = vpop.xlane.xlu0 %4800
        %v4802 = vmax.f32 %v4707, %v4708
        %4803 = vmax.xlane.f32.xlu0 %v4802
        %v4804 = vpop.xlane.xlu0 %4803
        %vm4805 = vcmp.eq.f32.partialorder %v4645, %v4711
        %vm4806 = vcmp.eq.f32.partialorder %v4646, %v4711
        %vm4807 = vcmp.eq.f32.partialorder %v4647, %v4714
        %vm4808 = vcmp.eq.f32.partialorder %v4648, %v4714
        %vm4809 = vcmp.eq.f32.partialorder %v4649, %v4717
        %vm4810 = vcmp.eq.f32.partialorder %v4650, %v4717
        %vm4811 = vcmp.eq.f32.partialorder %v4651, %v4720
        %vm4812 = vcmp.eq.f32.partialorder %v4652, %v4720
        %vm4813 = vcmp.eq.f32.partialorder %v4653, %v4723
        %vm4814 = vcmp.eq.f32.partialorder %v4654, %v4723
        %vm4815 = vcmp.eq.f32.partialorder %v4655, %v4726
        %vm4816 = vcmp.eq.f32.partialorder %v4656, %v4726
        %vm4817 = vcmp.eq.f32.partialorder %v4657, %v4729
        %vm4818 = vcmp.eq.f32.partialorder %v4658, %v4729
        %vm4819 = vcmp.eq.f32.partialorder %v4659, %v4732
        %vm4820 = vcmp.eq.f32.partialorder %v4660, %v4732
        %vm4821 = vcmp.eq.f32.partialorder %v4661, %v4735
        %vm4822 = vcmp.eq.f32.partialorder %v4662, %v4735
        %vm4823 = vcmp.eq.f32.partialorder %v4663, %v4738
        %vm4824 = vcmp.eq.f32.partialorder %v4664, %v4738
        %vm4825 = vcmp.eq.f32.partialorder %v4665, %v4741
        %vm4826 = vcmp.eq.f32.partialorder %v4666, %v4741
        %vm4827 = vcmp.eq.f32.partialorder %v4667, %v4744
        %vm4828 = vcmp.eq.f32.partialorder %v4668, %v4744
        %vm4829 = vcmp.eq.f32.partialorder %v4669, %v4747
        %vm4830 = vcmp.eq.f32.partialorder %v4670, %v4747
        %vm4831 = vcmp.eq.f32.partialorder %v4671, %v4750
        %vm4832 = vcmp.eq.f32.partialorder %v4672, %v4750
        %vm4833 = vcmp.eq.f32.partialorder %v4673, %v4753
        %vm4834 = vcmp.eq.f32.partialorder %v4674, %v4753
        %vm4835 = vcmp.eq.f32.partialorder %v4675, %v4756
        %vm4836 = vcmp.eq.f32.partialorder %v4676, %v4756
        %vm4837 = vcmp.eq.f32.partialorder %v4677, %v4759
        %vm4838 = vcmp.eq.f32.partialorder %v4678, %v4759
        %vm4839 = vcmp.eq.f32.partialorder %v4679, %v4762
        %vm4840 = vcmp.eq.f32.partialorder %v4680, %v4762
        %vm4841 = vcmp.eq.f32.partialorder %v4681, %v4765
        %vm4842 = vcmp.eq.f32.partialorder %v4682, %v4765
        %vm4843 = vcmp.eq.f32.partialorder %v4683, %v4768
        %vm4844 = vcmp.eq.f32.partialorder %v4684, %v4768
        %vm4845 = vcmp.eq.f32.partialorder %v4685, %v4771
        %vm4846 = vcmp.eq.f32.partialorder %v4686, %v4771
        %vm4847 = vcmp.eq.f32.partialorder %v4687, %v4774
        %vm4848 = vcmp.eq.f32.partialorder %v4688, %v4774
        %vm4849 = vcmp.eq.f32.partialorder %v4689, %v4777
        %vm4850 = vcmp.eq.f32.partialorder %v4690, %v4777
        %vm4851 = vcmp.eq.f32.partialorder %v4691, %v4780
        %vm4852 = vcmp.eq.f32.partialorder %v4692, %v4780
        %vm4853 = vcmp.eq.f32.partialorder %v4693, %v4783
        %vm4854 = vcmp.eq.f32.partialorder %v4694, %v4783
        %vm4855 = vcmp.eq.f32.partialorder %v4695, %v4786
        %vm4856 = vcmp.eq.f32.partialorder %v4696, %v4786
        %vm4857 = vcmp.eq.f32.partialorder %v4697, %v4789
        %vm4858 = vcmp.eq.f32.partialorder %v4698, %v4789
        %vm4859 = vcmp.eq.f32.partialorder %v4699, %v4792
        %vm4860 = vcmp.eq.f32.partialorder %v4700, %v4792
        %vm4861 = vcmp.eq.f32.partialorder %v4701, %v4795
        %vm4862 = vcmp.eq.f32.partialorder %v4702, %v4795
        %vm4863 = vcmp.eq.f32.partialorder %v4703, %v4798
        %vm4864 = vcmp.eq.f32.partialorder %v4704, %v4798
        %vm4865 = vcmp.eq.f32.partialorder %v4705, %v4801
        %vm4866 = vcmp.eq.f32.partialorder %v4706, %v4801
        %vm4867 = vcmp.eq.f32.partialorder %v4707, %v4804
        %vm4868 = vcmp.eq.f32.partialorder %v4708, %v4804
        %v4869 = vsel %vm4805, %v707, 256
        %v4870 = vsel %vm4806, %v708, 256
        %v4871 = vsel %vm4807, %v707, 256
        %v4872 = vsel %vm4808, %v708, 256
        %v4873 = vsel %vm4809, %v707, 256
        %v4874 = vsel %vm4810, %v708, 256
        %v4875 = vsel %vm4811, %v707, 256
        %v4876 = vsel %vm4812, %v708, 256
        %v4877 = vsel %vm4813, %v707, 256
        %v4878 = vsel %vm4814, %v708, 256
        %v4879 = vsel %vm4815, %v707, 256
        %v4880 = vsel %vm4816, %v708, 256
        %v4881 = vsel %vm4817, %v707, 256
        %v4882 = vsel %vm4818, %v708, 256
        %v4883 = vsel %vm4819, %v707, 256
        %v4884 = vsel %vm4820, %v708, 256
        %v4885 = vsel %vm4821, %v707, 256
        %v4886 = vsel %vm4822, %v708, 256
        %v4887 = vsel %vm4823, %v707, 256
        %v4888 = vsel %vm4824, %v708, 256
        %v4889 = vsel %vm4825, %v707, 256
        %v4890 = vsel %vm4826, %v708, 256
        %v4891 = vsel %vm4827, %v707, 256
        %v4892 = vsel %vm4828, %v708, 256
        %v4893 = vsel %vm4829, %v707, 256
        %v4894 = vsel %vm4830, %v708, 256
        %v4895 = vsel %vm4831, %v707, 256
        %v4896 = vsel %vm4832, %v708, 256
        %v4897 = vsel %vm4833, %v707, 256
        %v4898 = vsel %vm4834, %v708, 256
        %v4899 = vsel %vm4835, %v707, 256
        %v4900 = vsel %vm4836, %v708, 256
        %v4901 = vsel %vm4837, %v707, 256
        %v4902 = vsel %vm4838, %v708, 256
        %v4903 = vsel %vm4839, %v707, 256
        %v4904 = vsel %vm4840, %v708, 256
        %v4905 = vsel %vm4841, %v707, 256
        %v4906 = vsel %vm4842, %v708, 256
        %v4907 = vsel %vm4843, %v707, 256
        %v4908 = vsel %vm4844, %v708, 256
        %v4909 = vsel %vm4845, %v707, 256
        %v4910 = vsel %vm4846, %v708, 256
        %v4911 = vsel %vm4847, %v707, 256
        %v4912 = vsel %vm4848, %v708, 256
        %v4913 = vsel %vm4849, %v707, 256
        %v4914 = vsel %vm4850, %v708, 256
        %v4915 = vsel %vm4851, %v707, 256
        %v4916 = vsel %vm4852, %v708, 256
        %v4917 = vsel %vm4853, %v707, 256
        %v4918 = vsel %vm4854, %v708, 256
        %v4919 = vsel %vm4855, %v707, 256
        %v4920 = vsel %vm4856, %v708, 256
        %v4921 = vsel %vm4857, %v707, 256
        %v4922 = vsel %vm4858, %v708, 256
        %v4923 = vsel %vm4859, %v707, 256
        %v4924 = vsel %vm4860, %v708, 256
        %v4925 = vsel %vm4861, %v707, 256
        %v4926 = vsel %vm4862, %v708, 256
        %v4927 = vsel %vm4863, %v707, 256
        %v4928 = vsel %vm4864, %v708, 256
        %v4929 = vsel %vm4865, %v707, 256
        %v4930 = vsel %vm4866, %v708, 256
        %v4931 = vsel %vm4867, %v707, 256
        %v4932 = vsel %vm4868, %v708, 256
        %vm4933 = vcmp.lt.s32.totalorder %v4869, %v4870
        %v4934 = vsel %vm4933, %v4869, %v4870
        %v4935 = vand.u32 %v4934, 65535
        %v4936 = vshra.s32 %v4934, 16
        %v4937 = vcvt.s32.f32 %v4935
        %v4938 = vcvt.s32.f32 %v4936
        %4939 = vmin.xlane.f32.xlu0 %v4938
        %v4940 = vpop.xlane.xlu0 %4939
        %vm4941 = vcmp.eq.f32.partialorder %v4938, %v4940
        %v4942 = vsel %vm4941, %v4937, inf
        %4943 = vmin.xlane.f32.xlu0 %v4942
        %v4944 = vpop.xlane.xlu0 %4943
        %v4945 = vcvt.f32.s32 %v4944
        %v4946 = vcvt.f32.s32 %v4940
        %v4947 = vshll.u32 %v4946, 16
        %v4948 = vadd.s32 %v4947, %v4945
        %vm4949 = vcmp.lt.s32.totalorder %v4871, %v4872
        %v4950 = vsel %vm4949, %v4871, %v4872
        %v4951 = vand.u32 %v4950, 65535
        %v4952 = vshra.s32 %v4950, 16
        %v4953 = vcvt.s32.f32 %v4951
        %v4954 = vcvt.s32.f32 %v4952
        %4955 = vmin.xlane.f32.xlu0 %v4954
        %v4956 = vpop.xlane.xlu0 %4955
        %vm4957 = vcmp.eq.f32.partialorder %v4954, %v4956
        %v4958 = vsel %vm4957, %v4953, inf
        %4959 = vmin.xlane.f32.xlu0 %v4958
        %v4960 = vpop.xlane.xlu0 %4959
        %v4961 = vcvt.f32.s32 %v4960
        %v4962 = vcvt.f32.s32 %v4956
        %v4963 = vshll.u32 %v4962, 16
        %v4964 = vadd.s32 %v4963, %v4961
        %vm4965 = vcmp.lt.s32.totalorder %v4873, %v4874
        %v4966 = vsel %vm4965, %v4873, %v4874
        %v4967 = vand.u32 %v4966, 65535
        %v4968 = vshra.s32 %v4966, 16
        %v4969 = vcvt.s32.f32 %v4967
        %v4970 = vcvt.s32.f32 %v4968
        %4971 = vmin.xlane.f32.xlu0 %v4970
        %v4972 = vpop.xlane.xlu0 %4971
        %vm4973 = vcmp.eq.f32.partialorder %v4970, %v4972
        %v4974 = vsel %vm4973, %v4969, inf
        %4975 = vmin.xlane.f32.xlu0 %v4974
        %v4976 = vpop.xlane.xlu0 %4975
        %v4977 = vcvt.f32.s32 %v4976
        %v4978 = vcvt.f32.s32 %v4972
        %v4979 = vshll.u32 %v4978, 16
        %v4980 = vadd.s32 %v4979, %v4977
        %vm4981 = vcmp.lt.s32.totalorder %v4875, %v4876
        %v4982 = vsel %vm4981, %v4875, %v4876
        %v4983 = vand.u32 %v4982, 65535
        %v4984 = vshra.s32 %v4982, 16
        %v4985 = vcvt.s32.f32 %v4983
        %v4986 = vcvt.s32.f32 %v4984
        %4987 = vmin.xlane.f32.xlu0 %v4986
        %v4988 = vpop.xlane.xlu0 %4987
        %vm4989 = vcmp.eq.f32.partialorder %v4986, %v4988
        %v4990 = vsel %vm4989, %v4985, inf
        %4991 = vmin.xlane.f32.xlu0 %v4990
        %v4992 = vpop.xlane.xlu0 %4991
        %v4993 = vcvt.f32.s32 %v4992
        %v4994 = vcvt.f32.s32 %v4988
        %v4995 = vshll.u32 %v4994, 16
        %v4996 = vadd.s32 %v4995, %v4993
        %vm4997 = vcmp.lt.s32.totalorder %v4877, %v4878
        %v4998 = vsel %vm4997, %v4877, %v4878
        %v4999 = vand.u32 %v4998, 65535
        %v5000 = vshra.s32 %v4998, 16
        %v5001 = vcvt.s32.f32 %v4999
        %v5002 = vcvt.s32.f32 %v5000
        %5003 = vmin.xlane.f32.xlu0 %v5002
        %v5004 = vpop.xlane.xlu0 %5003
        %vm5005 = vcmp.eq.f32.partialorder %v5002, %v5004
        %v5006 = vsel %vm5005, %v5001, inf
        %5007 = vmin.xlane.f32.xlu0 %v5006
        %v5008 = vpop.xlane.xlu0 %5007
        %v5009 = vcvt.f32.s32 %v5008
        %v5010 = vcvt.f32.s32 %v5004
        %v5011 = vshll.u32 %v5010, 16
        %v5012 = vadd.s32 %v5011, %v5009
        %vm5013 = vcmp.lt.s32.totalorder %v4879, %v4880
        %v5014 = vsel %vm5013, %v4879, %v4880
        %v5015 = vand.u32 %v5014, 65535
        %v5016 = vshra.s32 %v5014, 16
        %v5017 = vcvt.s32.f32 %v5015
        %v5018 = vcvt.s32.f32 %v5016
        %5019 = vmin.xlane.f32.xlu0 %v5018
        %v5020 = vpop.xlane.xlu0 %5019
        %vm5021 = vcmp.eq.f32.partialorder %v5018, %v5020
        %v5022 = vsel %vm5021, %v5017, inf
        %5023 = vmin.xlane.f32.xlu0 %v5022
        %v5024 = vpop.xlane.xlu0 %5023
        %v5025 = vcvt.f32.s32 %v5024
        %v5026 = vcvt.f32.s32 %v5020
        %v5027 = vshll.u32 %v5026, 16
        %v5028 = vadd.s32 %v5027, %v5025
        %vm5029 = vcmp.lt.s32.totalorder %v4881, %v4882
        %v5030 = vsel %vm5029, %v4881, %v4882
        %v5031 = vand.u32 %v5030, 65535
        %v5032 = vshra.s32 %v5030, 16
        %v5033 = vcvt.s32.f32 %v5031
        %v5034 = vcvt.s32.f32 %v5032
        %5035 = vmin.xlane.f32.xlu0 %v5034
        %v5036 = vpop.xlane.xlu0 %5035
        %vm5037 = vcmp.eq.f32.partialorder %v5034, %v5036
        %v5038 = vsel %vm5037, %v5033, inf
        %5039 = vmin.xlane.f32.xlu0 %v5038
        %v5040 = vpop.xlane.xlu0 %5039
        %v5041 = vcvt.f32.s32 %v5040
        %v5042 = vcvt.f32.s32 %v5036
        %v5043 = vshll.u32 %v5042, 16
        %v5044 = vadd.s32 %v5043, %v5041
        %vm5045 = vcmp.lt.s32.totalorder %v4883, %v4884
        %v5046 = vsel %vm5045, %v4883, %v4884
        %v5047 = vand.u32 %v5046, 65535
        %v5048 = vshra.s32 %v5046, 16
        %v5049 = vcvt.s32.f32 %v5047
        %v5050 = vcvt.s32.f32 %v5048
        %5051 = vmin.xlane.f32.xlu0 %v5050
        %v5052 = vpop.xlane.xlu0 %5051
        %vm5053 = vcmp.eq.f32.partialorder %v5050, %v5052
        %v5054 = vsel %vm5053, %v5049, inf
        %5055 = vmin.xlane.f32.xlu0 %v5054
        %v5056 = vpop.xlane.xlu0 %5055
        %v5057 = vcvt.f32.s32 %v5056
        %v5058 = vcvt.f32.s32 %v5052
        %v5059 = vshll.u32 %v5058, 16
        %v5060 = vadd.s32 %v5059, %v5057
        %vm5061 = vcmp.lt.s32.totalorder %v4885, %v4886
        %v5062 = vsel %vm5061, %v4885, %v4886
        %v5063 = vand.u32 %v5062, 65535
        %v5064 = vshra.s32 %v5062, 16
        %v5065 = vcvt.s32.f32 %v5063
        %v5066 = vcvt.s32.f32 %v5064
        %5067 = vmin.xlane.f32.xlu0 %v5066
        %v5068 = vpop.xlane.xlu0 %5067
        %vm5069 = vcmp.eq.f32.partialorder %v5066, %v5068
        %v5070 = vsel %vm5069, %v5065, inf
        %5071 = vmin.xlane.f32.xlu0 %v5070
        %v5072 = vpop.xlane.xlu0 %5071
        %v5073 = vcvt.f32.s32 %v5072
        %v5074 = vcvt.f32.s32 %v5068
        %v5075 = vshll.u32 %v5074, 16
        %v5076 = vadd.s32 %v5075, %v5073
        %vm5077 = vcmp.lt.s32.totalorder %v4887, %v4888
        %v5078 = vsel %vm5077, %v4887, %v4888
        %v5079 = vand.u32 %v5078, 65535
        %v5080 = vshra.s32 %v5078, 16
        %v5081 = vcvt.s32.f32 %v5079
        %v5082 = vcvt.s32.f32 %v5080
        %5083 = vmin.xlane.f32.xlu0 %v5082
        %v5084 = vpop.xlane.xlu0 %5083
        %vm5085 = vcmp.eq.f32.partialorder %v5082, %v5084
        %v5086 = vsel %vm5085, %v5081, inf
        %5087 = vmin.xlane.f32.xlu0 %v5086
        %v5088 = vpop.xlane.xlu0 %5087
        %v5089 = vcvt.f32.s32 %v5088
        %v5090 = vcvt.f32.s32 %v5084
        %v5091 = vshll.u32 %v5090, 16
        %v5092 = vadd.s32 %v5091, %v5089
        %vm5093 = vcmp.lt.s32.totalorder %v4889, %v4890
        %v5094 = vsel %vm5093, %v4889, %v4890
        %v5095 = vand.u32 %v5094, 65535
        %v5096 = vshra.s32 %v5094, 16
        %v5097 = vcvt.s32.f32 %v5095
        %v5098 = vcvt.s32.f32 %v5096
        %5099 = vmin.xlane.f32.xlu0 %v5098
        %v5100 = vpop.xlane.xlu0 %5099
        %vm5101 = vcmp.eq.f32.partialorder %v5098, %v5100
        %v5102 = vsel %vm5101, %v5097, inf
        %5103 = vmin.xlane.f32.xlu0 %v5102
        %v5104 = vpop.xlane.xlu0 %5103
        %v5105 = vcvt.f32.s32 %v5104
        %v5106 = vcvt.f32.s32 %v5100
        %v5107 = vshll.u32 %v5106, 16
        %v5108 = vadd.s32 %v5107, %v5105
        %vm5109 = vcmp.lt.s32.totalorder %v4891, %v4892
        %v5110 = vsel %vm5109, %v4891, %v4892
        %v5111 = vand.u32 %v5110, 65535
        %v5112 = vshra.s32 %v5110, 16
        %v5113 = vcvt.s32.f32 %v5111
        %v5114 = vcvt.s32.f32 %v5112
        %5115 = vmin.xlane.f32.xlu0 %v5114
        %v5116 = vpop.xlane.xlu0 %5115
        %vm5117 = vcmp.eq.f32.partialorder %v5114, %v5116
        %v5118 = vsel %vm5117, %v5113, inf
        %5119 = vmin.xlane.f32.xlu0 %v5118
        %v5120 = vpop.xlane.xlu0 %5119
        %v5121 = vcvt.f32.s32 %v5120
        %v5122 = vcvt.f32.s32 %v5116
        %v5123 = vshll.u32 %v5122, 16
        %v5124 = vadd.s32 %v5123, %v5121
        %vm5125 = vcmp.lt.s32.totalorder %v4893, %v4894
        %v5126 = vsel %vm5125, %v4893, %v4894
        %v5127 = vand.u32 %v5126, 65535
        %v5128 = vshra.s32 %v5126, 16
        %v5129 = vcvt.s32.f32 %v5127
        %v5130 = vcvt.s32.f32 %v5128
        %5131 = vmin.xlane.f32.xlu0 %v5130
        %v5132 = vpop.xlane.xlu0 %5131
        %vm5133 = vcmp.eq.f32.partialorder %v5130, %v5132
        %v5134 = vsel %vm5133, %v5129, inf
        %5135 = vmin.xlane.f32.xlu0 %v5134
        %v5136 = vpop.xlane.xlu0 %5135
        %v5137 = vcvt.f32.s32 %v5136
        %v5138 = vcvt.f32.s32 %v5132
        %v5139 = vshll.u32 %v5138, 16
        %v5140 = vadd.s32 %v5139, %v5137
        %vm5141 = vcmp.lt.s32.totalorder %v4895, %v4896
        %v5142 = vsel %vm5141, %v4895, %v4896
        %v5143 = vand.u32 %v5142, 65535
        %v5144 = vshra.s32 %v5142, 16
        %v5145 = vcvt.s32.f32 %v5143
        %v5146 = vcvt.s32.f32 %v5144
        %5147 = vmin.xlane.f32.xlu0 %v5146
        %v5148 = vpop.xlane.xlu0 %5147
        %vm5149 = vcmp.eq.f32.partialorder %v5146, %v5148
        %v5150 = vsel %vm5149, %v5145, inf
        %5151 = vmin.xlane.f32.xlu0 %v5150
        %v5152 = vpop.xlane.xlu0 %5151
        %v5153 = vcvt.f32.s32 %v5152
        %v5154 = vcvt.f32.s32 %v5148
        %v5155 = vshll.u32 %v5154, 16
        %v5156 = vadd.s32 %v5155, %v5153
        %vm5157 = vcmp.lt.s32.totalorder %v4897, %v4898
        %v5158 = vsel %vm5157, %v4897, %v4898
        %v5159 = vand.u32 %v5158, 65535
        %v5160 = vshra.s32 %v5158, 16
        %v5161 = vcvt.s32.f32 %v5159
        %v5162 = vcvt.s32.f32 %v5160
        %5163 = vmin.xlane.f32.xlu0 %v5162
        %v5164 = vpop.xlane.xlu0 %5163
        %vm5165 = vcmp.eq.f32.partialorder %v5162, %v5164
        %v5166 = vsel %vm5165, %v5161, inf
        %5167 = vmin.xlane.f32.xlu0 %v5166
        %v5168 = vpop.xlane.xlu0 %5167
        %v5169 = vcvt.f32.s32 %v5168
        %v5170 = vcvt.f32.s32 %v5164
        %v5171 = vshll.u32 %v5170, 16
        %v5172 = vadd.s32 %v5171, %v5169
        %vm5173 = vcmp.lt.s32.totalorder %v4899, %v4900
        %v5174 = vsel %vm5173, %v4899, %v4900
        %v5175 = vand.u32 %v5174, 65535
        %v5176 = vshra.s32 %v5174, 16
        %v5177 = vcvt.s32.f32 %v5175
        %v5178 = vcvt.s32.f32 %v5176
        %5179 = vmin.xlane.f32.xlu0 %v5178
        %v5180 = vpop.xlane.xlu0 %5179
        %vm5181 = vcmp.eq.f32.partialorder %v5178, %v5180
        %v5182 = vsel %vm5181, %v5177, inf
        %5183 = vmin.xlane.f32.xlu0 %v5182
        %v5184 = vpop.xlane.xlu0 %5183
        %v5185 = vcvt.f32.s32 %v5184
        %v5186 = vcvt.f32.s32 %v5180
        %v5187 = vshll.u32 %v5186, 16
        %v5188 = vadd.s32 %v5187, %v5185
        %vm5189 = vcmp.lt.s32.totalorder %v4901, %v4902
        %v5190 = vsel %vm5189, %v4901, %v4902
        %v5191 = vand.u32 %v5190, 65535
        %v5192 = vshra.s32 %v5190, 16
        %v5193 = vcvt.s32.f32 %v5191
        %v5194 = vcvt.s32.f32 %v5192
        %5195 = vmin.xlane.f32.xlu0 %v5194
        %v5196 = vpop.xlane.xlu0 %5195
        %vm5197 = vcmp.eq.f32.partialorder %v5194, %v5196
        %v5198 = vsel %vm5197, %v5193, inf
        %5199 = vmin.xlane.f32.xlu0 %v5198
        %v5200 = vpop.xlane.xlu0 %5199
        %v5201 = vcvt.f32.s32 %v5200
        %v5202 = vcvt.f32.s32 %v5196
        %v5203 = vshll.u32 %v5202, 16
        %v5204 = vadd.s32 %v5203, %v5201
        %vm5205 = vcmp.lt.s32.totalorder %v4903, %v4904
        %v5206 = vsel %vm5205, %v4903, %v4904
        %v5207 = vand.u32 %v5206, 65535
        %v5208 = vshra.s32 %v5206, 16
        %v5209 = vcvt.s32.f32 %v5207
        %v5210 = vcvt.s32.f32 %v5208
        %5211 = vmin.xlane.f32.xlu0 %v5210
        %v5212 = vpop.xlane.xlu0 %5211
        %vm5213 = vcmp.eq.f32.partialorder %v5210, %v5212
        %v5214 = vsel %vm5213, %v5209, inf
        %5215 = vmin.xlane.f32.xlu0 %v5214
        %v5216 = vpop.xlane.xlu0 %5215
        %v5217 = vcvt.f32.s32 %v5216
        %v5218 = vcvt.f32.s32 %v5212
        %v5219 = vshll.u32 %v5218, 16
        %v5220 = vadd.s32 %v5219, %v5217
        %vm5221 = vcmp.lt.s32.totalorder %v4905, %v4906
        %v5222 = vsel %vm5221, %v4905, %v4906
        %v5223 = vand.u32 %v5222, 65535
        %v5224 = vshra.s32 %v5222, 16
        %v5225 = vcvt.s32.f32 %v5223
        %v5226 = vcvt.s32.f32 %v5224
        %5227 = vmin.xlane.f32.xlu0 %v5226
        %v5228 = vpop.xlane.xlu0 %5227
        %vm5229 = vcmp.eq.f32.partialorder %v5226, %v5228
        %v5230 = vsel %vm5229, %v5225, inf
        %5231 = vmin.xlane.f32.xlu0 %v5230
        %v5232 = vpop.xlane.xlu0 %5231
        %v5233 = vcvt.f32.s32 %v5232
        %v5234 = vcvt.f32.s32 %v5228
        %v5235 = vshll.u32 %v5234, 16
        %v5236 = vadd.s32 %v5235, %v5233
        %vm5237 = vcmp.lt.s32.totalorder %v4907, %v4908
        %v5238 = vsel %vm5237, %v4907, %v4908
        %v5239 = vand.u32 %v5238, 65535
        %v5240 = vshra.s32 %v5238, 16
        %v5241 = vcvt.s32.f32 %v5239
        %v5242 = vcvt.s32.f32 %v5240
        %5243 = vmin.xlane.f32.xlu0 %v5242
        %v5244 = vpop.xlane.xlu0 %5243
        %vm5245 = vcmp.eq.f32.partialorder %v5242, %v5244
        %v5246 = vsel %vm5245, %v5241, inf
        %5247 = vmin.xlane.f32.xlu0 %v5246
        %v5248 = vpop.xlane.xlu0 %5247
        %v5249 = vcvt.f32.s32 %v5248
        %v5250 = vcvt.f32.s32 %v5244
        %v5251 = vshll.u32 %v5250, 16
        %v5252 = vadd.s32 %v5251, %v5249
        %vm5253 = vcmp.lt.s32.totalorder %v4909, %v4910
        %v5254 = vsel %vm5253, %v4909, %v4910
        %v5255 = vand.u32 %v5254, 65535
        %v5256 = vshra.s32 %v5254, 16
        %v5257 = vcvt.s32.f32 %v5255
        %v5258 = vcvt.s32.f32 %v5256
        %5259 = vmin.xlane.f32.xlu0 %v5258
        %v5260 = vpop.xlane.xlu0 %5259
        %vm5261 = vcmp.eq.f32.partialorder %v5258, %v5260
        %v5262 = vsel %vm5261, %v5257, inf
        %5263 = vmin.xlane.f32.xlu0 %v5262
        %v5264 = vpop.xlane.xlu0 %5263
        %v5265 = vcvt.f32.s32 %v5264
        %v5266 = vcvt.f32.s32 %v5260
        %v5267 = vshll.u32 %v5266, 16
        %v5268 = vadd.s32 %v5267, %v5265
        %vm5269 = vcmp.lt.s32.totalorder %v4911, %v4912
        %v5270 = vsel %vm5269, %v4911, %v4912
        %v5271 = vand.u32 %v5270, 65535
        %v5272 = vshra.s32 %v5270, 16
        %v5273 = vcvt.s32.f32 %v5271
        %v5274 = vcvt.s32.f32 %v5272
        %5275 = vmin.xlane.f32.xlu0 %v5274
        %v5276 = vpop.xlane.xlu0 %5275
        %vm5277 = vcmp.eq.f32.partialorder %v5274, %v5276
        %v5278 = vsel %vm5277, %v5273, inf
        %5279 = vmin.xlane.f32.xlu0 %v5278
        %v5280 = vpop.xlane.xlu0 %5279
        %v5281 = vcvt.f32.s32 %v5280
        %v5282 = vcvt.f32.s32 %v5276
        %v5283 = vshll.u32 %v5282, 16
        %v5284 = vadd.s32 %v5283, %v5281
        %vm5285 = vcmp.lt.s32.totalorder %v4913, %v4914
        %v5286 = vsel %vm5285, %v4913, %v4914
        %v5287 = vand.u32 %v5286, 65535
        %v5288 = vshra.s32 %v5286, 16
        %v5289 = vcvt.s32.f32 %v5287
        %v5290 = vcvt.s32.f32 %v5288
        %5291 = vmin.xlane.f32.xlu0 %v5290
        %v5292 = vpop.xlane.xlu0 %5291
        %vm5293 = vcmp.eq.f32.partialorder %v5290, %v5292
        %v5294 = vsel %vm5293, %v5289, inf
        %5295 = vmin.xlane.f32.xlu0 %v5294
        %v5296 = vpop.xlane.xlu0 %5295
        %v5297 = vcvt.f32.s32 %v5296
        %v5298 = vcvt.f32.s32 %v5292
        %v5299 = vshll.u32 %v5298, 16
        %v5300 = vadd.s32 %v5299, %v5297
        %vm5301 = vcmp.lt.s32.totalorder %v4915, %v4916
        %v5302 = vsel %vm5301, %v4915, %v4916
        %v5303 = vand.u32 %v5302, 65535
        %v5304 = vshra.s32 %v5302, 16
        %v5305 = vcvt.s32.f32 %v5303
        %v5306 = vcvt.s32.f32 %v5304
        %5307 = vmin.xlane.f32.xlu0 %v5306
        %v5308 = vpop.xlane.xlu0 %5307
        %vm5309 = vcmp.eq.f32.partialorder %v5306, %v5308
        %v5310 = vsel %vm5309, %v5305, inf
        %5311 = vmin.xlane.f32.xlu0 %v5310
        %v5312 = vpop.xlane.xlu0 %5311
        %v5313 = vcvt.f32.s32 %v5312
        %v5314 = vcvt.f32.s32 %v5308
        %v5315 = vshll.u32 %v5314, 16
        %v5316 = vadd.s32 %v5315, %v5313
        %vm5317 = vcmp.lt.s32.totalorder %v4917, %v4918
        %v5318 = vsel %vm5317, %v4917, %v4918
        %v5319 = vand.u32 %v5318, 65535
        %v5320 = vshra.s32 %v5318, 16
        %v5321 = vcvt.s32.f32 %v5319
        %v5322 = vcvt.s32.f32 %v5320
        %5323 = vmin.xlane.f32.xlu0 %v5322
        %v5324 = vpop.xlane.xlu0 %5323
        %vm5325 = vcmp.eq.f32.partialorder %v5322, %v5324
        %v5326 = vsel %vm5325, %v5321, inf
        %5327 = vmin.xlane.f32.xlu0 %v5326
        %v5328 = vpop.xlane.xlu0 %5327
        %v5329 = vcvt.f32.s32 %v5328
        %v5330 = vcvt.f32.s32 %v5324
        %v5331 = vshll.u32 %v5330, 16
        %v5332 = vadd.s32 %v5331, %v5329
        %vm5333 = vcmp.lt.s32.totalorder %v4919, %v4920
        %v5334 = vsel %vm5333, %v4919, %v4920
        %v5335 = vand.u32 %v5334, 65535
        %v5336 = vshra.s32 %v5334, 16
        %v5337 = vcvt.s32.f32 %v5335
        %v5338 = vcvt.s32.f32 %v5336
        %5339 = vmin.xlane.f32.xlu0 %v5338
        %v5340 = vpop.xlane.xlu0 %5339
        %vm5341 = vcmp.eq.f32.partialorder %v5338, %v5340
        %v5342 = vsel %vm5341, %v5337, inf
        %5343 = vmin.xlane.f32.xlu0 %v5342
        %v5344 = vpop.xlane.xlu0 %5343
        %v5345 = vcvt.f32.s32 %v5344
        %v5346 = vcvt.f32.s32 %v5340
        %v5347 = vshll.u32 %v5346, 16
        %v5348 = vadd.s32 %v5347, %v5345
        %vm5349 = vcmp.lt.s32.totalorder %v4921, %v4922
        %v5350 = vsel %vm5349, %v4921, %v4922
        %v5351 = vand.u32 %v5350, 65535
        %v5352 = vshra.s32 %v5350, 16
        %v5353 = vcvt.s32.f32 %v5351
        %v5354 = vcvt.s32.f32 %v5352
        %5355 = vmin.xlane.f32.xlu0 %v5354
        %v5356 = vpop.xlane.xlu0 %5355
        %vm5357 = vcmp.eq.f32.partialorder %v5354, %v5356
        %v5358 = vsel %vm5357, %v5353, inf
        %5359 = vmin.xlane.f32.xlu0 %v5358
        %v5360 = vpop.xlane.xlu0 %5359
        %v5361 = vcvt.f32.s32 %v5360
        %v5362 = vcvt.f32.s32 %v5356
        %v5363 = vshll.u32 %v5362, 16
        %v5364 = vadd.s32 %v5363, %v5361
        %vm5365 = vcmp.lt.s32.totalorder %v4923, %v4924
        %v5366 = vsel %vm5365, %v4923, %v4924
        %v5367 = vand.u32 %v5366, 65535
        %v5368 = vshra.s32 %v5366, 16
        %v5369 = vcvt.s32.f32 %v5367
        %v5370 = vcvt.s32.f32 %v5368
        %5371 = vmin.xlane.f32.xlu0 %v5370
        %v5372 = vpop.xlane.xlu0 %5371
        %vm5373 = vcmp.eq.f32.partialorder %v5370, %v5372
        %v5374 = vsel %vm5373, %v5369, inf
        %5375 = vmin.xlane.f32.xlu0 %v5374
        %v5376 = vpop.xlane.xlu0 %5375
        %v5377 = vcvt.f32.s32 %v5376
        %v5378 = vcvt.f32.s32 %v5372
        %v5379 = vshll.u32 %v5378, 16
        %v5380 = vadd.s32 %v5379, %v5377
        %vm5381 = vcmp.lt.s32.totalorder %v4925, %v4926
        %v5382 = vsel %vm5381, %v4925, %v4926
        %v5383 = vand.u32 %v5382, 65535
        %v5384 = vshra.s32 %v5382, 16
        %v5385 = vcvt.s32.f32 %v5383
        %v5386 = vcvt.s32.f32 %v5384
        %5387 = vmin.xlane.f32.xlu0 %v5386
        %v5388 = vpop.xlane.xlu0 %5387
        %vm5389 = vcmp.eq.f32.partialorder %v5386, %v5388
        %v5390 = vsel %vm5389, %v5385, inf
        %5391 = vmin.xlane.f32.xlu0 %v5390
        %v5392 = vpop.xlane.xlu0 %5391
        %v5393 = vcvt.f32.s32 %v5392
        %v5394 = vcvt.f32.s32 %v5388
        %v5395 = vshll.u32 %v5394, 16
        %v5396 = vadd.s32 %v5395, %v5393
        %vm5397 = vcmp.lt.s32.totalorder %v4927, %v4928
        %v5398 = vsel %vm5397, %v4927, %v4928
        %v5399 = vand.u32 %v5398, 65535
        %v5400 = vshra.s32 %v5398, 16
        %v5401 = vcvt.s32.f32 %v5399
        %v5402 = vcvt.s32.f32 %v5400
        %5403 = vmin.xlane.f32.xlu0 %v5402
        %v5404 = vpop.xlane.xlu0 %5403
        %vm5405 = vcmp.eq.f32.partialorder %v5402, %v5404
        %v5406 = vsel %vm5405, %v5401, inf
        %5407 = vmin.xlane.f32.xlu0 %v5406
        %v5408 = vpop.xlane.xlu0 %5407
        %v5409 = vcvt.f32.s32 %v5408
        %v5410 = vcvt.f32.s32 %v5404
        %v5411 = vshll.u32 %v5410, 16
        %v5412 = vadd.s32 %v5411, %v5409
        %vm5413 = vcmp.lt.s32.totalorder %v4929, %v4930
        %v5414 = vsel %vm5413, %v4929, %v4930
        %v5415 = vand.u32 %v5414, 65535
        %v5416 = vshra.s32 %v5414, 16
        %v5417 = vcvt.s32.f32 %v5415
        %v5418 = vcvt.s32.f32 %v5416
        %5419 = vmin.xlane.f32.xlu0 %v5418
        %v5420 = vpop.xlane.xlu0 %5419
        %vm5421 = vcmp.eq.f32.partialorder %v5418, %v5420
        %v5422 = vsel %vm5421, %v5417, inf
        %5423 = vmin.xlane.f32.xlu0 %v5422
        %v5424 = vpop.xlane.xlu0 %5423
        %v5425 = vcvt.f32.s32 %v5424
        %v5426 = vcvt.f32.s32 %v5420
        %v5427 = vshll.u32 %v5426, 16
        %v5428 = vadd.s32 %v5427, %v5425
        %vm5429 = vcmp.lt.s32.totalorder %v4931, %v4932
        %v5430 = vsel %vm5429, %v4931, %v4932
        %v5431 = vand.u32 %v5430, 65535
        %v5432 = vshra.s32 %v5430, 16
        %v5433 = vcvt.s32.f32 %v5431
        %v5434 = vcvt.s32.f32 %v5432
        %5435 = vmin.xlane.f32.xlu0 %v5434
        %v5436 = vpop.xlane.xlu0 %5435
        %vm5437 = vcmp.eq.f32.partialorder %v5434, %v5436
        %v5438 = vsel %vm5437, %v5433, inf
        %5439 = vmin.xlane.f32.xlu0 %v5438
        %v5440 = vpop.xlane.xlu0 %5439
        %v5441 = vcvt.f32.s32 %v5440
        %v5442 = vcvt.f32.s32 %v5436
        %v5443 = vshll.u32 %v5442, 16
        %v5444 = vadd.s32 %v5443, %v5441
        %vm5445 = vcmp.eq.s32.totalorder %v707, %v4948
        %vm5446 = vcmp.eq.s32.totalorder %v708, %v4948
        %vm5447 = vcmp.eq.s32.totalorder %v707, %v4964
        %vm5448 = vcmp.eq.s32.totalorder %v708, %v4964
        %vm5449 = vcmp.eq.s32.totalorder %v707, %v4980
        %vm5450 = vcmp.eq.s32.totalorder %v708, %v4980
        %vm5451 = vcmp.eq.s32.totalorder %v707, %v4996
        %vm5452 = vcmp.eq.s32.totalorder %v708, %v4996
        %vm5453 = vcmp.eq.s32.totalorder %v707, %v5012
        %vm5454 = vcmp.eq.s32.totalorder %v708, %v5012
        %vm5455 = vcmp.eq.s32.totalorder %v707, %v5028
        %vm5456 = vcmp.eq.s32.totalorder %v708, %v5028
        %vm5457 = vcmp.eq.s32.totalorder %v707, %v5044
        %vm5458 = vcmp.eq.s32.totalorder %v708, %v5044
        %vm5459 = vcmp.eq.s32.totalorder %v707, %v5060
        %vm5460 = vcmp.eq.s32.totalorder %v708, %v5060
        %vm5461 = vcmp.eq.s32.totalorder %v707, %v5076
        %vm5462 = vcmp.eq.s32.totalorder %v708, %v5076
        %vm5463 = vcmp.eq.s32.totalorder %v707, %v5092
        %vm5464 = vcmp.eq.s32.totalorder %v708, %v5092
        %vm5465 = vcmp.eq.s32.totalorder %v707, %v5108
        %vm5466 = vcmp.eq.s32.totalorder %v708, %v5108
        %vm5467 = vcmp.eq.s32.totalorder %v707, %v5124
        %vm5468 = vcmp.eq.s32.totalorder %v708, %v5124
        %vm5469 = vcmp.eq.s32.totalorder %v707, %v5140
        %vm5470 = vcmp.eq.s32.totalorder %v708, %v5140
        %vm5471 = vcmp.eq.s32.totalorder %v707, %v5156
        %vm5472 = vcmp.eq.s32.totalorder %v708, %v5156
        %vm5473 = vcmp.eq.s32.totalorder %v707, %v5172
        %vm5474 = vcmp.eq.s32.totalorder %v708, %v5172
        %vm5475 = vcmp.eq.s32.totalorder %v707, %v5188
        %vm5476 = vcmp.eq.s32.totalorder %v708, %v5188
        %vm5477 = vcmp.eq.s32.totalorder %v707, %v5204
        %vm5478 = vcmp.eq.s32.totalorder %v708, %v5204
        %vm5479 = vcmp.eq.s32.totalorder %v707, %v5220
        %vm5480 = vcmp.eq.s32.totalorder %v708, %v5220
        %vm5481 = vcmp.eq.s32.totalorder %v707, %v5236
        %vm5482 = vcmp.eq.s32.totalorder %v708, %v5236
        %vm5483 = vcmp.eq.s32.totalorder %v707, %v5252
        %vm5484 = vcmp.eq.s32.totalorder %v708, %v5252
        %vm5485 = vcmp.eq.s32.totalorder %v707, %v5268
        %vm5486 = vcmp.eq.s32.totalorder %v708, %v5268
        %vm5487 = vcmp.eq.s32.totalorder %v707, %v5284
        %vm5488 = vcmp.eq.s32.totalorder %v708, %v5284
        %vm5489 = vcmp.eq.s32.totalorder %v707, %v5300
        %vm5490 = vcmp.eq.s32.totalorder %v708, %v5300
        %vm5491 = vcmp.eq.s32.totalorder %v707, %v5316
        %vm5492 = vcmp.eq.s32.totalorder %v708, %v5316
        %vm5493 = vcmp.eq.s32.totalorder %v707, %v5332
        %vm5494 = vcmp.eq.s32.totalorder %v708, %v5332
        %vm5495 = vcmp.eq.s32.totalorder %v707, %v5348
        %vm5496 = vcmp.eq.s32.totalorder %v708, %v5348
        %vm5497 = vcmp.eq.s32.totalorder %v707, %v5364
        %vm5498 = vcmp.eq.s32.totalorder %v708, %v5364
        %vm5499 = vcmp.eq.s32.totalorder %v707, %v5380
        %vm5500 = vcmp.eq.s32.totalorder %v708, %v5380
        %vm5501 = vcmp.eq.s32.totalorder %v707, %v5396
        %vm5502 = vcmp.eq.s32.totalorder %v708, %v5396
        %vm5503 = vcmp.eq.s32.totalorder %v707, %v5412
        %vm5504 = vcmp.eq.s32.totalorder %v708, %v5412
        %vm5505 = vcmp.eq.s32.totalorder %v707, %v5428
        %vm5506 = vcmp.eq.s32.totalorder %v708, %v5428
        %vm5507 = vcmp.eq.s32.totalorder %v707, %v5444
        %vm5508 = vcmp.eq.s32.totalorder %v708, %v5444
        %v5509 = vsub.f32 %v4711, %v711
        %v5510 = vsub.f32 %v4714, %v714
        %v5511 = vsub.f32 %v4717, %v717
        %v5512 = vsub.f32 %v4720, %v720
        %v5513 = vsub.f32 %v4723, %v723
        %v5514 = vsub.f32 %v4726, %v726
        %v5515 = vsub.f32 %v4729, %v729
        %v5516 = vsub.f32 %v4732, %v732
        %v5517 = vsub.f32 %v4735, %v735
        %v5518 = vsub.f32 %v4738, %v738
        %v5519 = vsub.f32 %v4741, %v741
        %v5520 = vsub.f32 %v4744, %v744
        %v5521 = vsub.f32 %v4747, %v747
        %v5522 = vsub.f32 %v4750, %v750
        %v5523 = vsub.f32 %v4753, %v753
        %v5524 = vsub.f32 %v4756, %v756
        %v5525 = vsub.f32 %v4759, %v759
        %v5526 = vsub.f32 %v4762, %v762
        %v5527 = vsub.f32 %v4765, %v765
        %v5528 = vsub.f32 %v4768, %v768
        %v5529 = vsub.f32 %v4771, %v771
        %v5530 = vsub.f32 %v4774, %v774
        %v5531 = vsub.f32 %v4777, %v777
        %v5532 = vsub.f32 %v4780, %v780
        %v5533 = vsub.f32 %v4783, %v783
        %v5534 = vsub.f32 %v4786, %v786
        %v5535 = vsub.f32 %v4789, %v789
        %v5536 = vsub.f32 %v4792, %v792
        %v5537 = vsub.f32 %v4795, %v795
        %v5538 = vsub.f32 %v4798, %v798
        %v5539 = vsub.f32 %v4801, %v801
        %v5540 = vsub.f32 %v4804, %v804
        %v5541 = vmul.f32 %v5509, 1.442695
        %v5542 = vpow.pop %v5541
        %v5543 = vmul.f32 %v5510, 1.442695
        %v5544 = vpow.pop %v5543
        %v5545 = vmul.f32 %v5511, 1.442695
        %v5546 = vpow.pop %v5545
        %v5547 = vmul.f32 %v5512, 1.442695
        %v5548 = vpow.pop %v5547
        %v5549 = vmul.f32 %v5513, 1.442695
        %v5550 = vpow.pop %v5549
        %v5551 = vmul.f32 %v5514, 1.442695
        %v5552 = vpow.pop %v5551
        %v5553 = vmul.f32 %v5515, 1.442695
        %v5554 = vpow.pop %v5553
        %v5555 = vmul.f32 %v5516, 1.442695
        %v5556 = vpow.pop %v5555
        %v5557 = vmul.f32 %v5517, 1.442695
        %v5558 = vpow.pop %v5557
        %v5559 = vmul.f32 %v5518, 1.442695
        %v5560 = vpow.pop %v5559
        %v5561 = vmul.f32 %v5519, 1.442695
        %v5562 = vpow.pop %v5561
        %v5563 = vmul.f32 %v5520, 1.442695
        %v5564 = vpow.pop %v5563
        %v5565 = vmul.f32 %v5521, 1.442695
        %v5566 = vpow.pop %v5565
        %v5567 = vmul.f32 %v5522, 1.442695
        %v5568 = vpow.pop %v5567
        %v5569 = vmul.f32 %v5523, 1.442695
        %v5570 = vpow.pop %v5569
        %v5571 = vmul.f32 %v5524, 1.442695
        %v5572 = vpow.pop %v5571
        %v5573 = vmul.f32 %v5525, 1.442695
        %v5574 = vpow.pop %v5573
        %v5575 = vmul.f32 %v5526, 1.442695
        %v5576 = vpow.pop %v5575
        %v5577 = vmul.f32 %v5527, 1.442695
        %v5578 = vpow.pop %v5577
        %v5579 = vmul.f32 %v5528, 1.442695
        %v5580 = vpow.pop %v5579
        %v5581 = vmul.f32 %v5529, 1.442695
        %v5582 = vpow.pop %v5581
        %v5583 = vmul.f32 %v5530, 1.442695
        %v5584 = vpow.pop %v5583
        %v5585 = vmul.f32 %v5531, 1.442695
        %v5586 = vpow.pop %v5585
        %v5587 = vmul.f32 %v5532, 1.442695
        %v5588 = vpow.pop %v5587
        %v5589 = vmul.f32 %v5533, 1.442695
        %v5590 = vpow.pop %v5589
        %v5591 = vmul.f32 %v5534, 1.442695
        %v5592 = vpow.pop %v5591
        %v5593 = vmul.f32 %v5535, 1.442695
        %v5594 = vpow.pop %v5593
        %v5595 = vmul.f32 %v5536, 1.442695
        %v5596 = vpow.pop %v5595
        %v5597 = vmul.f32 %v5537, 1.442695
        %v5598 = vpow.pop %v5597
        %v5599 = vmul.f32 %v5538, 1.442695
        %v5600 = vpow.pop %v5599
        %v5601 = vmul.f32 %v5539, 1.442695
        %v5602 = vpow.pop %v5601
        %v5603 = vmul.f32 %v5540, 1.442695
        %v5604 = vpow.pop %v5603
        %v5605 = vsel %vm5445, %v5542, %v4581
        %v5606 = vsel %vm5446, %v5542, %v4582
        %v5607 = vsel %vm5447, %v5544, %v4583
        %v5608 = vsel %vm5448, %v5544, %v4584
        %v5609 = vsel %vm5449, %v5546, %v4585
        %v5610 = vsel %vm5450, %v5546, %v4586
        %v5611 = vsel %vm5451, %v5548, %v4587
        %v5612 = vsel %vm5452, %v5548, %v4588
        %v5613 = vsel %vm5453, %v5550, %v4589
        %v5614 = vsel %vm5454, %v5550, %v4590
        %v5615 = vsel %vm5455, %v5552, %v4591
        %v5616 = vsel %vm5456, %v5552, %v4592
        %v5617 = vsel %vm5457, %v5554, %v4593
        %v5618 = vsel %vm5458, %v5554, %v4594
        %v5619 = vsel %vm5459, %v5556, %v4595
        %v5620 = vsel %vm5460, %v5556, %v4596
        %v5621 = vsel %vm5461, %v5558, %v4597
        %v5622 = vsel %vm5462, %v5558, %v4598
        %v5623 = vsel %vm5463, %v5560, %v4599
        %v5624 = vsel %vm5464, %v5560, %v4600
        %v5625 = vsel %vm5465, %v5562, %v4601
        %v5626 = vsel %vm5466, %v5562, %v4602
        %v5627 = vsel %vm5467, %v5564, %v4603
        %v5628 = vsel %vm5468, %v5564, %v4604
        %v5629 = vsel %vm5469, %v5566, %v4605
        %v5630 = vsel %vm5470, %v5566, %v4606
        %v5631 = vsel %vm5471, %v5568, %v4607
        %v5632 = vsel %vm5472, %v5568, %v4608
        %v5633 = vsel %vm5473, %v5570, %v4609
        %v5634 = vsel %vm5474, %v5570, %v4610
        %v5635 = vsel %vm5475, %v5572, %v4611
        %v5636 = vsel %vm5476, %v5572, %v4612
        %v5637 = vsel %vm5477, %v5574, %v4613
        %v5638 = vsel %vm5478, %v5574, %v4614
        %v5639 = vsel %vm5479, %v5576, %v4615
        %v5640 = vsel %vm5480, %v5576, %v4616
        %v5641 = vsel %vm5481, %v5578, %v4617
        %v5642 = vsel %vm5482, %v5578, %v4618
        %v5643 = vsel %vm5483, %v5580, %v4619
        %v5644 = vsel %vm5484, %v5580, %v4620
        %v5645 = vsel %vm5485, %v5582, %v4621
        %v5646 = vsel %vm5486, %v5582, %v4622
        %v5647 = vsel %vm5487, %v5584, %v4623
        %v5648 = vsel %vm5488, %v5584, %v4624
        %v5649 = vsel %vm5489, %v5586, %v4625
        %v5650 = vsel %vm5490, %v5586, %v4626
        %v5651 = vsel %vm5491, %v5588, %v4627
        %v5652 = vsel %vm5492, %v5588, %v4628
        %v5653 = vsel %vm5493, %v5590, %v4629
        %v5654 = vsel %vm5494, %v5590, %v4630
        %v5655 = vsel %vm5495, %v5592, %v4631
        %v5656 = vsel %vm5496, %v5592, %v4632
        %v5657 = vsel %vm5497, %v5594, %v4633
        %v5658 = vsel %vm5498, %v5594, %v4634
        %v5659 = vsel %vm5499, %v5596, %v4635
        %v5660 = vsel %vm5500, %v5596, %v4636
        %v5661 = vsel %vm5501, %v5598, %v4637
        %v5662 = vsel %vm5502, %v5598, %v4638
        %v5663 = vsel %vm5503, %v5600, %v4639
        %v5664 = vsel %vm5504, %v5600, %v4640
        %v5665 = vsel %vm5505, %v5602, %v4641
        %v5666 = vsel %vm5506, %v5602, %v4642
        %v5667 = vsel %vm5507, %v5604, %v4643
        %v5668 = vsel %vm5508, %v5604, %v4644
        %v5669 = vsel %vm5445, -1e+30, %v4645
        %v5670 = vsel %vm5446, -1e+30, %v4646
        %v5671 = vsel %vm5447, -1e+30, %v4647
        %v5672 = vsel %vm5448, -1e+30, %v4648
        %v5673 = vsel %vm5449, -1e+30, %v4649
        %v5674 = vsel %vm5450, -1e+30, %v4650
        %v5675 = vsel %vm5451, -1e+30, %v4651
        %v5676 = vsel %vm5452, -1e+30, %v4652
        %v5677 = vsel %vm5453, -1e+30, %v4653
        %v5678 = vsel %vm5454, -1e+30, %v4654
        %v5679 = vsel %vm5455, -1e+30, %v4655
        %v5680 = vsel %vm5456, -1e+30, %v4656
        %v5681 = vsel %vm5457, -1e+30, %v4657
        %v5682 = vsel %vm5458, -1e+30, %v4658
        %v5683 = vsel %vm5459, -1e+30, %v4659
        %v5684 = vsel %vm5460, -1e+30, %v4660
        %v5685 = vsel %vm5461, -1e+30, %v4661
        %v5686 = vsel %vm5462, -1e+30, %v4662
        %v5687 = vsel %vm5463, -1e+30, %v4663
        %v5688 = vsel %vm5464, -1e+30, %v4664
        %v5689 = vsel %vm5465, -1e+30, %v4665
        %v5690 = vsel %vm5466, -1e+30, %v4666
        %v5691 = vsel %vm5467, -1e+30, %v4667
        %v5692 = vsel %vm5468, -1e+30, %v4668
        %v5693 = vsel %vm5469, -1e+30, %v4669
        %v5694 = vsel %vm5470, -1e+30, %v4670
        %v5695 = vsel %vm5471, -1e+30, %v4671
        %v5696 = vsel %vm5472, -1e+30, %v4672
        %v5697 = vsel %vm5473, -1e+30, %v4673
        %v5698 = vsel %vm5474, -1e+30, %v4674
        %v5699 = vsel %vm5475, -1e+30, %v4675
        %v5700 = vsel %vm5476, -1e+30, %v4676
        %v5701 = vsel %vm5477, -1e+30, %v4677
        %v5702 = vsel %vm5478, -1e+30, %v4678
        %v5703 = vsel %vm5479, -1e+30, %v4679
        %v5704 = vsel %vm5480, -1e+30, %v4680
        %v5705 = vsel %vm5481, -1e+30, %v4681
        %v5706 = vsel %vm5482, -1e+30, %v4682
        %v5707 = vsel %vm5483, -1e+30, %v4683
        %v5708 = vsel %vm5484, -1e+30, %v4684
        %v5709 = vsel %vm5485, -1e+30, %v4685
        %v5710 = vsel %vm5486, -1e+30, %v4686
        %v5711 = vsel %vm5487, -1e+30, %v4687
        %v5712 = vsel %vm5488, -1e+30, %v4688
        %v5713 = vsel %vm5489, -1e+30, %v4689
        %v5714 = vsel %vm5490, -1e+30, %v4690
        %v5715 = vsel %vm5491, -1e+30, %v4691
        %v5716 = vsel %vm5492, -1e+30, %v4692
        %v5717 = vsel %vm5493, -1e+30, %v4693
        %v5718 = vsel %vm5494, -1e+30, %v4694
        %v5719 = vsel %vm5495, -1e+30, %v4695
        %v5720 = vsel %vm5496, -1e+30, %v4696
        %v5721 = vsel %vm5497, -1e+30, %v4697
        %v5722 = vsel %vm5498, -1e+30, %v4698
        %v5723 = vsel %vm5499, -1e+30, %v4699
        %v5724 = vsel %vm5500, -1e+30, %v4700
        %v5725 = vsel %vm5501, -1e+30, %v4701
        %v5726 = vsel %vm5502, -1e+30, %v4702
        %v5727 = vsel %vm5503, -1e+30, %v4703
        %v5728 = vsel %vm5504, -1e+30, %v4704
        %v5729 = vsel %vm5505, -1e+30, %v4705
        %v5730 = vsel %vm5506, -1e+30, %v4706
        %v5731 = vsel %vm5507, -1e+30, %v4707
        %v5732 = vsel %vm5508, -1e+30, %v4708
        %v5733 = vmax.f32 %v5669, %v5670
        %5734 = vmax.xlane.f32.xlu0 %v5733
        %v5735 = vpop.xlane.xlu0 %5734
        %v5736 = vmax.f32 %v5671, %v5672
        %5737 = vmax.xlane.f32.xlu0 %v5736
        %v5738 = vpop.xlane.xlu0 %5737
        %v5739 = vmax.f32 %v5673, %v5674
        %5740 = vmax.xlane.f32.xlu0 %v5739
        %v5741 = vpop.xlane.xlu0 %5740
        %v5742 = vmax.f32 %v5675, %v5676
        %5743 = vmax.xlane.f32.xlu0 %v5742
        %v5744 = vpop.xlane.xlu0 %5743
        %v5745 = vmax.f32 %v5677, %v5678
        %5746 = vmax.xlane.f32.xlu0 %v5745
        %v5747 = vpop.xlane.xlu0 %5746
        %v5748 = vmax.f32 %v5679, %v5680
        %5749 = vmax.xlane.f32.xlu0 %v5748
        %v5750 = vpop.xlane.xlu0 %5749
        %v5751 = vmax.f32 %v5681, %v5682
        %5752 = vmax.xlane.f32.xlu0 %v5751
        %v5753 = vpop.xlane.xlu0 %5752
        %v5754 = vmax.f32 %v5683, %v5684
        %5755 = vmax.xlane.f32.xlu0 %v5754
        %v5756 = vpop.xlane.xlu0 %5755
        %v5757 = vmax.f32 %v5685, %v5686
        %5758 = vmax.xlane.f32.xlu0 %v5757
        %v5759 = vpop.xlane.xlu0 %5758
        %v5760 = vmax.f32 %v5687, %v5688
        %5761 = vmax.xlane.f32.xlu0 %v5760
        %v5762 = vpop.xlane.xlu0 %5761
        %v5763 = vmax.f32 %v5689, %v5690
        %5764 = vmax.xlane.f32.xlu0 %v5763
        %v5765 = vpop.xlane.xlu0 %5764
        %v5766 = vmax.f32 %v5691, %v5692
        %5767 = vmax.xlane.f32.xlu0 %v5766
        %v5768 = vpop.xlane.xlu0 %5767
        %v5769 = vmax.f32 %v5693, %v5694
        %5770 = vmax.xlane.f32.xlu0 %v5769
        %v5771 = vpop.xlane.xlu0 %5770
        %v5772 = vmax.f32 %v5695, %v5696
        %5773 = vmax.xlane.f32.xlu0 %v5772
        %v5774 = vpop.xlane.xlu0 %5773
        %v5775 = vmax.f32 %v5697, %v5698
        %5776 = vmax.xlane.f32.xlu0 %v5775
        %v5777 = vpop.xlane.xlu0 %5776
        %v5778 = vmax.f32 %v5699, %v5700
        %5779 = vmax.xlane.f32.xlu0 %v5778
        %v5780 = vpop.xlane.xlu0 %5779
        %v5781 = vmax.f32 %v5701, %v5702
        %5782 = vmax.xlane.f32.xlu0 %v5781
        %v5783 = vpop.xlane.xlu0 %5782
        %v5784 = vmax.f32 %v5703, %v5704
        %5785 = vmax.xlane.f32.xlu0 %v5784
        %v5786 = vpop.xlane.xlu0 %5785
        %v5787 = vmax.f32 %v5705, %v5706
        %5788 = vmax.xlane.f32.xlu0 %v5787
        %v5789 = vpop.xlane.xlu0 %5788
        %v5790 = vmax.f32 %v5707, %v5708
        %5791 = vmax.xlane.f32.xlu0 %v5790
        %v5792 = vpop.xlane.xlu0 %5791
        %v5793 = vmax.f32 %v5709, %v5710
        %5794 = vmax.xlane.f32.xlu0 %v5793
        %v5795 = vpop.xlane.xlu0 %5794
        %v5796 = vmax.f32 %v5711, %v5712
        %5797 = vmax.xlane.f32.xlu0 %v5796
        %v5798 = vpop.xlane.xlu0 %5797
        %v5799 = vmax.f32 %v5713, %v5714
        %5800 = vmax.xlane.f32.xlu0 %v5799
        %v5801 = vpop.xlane.xlu0 %5800
        %v5802 = vmax.f32 %v5715, %v5716
        %5803 = vmax.xlane.f32.xlu0 %v5802
        %v5804 = vpop.xlane.xlu0 %5803
        %v5805 = vmax.f32 %v5717, %v5718
        %5806 = vmax.xlane.f32.xlu0 %v5805
        %v5807 = vpop.xlane.xlu0 %5806
        %v5808 = vmax.f32 %v5719, %v5720
        %5809 = vmax.xlane.f32.xlu0 %v5808
        %v5810 = vpop.xlane.xlu0 %5809
        %v5811 = vmax.f32 %v5721, %v5722
        %5812 = vmax.xlane.f32.xlu0 %v5811
        %v5813 = vpop.xlane.xlu0 %5812
        %v5814 = vmax.f32 %v5723, %v5724
        %5815 = vmax.xlane.f32.xlu0 %v5814
        %v5816 = vpop.xlane.xlu0 %5815
        %v5817 = vmax.f32 %v5725, %v5726
        %5818 = vmax.xlane.f32.xlu0 %v5817
        %v5819 = vpop.xlane.xlu0 %5818
        %v5820 = vmax.f32 %v5727, %v5728
        %5821 = vmax.xlane.f32.xlu0 %v5820
        %v5822 = vpop.xlane.xlu0 %5821
        %v5823 = vmax.f32 %v5729, %v5730
        %5824 = vmax.xlane.f32.xlu0 %v5823
        %v5825 = vpop.xlane.xlu0 %5824
        %v5826 = vmax.f32 %v5731, %v5732
        %5827 = vmax.xlane.f32.xlu0 %v5826
        %v5828 = vpop.xlane.xlu0 %5827
        %vm5829 = vcmp.eq.f32.partialorder %v5669, %v5735
        %vm5830 = vcmp.eq.f32.partialorder %v5670, %v5735
        %vm5831 = vcmp.eq.f32.partialorder %v5671, %v5738
        %vm5832 = vcmp.eq.f32.partialorder %v5672, %v5738
        %vm5833 = vcmp.eq.f32.partialorder %v5673, %v5741
        %vm5834 = vcmp.eq.f32.partialorder %v5674, %v5741
        %vm5835 = vcmp.eq.f32.partialorder %v5675, %v5744
        %vm5836 = vcmp.eq.f32.partialorder %v5676, %v5744
        %vm5837 = vcmp.eq.f32.partialorder %v5677, %v5747
        %vm5838 = vcmp.eq.f32.partialorder %v5678, %v5747
        %vm5839 = vcmp.eq.f32.partialorder %v5679, %v5750
        %vm5840 = vcmp.eq.f32.partialorder %v5680, %v5750
        %vm5841 = vcmp.eq.f32.partialorder %v5681, %v5753
        %vm5842 = vcmp.eq.f32.partialorder %v5682, %v5753
        %vm5843 = vcmp.eq.f32.partialorder %v5683, %v5756
        %vm5844 = vcmp.eq.f32.partialorder %v5684, %v5756
        %vm5845 = vcmp.eq.f32.partialorder %v5685, %v5759
        %vm5846 = vcmp.eq.f32.partialorder %v5686, %v5759
        %vm5847 = vcmp.eq.f32.partialorder %v5687, %v5762
        %vm5848 = vcmp.eq.f32.partialorder %v5688, %v5762
        %vm5849 = vcmp.eq.f32.partialorder %v5689, %v5765
        %vm5850 = vcmp.eq.f32.partialorder %v5690, %v5765
        %vm5851 = vcmp.eq.f32.partialorder %v5691, %v5768
        %vm5852 = vcmp.eq.f32.partialorder %v5692, %v5768
        %vm5853 = vcmp.eq.f32.partialorder %v5693, %v5771
        %vm5854 = vcmp.eq.f32.partialorder %v5694, %v5771
        %vm5855 = vcmp.eq.f32.partialorder %v5695, %v5774
        %vm5856 = vcmp.eq.f32.partialorder %v5696, %v5774
        %vm5857 = vcmp.eq.f32.partialorder %v5697, %v5777
        %vm5858 = vcmp.eq.f32.partialorder %v5698, %v5777
        %vm5859 = vcmp.eq.f32.partialorder %v5699, %v5780
        %vm5860 = vcmp.eq.f32.partialorder %v5700, %v5780
        %vm5861 = vcmp.eq.f32.partialorder %v5701, %v5783
        %vm5862 = vcmp.eq.f32.partialorder %v5702, %v5783
        %vm5863 = vcmp.eq.f32.partialorder %v5703, %v5786
        %vm5864 = vcmp.eq.f32.partialorder %v5704, %v5786
        %vm5865 = vcmp.eq.f32.partialorder %v5705, %v5789
        %vm5866 = vcmp.eq.f32.partialorder %v5706, %v5789
        %vm5867 = vcmp.eq.f32.partialorder %v5707, %v5792
        %vm5868 = vcmp.eq.f32.partialorder %v5708, %v5792
        %vm5869 = vcmp.eq.f32.partialorder %v5709, %v5795
        %vm5870 = vcmp.eq.f32.partialorder %v5710, %v5795
        %vm5871 = vcmp.eq.f32.partialorder %v5711, %v5798
        %vm5872 = vcmp.eq.f32.partialorder %v5712, %v5798
        %vm5873 = vcmp.eq.f32.partialorder %v5713, %v5801
        %vm5874 = vcmp.eq.f32.partialorder %v5714, %v5801
        %vm5875 = vcmp.eq.f32.partialorder %v5715, %v5804
        %vm5876 = vcmp.eq.f32.partialorder %v5716, %v5804
        %vm5877 = vcmp.eq.f32.partialorder %v5717, %v5807
        %vm5878 = vcmp.eq.f32.partialorder %v5718, %v5807
        %vm5879 = vcmp.eq.f32.partialorder %v5719, %v5810
        %vm5880 = vcmp.eq.f32.partialorder %v5720, %v5810
        %vm5881 = vcmp.eq.f32.partialorder %v5721, %v5813
        %vm5882 = vcmp.eq.f32.partialorder %v5722, %v5813
        %vm5883 = vcmp.eq.f32.partialorder %v5723, %v5816
        %vm5884 = vcmp.eq.f32.partialorder %v5724, %v5816
        %vm5885 = vcmp.eq.f32.partialorder %v5725, %v5819
        %vm5886 = vcmp.eq.f32.partialorder %v5726, %v5819
        %vm5887 = vcmp.eq.f32.partialorder %v5727, %v5822
        %vm5888 = vcmp.eq.f32.partialorder %v5728, %v5822
        %vm5889 = vcmp.eq.f32.partialorder %v5729, %v5825
        %vm5890 = vcmp.eq.f32.partialorder %v5730, %v5825
        %vm5891 = vcmp.eq.f32.partialorder %v5731, %v5828
        %vm5892 = vcmp.eq.f32.partialorder %v5732, %v5828
        %v5893 = vsel %vm5829, %v707, 256
        %v5894 = vsel %vm5830, %v708, 256
        %v5895 = vsel %vm5831, %v707, 256
        %v5896 = vsel %vm5832, %v708, 256
        %v5897 = vsel %vm5833, %v707, 256
        %v5898 = vsel %vm5834, %v708, 256
        %v5899 = vsel %vm5835, %v707, 256
        %v5900 = vsel %vm5836, %v708, 256
        %v5901 = vsel %vm5837, %v707, 256
        %v5902 = vsel %vm5838, %v708, 256
        %v5903 = vsel %vm5839, %v707, 256
        %v5904 = vsel %vm5840, %v708, 256
        %v5905 = vsel %vm5841, %v707, 256
        %v5906 = vsel %vm5842, %v708, 256
        %v5907 = vsel %vm5843, %v707, 256
        %v5908 = vsel %vm5844, %v708, 256
        %v5909 = vsel %vm5845, %v707, 256
        %v5910 = vsel %vm5846, %v708, 256
        %v5911 = vsel %vm5847, %v707, 256
        %v5912 = vsel %vm5848, %v708, 256
        %v5913 = vsel %vm5849, %v707, 256
        %v5914 = vsel %vm5850, %v708, 256
        %v5915 = vsel %vm5851, %v707, 256
        %v5916 = vsel %vm5852, %v708, 256
        %v5917 = vsel %vm5853, %v707, 256
        %v5918 = vsel %vm5854, %v708, 256
        %v5919 = vsel %vm5855, %v707, 256
        %v5920 = vsel %vm5856, %v708, 256
        %v5921 = vsel %vm5857, %v707, 256
        %v5922 = vsel %vm5858, %v708, 256
        %v5923 = vsel %vm5859, %v707, 256
        %v5924 = vsel %vm5860, %v708, 256
        %v5925 = vsel %vm5861, %v707, 256
        %v5926 = vsel %vm5862, %v708, 256
        %v5927 = vsel %vm5863, %v707, 256
        %v5928 = vsel %vm5864, %v708, 256
        %v5929 = vsel %vm5865, %v707, 256
        %v5930 = vsel %vm5866, %v708, 256
        %v5931 = vsel %vm5867, %v707, 256
        %v5932 = vsel %vm5868, %v708, 256
        %v5933 = vsel %vm5869, %v707, 256
        %v5934 = vsel %vm5870, %v708, 256
        %v5935 = vsel %vm5871, %v707, 256
        %v5936 = vsel %vm5872, %v708, 256
        %v5937 = vsel %vm5873, %v707, 256
        %v5938 = vsel %vm5874, %v708, 256
        %v5939 = vsel %vm5875, %v707, 256
        %v5940 = vsel %vm5876, %v708, 256
        %v5941 = vsel %vm5877, %v707, 256
        %v5942 = vsel %vm5878, %v708, 256
        %v5943 = vsel %vm5879, %v707, 256
        %v5944 = vsel %vm5880, %v708, 256
        %v5945 = vsel %vm5881, %v707, 256
        %v5946 = vsel %vm5882, %v708, 256
        %v5947 = vsel %vm5883, %v707, 256
        %v5948 = vsel %vm5884, %v708, 256
        %v5949 = vsel %vm5885, %v707, 256
        %v5950 = vsel %vm5886, %v708, 256
        %v5951 = vsel %vm5887, %v707, 256
        %v5952 = vsel %vm5888, %v708, 256
        %v5953 = vsel %vm5889, %v707, 256
        %v5954 = vsel %vm5890, %v708, 256
        %v5955 = vsel %vm5891, %v707, 256
        %v5956 = vsel %vm5892, %v708, 256
        %vm5957 = vcmp.lt.s32.totalorder %v5893, %v5894
        %v5958 = vsel %vm5957, %v5893, %v5894
        %v5959 = vand.u32 %v5958, 65535
        %v5960 = vshra.s32 %v5958, 16
        %v5961 = vcvt.s32.f32 %v5959
        %v5962 = vcvt.s32.f32 %v5960
        %5963 = vmin.xlane.f32.xlu0 %v5962
        %v5964 = vpop.xlane.xlu0 %5963
        %vm5965 = vcmp.eq.f32.partialorder %v5962, %v5964
        %v5966 = vsel %vm5965, %v5961, inf
        %5967 = vmin.xlane.f32.xlu0 %v5966
        %v5968 = vpop.xlane.xlu0 %5967
        %v5969 = vcvt.f32.s32 %v5968
        %v5970 = vcvt.f32.s32 %v5964
        %v5971 = vshll.u32 %v5970, 16
        %v5972 = vadd.s32 %v5971, %v5969
        %vm5973 = vcmp.lt.s32.totalorder %v5895, %v5896
        %v5974 = vsel %vm5973, %v5895, %v5896
        %v5975 = vand.u32 %v5974, 65535
        %v5976 = vshra.s32 %v5974, 16
        %v5977 = vcvt.s32.f32 %v5975
        %v5978 = vcvt.s32.f32 %v5976
        %5979 = vmin.xlane.f32.xlu0 %v5978
        %v5980 = vpop.xlane.xlu0 %5979
        %vm5981 = vcmp.eq.f32.partialorder %v5978, %v5980
        %v5982 = vsel %vm5981, %v5977, inf
        %5983 = vmin.xlane.f32.xlu0 %v5982
        %v5984 = vpop.xlane.xlu0 %5983
        %v5985 = vcvt.f32.s32 %v5984
        %v5986 = vcvt.f32.s32 %v5980
        %v5987 = vshll.u32 %v5986, 16
        %v5988 = vadd.s32 %v5987, %v5985
        %vm5989 = vcmp.lt.s32.totalorder %v5897, %v5898
        %v5990 = vsel %vm5989, %v5897, %v5898
        %v5991 = vand.u32 %v5990, 65535
        %v5992 = vshra.s32 %v5990, 16
        %v5993 = vcvt.s32.f32 %v5991
        %v5994 = vcvt.s32.f32 %v5992
        %5995 = vmin.xlane.f32.xlu0 %v5994
        %v5996 = vpop.xlane.xlu0 %5995
        %vm5997 = vcmp.eq.f32.partialorder %v5994, %v5996
        %v5998 = vsel %vm5997, %v5993, inf
        %5999 = vmin.xlane.f32.xlu0 %v5998
        %v6000 = vpop.xlane.xlu0 %5999
        %v6001 = vcvt.f32.s32 %v6000
        %v6002 = vcvt.f32.s32 %v5996
        %v6003 = vshll.u32 %v6002, 16
        %v6004 = vadd.s32 %v6003, %v6001
        %vm6005 = vcmp.lt.s32.totalorder %v5899, %v5900
        %v6006 = vsel %vm6005, %v5899, %v5900
        %v6007 = vand.u32 %v6006, 65535
        %v6008 = vshra.s32 %v6006, 16
        %v6009 = vcvt.s32.f32 %v6007
        %v6010 = vcvt.s32.f32 %v6008
        %6011 = vmin.xlane.f32.xlu0 %v6010
        %v6012 = vpop.xlane.xlu0 %6011
        %vm6013 = vcmp.eq.f32.partialorder %v6010, %v6012
        %v6014 = vsel %vm6013, %v6009, inf
        %6015 = vmin.xlane.f32.xlu0 %v6014
        %v6016 = vpop.xlane.xlu0 %6015
        %v6017 = vcvt.f32.s32 %v6016
        %v6018 = vcvt.f32.s32 %v6012
        %v6019 = vshll.u32 %v6018, 16
        %v6020 = vadd.s32 %v6019, %v6017
        %vm6021 = vcmp.lt.s32.totalorder %v5901, %v5902
        %v6022 = vsel %vm6021, %v5901, %v5902
        %v6023 = vand.u32 %v6022, 65535
        %v6024 = vshra.s32 %v6022, 16
        %v6025 = vcvt.s32.f32 %v6023
        %v6026 = vcvt.s32.f32 %v6024
        %6027 = vmin.xlane.f32.xlu0 %v6026
        %v6028 = vpop.xlane.xlu0 %6027
        %vm6029 = vcmp.eq.f32.partialorder %v6026, %v6028
        %v6030 = vsel %vm6029, %v6025, inf
        %6031 = vmin.xlane.f32.xlu0 %v6030
        %v6032 = vpop.xlane.xlu0 %6031
        %v6033 = vcvt.f32.s32 %v6032
        %v6034 = vcvt.f32.s32 %v6028
        %v6035 = vshll.u32 %v6034, 16
        %v6036 = vadd.s32 %v6035, %v6033
        %vm6037 = vcmp.lt.s32.totalorder %v5903, %v5904
        %v6038 = vsel %vm6037, %v5903, %v5904
        %v6039 = vand.u32 %v6038, 65535
        %v6040 = vshra.s32 %v6038, 16
        %v6041 = vcvt.s32.f32 %v6039
        %v6042 = vcvt.s32.f32 %v6040
        %6043 = vmin.xlane.f32.xlu0 %v6042
        %v6044 = vpop.xlane.xlu0 %6043
        %vm6045 = vcmp.eq.f32.partialorder %v6042, %v6044
        %v6046 = vsel %vm6045, %v6041, inf
        %6047 = vmin.xlane.f32.xlu0 %v6046
        %v6048 = vpop.xlane.xlu0 %6047
        %v6049 = vcvt.f32.s32 %v6048
        %v6050 = vcvt.f32.s32 %v6044
        %v6051 = vshll.u32 %v6050, 16
        %v6052 = vadd.s32 %v6051, %v6049
        %vm6053 = vcmp.lt.s32.totalorder %v5905, %v5906
        %v6054 = vsel %vm6053, %v5905, %v5906
        %v6055 = vand.u32 %v6054, 65535
        %v6056 = vshra.s32 %v6054, 16
        %v6057 = vcvt.s32.f32 %v6055
        %v6058 = vcvt.s32.f32 %v6056
        %6059 = vmin.xlane.f32.xlu0 %v6058
        %v6060 = vpop.xlane.xlu0 %6059
        %vm6061 = vcmp.eq.f32.partialorder %v6058, %v6060
        %v6062 = vsel %vm6061, %v6057, inf
        %6063 = vmin.xlane.f32.xlu0 %v6062
        %v6064 = vpop.xlane.xlu0 %6063
        %v6065 = vcvt.f32.s32 %v6064
        %v6066 = vcvt.f32.s32 %v6060
        %v6067 = vshll.u32 %v6066, 16
        %v6068 = vadd.s32 %v6067, %v6065
        %vm6069 = vcmp.lt.s32.totalorder %v5907, %v5908
        %v6070 = vsel %vm6069, %v5907, %v5908
        %v6071 = vand.u32 %v6070, 65535
        %v6072 = vshra.s32 %v6070, 16
        %v6073 = vcvt.s32.f32 %v6071
        %v6074 = vcvt.s32.f32 %v6072
        %6075 = vmin.xlane.f32.xlu0 %v6074
        %v6076 = vpop.xlane.xlu0 %6075
        %vm6077 = vcmp.eq.f32.partialorder %v6074, %v6076
        %v6078 = vsel %vm6077, %v6073, inf
        %6079 = vmin.xlane.f32.xlu0 %v6078
        %v6080 = vpop.xlane.xlu0 %6079
        %v6081 = vcvt.f32.s32 %v6080
        %v6082 = vcvt.f32.s32 %v6076
        %v6083 = vshll.u32 %v6082, 16
        %v6084 = vadd.s32 %v6083, %v6081
        %vm6085 = vcmp.lt.s32.totalorder %v5909, %v5910
        %v6086 = vsel %vm6085, %v5909, %v5910
        %v6087 = vand.u32 %v6086, 65535
        %v6088 = vshra.s32 %v6086, 16
        %v6089 = vcvt.s32.f32 %v6087
        %v6090 = vcvt.s32.f32 %v6088
        %6091 = vmin.xlane.f32.xlu0 %v6090
        %v6092 = vpop.xlane.xlu0 %6091
        %vm6093 = vcmp.eq.f32.partialorder %v6090, %v6092
        %v6094 = vsel %vm6093, %v6089, inf
        %6095 = vmin.xlane.f32.xlu0 %v6094
        %v6096 = vpop.xlane.xlu0 %6095
        %v6097 = vcvt.f32.s32 %v6096
        %v6098 = vcvt.f32.s32 %v6092
        %v6099 = vshll.u32 %v6098, 16
        %v6100 = vadd.s32 %v6099, %v6097
        %vm6101 = vcmp.lt.s32.totalorder %v5911, %v5912
        %v6102 = vsel %vm6101, %v5911, %v5912
        %v6103 = vand.u32 %v6102, 65535
        %v6104 = vshra.s32 %v6102, 16
        %v6105 = vcvt.s32.f32 %v6103
        %v6106 = vcvt.s32.f32 %v6104
        %6107 = vmin.xlane.f32.xlu0 %v6106
        %v6108 = vpop.xlane.xlu0 %6107
        %vm6109 = vcmp.eq.f32.partialorder %v6106, %v6108
        %v6110 = vsel %vm6109, %v6105, inf
        %6111 = vmin.xlane.f32.xlu0 %v6110
        %v6112 = vpop.xlane.xlu0 %6111
        %v6113 = vcvt.f32.s32 %v6112
        %v6114 = vcvt.f32.s32 %v6108
        %v6115 = vshll.u32 %v6114, 16
        %v6116 = vadd.s32 %v6115, %v6113
        %vm6117 = vcmp.lt.s32.totalorder %v5913, %v5914
        %v6118 = vsel %vm6117, %v5913, %v5914
        %v6119 = vand.u32 %v6118, 65535
        %v6120 = vshra.s32 %v6118, 16
        %v6121 = vcvt.s32.f32 %v6119
        %v6122 = vcvt.s32.f32 %v6120
        %6123 = vmin.xlane.f32.xlu0 %v6122
        %v6124 = vpop.xlane.xlu0 %6123
        %vm6125 = vcmp.eq.f32.partialorder %v6122, %v6124
        %v6126 = vsel %vm6125, %v6121, inf
        %6127 = vmin.xlane.f32.xlu0 %v6126
        %v6128 = vpop.xlane.xlu0 %6127
        %v6129 = vcvt.f32.s32 %v6128
        %v6130 = vcvt.f32.s32 %v6124
        %v6131 = vshll.u32 %v6130, 16
        %v6132 = vadd.s32 %v6131, %v6129
        %vm6133 = vcmp.lt.s32.totalorder %v5915, %v5916
        %v6134 = vsel %vm6133, %v5915, %v5916
        %v6135 = vand.u32 %v6134, 65535
        %v6136 = vshra.s32 %v6134, 16
        %v6137 = vcvt.s32.f32 %v6135
        %v6138 = vcvt.s32.f32 %v6136
        %6139 = vmin.xlane.f32.xlu0 %v6138
        %v6140 = vpop.xlane.xlu0 %6139
        %vm6141 = vcmp.eq.f32.partialorder %v6138, %v6140
        %v6142 = vsel %vm6141, %v6137, inf
        %6143 = vmin.xlane.f32.xlu0 %v6142
        %v6144 = vpop.xlane.xlu0 %6143
        %v6145 = vcvt.f32.s32 %v6144
        %v6146 = vcvt.f32.s32 %v6140
        %v6147 = vshll.u32 %v6146, 16
        %v6148 = vadd.s32 %v6147, %v6145
        %vm6149 = vcmp.lt.s32.totalorder %v5917, %v5918
        %v6150 = vsel %vm6149, %v5917, %v5918
        %v6151 = vand.u32 %v6150, 65535
        %v6152 = vshra.s32 %v6150, 16
        %v6153 = vcvt.s32.f32 %v6151
        %v6154 = vcvt.s32.f32 %v6152
        %6155 = vmin.xlane.f32.xlu0 %v6154
        %v6156 = vpop.xlane.xlu0 %6155
        %vm6157 = vcmp.eq.f32.partialorder %v6154, %v6156
        %v6158 = vsel %vm6157, %v6153, inf
        %6159 = vmin.xlane.f32.xlu0 %v6158
        %v6160 = vpop.xlane.xlu0 %6159
        %v6161 = vcvt.f32.s32 %v6160
        %v6162 = vcvt.f32.s32 %v6156
        %v6163 = vshll.u32 %v6162, 16
        %v6164 = vadd.s32 %v6163, %v6161
        %vm6165 = vcmp.lt.s32.totalorder %v5919, %v5920
        %v6166 = vsel %vm6165, %v5919, %v5920
        %v6167 = vand.u32 %v6166, 65535
        %v6168 = vshra.s32 %v6166, 16
        %v6169 = vcvt.s32.f32 %v6167
        %v6170 = vcvt.s32.f32 %v6168
        %6171 = vmin.xlane.f32.xlu0 %v6170
        %v6172 = vpop.xlane.xlu0 %6171
        %vm6173 = vcmp.eq.f32.partialorder %v6170, %v6172
        %v6174 = vsel %vm6173, %v6169, inf
        %6175 = vmin.xlane.f32.xlu0 %v6174
        %v6176 = vpop.xlane.xlu0 %6175
        %v6177 = vcvt.f32.s32 %v6176
        %v6178 = vcvt.f32.s32 %v6172
        %v6179 = vshll.u32 %v6178, 16
        %v6180 = vadd.s32 %v6179, %v6177
        %vm6181 = vcmp.lt.s32.totalorder %v5921, %v5922
        %v6182 = vsel %vm6181, %v5921, %v5922
        %v6183 = vand.u32 %v6182, 65535
        %v6184 = vshra.s32 %v6182, 16
        %v6185 = vcvt.s32.f32 %v6183
        %v6186 = vcvt.s32.f32 %v6184
        %6187 = vmin.xlane.f32.xlu0 %v6186
        %v6188 = vpop.xlane.xlu0 %6187
        %vm6189 = vcmp.eq.f32.partialorder %v6186, %v6188
        %v6190 = vsel %vm6189, %v6185, inf
        %6191 = vmin.xlane.f32.xlu0 %v6190
        %v6192 = vpop.xlane.xlu0 %6191
        %v6193 = vcvt.f32.s32 %v6192
        %v6194 = vcvt.f32.s32 %v6188
        %v6195 = vshll.u32 %v6194, 16
        %v6196 = vadd.s32 %v6195, %v6193
        %vm6197 = vcmp.lt.s32.totalorder %v5923, %v5924
        %v6198 = vsel %vm6197, %v5923, %v5924
        %v6199 = vand.u32 %v6198, 65535
        %v6200 = vshra.s32 %v6198, 16
        %v6201 = vcvt.s32.f32 %v6199
        %v6202 = vcvt.s32.f32 %v6200
        %6203 = vmin.xlane.f32.xlu0 %v6202
        %v6204 = vpop.xlane.xlu0 %6203
        %vm6205 = vcmp.eq.f32.partialorder %v6202, %v6204
        %v6206 = vsel %vm6205, %v6201, inf
        %6207 = vmin.xlane.f32.xlu0 %v6206
        %v6208 = vpop.xlane.xlu0 %6207
        %v6209 = vcvt.f32.s32 %v6208
        %v6210 = vcvt.f32.s32 %v6204
        %v6211 = vshll.u32 %v6210, 16
        %v6212 = vadd.s32 %v6211, %v6209
        %vm6213 = vcmp.lt.s32.totalorder %v5925, %v5926
        %v6214 = vsel %vm6213, %v5925, %v5926
        %v6215 = vand.u32 %v6214, 65535
        %v6216 = vshra.s32 %v6214, 16
        %v6217 = vcvt.s32.f32 %v6215
        %v6218 = vcvt.s32.f32 %v6216
        %6219 = vmin.xlane.f32.xlu0 %v6218
        %v6220 = vpop.xlane.xlu0 %6219
        %vm6221 = vcmp.eq.f32.partialorder %v6218, %v6220
        %v6222 = vsel %vm6221, %v6217, inf
        %6223 = vmin.xlane.f32.xlu0 %v6222
        %v6224 = vpop.xlane.xlu0 %6223
        %v6225 = vcvt.f32.s32 %v6224
        %v6226 = vcvt.f32.s32 %v6220
        %v6227 = vshll.u32 %v6226, 16
        %v6228 = vadd.s32 %v6227, %v6225
        %vm6229 = vcmp.lt.s32.totalorder %v5927, %v5928
        %v6230 = vsel %vm6229, %v5927, %v5928
        %v6231 = vand.u32 %v6230, 65535
        %v6232 = vshra.s32 %v6230, 16
        %v6233 = vcvt.s32.f32 %v6231
        %v6234 = vcvt.s32.f32 %v6232
        %6235 = vmin.xlane.f32.xlu0 %v6234
        %v6236 = vpop.xlane.xlu0 %6235
        %vm6237 = vcmp.eq.f32.partialorder %v6234, %v6236
        %v6238 = vsel %vm6237, %v6233, inf
        %6239 = vmin.xlane.f32.xlu0 %v6238
        %v6240 = vpop.xlane.xlu0 %6239
        %v6241 = vcvt.f32.s32 %v6240
        %v6242 = vcvt.f32.s32 %v6236
        %v6243 = vshll.u32 %v6242, 16
        %v6244 = vadd.s32 %v6243, %v6241
        %vm6245 = vcmp.lt.s32.totalorder %v5929, %v5930
        %v6246 = vsel %vm6245, %v5929, %v5930
        %v6247 = vand.u32 %v6246, 65535
        %v6248 = vshra.s32 %v6246, 16
        %v6249 = vcvt.s32.f32 %v6247
        %v6250 = vcvt.s32.f32 %v6248
        %6251 = vmin.xlane.f32.xlu0 %v6250
        %v6252 = vpop.xlane.xlu0 %6251
        %vm6253 = vcmp.eq.f32.partialorder %v6250, %v6252
        %v6254 = vsel %vm6253, %v6249, inf
        %6255 = vmin.xlane.f32.xlu0 %v6254
        %v6256 = vpop.xlane.xlu0 %6255
        %v6257 = vcvt.f32.s32 %v6256
        %v6258 = vcvt.f32.s32 %v6252
        %v6259 = vshll.u32 %v6258, 16
        %v6260 = vadd.s32 %v6259, %v6257
        %vm6261 = vcmp.lt.s32.totalorder %v5931, %v5932
        %v6262 = vsel %vm6261, %v5931, %v5932
        %v6263 = vand.u32 %v6262, 65535
        %v6264 = vshra.s32 %v6262, 16
        %v6265 = vcvt.s32.f32 %v6263
        %v6266 = vcvt.s32.f32 %v6264
        %6267 = vmin.xlane.f32.xlu0 %v6266
        %v6268 = vpop.xlane.xlu0 %6267
        %vm6269 = vcmp.eq.f32.partialorder %v6266, %v6268
        %v6270 = vsel %vm6269, %v6265, inf
        %6271 = vmin.xlane.f32.xlu0 %v6270
        %v6272 = vpop.xlane.xlu0 %6271
        %v6273 = vcvt.f32.s32 %v6272
        %v6274 = vcvt.f32.s32 %v6268
        %v6275 = vshll.u32 %v6274, 16
        %v6276 = vadd.s32 %v6275, %v6273
        %vm6277 = vcmp.lt.s32.totalorder %v5933, %v5934
        %v6278 = vsel %vm6277, %v5933, %v5934
        %v6279 = vand.u32 %v6278, 65535
        %v6280 = vshra.s32 %v6278, 16
        %v6281 = vcvt.s32.f32 %v6279
        %v6282 = vcvt.s32.f32 %v6280
        %6283 = vmin.xlane.f32.xlu0 %v6282
        %v6284 = vpop.xlane.xlu0 %6283
        %vm6285 = vcmp.eq.f32.partialorder %v6282, %v6284
        %v6286 = vsel %vm6285, %v6281, inf
        %6287 = vmin.xlane.f32.xlu0 %v6286
        %v6288 = vpop.xlane.xlu0 %6287
        %v6289 = vcvt.f32.s32 %v6288
        %v6290 = vcvt.f32.s32 %v6284
        %v6291 = vshll.u32 %v6290, 16
        %v6292 = vadd.s32 %v6291, %v6289
        %vm6293 = vcmp.lt.s32.totalorder %v5935, %v5936
        %v6294 = vsel %vm6293, %v5935, %v5936
        %v6295 = vand.u32 %v6294, 65535
        %v6296 = vshra.s32 %v6294, 16
        %v6297 = vcvt.s32.f32 %v6295
        %v6298 = vcvt.s32.f32 %v6296
        %6299 = vmin.xlane.f32.xlu0 %v6298
        %v6300 = vpop.xlane.xlu0 %6299
        %vm6301 = vcmp.eq.f32.partialorder %v6298, %v6300
        %v6302 = vsel %vm6301, %v6297, inf
        %6303 = vmin.xlane.f32.xlu0 %v6302
        %v6304 = vpop.xlane.xlu0 %6303
        %v6305 = vcvt.f32.s32 %v6304
        %v6306 = vcvt.f32.s32 %v6300
        %v6307 = vshll.u32 %v6306, 16
        %v6308 = vadd.s32 %v6307, %v6305
        %vm6309 = vcmp.lt.s32.totalorder %v5937, %v5938
        %v6310 = vsel %vm6309, %v5937, %v5938
        %v6311 = vand.u32 %v6310, 65535
        %v6312 = vshra.s32 %v6310, 16
        %v6313 = vcvt.s32.f32 %v6311
        %v6314 = vcvt.s32.f32 %v6312
        %6315 = vmin.xlane.f32.xlu0 %v6314
        %v6316 = vpop.xlane.xlu0 %6315
        %vm6317 = vcmp.eq.f32.partialorder %v6314, %v6316
        %v6318 = vsel %vm6317, %v6313, inf
        %6319 = vmin.xlane.f32.xlu0 %v6318
        %v6320 = vpop.xlane.xlu0 %6319
        %v6321 = vcvt.f32.s32 %v6320
        %v6322 = vcvt.f32.s32 %v6316
        %v6323 = vshll.u32 %v6322, 16
        %v6324 = vadd.s32 %v6323, %v6321
        %vm6325 = vcmp.lt.s32.totalorder %v5939, %v5940
        %v6326 = vsel %vm6325, %v5939, %v5940
        %v6327 = vand.u32 %v6326, 65535
        %v6328 = vshra.s32 %v6326, 16
        %v6329 = vcvt.s32.f32 %v6327
        %v6330 = vcvt.s32.f32 %v6328
        %6331 = vmin.xlane.f32.xlu0 %v6330
        %v6332 = vpop.xlane.xlu0 %6331
        %vm6333 = vcmp.eq.f32.partialorder %v6330, %v6332
        %v6334 = vsel %vm6333, %v6329, inf
        %6335 = vmin.xlane.f32.xlu0 %v6334
        %v6336 = vpop.xlane.xlu0 %6335
        %v6337 = vcvt.f32.s32 %v6336
        %v6338 = vcvt.f32.s32 %v6332
        %v6339 = vshll.u32 %v6338, 16
        %v6340 = vadd.s32 %v6339, %v6337
        %vm6341 = vcmp.lt.s32.totalorder %v5941, %v5942
        %v6342 = vsel %vm6341, %v5941, %v5942
        %v6343 = vand.u32 %v6342, 65535
        %v6344 = vshra.s32 %v6342, 16
        %v6345 = vcvt.s32.f32 %v6343
        %v6346 = vcvt.s32.f32 %v6344
        %6347 = vmin.xlane.f32.xlu0 %v6346
        %v6348 = vpop.xlane.xlu0 %6347
        %vm6349 = vcmp.eq.f32.partialorder %v6346, %v6348
        %v6350 = vsel %vm6349, %v6345, inf
        %6351 = vmin.xlane.f32.xlu0 %v6350
        %v6352 = vpop.xlane.xlu0 %6351
        %v6353 = vcvt.f32.s32 %v6352
        %v6354 = vcvt.f32.s32 %v6348
        %v6355 = vshll.u32 %v6354, 16
        %v6356 = vadd.s32 %v6355, %v6353
        %vm6357 = vcmp.lt.s32.totalorder %v5943, %v5944
        %v6358 = vsel %vm6357, %v5943, %v5944
        %v6359 = vand.u32 %v6358, 65535
        %v6360 = vshra.s32 %v6358, 16
        %v6361 = vcvt.s32.f32 %v6359
        %v6362 = vcvt.s32.f32 %v6360
        %6363 = vmin.xlane.f32.xlu0 %v6362
        %v6364 = vpop.xlane.xlu0 %6363
        %vm6365 = vcmp.eq.f32.partialorder %v6362, %v6364
        %v6366 = vsel %vm6365, %v6361, inf
        %6367 = vmin.xlane.f32.xlu0 %v6366
        %v6368 = vpop.xlane.xlu0 %6367
        %v6369 = vcvt.f32.s32 %v6368
        %v6370 = vcvt.f32.s32 %v6364
        %v6371 = vshll.u32 %v6370, 16
        %v6372 = vadd.s32 %v6371, %v6369
        %vm6373 = vcmp.lt.s32.totalorder %v5945, %v5946
        %v6374 = vsel %vm6373, %v5945, %v5946
        %v6375 = vand.u32 %v6374, 65535
        %v6376 = vshra.s32 %v6374, 16
        %v6377 = vcvt.s32.f32 %v6375
        %v6378 = vcvt.s32.f32 %v6376
        %6379 = vmin.xlane.f32.xlu0 %v6378
        %v6380 = vpop.xlane.xlu0 %6379
        %vm6381 = vcmp.eq.f32.partialorder %v6378, %v6380
        %v6382 = vsel %vm6381, %v6377, inf
        %6383 = vmin.xlane.f32.xlu0 %v6382
        %v6384 = vpop.xlane.xlu0 %6383
        %v6385 = vcvt.f32.s32 %v6384
        %v6386 = vcvt.f32.s32 %v6380
        %v6387 = vshll.u32 %v6386, 16
        %v6388 = vadd.s32 %v6387, %v6385
        %vm6389 = vcmp.lt.s32.totalorder %v5947, %v5948
        %v6390 = vsel %vm6389, %v5947, %v5948
        %v6391 = vand.u32 %v6390, 65535
        %v6392 = vshra.s32 %v6390, 16
        %v6393 = vcvt.s32.f32 %v6391
        %v6394 = vcvt.s32.f32 %v6392
        %6395 = vmin.xlane.f32.xlu0 %v6394
        %v6396 = vpop.xlane.xlu0 %6395
        %vm6397 = vcmp.eq.f32.partialorder %v6394, %v6396
        %v6398 = vsel %vm6397, %v6393, inf
        %6399 = vmin.xlane.f32.xlu0 %v6398
        %v6400 = vpop.xlane.xlu0 %6399
        %v6401 = vcvt.f32.s32 %v6400
        %v6402 = vcvt.f32.s32 %v6396
        %v6403 = vshll.u32 %v6402, 16
        %v6404 = vadd.s32 %v6403, %v6401
        %vm6405 = vcmp.lt.s32.totalorder %v5949, %v5950
        %v6406 = vsel %vm6405, %v5949, %v5950
        %v6407 = vand.u32 %v6406, 65535
        %v6408 = vshra.s32 %v6406, 16
        %v6409 = vcvt.s32.f32 %v6407
        %v6410 = vcvt.s32.f32 %v6408
        %6411 = vmin.xlane.f32.xlu0 %v6410
        %v6412 = vpop.xlane.xlu0 %6411
        %vm6413 = vcmp.eq.f32.partialorder %v6410, %v6412
        %v6414 = vsel %vm6413, %v6409, inf
        %6415 = vmin.xlane.f32.xlu0 %v6414
        %v6416 = vpop.xlane.xlu0 %6415
        %v6417 = vcvt.f32.s32 %v6416
        %v6418 = vcvt.f32.s32 %v6412
        %v6419 = vshll.u32 %v6418, 16
        %v6420 = vadd.s32 %v6419, %v6417
        %vm6421 = vcmp.lt.s32.totalorder %v5951, %v5952
        %v6422 = vsel %vm6421, %v5951, %v5952
        %v6423 = vand.u32 %v6422, 65535
        %v6424 = vshra.s32 %v6422, 16
        %v6425 = vcvt.s32.f32 %v6423
        %v6426 = vcvt.s32.f32 %v6424
        %6427 = vmin.xlane.f32.xlu0 %v6426
        %v6428 = vpop.xlane.xlu0 %6427
        %vm6429 = vcmp.eq.f32.partialorder %v6426, %v6428
        %v6430 = vsel %vm6429, %v6425, inf
        %6431 = vmin.xlane.f32.xlu0 %v6430
        %v6432 = vpop.xlane.xlu0 %6431
        %v6433 = vcvt.f32.s32 %v6432
        %v6434 = vcvt.f32.s32 %v6428
        %v6435 = vshll.u32 %v6434, 16
        %v6436 = vadd.s32 %v6435, %v6433
        %vm6437 = vcmp.lt.s32.totalorder %v5953, %v5954
        %v6438 = vsel %vm6437, %v5953, %v5954
        %v6439 = vand.u32 %v6438, 65535
        %v6440 = vshra.s32 %v6438, 16
        %v6441 = vcvt.s32.f32 %v6439
        %v6442 = vcvt.s32.f32 %v6440
        %6443 = vmin.xlane.f32.xlu0 %v6442
        %v6444 = vpop.xlane.xlu0 %6443
        %vm6445 = vcmp.eq.f32.partialorder %v6442, %v6444
        %v6446 = vsel %vm6445, %v6441, inf
        %6447 = vmin.xlane.f32.xlu0 %v6446
        %v6448 = vpop.xlane.xlu0 %6447
        %v6449 = vcvt.f32.s32 %v6448
        %v6450 = vcvt.f32.s32 %v6444
        %v6451 = vshll.u32 %v6450, 16
        %v6452 = vadd.s32 %v6451, %v6449
        %vm6453 = vcmp.lt.s32.totalorder %v5955, %v5956
        %v6454 = vsel %vm6453, %v5955, %v5956
        %v6455 = vand.u32 %v6454, 65535
        %v6456 = vshra.s32 %v6454, 16
        %v6457 = vcvt.s32.f32 %v6455
        %v6458 = vcvt.s32.f32 %v6456
        %6459 = vmin.xlane.f32.xlu0 %v6458
        %v6460 = vpop.xlane.xlu0 %6459
        %vm6461 = vcmp.eq.f32.partialorder %v6458, %v6460
        %v6462 = vsel %vm6461, %v6457, inf
        %6463 = vmin.xlane.f32.xlu0 %v6462
        %v6464 = vpop.xlane.xlu0 %6463
        %v6465 = vcvt.f32.s32 %v6464
        %v6466 = vcvt.f32.s32 %v6460
        %v6467 = vshll.u32 %v6466, 16
        %v6468 = vadd.s32 %v6467, %v6465
        %vm6469 = vcmp.eq.s32.totalorder %v707, %v5972
        %vm6470 = vcmp.eq.s32.totalorder %v708, %v5972
        %vm6471 = vcmp.eq.s32.totalorder %v707, %v5988
        %vm6472 = vcmp.eq.s32.totalorder %v708, %v5988
        %vm6473 = vcmp.eq.s32.totalorder %v707, %v6004
        %vm6474 = vcmp.eq.s32.totalorder %v708, %v6004
        %vm6475 = vcmp.eq.s32.totalorder %v707, %v6020
        %vm6476 = vcmp.eq.s32.totalorder %v708, %v6020
        %vm6477 = vcmp.eq.s32.totalorder %v707, %v6036
        %vm6478 = vcmp.eq.s32.totalorder %v708, %v6036
        %vm6479 = vcmp.eq.s32.totalorder %v707, %v6052
        %vm6480 = vcmp.eq.s32.totalorder %v708, %v6052
        %vm6481 = vcmp.eq.s32.totalorder %v707, %v6068
        %vm6482 = vcmp.eq.s32.totalorder %v708, %v6068
        %vm6483 = vcmp.eq.s32.totalorder %v707, %v6084
        %vm6484 = vcmp.eq.s32.totalorder %v708, %v6084
        %vm6485 = vcmp.eq.s32.totalorder %v707, %v6100
        %vm6486 = vcmp.eq.s32.totalorder %v708, %v6100
        %vm6487 = vcmp.eq.s32.totalorder %v707, %v6116
        %vm6488 = vcmp.eq.s32.totalorder %v708, %v6116
        %vm6489 = vcmp.eq.s32.totalorder %v707, %v6132
        %vm6490 = vcmp.eq.s32.totalorder %v708, %v6132
        %vm6491 = vcmp.eq.s32.totalorder %v707, %v6148
        %vm6492 = vcmp.eq.s32.totalorder %v708, %v6148
        %vm6493 = vcmp.eq.s32.totalorder %v707, %v6164
        %vm6494 = vcmp.eq.s32.totalorder %v708, %v6164
        %vm6495 = vcmp.eq.s32.totalorder %v707, %v6180
        %vm6496 = vcmp.eq.s32.totalorder %v708, %v6180
        %vm6497 = vcmp.eq.s32.totalorder %v707, %v6196
        %vm6498 = vcmp.eq.s32.totalorder %v708, %v6196
        %vm6499 = vcmp.eq.s32.totalorder %v707, %v6212
        %vm6500 = vcmp.eq.s32.totalorder %v708, %v6212
        %vm6501 = vcmp.eq.s32.totalorder %v707, %v6228
        %vm6502 = vcmp.eq.s32.totalorder %v708, %v6228
        %vm6503 = vcmp.eq.s32.totalorder %v707, %v6244
        %vm6504 = vcmp.eq.s32.totalorder %v708, %v6244
        %vm6505 = vcmp.eq.s32.totalorder %v707, %v6260
        %vm6506 = vcmp.eq.s32.totalorder %v708, %v6260
        %vm6507 = vcmp.eq.s32.totalorder %v707, %v6276
        %vm6508 = vcmp.eq.s32.totalorder %v708, %v6276
        %vm6509 = vcmp.eq.s32.totalorder %v707, %v6292
        %vm6510 = vcmp.eq.s32.totalorder %v708, %v6292
        %vm6511 = vcmp.eq.s32.totalorder %v707, %v6308
        %vm6512 = vcmp.eq.s32.totalorder %v708, %v6308
        %vm6513 = vcmp.eq.s32.totalorder %v707, %v6324
        %vm6514 = vcmp.eq.s32.totalorder %v708, %v6324
        %vm6515 = vcmp.eq.s32.totalorder %v707, %v6340
        %vm6516 = vcmp.eq.s32.totalorder %v708, %v6340
        %vm6517 = vcmp.eq.s32.totalorder %v707, %v6356
        %vm6518 = vcmp.eq.s32.totalorder %v708, %v6356
        %vm6519 = vcmp.eq.s32.totalorder %v707, %v6372
        %vm6520 = vcmp.eq.s32.totalorder %v708, %v6372
        %vm6521 = vcmp.eq.s32.totalorder %v707, %v6388
        %vm6522 = vcmp.eq.s32.totalorder %v708, %v6388
        %vm6523 = vcmp.eq.s32.totalorder %v707, %v6404
        %vm6524 = vcmp.eq.s32.totalorder %v708, %v6404
        %vm6525 = vcmp.eq.s32.totalorder %v707, %v6420
        %vm6526 = vcmp.eq.s32.totalorder %v708, %v6420
        %vm6527 = vcmp.eq.s32.totalorder %v707, %v6436
        %vm6528 = vcmp.eq.s32.totalorder %v708, %v6436
        %vm6529 = vcmp.eq.s32.totalorder %v707, %v6452
        %vm6530 = vcmp.eq.s32.totalorder %v708, %v6452
        %vm6531 = vcmp.eq.s32.totalorder %v707, %v6468
        %vm6532 = vcmp.eq.s32.totalorder %v708, %v6468
        %v6533 = vsub.f32 %v5735, %v711
        %v6534 = vsub.f32 %v5738, %v714
        %v6535 = vsub.f32 %v5741, %v717
        %v6536 = vsub.f32 %v5744, %v720
        %v6537 = vsub.f32 %v5747, %v723
        %v6538 = vsub.f32 %v5750, %v726
        %v6539 = vsub.f32 %v5753, %v729
        %v6540 = vsub.f32 %v5756, %v732
        %v6541 = vsub.f32 %v5759, %v735
        %v6542 = vsub.f32 %v5762, %v738
        %v6543 = vsub.f32 %v5765, %v741
        %v6544 = vsub.f32 %v5768, %v744
        %v6545 = vsub.f32 %v5771, %v747
        %v6546 = vsub.f32 %v5774, %v750
        %v6547 = vsub.f32 %v5777, %v753
        %v6548 = vsub.f32 %v5780, %v756
        %v6549 = vsub.f32 %v5783, %v759
        %v6550 = vsub.f32 %v5786, %v762
        %v6551 = vsub.f32 %v5789, %v765
        %v6552 = vsub.f32 %v5792, %v768
        %v6553 = vsub.f32 %v5795, %v771
        %v6554 = vsub.f32 %v5798, %v774
        %v6555 = vsub.f32 %v5801, %v777
        %v6556 = vsub.f32 %v5804, %v780
        %v6557 = vsub.f32 %v5807, %v783
        %v6558 = vsub.f32 %v5810, %v786
        %v6559 = vsub.f32 %v5813, %v789
        %v6560 = vsub.f32 %v5816, %v792
        %v6561 = vsub.f32 %v5819, %v795
        %v6562 = vsub.f32 %v5822, %v798
        %v6563 = vsub.f32 %v5825, %v801
        %v6564 = vsub.f32 %v5828, %v804
        %v6565 = vmul.f32 %v6533, 1.442695
        %v6566 = vpow.pop %v6565
        %v6567 = vmul.f32 %v6534, 1.442695
        %v6568 = vpow.pop %v6567
        %v6569 = vmul.f32 %v6535, 1.442695
        %v6570 = vpow.pop %v6569
        %v6571 = vmul.f32 %v6536, 1.442695
        %v6572 = vpow.pop %v6571
        %v6573 = vmul.f32 %v6537, 1.442695
        %v6574 = vpow.pop %v6573
        %v6575 = vmul.f32 %v6538, 1.442695
        %v6576 = vpow.pop %v6575
        %v6577 = vmul.f32 %v6539, 1.442695
        %v6578 = vpow.pop %v6577
        %v6579 = vmul.f32 %v6540, 1.442695
        %v6580 = vpow.pop %v6579
        %v6581 = vmul.f32 %v6541, 1.442695
        %v6582 = vpow.pop %v6581
        %v6583 = vmul.f32 %v6542, 1.442695
        %v6584 = vpow.pop %v6583
        %v6585 = vmul.f32 %v6543, 1.442695
        %v6586 = vpow.pop %v6585
        %v6587 = vmul.f32 %v6544, 1.442695
        %v6588 = vpow.pop %v6587
        %v6589 = vmul.f32 %v6545, 1.442695
        %v6590 = vpow.pop %v6589
        %v6591 = vmul.f32 %v6546, 1.442695
        %v6592 = vpow.pop %v6591
        %v6593 = vmul.f32 %v6547, 1.442695
        %v6594 = vpow.pop %v6593
        %v6595 = vmul.f32 %v6548, 1.442695
        %v6596 = vpow.pop %v6595
        %v6597 = vmul.f32 %v6549, 1.442695
        %v6598 = vpow.pop %v6597
        %v6599 = vmul.f32 %v6550, 1.442695
        %v6600 = vpow.pop %v6599
        %v6601 = vmul.f32 %v6551, 1.442695
        %v6602 = vpow.pop %v6601
        %v6603 = vmul.f32 %v6552, 1.442695
        %v6604 = vpow.pop %v6603
        %v6605 = vmul.f32 %v6553, 1.442695
        %v6606 = vpow.pop %v6605
        %v6607 = vmul.f32 %v6554, 1.442695
        %v6608 = vpow.pop %v6607
        %v6609 = vmul.f32 %v6555, 1.442695
        %v6610 = vpow.pop %v6609
        %v6611 = vmul.f32 %v6556, 1.442695
        %v6612 = vpow.pop %v6611
        %v6613 = vmul.f32 %v6557, 1.442695
        %v6614 = vpow.pop %v6613
        %v6615 = vmul.f32 %v6558, 1.442695
        %v6616 = vpow.pop %v6615
        %v6617 = vmul.f32 %v6559, 1.442695
        %v6618 = vpow.pop %v6617
        %v6619 = vmul.f32 %v6560, 1.442695
        %v6620 = vpow.pop %v6619
        %v6621 = vmul.f32 %v6561, 1.442695
        %v6622 = vpow.pop %v6621
        %v6623 = vmul.f32 %v6562, 1.442695
        %v6624 = vpow.pop %v6623
        %v6625 = vmul.f32 %v6563, 1.442695
        %v6626 = vpow.pop %v6625
        %v6627 = vmul.f32 %v6564, 1.442695
        %v6628 = vpow.pop %v6627
        %v6629 = vsel %vm6469, %v6566, %v5605
        %v6630 = vsel %vm6470, %v6566, %v5606
        %v6631 = vsel %vm6471, %v6568, %v5607
        %v6632 = vsel %vm6472, %v6568, %v5608
        %v6633 = vsel %vm6473, %v6570, %v5609
        %v6634 = vsel %vm6474, %v6570, %v5610
        %v6635 = vsel %vm6475, %v6572, %v5611
        %v6636 = vsel %vm6476, %v6572, %v5612
        %v6637 = vsel %vm6477, %v6574, %v5613
        %v6638 = vsel %vm6478, %v6574, %v5614
        %v6639 = vsel %vm6479, %v6576, %v5615
        %v6640 = vsel %vm6480, %v6576, %v5616
        %v6641 = vsel %vm6481, %v6578, %v5617
        %v6642 = vsel %vm6482, %v6578, %v5618
        %v6643 = vsel %vm6483, %v6580, %v5619
        %v6644 = vsel %vm6484, %v6580, %v5620
        %v6645 = vsel %vm6485, %v6582, %v5621
        %v6646 = vsel %vm6486, %v6582, %v5622
        %v6647 = vsel %vm6487, %v6584, %v5623
        %v6648 = vsel %vm6488, %v6584, %v5624
        %v6649 = vsel %vm6489, %v6586, %v5625
        %v6650 = vsel %vm6490, %v6586, %v5626
        %v6651 = vsel %vm6491, %v6588, %v5627
        %v6652 = vsel %vm6492, %v6588, %v5628
        %v6653 = vsel %vm6493, %v6590, %v5629
        %v6654 = vsel %vm6494, %v6590, %v5630
        %v6655 = vsel %vm6495, %v6592, %v5631
        %v6656 = vsel %vm6496, %v6592, %v5632
        %v6657 = vsel %vm6497, %v6594, %v5633
        %v6658 = vsel %vm6498, %v6594, %v5634
        %v6659 = vsel %vm6499, %v6596, %v5635
        %v6660 = vsel %vm6500, %v6596, %v5636
        %v6661 = vsel %vm6501, %v6598, %v5637
        %v6662 = vsel %vm6502, %v6598, %v5638
        %v6663 = vsel %vm6503, %v6600, %v5639
        %v6664 = vsel %vm6504, %v6600, %v5640
        %v6665 = vsel %vm6505, %v6602, %v5641
        %v6666 = vsel %vm6506, %v6602, %v5642
        %v6667 = vsel %vm6507, %v6604, %v5643
        %v6668 = vsel %vm6508, %v6604, %v5644
        %v6669 = vsel %vm6509, %v6606, %v5645
        %v6670 = vsel %vm6510, %v6606, %v5646
        %v6671 = vsel %vm6511, %v6608, %v5647
        %v6672 = vsel %vm6512, %v6608, %v5648
        %v6673 = vsel %vm6513, %v6610, %v5649
        %v6674 = vsel %vm6514, %v6610, %v5650
        %v6675 = vsel %vm6515, %v6612, %v5651
        %v6676 = vsel %vm6516, %v6612, %v5652
        %v6677 = vsel %vm6517, %v6614, %v5653
        %v6678 = vsel %vm6518, %v6614, %v5654
        %v6679 = vsel %vm6519, %v6616, %v5655
        %v6680 = vsel %vm6520, %v6616, %v5656
        %v6681 = vsel %vm6521, %v6618, %v5657
        %v6682 = vsel %vm6522, %v6618, %v5658
        %v6683 = vsel %vm6523, %v6620, %v5659
        %v6684 = vsel %vm6524, %v6620, %v5660
        %v6685 = vsel %vm6525, %v6622, %v5661
        %v6686 = vsel %vm6526, %v6622, %v5662
        %v6687 = vsel %vm6527, %v6624, %v5663
        %v6688 = vsel %vm6528, %v6624, %v5664
        %v6689 = vsel %vm6529, %v6626, %v5665
        %v6690 = vsel %vm6530, %v6626, %v5666
        %v6691 = vsel %vm6531, %v6628, %v5667
        %v6692 = vsel %vm6532, %v6628, %v5668
        %v6693 = vsel %vm6469, -1e+30, %v5669
        %v6694 = vsel %vm6470, -1e+30, %v5670
        %v6695 = vsel %vm6471, -1e+30, %v5671
        %v6696 = vsel %vm6472, -1e+30, %v5672
        %v6697 = vsel %vm6473, -1e+30, %v5673
        %v6698 = vsel %vm6474, -1e+30, %v5674
        %v6699 = vsel %vm6475, -1e+30, %v5675
        %v6700 = vsel %vm6476, -1e+30, %v5676
        %v6701 = vsel %vm6477, -1e+30, %v5677
        %v6702 = vsel %vm6478, -1e+30, %v5678
        %v6703 = vsel %vm6479, -1e+30, %v5679
        %v6704 = vsel %vm6480, -1e+30, %v5680
        %v6705 = vsel %vm6481, -1e+30, %v5681
        %v6706 = vsel %vm6482, -1e+30, %v5682
        %v6707 = vsel %vm6483, -1e+30, %v5683
        %v6708 = vsel %vm6484, -1e+30, %v5684
        %v6709 = vsel %vm6485, -1e+30, %v5685
        %v6710 = vsel %vm6486, -1e+30, %v5686
        %v6711 = vsel %vm6487, -1e+30, %v5687
        %v6712 = vsel %vm6488, -1e+30, %v5688
        %v6713 = vsel %vm6489, -1e+30, %v5689
        %v6714 = vsel %vm6490, -1e+30, %v5690
        %v6715 = vsel %vm6491, -1e+30, %v5691
        %v6716 = vsel %vm6492, -1e+30, %v5692
        %v6717 = vsel %vm6493, -1e+30, %v5693
        %v6718 = vsel %vm6494, -1e+30, %v5694
        %v6719 = vsel %vm6495, -1e+30, %v5695
        %v6720 = vsel %vm6496, -1e+30, %v5696
        %v6721 = vsel %vm6497, -1e+30, %v5697
        %v6722 = vsel %vm6498, -1e+30, %v5698
        %v6723 = vsel %vm6499, -1e+30, %v5699
        %v6724 = vsel %vm6500, -1e+30, %v5700
        %v6725 = vsel %vm6501, -1e+30, %v5701
        %v6726 = vsel %vm6502, -1e+30, %v5702
        %v6727 = vsel %vm6503, -1e+30, %v5703
        %v6728 = vsel %vm6504, -1e+30, %v5704
        %v6729 = vsel %vm6505, -1e+30, %v5705
        %v6730 = vsel %vm6506, -1e+30, %v5706
        %v6731 = vsel %vm6507, -1e+30, %v5707
        %v6732 = vsel %vm6508, -1e+30, %v5708
        %v6733 = vsel %vm6509, -1e+30, %v5709
        %v6734 = vsel %vm6510, -1e+30, %v5710
        %v6735 = vsel %vm6511, -1e+30, %v5711
        %v6736 = vsel %vm6512, -1e+30, %v5712
        %v6737 = vsel %vm6513, -1e+30, %v5713
        %v6738 = vsel %vm6514, -1e+30, %v5714
        %v6739 = vsel %vm6515, -1e+30, %v5715
        %v6740 = vsel %vm6516, -1e+30, %v5716
        %v6741 = vsel %vm6517, -1e+30, %v5717
        %v6742 = vsel %vm6518, -1e+30, %v5718
        %v6743 = vsel %vm6519, -1e+30, %v5719
        %v6744 = vsel %vm6520, -1e+30, %v5720
        %v6745 = vsel %vm6521, -1e+30, %v5721
        %v6746 = vsel %vm6522, -1e+30, %v5722
        %v6747 = vsel %vm6523, -1e+30, %v5723
        %v6748 = vsel %vm6524, -1e+30, %v5724
        %v6749 = vsel %vm6525, -1e+30, %v5725
        %v6750 = vsel %vm6526, -1e+30, %v5726
        %v6751 = vsel %vm6527, -1e+30, %v5727
        %v6752 = vsel %vm6528, -1e+30, %v5728
        %v6753 = vsel %vm6529, -1e+30, %v5729
        %v6754 = vsel %vm6530, -1e+30, %v5730
        %v6755 = vsel %vm6531, -1e+30, %v5731
        %v6756 = vsel %vm6532, -1e+30, %v5732
        %v6757 = vmax.f32 %v6693, %v6694
        %6758 = vmax.xlane.f32.xlu0 %v6757
        %v6759 = vpop.xlane.xlu0 %6758
        %v6760 = vmax.f32 %v6695, %v6696
        %6761 = vmax.xlane.f32.xlu0 %v6760
        %v6762 = vpop.xlane.xlu0 %6761
        %v6763 = vmax.f32 %v6697, %v6698
        %6764 = vmax.xlane.f32.xlu0 %v6763
        %v6765 = vpop.xlane.xlu0 %6764
        %v6766 = vmax.f32 %v6699, %v6700
        %6767 = vmax.xlane.f32.xlu0 %v6766
        %v6768 = vpop.xlane.xlu0 %6767
        %v6769 = vmax.f32 %v6701, %v6702
        %6770 = vmax.xlane.f32.xlu0 %v6769
        %v6771 = vpop.xlane.xlu0 %6770
        %v6772 = vmax.f32 %v6703, %v6704
        %6773 = vmax.xlane.f32.xlu0 %v6772
        %v6774 = vpop.xlane.xlu0 %6773
        %v6775 = vmax.f32 %v6705, %v6706
        %6776 = vmax.xlane.f32.xlu0 %v6775
        %v6777 = vpop.xlane.xlu0 %6776
        %v6778 = vmax.f32 %v6707, %v6708
        %6779 = vmax.xlane.f32.xlu0 %v6778
        %v6780 = vpop.xlane.xlu0 %6779
        %v6781 = vmax.f32 %v6709, %v6710
        %6782 = vmax.xlane.f32.xlu0 %v6781
        %v6783 = vpop.xlane.xlu0 %6782
        %v6784 = vmax.f32 %v6711, %v6712
        %6785 = vmax.xlane.f32.xlu0 %v6784
        %v6786 = vpop.xlane.xlu0 %6785
        %v6787 = vmax.f32 %v6713, %v6714
        %6788 = vmax.xlane.f32.xlu0 %v6787
        %v6789 = vpop.xlane.xlu0 %6788
        %v6790 = vmax.f32 %v6715, %v6716
        %6791 = vmax.xlane.f32.xlu0 %v6790
        %v6792 = vpop.xlane.xlu0 %6791
        %v6793 = vmax.f32 %v6717, %v6718
        %6794 = vmax.xlane.f32.xlu0 %v6793
        %v6795 = vpop.xlane.xlu0 %6794
        %v6796 = vmax.f32 %v6719, %v6720
        %6797 = vmax.xlane.f32.xlu0 %v6796
        %v6798 = vpop.xlane.xlu0 %6797
        %v6799 = vmax.f32 %v6721, %v6722
        %6800 = vmax.xlane.f32.xlu0 %v6799
        %v6801 = vpop.xlane.xlu0 %6800
        %v6802 = vmax.f32 %v6723, %v6724
        %6803 = vmax.xlane.f32.xlu0 %v6802
        %v6804 = vpop.xlane.xlu0 %6803
        %v6805 = vmax.f32 %v6725, %v6726
        %6806 = vmax.xlane.f32.xlu0 %v6805
        %v6807 = vpop.xlane.xlu0 %6806
        %v6808 = vmax.f32 %v6727, %v6728
        %6809 = vmax.xlane.f32.xlu0 %v6808
        %v6810 = vpop.xlane.xlu0 %6809
        %v6811 = vmax.f32 %v6729, %v6730
        %6812 = vmax.xlane.f32.xlu0 %v6811
        %v6813 = vpop.xlane.xlu0 %6812
        %v6814 = vmax.f32 %v6731, %v6732
        %6815 = vmax.xlane.f32.xlu0 %v6814
        %v6816 = vpop.xlane.xlu0 %6815
        %v6817 = vmax.f32 %v6733, %v6734
        %6818 = vmax.xlane.f32.xlu0 %v6817
        %v6819 = vpop.xlane.xlu0 %6818
        %v6820 = vmax.f32 %v6735, %v6736
        %6821 = vmax.xlane.f32.xlu0 %v6820
        %v6822 = vpop.xlane.xlu0 %6821
        %v6823 = vmax.f32 %v6737, %v6738
        %6824 = vmax.xlane.f32.xlu0 %v6823
        %v6825 = vpop.xlane.xlu0 %6824
        %v6826 = vmax.f32 %v6739, %v6740
        %6827 = vmax.xlane.f32.xlu0 %v6826
        %v6828 = vpop.xlane.xlu0 %6827
        %v6829 = vmax.f32 %v6741, %v6742
        %6830 = vmax.xlane.f32.xlu0 %v6829
        %v6831 = vpop.xlane.xlu0 %6830
        %v6832 = vmax.f32 %v6743, %v6744
        %6833 = vmax.xlane.f32.xlu0 %v6832
        %v6834 = vpop.xlane.xlu0 %6833
        %v6835 = vmax.f32 %v6745, %v6746
        %6836 = vmax.xlane.f32.xlu0 %v6835
        %v6837 = vpop.xlane.xlu0 %6836
        %v6838 = vmax.f32 %v6747, %v6748
        %6839 = vmax.xlane.f32.xlu0 %v6838
        %v6840 = vpop.xlane.xlu0 %6839
        %v6841 = vmax.f32 %v6749, %v6750
        %6842 = vmax.xlane.f32.xlu0 %v6841
        %v6843 = vpop.xlane.xlu0 %6842
        %v6844 = vmax.f32 %v6751, %v6752
        %6845 = vmax.xlane.f32.xlu0 %v6844
        %v6846 = vpop.xlane.xlu0 %6845
        %v6847 = vmax.f32 %v6753, %v6754
        %6848 = vmax.xlane.f32.xlu0 %v6847
        %v6849 = vpop.xlane.xlu0 %6848
        %v6850 = vmax.f32 %v6755, %v6756
        %6851 = vmax.xlane.f32.xlu0 %v6850
        %v6852 = vpop.xlane.xlu0 %6851
        %vm6853 = vcmp.eq.f32.partialorder %v6693, %v6759
        %vm6854 = vcmp.eq.f32.partialorder %v6694, %v6759
        %vm6855 = vcmp.eq.f32.partialorder %v6695, %v6762
        %vm6856 = vcmp.eq.f32.partialorder %v6696, %v6762
        %vm6857 = vcmp.eq.f32.partialorder %v6697, %v6765
        %vm6858 = vcmp.eq.f32.partialorder %v6698, %v6765
        %vm6859 = vcmp.eq.f32.partialorder %v6699, %v6768
        %vm6860 = vcmp.eq.f32.partialorder %v6700, %v6768
        %vm6861 = vcmp.eq.f32.partialorder %v6701, %v6771
        %vm6862 = vcmp.eq.f32.partialorder %v6702, %v6771
        %vm6863 = vcmp.eq.f32.partialorder %v6703, %v6774
        %vm6864 = vcmp.eq.f32.partialorder %v6704, %v6774
        %vm6865 = vcmp.eq.f32.partialorder %v6705, %v6777
        %vm6866 = vcmp.eq.f32.partialorder %v6706, %v6777
        %vm6867 = vcmp.eq.f32.partialorder %v6707, %v6780
        %vm6868 = vcmp.eq.f32.partialorder %v6708, %v6780
        %vm6869 = vcmp.eq.f32.partialorder %v6709, %v6783
        %vm6870 = vcmp.eq.f32.partialorder %v6710, %v6783
        %vm6871 = vcmp.eq.f32.partialorder %v6711, %v6786
        %vm6872 = vcmp.eq.f32.partialorder %v6712, %v6786
        %vm6873 = vcmp.eq.f32.partialorder %v6713, %v6789
        %vm6874 = vcmp.eq.f32.partialorder %v6714, %v6789
        %vm6875 = vcmp.eq.f32.partialorder %v6715, %v6792
        %vm6876 = vcmp.eq.f32.partialorder %v6716, %v6792
        %vm6877 = vcmp.eq.f32.partialorder %v6717, %v6795
        %vm6878 = vcmp.eq.f32.partialorder %v6718, %v6795
        %vm6879 = vcmp.eq.f32.partialorder %v6719, %v6798
        %vm6880 = vcmp.eq.f32.partialorder %v6720, %v6798
        %vm6881 = vcmp.eq.f32.partialorder %v6721, %v6801
        %vm6882 = vcmp.eq.f32.partialorder %v6722, %v6801
        %vm6883 = vcmp.eq.f32.partialorder %v6723, %v6804
        %vm6884 = vcmp.eq.f32.partialorder %v6724, %v6804
        %vm6885 = vcmp.eq.f32.partialorder %v6725, %v6807
        %vm6886 = vcmp.eq.f32.partialorder %v6726, %v6807
        %vm6887 = vcmp.eq.f32.partialorder %v6727, %v6810
        %vm6888 = vcmp.eq.f32.partialorder %v6728, %v6810
        %vm6889 = vcmp.eq.f32.partialorder %v6729, %v6813
        %vm6890 = vcmp.eq.f32.partialorder %v6730, %v6813
        %vm6891 = vcmp.eq.f32.partialorder %v6731, %v6816
        %vm6892 = vcmp.eq.f32.partialorder %v6732, %v6816
        %vm6893 = vcmp.eq.f32.partialorder %v6733, %v6819
        %vm6894 = vcmp.eq.f32.partialorder %v6734, %v6819
        %vm6895 = vcmp.eq.f32.partialorder %v6735, %v6822
        %vm6896 = vcmp.eq.f32.partialorder %v6736, %v6822
        %vm6897 = vcmp.eq.f32.partialorder %v6737, %v6825
        %vm6898 = vcmp.eq.f32.partialorder %v6738, %v6825
        %vm6899 = vcmp.eq.f32.partialorder %v6739, %v6828
        %vm6900 = vcmp.eq.f32.partialorder %v6740, %v6828
        %vm6901 = vcmp.eq.f32.partialorder %v6741, %v6831
        %vm6902 = vcmp.eq.f32.partialorder %v6742, %v6831
        %vm6903 = vcmp.eq.f32.partialorder %v6743, %v6834
        %vm6904 = vcmp.eq.f32.partialorder %v6744, %v6834
        %vm6905 = vcmp.eq.f32.partialorder %v6745, %v6837
        %vm6906 = vcmp.eq.f32.partialorder %v6746, %v6837
        %vm6907 = vcmp.eq.f32.partialorder %v6747, %v6840
        %vm6908 = vcmp.eq.f32.partialorder %v6748, %v6840
        %vm6909 = vcmp.eq.f32.partialorder %v6749, %v6843
        %vm6910 = vcmp.eq.f32.partialorder %v6750, %v6843
        %vm6911 = vcmp.eq.f32.partialorder %v6751, %v6846
        %vm6912 = vcmp.eq.f32.partialorder %v6752, %v6846
        %vm6913 = vcmp.eq.f32.partialorder %v6753, %v6849
        %vm6914 = vcmp.eq.f32.partialorder %v6754, %v6849
        %vm6915 = vcmp.eq.f32.partialorder %v6755, %v6852
        %vm6916 = vcmp.eq.f32.partialorder %v6756, %v6852
        %v6917 = vsel %vm6853, %v707, 256
        %v6918 = vsel %vm6854, %v708, 256
        %v6919 = vsel %vm6855, %v707, 256
        %v6920 = vsel %vm6856, %v708, 256
        %v6921 = vsel %vm6857, %v707, 256
        %v6922 = vsel %vm6858, %v708, 256
        %v6923 = vsel %vm6859, %v707, 256
        %v6924 = vsel %vm6860, %v708, 256
        %v6925 = vsel %vm6861, %v707, 256
        %v6926 = vsel %vm6862, %v708, 256
        %v6927 = vsel %vm6863, %v707, 256
        %v6928 = vsel %vm6864, %v708, 256
        %v6929 = vsel %vm6865, %v707, 256
        %v6930 = vsel %vm6866, %v708, 256
        %v6931 = vsel %vm6867, %v707, 256
        %v6932 = vsel %vm6868, %v708, 256
        %v6933 = vsel %vm6869, %v707, 256
        %v6934 = vsel %vm6870, %v708, 256
        %v6935 = vsel %vm6871, %v707, 256
        %v6936 = vsel %vm6872, %v708, 256
        %v6937 = vsel %vm6873, %v707, 256
        %v6938 = vsel %vm6874, %v708, 256
        %v6939 = vsel %vm6875, %v707, 256
        %v6940 = vsel %vm6876, %v708, 256
        %v6941 = vsel %vm6877, %v707, 256
        %v6942 = vsel %vm6878, %v708, 256
        %v6943 = vsel %vm6879, %v707, 256
        %v6944 = vsel %vm6880, %v708, 256
        %v6945 = vsel %vm6881, %v707, 256
        %v6946 = vsel %vm6882, %v708, 256
        %v6947 = vsel %vm6883, %v707, 256
        %v6948 = vsel %vm6884, %v708, 256
        %v6949 = vsel %vm6885, %v707, 256
        %v6950 = vsel %vm6886, %v708, 256
        %v6951 = vsel %vm6887, %v707, 256
        %v6952 = vsel %vm6888, %v708, 256
        %v6953 = vsel %vm6889, %v707, 256
        %v6954 = vsel %vm6890, %v708, 256
        %v6955 = vsel %vm6891, %v707, 256
        %v6956 = vsel %vm6892, %v708, 256
        %v6957 = vsel %vm6893, %v707, 256
        %v6958 = vsel %vm6894, %v708, 256
        %v6959 = vsel %vm6895, %v707, 256
        %v6960 = vsel %vm6896, %v708, 256
        %v6961 = vsel %vm6897, %v707, 256
        %v6962 = vsel %vm6898, %v708, 256
        %v6963 = vsel %vm6899, %v707, 256
        %v6964 = vsel %vm6900, %v708, 256
        %v6965 = vsel %vm6901, %v707, 256
        %v6966 = vsel %vm6902, %v708, 256
        %v6967 = vsel %vm6903, %v707, 256
        %v6968 = vsel %vm6904, %v708, 256
        %v6969 = vsel %vm6905, %v707, 256
        %v6970 = vsel %vm6906, %v708, 256
        %v6971 = vsel %vm6907, %v707, 256
        %v6972 = vsel %vm6908, %v708, 256
        %v6973 = vsel %vm6909, %v707, 256
        %v6974 = vsel %vm6910, %v708, 256
        %v6975 = vsel %vm6911, %v707, 256
        %v6976 = vsel %vm6912, %v708, 256
        %v6977 = vsel %vm6913, %v707, 256
        %v6978 = vsel %vm6914, %v708, 256
        %v6979 = vsel %vm6915, %v707, 256
        %v6980 = vsel %vm6916, %v708, 256
        %vm6981 = vcmp.lt.s32.totalorder %v6917, %v6918
        %v6982 = vsel %vm6981, %v6917, %v6918
        %v6983 = vand.u32 %v6982, 65535
        %v6984 = vshra.s32 %v6982, 16
        %v6985 = vcvt.s32.f32 %v6983
        %v6986 = vcvt.s32.f32 %v6984
        %6987 = vmin.xlane.f32.xlu0 %v6986
        %v6988 = vpop.xlane.xlu0 %6987
        %vm6989 = vcmp.eq.f32.partialorder %v6986, %v6988
        %v6990 = vsel %vm6989, %v6985, inf
        %6991 = vmin.xlane.f32.xlu0 %v6990
        %v6992 = vpop.xlane.xlu0 %6991
        %v6993 = vcvt.f32.s32 %v6992
        %v6994 = vcvt.f32.s32 %v6988
        %v6995 = vshll.u32 %v6994, 16
        %v6996 = vadd.s32 %v6995, %v6993
        %vm6997 = vcmp.lt.s32.totalorder %v6919, %v6920
        %v6998 = vsel %vm6997, %v6919, %v6920
        %v6999 = vand.u32 %v6998, 65535
        %v7000 = vshra.s32 %v6998, 16
        %v7001 = vcvt.s32.f32 %v6999
        %v7002 = vcvt.s32.f32 %v7000
        %7003 = vmin.xlane.f32.xlu0 %v7002
        %v7004 = vpop.xlane.xlu0 %7003
        %vm7005 = vcmp.eq.f32.partialorder %v7002, %v7004
        %v7006 = vsel %vm7005, %v7001, inf
        %7007 = vmin.xlane.f32.xlu0 %v7006
        %v7008 = vpop.xlane.xlu0 %7007
        %v7009 = vcvt.f32.s32 %v7008
        %v7010 = vcvt.f32.s32 %v7004
        %v7011 = vshll.u32 %v7010, 16
        %v7012 = vadd.s32 %v7011, %v7009
        %vm7013 = vcmp.lt.s32.totalorder %v6921, %v6922
        %v7014 = vsel %vm7013, %v6921, %v6922
        %v7015 = vand.u32 %v7014, 65535
        %v7016 = vshra.s32 %v7014, 16
        %v7017 = vcvt.s32.f32 %v7015
        %v7018 = vcvt.s32.f32 %v7016
        %7019 = vmin.xlane.f32.xlu0 %v7018
        %v7020 = vpop.xlane.xlu0 %7019
        %vm7021 = vcmp.eq.f32.partialorder %v7018, %v7020
        %v7022 = vsel %vm7021, %v7017, inf
        %7023 = vmin.xlane.f32.xlu0 %v7022
        %v7024 = vpop.xlane.xlu0 %7023
        %v7025 = vcvt.f32.s32 %v7024
        %v7026 = vcvt.f32.s32 %v7020
        %v7027 = vshll.u32 %v7026, 16
        %v7028 = vadd.s32 %v7027, %v7025
        %vm7029 = vcmp.lt.s32.totalorder %v6923, %v6924
        %v7030 = vsel %vm7029, %v6923, %v6924
        %v7031 = vand.u32 %v7030, 65535
        %v7032 = vshra.s32 %v7030, 16
        %v7033 = vcvt.s32.f32 %v7031
        %v7034 = vcvt.s32.f32 %v7032
        %7035 = vmin.xlane.f32.xlu0 %v7034
        %v7036 = vpop.xlane.xlu0 %7035
        %vm7037 = vcmp.eq.f32.partialorder %v7034, %v7036
        %v7038 = vsel %vm7037, %v7033, inf
        %7039 = vmin.xlane.f32.xlu0 %v7038
        %v7040 = vpop.xlane.xlu0 %7039
        %v7041 = vcvt.f32.s32 %v7040
        %v7042 = vcvt.f32.s32 %v7036
        %v7043 = vshll.u32 %v7042, 16
        %v7044 = vadd.s32 %v7043, %v7041
        %vm7045 = vcmp.lt.s32.totalorder %v6925, %v6926
        %v7046 = vsel %vm7045, %v6925, %v6926
        %v7047 = vand.u32 %v7046, 65535
        %v7048 = vshra.s32 %v7046, 16
        %v7049 = vcvt.s32.f32 %v7047
        %v7050 = vcvt.s32.f32 %v7048
        %7051 = vmin.xlane.f32.xlu0 %v7050
        %v7052 = vpop.xlane.xlu0 %7051
        %vm7053 = vcmp.eq.f32.partialorder %v7050, %v7052
        %v7054 = vsel %vm7053, %v7049, inf
        %7055 = vmin.xlane.f32.xlu0 %v7054
        %v7056 = vpop.xlane.xlu0 %7055
        %v7057 = vcvt.f32.s32 %v7056
        %v7058 = vcvt.f32.s32 %v7052
        %v7059 = vshll.u32 %v7058, 16
        %v7060 = vadd.s32 %v7059, %v7057
        %vm7061 = vcmp.lt.s32.totalorder %v6927, %v6928
        %v7062 = vsel %vm7061, %v6927, %v6928
        %v7063 = vand.u32 %v7062, 65535
        %v7064 = vshra.s32 %v7062, 16
        %v7065 = vcvt.s32.f32 %v7063
        %v7066 = vcvt.s32.f32 %v7064
        %7067 = vmin.xlane.f32.xlu0 %v7066
        %v7068 = vpop.xlane.xlu0 %7067
        %vm7069 = vcmp.eq.f32.partialorder %v7066, %v7068
        %v7070 = vsel %vm7069, %v7065, inf
        %7071 = vmin.xlane.f32.xlu0 %v7070
        %v7072 = vpop.xlane.xlu0 %7071
        %v7073 = vcvt.f32.s32 %v7072
        %v7074 = vcvt.f32.s32 %v7068
        %v7075 = vshll.u32 %v7074, 16
        %v7076 = vadd.s32 %v7075, %v7073
        %vm7077 = vcmp.lt.s32.totalorder %v6929, %v6930
        %v7078 = vsel %vm7077, %v6929, %v6930
        %v7079 = vand.u32 %v7078, 65535
        %v7080 = vshra.s32 %v7078, 16
        %v7081 = vcvt.s32.f32 %v7079
        %v7082 = vcvt.s32.f32 %v7080
        %7083 = vmin.xlane.f32.xlu0 %v7082
        %v7084 = vpop.xlane.xlu0 %7083
        %vm7085 = vcmp.eq.f32.partialorder %v7082, %v7084
        %v7086 = vsel %vm7085, %v7081, inf
        %7087 = vmin.xlane.f32.xlu0 %v7086
        %v7088 = vpop.xlane.xlu0 %7087
        %v7089 = vcvt.f32.s32 %v7088
        %v7090 = vcvt.f32.s32 %v7084
        %v7091 = vshll.u32 %v7090, 16
        %v7092 = vadd.s32 %v7091, %v7089
        %vm7093 = vcmp.lt.s32.totalorder %v6931, %v6932
        %v7094 = vsel %vm7093, %v6931, %v6932
        %v7095 = vand.u32 %v7094, 65535
        %v7096 = vshra.s32 %v7094, 16
        %v7097 = vcvt.s32.f32 %v7095
        %v7098 = vcvt.s32.f32 %v7096
        %7099 = vmin.xlane.f32.xlu0 %v7098
        %v7100 = vpop.xlane.xlu0 %7099
        %vm7101 = vcmp.eq.f32.partialorder %v7098, %v7100
        %v7102 = vsel %vm7101, %v7097, inf
        %7103 = vmin.xlane.f32.xlu0 %v7102
        %v7104 = vpop.xlane.xlu0 %7103
        %v7105 = vcvt.f32.s32 %v7104
        %v7106 = vcvt.f32.s32 %v7100
        %v7107 = vshll.u32 %v7106, 16
        %v7108 = vadd.s32 %v7107, %v7105
        %vm7109 = vcmp.lt.s32.totalorder %v6933, %v6934
        %v7110 = vsel %vm7109, %v6933, %v6934
        %v7111 = vand.u32 %v7110, 65535
        %v7112 = vshra.s32 %v7110, 16
        %v7113 = vcvt.s32.f32 %v7111
        %v7114 = vcvt.s32.f32 %v7112
        %7115 = vmin.xlane.f32.xlu0 %v7114
        %v7116 = vpop.xlane.xlu0 %7115
        %vm7117 = vcmp.eq.f32.partialorder %v7114, %v7116
        %v7118 = vsel %vm7117, %v7113, inf
        %7119 = vmin.xlane.f32.xlu0 %v7118
        %v7120 = vpop.xlane.xlu0 %7119
        %v7121 = vcvt.f32.s32 %v7120
        %v7122 = vcvt.f32.s32 %v7116
        %v7123 = vshll.u32 %v7122, 16
        %v7124 = vadd.s32 %v7123, %v7121
        %vm7125 = vcmp.lt.s32.totalorder %v6935, %v6936
        %v7126 = vsel %vm7125, %v6935, %v6936
        %v7127 = vand.u32 %v7126, 65535
        %v7128 = vshra.s32 %v7126, 16
        %v7129 = vcvt.s32.f32 %v7127
        %v7130 = vcvt.s32.f32 %v7128
        %7131 = vmin.xlane.f32.xlu0 %v7130
        %v7132 = vpop.xlane.xlu0 %7131
        %vm7133 = vcmp.eq.f32.partialorder %v7130, %v7132
        %v7134 = vsel %vm7133, %v7129, inf
        %7135 = vmin.xlane.f32.xlu0 %v7134
        %v7136 = vpop.xlane.xlu0 %7135
        %v7137 = vcvt.f32.s32 %v7136
        %v7138 = vcvt.f32.s32 %v7132
        %v7139 = vshll.u32 %v7138, 16
        %v7140 = vadd.s32 %v7139, %v7137
        %vm7141 = vcmp.lt.s32.totalorder %v6937, %v6938
        %v7142 = vsel %vm7141, %v6937, %v6938
        %v7143 = vand.u32 %v7142, 65535
        %v7144 = vshra.s32 %v7142, 16
        %v7145 = vcvt.s32.f32 %v7143
        %v7146 = vcvt.s32.f32 %v7144
        %7147 = vmin.xlane.f32.xlu0 %v7146
        %v7148 = vpop.xlane.xlu0 %7147
        %vm7149 = vcmp.eq.f32.partialorder %v7146, %v7148
        %v7150 = vsel %vm7149, %v7145, inf
        %7151 = vmin.xlane.f32.xlu0 %v7150
        %v7152 = vpop.xlane.xlu0 %7151
        %v7153 = vcvt.f32.s32 %v7152
        %v7154 = vcvt.f32.s32 %v7148
        %v7155 = vshll.u32 %v7154, 16
        %v7156 = vadd.s32 %v7155, %v7153
        %vm7157 = vcmp.lt.s32.totalorder %v6939, %v6940
        %v7158 = vsel %vm7157, %v6939, %v6940
        %v7159 = vand.u32 %v7158, 65535
        %v7160 = vshra.s32 %v7158, 16
        %v7161 = vcvt.s32.f32 %v7159
        %v7162 = vcvt.s32.f32 %v7160
        %7163 = vmin.xlane.f32.xlu0 %v7162
        %v7164 = vpop.xlane.xlu0 %7163
        %vm7165 = vcmp.eq.f32.partialorder %v7162, %v7164
        %v7166 = vsel %vm7165, %v7161, inf
        %7167 = vmin.xlane.f32.xlu0 %v7166
        %v7168 = vpop.xlane.xlu0 %7167
        %v7169 = vcvt.f32.s32 %v7168
        %v7170 = vcvt.f32.s32 %v7164
        %v7171 = vshll.u32 %v7170, 16
        %v7172 = vadd.s32 %v7171, %v7169
        %vm7173 = vcmp.lt.s32.totalorder %v6941, %v6942
        %v7174 = vsel %vm7173, %v6941, %v6942
        %v7175 = vand.u32 %v7174, 65535
        %v7176 = vshra.s32 %v7174, 16
        %v7177 = vcvt.s32.f32 %v7175
        %v7178 = vcvt.s32.f32 %v7176
        %7179 = vmin.xlane.f32.xlu0 %v7178
        %v7180 = vpop.xlane.xlu0 %7179
        %vm7181 = vcmp.eq.f32.partialorder %v7178, %v7180
        %v7182 = vsel %vm7181, %v7177, inf
        %7183 = vmin.xlane.f32.xlu0 %v7182
        %v7184 = vpop.xlane.xlu0 %7183
        %v7185 = vcvt.f32.s32 %v7184
        %v7186 = vcvt.f32.s32 %v7180
        %v7187 = vshll.u32 %v7186, 16
        %v7188 = vadd.s32 %v7187, %v7185
        %vm7189 = vcmp.lt.s32.totalorder %v6943, %v6944
        %v7190 = vsel %vm7189, %v6943, %v6944
        %v7191 = vand.u32 %v7190, 65535
        %v7192 = vshra.s32 %v7190, 16
        %v7193 = vcvt.s32.f32 %v7191
        %v7194 = vcvt.s32.f32 %v7192
        %7195 = vmin.xlane.f32.xlu0 %v7194
        %v7196 = vpop.xlane.xlu0 %7195
        %vm7197 = vcmp.eq.f32.partialorder %v7194, %v7196
        %v7198 = vsel %vm7197, %v7193, inf
        %7199 = vmin.xlane.f32.xlu0 %v7198
        %v7200 = vpop.xlane.xlu0 %7199
        %v7201 = vcvt.f32.s32 %v7200
        %v7202 = vcvt.f32.s32 %v7196
        %v7203 = vshll.u32 %v7202, 16
        %v7204 = vadd.s32 %v7203, %v7201
        %vm7205 = vcmp.lt.s32.totalorder %v6945, %v6946
        %v7206 = vsel %vm7205, %v6945, %v6946
        %v7207 = vand.u32 %v7206, 65535
        %v7208 = vshra.s32 %v7206, 16
        %v7209 = vcvt.s32.f32 %v7207
        %v7210 = vcvt.s32.f32 %v7208
        %7211 = vmin.xlane.f32.xlu0 %v7210
        %v7212 = vpop.xlane.xlu0 %7211
        %vm7213 = vcmp.eq.f32.partialorder %v7210, %v7212
        %v7214 = vsel %vm7213, %v7209, inf
        %7215 = vmin.xlane.f32.xlu0 %v7214
        %v7216 = vpop.xlane.xlu0 %7215
        %v7217 = vcvt.f32.s32 %v7216
        %v7218 = vcvt.f32.s32 %v7212
        %v7219 = vshll.u32 %v7218, 16
        %v7220 = vadd.s32 %v7219, %v7217
        %vm7221 = vcmp.lt.s32.totalorder %v6947, %v6948
        %v7222 = vsel %vm7221, %v6947, %v6948
        %v7223 = vand.u32 %v7222, 65535
        %v7224 = vshra.s32 %v7222, 16
        %v7225 = vcvt.s32.f32 %v7223
        %v7226 = vcvt.s32.f32 %v7224
        %7227 = vmin.xlane.f32.xlu0 %v7226
        %v7228 = vpop.xlane.xlu0 %7227
        %vm7229 = vcmp.eq.f32.partialorder %v7226, %v7228
        %v7230 = vsel %vm7229, %v7225, inf
        %7231 = vmin.xlane.f32.xlu0 %v7230
        %v7232 = vpop.xlane.xlu0 %7231
        %v7233 = vcvt.f32.s32 %v7232
        %v7234 = vcvt.f32.s32 %v7228
        %v7235 = vshll.u32 %v7234, 16
        %v7236 = vadd.s32 %v7235, %v7233
        %vm7237 = vcmp.lt.s32.totalorder %v6949, %v6950
        %v7238 = vsel %vm7237, %v6949, %v6950
        %v7239 = vand.u32 %v7238, 65535
        %v7240 = vshra.s32 %v7238, 16
        %v7241 = vcvt.s32.f32 %v7239
        %v7242 = vcvt.s32.f32 %v7240
        %7243 = vmin.xlane.f32.xlu0 %v7242
        %v7244 = vpop.xlane.xlu0 %7243
        %vm7245 = vcmp.eq.f32.partialorder %v7242, %v7244
        %v7246 = vsel %vm7245, %v7241, inf
        %7247 = vmin.xlane.f32.xlu0 %v7246
        %v7248 = vpop.xlane.xlu0 %7247
        %v7249 = vcvt.f32.s32 %v7248
        %v7250 = vcvt.f32.s32 %v7244
        %v7251 = vshll.u32 %v7250, 16
        %v7252 = vadd.s32 %v7251, %v7249
        %vm7253 = vcmp.lt.s32.totalorder %v6951, %v6952
        %v7254 = vsel %vm7253, %v6951, %v6952
        %v7255 = vand.u32 %v7254, 65535
        %v7256 = vshra.s32 %v7254, 16
        %v7257 = vcvt.s32.f32 %v7255
        %v7258 = vcvt.s32.f32 %v7256
        %7259 = vmin.xlane.f32.xlu0 %v7258
        %v7260 = vpop.xlane.xlu0 %7259
        %vm7261 = vcmp.eq.f32.partialorder %v7258, %v7260
        %v7262 = vsel %vm7261, %v7257, inf
        %7263 = vmin.xlane.f32.xlu0 %v7262
        %v7264 = vpop.xlane.xlu0 %7263
        %v7265 = vcvt.f32.s32 %v7264
        %v7266 = vcvt.f32.s32 %v7260
        %v7267 = vshll.u32 %v7266, 16
        %v7268 = vadd.s32 %v7267, %v7265
        %vm7269 = vcmp.lt.s32.totalorder %v6953, %v6954
        %v7270 = vsel %vm7269, %v6953, %v6954
        %v7271 = vand.u32 %v7270, 65535
        %v7272 = vshra.s32 %v7270, 16
        %v7273 = vcvt.s32.f32 %v7271
        %v7274 = vcvt.s32.f32 %v7272
        %7275 = vmin.xlane.f32.xlu0 %v7274
        %v7276 = vpop.xlane.xlu0 %7275
        %vm7277 = vcmp.eq.f32.partialorder %v7274, %v7276
        %v7278 = vsel %vm7277, %v7273, inf
        %7279 = vmin.xlane.f32.xlu0 %v7278
        %v7280 = vpop.xlane.xlu0 %7279
        %v7281 = vcvt.f32.s32 %v7280
        %v7282 = vcvt.f32.s32 %v7276
        %v7283 = vshll.u32 %v7282, 16
        %v7284 = vadd.s32 %v7283, %v7281
        %vm7285 = vcmp.lt.s32.totalorder %v6955, %v6956
        %v7286 = vsel %vm7285, %v6955, %v6956
        %v7287 = vand.u32 %v7286, 65535
        %v7288 = vshra.s32 %v7286, 16
        %v7289 = vcvt.s32.f32 %v7287
        %v7290 = vcvt.s32.f32 %v7288
        %7291 = vmin.xlane.f32.xlu0 %v7290
        %v7292 = vpop.xlane.xlu0 %7291
        %vm7293 = vcmp.eq.f32.partialorder %v7290, %v7292
        %v7294 = vsel %vm7293, %v7289, inf
        %7295 = vmin.xlane.f32.xlu0 %v7294
        %v7296 = vpop.xlane.xlu0 %7295
        %v7297 = vcvt.f32.s32 %v7296
        %v7298 = vcvt.f32.s32 %v7292
        %v7299 = vshll.u32 %v7298, 16
        %v7300 = vadd.s32 %v7299, %v7297
        %vm7301 = vcmp.lt.s32.totalorder %v6957, %v6958
        %v7302 = vsel %vm7301, %v6957, %v6958
        %v7303 = vand.u32 %v7302, 65535
        %v7304 = vshra.s32 %v7302, 16
        %v7305 = vcvt.s32.f32 %v7303
        %v7306 = vcvt.s32.f32 %v7304
        %7307 = vmin.xlane.f32.xlu0 %v7306
        %v7308 = vpop.xlane.xlu0 %7307
        %vm7309 = vcmp.eq.f32.partialorder %v7306, %v7308
        %v7310 = vsel %vm7309, %v7305, inf
        %7311 = vmin.xlane.f32.xlu0 %v7310
        %v7312 = vpop.xlane.xlu0 %7311
        %v7313 = vcvt.f32.s32 %v7312
        %v7314 = vcvt.f32.s32 %v7308
        %v7315 = vshll.u32 %v7314, 16
        %v7316 = vadd.s32 %v7315, %v7313
        %vm7317 = vcmp.lt.s32.totalorder %v6959, %v6960
        %v7318 = vsel %vm7317, %v6959, %v6960
        %v7319 = vand.u32 %v7318, 65535
        %v7320 = vshra.s32 %v7318, 16
        %v7321 = vcvt.s32.f32 %v7319
        %v7322 = vcvt.s32.f32 %v7320
        %7323 = vmin.xlane.f32.xlu0 %v7322
        %v7324 = vpop.xlane.xlu0 %7323
        %vm7325 = vcmp.eq.f32.partialorder %v7322, %v7324
        %v7326 = vsel %vm7325, %v7321, inf
        %7327 = vmin.xlane.f32.xlu0 %v7326
        %v7328 = vpop.xlane.xlu0 %7327
        %v7329 = vcvt.f32.s32 %v7328
        %v7330 = vcvt.f32.s32 %v7324
        %v7331 = vshll.u32 %v7330, 16
        %v7332 = vadd.s32 %v7331, %v7329
        %vm7333 = vcmp.lt.s32.totalorder %v6961, %v6962
        %v7334 = vsel %vm7333, %v6961, %v6962
        %v7335 = vand.u32 %v7334, 65535
        %v7336 = vshra.s32 %v7334, 16
        %v7337 = vcvt.s32.f32 %v7335
        %v7338 = vcvt.s32.f32 %v7336
        %7339 = vmin.xlane.f32.xlu0 %v7338
        %v7340 = vpop.xlane.xlu0 %7339
        %vm7341 = vcmp.eq.f32.partialorder %v7338, %v7340
        %v7342 = vsel %vm7341, %v7337, inf
        %7343 = vmin.xlane.f32.xlu0 %v7342
        %v7344 = vpop.xlane.xlu0 %7343
        %v7345 = vcvt.f32.s32 %v7344
        %v7346 = vcvt.f32.s32 %v7340
        %v7347 = vshll.u32 %v7346, 16
        %v7348 = vadd.s32 %v7347, %v7345
        %vm7349 = vcmp.lt.s32.totalorder %v6963, %v6964
        %v7350 = vsel %vm7349, %v6963, %v6964
        %v7351 = vand.u32 %v7350, 65535
        %v7352 = vshra.s32 %v7350, 16
        %v7353 = vcvt.s32.f32 %v7351
        %v7354 = vcvt.s32.f32 %v7352
        %7355 = vmin.xlane.f32.xlu0 %v7354
        %v7356 = vpop.xlane.xlu0 %7355
        %vm7357 = vcmp.eq.f32.partialorder %v7354, %v7356
        %v7358 = vsel %vm7357, %v7353, inf
        %7359 = vmin.xlane.f32.xlu0 %v7358
        %v7360 = vpop.xlane.xlu0 %7359
        %v7361 = vcvt.f32.s32 %v7360
        %v7362 = vcvt.f32.s32 %v7356
        %v7363 = vshll.u32 %v7362, 16
        %v7364 = vadd.s32 %v7363, %v7361
        %vm7365 = vcmp.lt.s32.totalorder %v6965, %v6966
        %v7366 = vsel %vm7365, %v6965, %v6966
        %v7367 = vand.u32 %v7366, 65535
        %v7368 = vshra.s32 %v7366, 16
        %v7369 = vcvt.s32.f32 %v7367
        %v7370 = vcvt.s32.f32 %v7368
        %7371 = vmin.xlane.f32.xlu0 %v7370
        %v7372 = vpop.xlane.xlu0 %7371
        %vm7373 = vcmp.eq.f32.partialorder %v7370, %v7372
        %v7374 = vsel %vm7373, %v7369, inf
        %7375 = vmin.xlane.f32.xlu0 %v7374
        %v7376 = vpop.xlane.xlu0 %7375
        %v7377 = vcvt.f32.s32 %v7376
        %v7378 = vcvt.f32.s32 %v7372
        %v7379 = vshll.u32 %v7378, 16
        %v7380 = vadd.s32 %v7379, %v7377
        %vm7381 = vcmp.lt.s32.totalorder %v6967, %v6968
        %v7382 = vsel %vm7381, %v6967, %v6968
        %v7383 = vand.u32 %v7382, 65535
        %v7384 = vshra.s32 %v7382, 16
        %v7385 = vcvt.s32.f32 %v7383
        %v7386 = vcvt.s32.f32 %v7384
        %7387 = vmin.xlane.f32.xlu0 %v7386
        %v7388 = vpop.xlane.xlu0 %7387
        %vm7389 = vcmp.eq.f32.partialorder %v7386, %v7388
        %v7390 = vsel %vm7389, %v7385, inf
        %7391 = vmin.xlane.f32.xlu0 %v7390
        %v7392 = vpop.xlane.xlu0 %7391
        %v7393 = vcvt.f32.s32 %v7392
        %v7394 = vcvt.f32.s32 %v7388
        %v7395 = vshll.u32 %v7394, 16
        %v7396 = vadd.s32 %v7395, %v7393
        %vm7397 = vcmp.lt.s32.totalorder %v6969, %v6970
        %v7398 = vsel %vm7397, %v6969, %v6970
        %v7399 = vand.u32 %v7398, 65535
        %v7400 = vshra.s32 %v7398, 16
        %v7401 = vcvt.s32.f32 %v7399
        %v7402 = vcvt.s32.f32 %v7400
        %7403 = vmin.xlane.f32.xlu0 %v7402
        %v7404 = vpop.xlane.xlu0 %7403
        %vm7405 = vcmp.eq.f32.partialorder %v7402, %v7404
        %v7406 = vsel %vm7405, %v7401, inf
        %7407 = vmin.xlane.f32.xlu0 %v7406
        %v7408 = vpop.xlane.xlu0 %7407
        %v7409 = vcvt.f32.s32 %v7408
        %v7410 = vcvt.f32.s32 %v7404
        %v7411 = vshll.u32 %v7410, 16
        %v7412 = vadd.s32 %v7411, %v7409
        %vm7413 = vcmp.lt.s32.totalorder %v6971, %v6972
        %v7414 = vsel %vm7413, %v6971, %v6972
        %v7415 = vand.u32 %v7414, 65535
        %v7416 = vshra.s32 %v7414, 16
        %v7417 = vcvt.s32.f32 %v7415
        %v7418 = vcvt.s32.f32 %v7416
        %7419 = vmin.xlane.f32.xlu0 %v7418
        %v7420 = vpop.xlane.xlu0 %7419
        %vm7421 = vcmp.eq.f32.partialorder %v7418, %v7420
        %v7422 = vsel %vm7421, %v7417, inf
        %7423 = vmin.xlane.f32.xlu0 %v7422
        %v7424 = vpop.xlane.xlu0 %7423
        %v7425 = vcvt.f32.s32 %v7424
        %v7426 = vcvt.f32.s32 %v7420
        %v7427 = vshll.u32 %v7426, 16
        %v7428 = vadd.s32 %v7427, %v7425
        %vm7429 = vcmp.lt.s32.totalorder %v6973, %v6974
        %v7430 = vsel %vm7429, %v6973, %v6974
        %v7431 = vand.u32 %v7430, 65535
        %v7432 = vshra.s32 %v7430, 16
        %v7433 = vcvt.s32.f32 %v7431
        %v7434 = vcvt.s32.f32 %v7432
        %7435 = vmin.xlane.f32.xlu0 %v7434
        %v7436 = vpop.xlane.xlu0 %7435
        %vm7437 = vcmp.eq.f32.partialorder %v7434, %v7436
        %v7438 = vsel %vm7437, %v7433, inf
        %7439 = vmin.xlane.f32.xlu0 %v7438
        %v7440 = vpop.xlane.xlu0 %7439
        %v7441 = vcvt.f32.s32 %v7440
        %v7442 = vcvt.f32.s32 %v7436
        %v7443 = vshll.u32 %v7442, 16
        %v7444 = vadd.s32 %v7443, %v7441
        %vm7445 = vcmp.lt.s32.totalorder %v6975, %v6976
        %v7446 = vsel %vm7445, %v6975, %v6976
        %v7447 = vand.u32 %v7446, 65535
        %v7448 = vshra.s32 %v7446, 16
        %v7449 = vcvt.s32.f32 %v7447
        %v7450 = vcvt.s32.f32 %v7448
        %7451 = vmin.xlane.f32.xlu0 %v7450
        %v7452 = vpop.xlane.xlu0 %7451
        %vm7453 = vcmp.eq.f32.partialorder %v7450, %v7452
        %v7454 = vsel %vm7453, %v7449, inf
        %7455 = vmin.xlane.f32.xlu0 %v7454
        %v7456 = vpop.xlane.xlu0 %7455
        %v7457 = vcvt.f32.s32 %v7456
        %v7458 = vcvt.f32.s32 %v7452
        %v7459 = vshll.u32 %v7458, 16
        %v7460 = vadd.s32 %v7459, %v7457
        %vm7461 = vcmp.lt.s32.totalorder %v6977, %v6978
        %v7462 = vsel %vm7461, %v6977, %v6978
        %v7463 = vand.u32 %v7462, 65535
        %v7464 = vshra.s32 %v7462, 16
        %v7465 = vcvt.s32.f32 %v7463
        %v7466 = vcvt.s32.f32 %v7464
        %7467 = vmin.xlane.f32.xlu0 %v7466
        %v7468 = vpop.xlane.xlu0 %7467
        %vm7469 = vcmp.eq.f32.partialorder %v7466, %v7468
        %v7470 = vsel %vm7469, %v7465, inf
        %7471 = vmin.xlane.f32.xlu0 %v7470
        %v7472 = vpop.xlane.xlu0 %7471
        %v7473 = vcvt.f32.s32 %v7472
        %v7474 = vcvt.f32.s32 %v7468
        %v7475 = vshll.u32 %v7474, 16
        %v7476 = vadd.s32 %v7475, %v7473
        %vm7477 = vcmp.lt.s32.totalorder %v6979, %v6980
        %v7478 = vsel %vm7477, %v6979, %v6980
        %v7479 = vand.u32 %v7478, 65535
        %v7480 = vshra.s32 %v7478, 16
        %v7481 = vcvt.s32.f32 %v7479
        %v7482 = vcvt.s32.f32 %v7480
        %7483 = vmin.xlane.f32.xlu0 %v7482
        %v7484 = vpop.xlane.xlu0 %7483
        %vm7485 = vcmp.eq.f32.partialorder %v7482, %v7484
        %v7486 = vsel %vm7485, %v7481, inf
        %7487 = vmin.xlane.f32.xlu0 %v7486
        %v7488 = vpop.xlane.xlu0 %7487
        %v7489 = vcvt.f32.s32 %v7488
        %v7490 = vcvt.f32.s32 %v7484
        %v7491 = vshll.u32 %v7490, 16
        %v7492 = vadd.s32 %v7491, %v7489
        %vm7493 = vcmp.eq.s32.totalorder %v707, %v6996
        %vm7494 = vcmp.eq.s32.totalorder %v708, %v6996
        %vm7495 = vcmp.eq.s32.totalorder %v707, %v7012
        %vm7496 = vcmp.eq.s32.totalorder %v708, %v7012
        %vm7497 = vcmp.eq.s32.totalorder %v707, %v7028
        %vm7498 = vcmp.eq.s32.totalorder %v708, %v7028
        %vm7499 = vcmp.eq.s32.totalorder %v707, %v7044
        %vm7500 = vcmp.eq.s32.totalorder %v708, %v7044
        %vm7501 = vcmp.eq.s32.totalorder %v707, %v7060
        %vm7502 = vcmp.eq.s32.totalorder %v708, %v7060
        %vm7503 = vcmp.eq.s32.totalorder %v707, %v7076
        %vm7504 = vcmp.eq.s32.totalorder %v708, %v7076
        %vm7505 = vcmp.eq.s32.totalorder %v707, %v7092
        %vm7506 = vcmp.eq.s32.totalorder %v708, %v7092
        %vm7507 = vcmp.eq.s32.totalorder %v707, %v7108
        %vm7508 = vcmp.eq.s32.totalorder %v708, %v7108
        %vm7509 = vcmp.eq.s32.totalorder %v707, %v7124
        %vm7510 = vcmp.eq.s32.totalorder %v708, %v7124
        %vm7511 = vcmp.eq.s32.totalorder %v707, %v7140
        %vm7512 = vcmp.eq.s32.totalorder %v708, %v7140
        %vm7513 = vcmp.eq.s32.totalorder %v707, %v7156
        %vm7514 = vcmp.eq.s32.totalorder %v708, %v7156
        %vm7515 = vcmp.eq.s32.totalorder %v707, %v7172
        %vm7516 = vcmp.eq.s32.totalorder %v708, %v7172
        %vm7517 = vcmp.eq.s32.totalorder %v707, %v7188
        %vm7518 = vcmp.eq.s32.totalorder %v708, %v7188
        %vm7519 = vcmp.eq.s32.totalorder %v707, %v7204
        %vm7520 = vcmp.eq.s32.totalorder %v708, %v7204
        %vm7521 = vcmp.eq.s32.totalorder %v707, %v7220
        %vm7522 = vcmp.eq.s32.totalorder %v708, %v7220
        %vm7523 = vcmp.eq.s32.totalorder %v707, %v7236
        %vm7524 = vcmp.eq.s32.totalorder %v708, %v7236
        %vm7525 = vcmp.eq.s32.totalorder %v707, %v7252
        %vm7526 = vcmp.eq.s32.totalorder %v708, %v7252
        %vm7527 = vcmp.eq.s32.totalorder %v707, %v7268
        %vm7528 = vcmp.eq.s32.totalorder %v708, %v7268
        %vm7529 = vcmp.eq.s32.totalorder %v707, %v7284
        %vm7530 = vcmp.eq.s32.totalorder %v708, %v7284
        %vm7531 = vcmp.eq.s32.totalorder %v707, %v7300
        %vm7532 = vcmp.eq.s32.totalorder %v708, %v7300
        %vm7533 = vcmp.eq.s32.totalorder %v707, %v7316
        %vm7534 = vcmp.eq.s32.totalorder %v708, %v7316
        %vm7535 = vcmp.eq.s32.totalorder %v707, %v7332
        %vm7536 = vcmp.eq.s32.totalorder %v708, %v7332
        %vm7537 = vcmp.eq.s32.totalorder %v707, %v7348
        %vm7538 = vcmp.eq.s32.totalorder %v708, %v7348
        %vm7539 = vcmp.eq.s32.totalorder %v707, %v7364
        %vm7540 = vcmp.eq.s32.totalorder %v708, %v7364
        %vm7541 = vcmp.eq.s32.totalorder %v707, %v7380
        %vm7542 = vcmp.eq.s32.totalorder %v708, %v7380
        %vm7543 = vcmp.eq.s32.totalorder %v707, %v7396
        %vm7544 = vcmp.eq.s32.totalorder %v708, %v7396
        %vm7545 = vcmp.eq.s32.totalorder %v707, %v7412
        %vm7546 = vcmp.eq.s32.totalorder %v708, %v7412
        %vm7547 = vcmp.eq.s32.totalorder %v707, %v7428
        %vm7548 = vcmp.eq.s32.totalorder %v708, %v7428
        %vm7549 = vcmp.eq.s32.totalorder %v707, %v7444
        %vm7550 = vcmp.eq.s32.totalorder %v708, %v7444
        %vm7551 = vcmp.eq.s32.totalorder %v707, %v7460
        %vm7552 = vcmp.eq.s32.totalorder %v708, %v7460
        %vm7553 = vcmp.eq.s32.totalorder %v707, %v7476
        %vm7554 = vcmp.eq.s32.totalorder %v708, %v7476
        %vm7555 = vcmp.eq.s32.totalorder %v707, %v7492
        %vm7556 = vcmp.eq.s32.totalorder %v708, %v7492
        %v7557 = vsub.f32 %v6759, %v711
        %v7558 = vsub.f32 %v6762, %v714
        %v7559 = vsub.f32 %v6765, %v717
        %v7560 = vsub.f32 %v6768, %v720
        %v7561 = vsub.f32 %v6771, %v723
        %v7562 = vsub.f32 %v6774, %v726
        %v7563 = vsub.f32 %v6777, %v729
        %v7564 = vsub.f32 %v6780, %v732
        %v7565 = vsub.f32 %v6783, %v735
        %v7566 = vsub.f32 %v6786, %v738
        %v7567 = vsub.f32 %v6789, %v741
        %v7568 = vsub.f32 %v6792, %v744
        %v7569 = vsub.f32 %v6795, %v747
        %v7570 = vsub.f32 %v6798, %v750
        %v7571 = vsub.f32 %v6801, %v753
        %v7572 = vsub.f32 %v6804, %v756
        %v7573 = vsub.f32 %v6807, %v759
        %v7574 = vsub.f32 %v6810, %v762
        %v7575 = vsub.f32 %v6813, %v765
        %v7576 = vsub.f32 %v6816, %v768
        %v7577 = vsub.f32 %v6819, %v771
        %v7578 = vsub.f32 %v6822, %v774
        %v7579 = vsub.f32 %v6825, %v777
        %v7580 = vsub.f32 %v6828, %v780
        %v7581 = vsub.f32 %v6831, %v783
        %v7582 = vsub.f32 %v6834, %v786
        %v7583 = vsub.f32 %v6837, %v789
        %v7584 = vsub.f32 %v6840, %v792
        %v7585 = vsub.f32 %v6843, %v795
        %v7586 = vsub.f32 %v6846, %v798
        %v7587 = vsub.f32 %v6849, %v801
        %v7588 = vsub.f32 %v6852, %v804
        %v7589 = vmul.f32 %v7557, 1.442695
        %v7590 = vpow.pop %v7589
        %v7591 = vmul.f32 %v7558, 1.442695
        %v7592 = vpow.pop %v7591
        %v7593 = vmul.f32 %v7559, 1.442695
        %v7594 = vpow.pop %v7593
        %v7595 = vmul.f32 %v7560, 1.442695
        %v7596 = vpow.pop %v7595
        %v7597 = vmul.f32 %v7561, 1.442695
        %v7598 = vpow.pop %v7597
        %v7599 = vmul.f32 %v7562, 1.442695
        %v7600 = vpow.pop %v7599
        %v7601 = vmul.f32 %v7563, 1.442695
        %v7602 = vpow.pop %v7601
        %v7603 = vmul.f32 %v7564, 1.442695
        %v7604 = vpow.pop %v7603
        %v7605 = vmul.f32 %v7565, 1.442695
        %v7606 = vpow.pop %v7605
        %v7607 = vmul.f32 %v7566, 1.442695
        %v7608 = vpow.pop %v7607
        %v7609 = vmul.f32 %v7567, 1.442695
        %v7610 = vpow.pop %v7609
        %v7611 = vmul.f32 %v7568, 1.442695
        %v7612 = vpow.pop %v7611
        %v7613 = vmul.f32 %v7569, 1.442695
        %v7614 = vpow.pop %v7613
        %v7615 = vmul.f32 %v7570, 1.442695
        %v7616 = vpow.pop %v7615
        %v7617 = vmul.f32 %v7571, 1.442695
        %v7618 = vpow.pop %v7617
        %v7619 = vmul.f32 %v7572, 1.442695
        %v7620 = vpow.pop %v7619
        %v7621 = vmul.f32 %v7573, 1.442695
        %v7622 = vpow.pop %v7621
        %v7623 = vmul.f32 %v7574, 1.442695
        %v7624 = vpow.pop %v7623
        %v7625 = vmul.f32 %v7575, 1.442695
        %v7626 = vpow.pop %v7625
        %v7627 = vmul.f32 %v7576, 1.442695
        %v7628 = vpow.pop %v7627
        %v7629 = vmul.f32 %v7577, 1.442695
        %v7630 = vpow.pop %v7629
        %v7631 = vmul.f32 %v7578, 1.442695
        %v7632 = vpow.pop %v7631
        %v7633 = vmul.f32 %v7579, 1.442695
        %v7634 = vpow.pop %v7633
        %v7635 = vmul.f32 %v7580, 1.442695
        %v7636 = vpow.pop %v7635
        %v7637 = vmul.f32 %v7581, 1.442695
        %v7638 = vpow.pop %v7637
        %v7639 = vmul.f32 %v7582, 1.442695
        %v7640 = vpow.pop %v7639
        %v7641 = vmul.f32 %v7583, 1.442695
        %v7642 = vpow.pop %v7641
        %v7643 = vmul.f32 %v7584, 1.442695
        %v7644 = vpow.pop %v7643
        %v7645 = vmul.f32 %v7585, 1.442695
        %v7646 = vpow.pop %v7645
        %v7647 = vmul.f32 %v7586, 1.442695
        %v7648 = vpow.pop %v7647
        %v7649 = vmul.f32 %v7587, 1.442695
        %v7650 = vpow.pop %v7649
        %v7651 = vmul.f32 %v7588, 1.442695
        %v7652 = vpow.pop %v7651
        %v7653 = vsel %vm7493, %v7590, %v6629
        %v7654 = vsel %vm7494, %v7590, %v6630
        %v7655 = vsel %vm7495, %v7592, %v6631
        %v7656 = vsel %vm7496, %v7592, %v6632
        %v7657 = vsel %vm7497, %v7594, %v6633
        %v7658 = vsel %vm7498, %v7594, %v6634
        %v7659 = vsel %vm7499, %v7596, %v6635
        %v7660 = vsel %vm7500, %v7596, %v6636
        %v7661 = vsel %vm7501, %v7598, %v6637
        %v7662 = vsel %vm7502, %v7598, %v6638
        %v7663 = vsel %vm7503, %v7600, %v6639
        %v7664 = vsel %vm7504, %v7600, %v6640
        %v7665 = vsel %vm7505, %v7602, %v6641
        %v7666 = vsel %vm7506, %v7602, %v6642
        %v7667 = vsel %vm7507, %v7604, %v6643
        %v7668 = vsel %vm7508, %v7604, %v6644
        %v7669 = vsel %vm7509, %v7606, %v6645
        %v7670 = vsel %vm7510, %v7606, %v6646
        %v7671 = vsel %vm7511, %v7608, %v6647
        %v7672 = vsel %vm7512, %v7608, %v6648
        %v7673 = vsel %vm7513, %v7610, %v6649
        %v7674 = vsel %vm7514, %v7610, %v6650
        %v7675 = vsel %vm7515, %v7612, %v6651
        %v7676 = vsel %vm7516, %v7612, %v6652
        %v7677 = vsel %vm7517, %v7614, %v6653
        %v7678 = vsel %vm7518, %v7614, %v6654
        %v7679 = vsel %vm7519, %v7616, %v6655
        %v7680 = vsel %vm7520, %v7616, %v6656
        %v7681 = vsel %vm7521, %v7618, %v6657
        %v7682 = vsel %vm7522, %v7618, %v6658
        %v7683 = vsel %vm7523, %v7620, %v6659
        %v7684 = vsel %vm7524, %v7620, %v6660
        %v7685 = vsel %vm7525, %v7622, %v6661
        %v7686 = vsel %vm7526, %v7622, %v6662
        %v7687 = vsel %vm7527, %v7624, %v6663
        %v7688 = vsel %vm7528, %v7624, %v6664
        %v7689 = vsel %vm7529, %v7626, %v6665
        %v7690 = vsel %vm7530, %v7626, %v6666
        %v7691 = vsel %vm7531, %v7628, %v6667
        %v7692 = vsel %vm7532, %v7628, %v6668
        %v7693 = vsel %vm7533, %v7630, %v6669
        %v7694 = vsel %vm7534, %v7630, %v6670
        %v7695 = vsel %vm7535, %v7632, %v6671
        %v7696 = vsel %vm7536, %v7632, %v6672
        %v7697 = vsel %vm7537, %v7634, %v6673
        %v7698 = vsel %vm7538, %v7634, %v6674
        %v7699 = vsel %vm7539, %v7636, %v6675
        %v7700 = vsel %vm7540, %v7636, %v6676
        %v7701 = vsel %vm7541, %v7638, %v6677
        %v7702 = vsel %vm7542, %v7638, %v6678
        %v7703 = vsel %vm7543, %v7640, %v6679
        %v7704 = vsel %vm7544, %v7640, %v6680
        %v7705 = vsel %vm7545, %v7642, %v6681
        %v7706 = vsel %vm7546, %v7642, %v6682
        %v7707 = vsel %vm7547, %v7644, %v6683
        %v7708 = vsel %vm7548, %v7644, %v6684
        %v7709 = vsel %vm7549, %v7646, %v6685
        %v7710 = vsel %vm7550, %v7646, %v6686
        %v7711 = vsel %vm7551, %v7648, %v6687
        %v7712 = vsel %vm7552, %v7648, %v6688
        %v7713 = vsel %vm7553, %v7650, %v6689
        %v7714 = vsel %vm7554, %v7650, %v6690
        %v7715 = vsel %vm7555, %v7652, %v6691
        %v7716 = vsel %vm7556, %v7652, %v6692
        %v7717 = vsel %vm7493, -1e+30, %v6693
        %v7718 = vsel %vm7494, -1e+30, %v6694
        %v7719 = vsel %vm7495, -1e+30, %v6695
        %v7720 = vsel %vm7496, -1e+30, %v6696
        %v7721 = vsel %vm7497, -1e+30, %v6697
        %v7722 = vsel %vm7498, -1e+30, %v6698
        %v7723 = vsel %vm7499, -1e+30, %v6699
        %v7724 = vsel %vm7500, -1e+30, %v6700
        %v7725 = vsel %vm7501, -1e+30, %v6701
        %v7726 = vsel %vm7502, -1e+30, %v6702
        %v7727 = vsel %vm7503, -1e+30, %v6703
        %v7728 = vsel %vm7504, -1e+30, %v6704
        %v7729 = vsel %vm7505, -1e+30, %v6705
        %v7730 = vsel %vm7506, -1e+30, %v6706
        %v7731 = vsel %vm7507, -1e+30, %v6707
        %v7732 = vsel %vm7508, -1e+30, %v6708
        %v7733 = vsel %vm7509, -1e+30, %v6709
        %v7734 = vsel %vm7510, -1e+30, %v6710
        %v7735 = vsel %vm7511, -1e+30, %v6711
        %v7736 = vsel %vm7512, -1e+30, %v6712
        %v7737 = vsel %vm7513, -1e+30, %v6713
        %v7738 = vsel %vm7514, -1e+30, %v6714
        %v7739 = vsel %vm7515, -1e+30, %v6715
        %v7740 = vsel %vm7516, -1e+30, %v6716
        %v7741 = vsel %vm7517, -1e+30, %v6717
        %v7742 = vsel %vm7518, -1e+30, %v6718
        %v7743 = vsel %vm7519, -1e+30, %v6719
        %v7744 = vsel %vm7520, -1e+30, %v6720
        %v7745 = vsel %vm7521, -1e+30, %v6721
        %v7746 = vsel %vm7522, -1e+30, %v6722
        %v7747 = vsel %vm7523, -1e+30, %v6723
        %v7748 = vsel %vm7524, -1e+30, %v6724
        %v7749 = vsel %vm7525, -1e+30, %v6725
        %v7750 = vsel %vm7526, -1e+30, %v6726
        %v7751 = vsel %vm7527, -1e+30, %v6727
        %v7752 = vsel %vm7528, -1e+30, %v6728
        %v7753 = vsel %vm7529, -1e+30, %v6729
        %v7754 = vsel %vm7530, -1e+30, %v6730
        %v7755 = vsel %vm7531, -1e+30, %v6731
        %v7756 = vsel %vm7532, -1e+30, %v6732
        %v7757 = vsel %vm7533, -1e+30, %v6733
        %v7758 = vsel %vm7534, -1e+30, %v6734
        %v7759 = vsel %vm7535, -1e+30, %v6735
        %v7760 = vsel %vm7536, -1e+30, %v6736
        %v7761 = vsel %vm7537, -1e+30, %v6737
        %v7762 = vsel %vm7538, -1e+30, %v6738
        %v7763 = vsel %vm7539, -1e+30, %v6739
        %v7764 = vsel %vm7540, -1e+30, %v6740
        %v7765 = vsel %vm7541, -1e+30, %v6741
        %v7766 = vsel %vm7542, -1e+30, %v6742
        %v7767 = vsel %vm7543, -1e+30, %v6743
        %v7768 = vsel %vm7544, -1e+30, %v6744
        %v7769 = vsel %vm7545, -1e+30, %v6745
        %v7770 = vsel %vm7546, -1e+30, %v6746
        %v7771 = vsel %vm7547, -1e+30, %v6747
        %v7772 = vsel %vm7548, -1e+30, %v6748
        %v7773 = vsel %vm7549, -1e+30, %v6749
        %v7774 = vsel %vm7550, -1e+30, %v6750
        %v7775 = vsel %vm7551, -1e+30, %v6751
        %v7776 = vsel %vm7552, -1e+30, %v6752
        %v7777 = vsel %vm7553, -1e+30, %v6753
        %v7778 = vsel %vm7554, -1e+30, %v6754
        %v7779 = vsel %vm7555, -1e+30, %v6755
        %v7780 = vsel %vm7556, -1e+30, %v6756
        %v7781 = vmax.f32 %v7717, %v7718
        %7782 = vmax.xlane.f32.xlu0 %v7781
        %v7783 = vpop.xlane.xlu0 %7782
        %v7784 = vmax.f32 %v7719, %v7720
        %7785 = vmax.xlane.f32.xlu0 %v7784
        %v7786 = vpop.xlane.xlu0 %7785
        %v7787 = vmax.f32 %v7721, %v7722
        %7788 = vmax.xlane.f32.xlu0 %v7787
        %v7789 = vpop.xlane.xlu0 %7788
        %v7790 = vmax.f32 %v7723, %v7724
        %7791 = vmax.xlane.f32.xlu0 %v7790
        %v7792 = vpop.xlane.xlu0 %7791
        %v7793 = vmax.f32 %v7725, %v7726
        %7794 = vmax.xlane.f32.xlu0 %v7793
        %v7795 = vpop.xlane.xlu0 %7794
        %v7796 = vmax.f32 %v7727, %v7728
        %7797 = vmax.xlane.f32.xlu0 %v7796
        %v7798 = vpop.xlane.xlu0 %7797
        %v7799 = vmax.f32 %v7729, %v7730
        %7800 = vmax.xlane.f32.xlu0 %v7799
        %v7801 = vpop.xlane.xlu0 %7800
        %v7802 = vmax.f32 %v7731, %v7732
        %7803 = vmax.xlane.f32.xlu0 %v7802
        %v7804 = vpop.xlane.xlu0 %7803
        %v7805 = vmax.f32 %v7733, %v7734
        %7806 = vmax.xlane.f32.xlu0 %v7805
        %v7807 = vpop.xlane.xlu0 %7806
        %v7808 = vmax.f32 %v7735, %v7736
        %7809 = vmax.xlane.f32.xlu0 %v7808
        %v7810 = vpop.xlane.xlu0 %7809
        %v7811 = vmax.f32 %v7737, %v7738
        %7812 = vmax.xlane.f32.xlu0 %v7811
        %v7813 = vpop.xlane.xlu0 %7812
        %v7814 = vmax.f32 %v7739, %v7740
        %7815 = vmax.xlane.f32.xlu0 %v7814
        %v7816 = vpop.xlane.xlu0 %7815
        %v7817 = vmax.f32 %v7741, %v7742
        %7818 = vmax.xlane.f32.xlu0 %v7817
        %v7819 = vpop.xlane.xlu0 %7818
        %v7820 = vmax.f32 %v7743, %v7744
        %7821 = vmax.xlane.f32.xlu0 %v7820
        %v7822 = vpop.xlane.xlu0 %7821
        %v7823 = vmax.f32 %v7745, %v7746
        %7824 = vmax.xlane.f32.xlu0 %v7823
        %v7825 = vpop.xlane.xlu0 %7824
        %v7826 = vmax.f32 %v7747, %v7748
        %7827 = vmax.xlane.f32.xlu0 %v7826
        %v7828 = vpop.xlane.xlu0 %7827
        %v7829 = vmax.f32 %v7749, %v7750
        %7830 = vmax.xlane.f32.xlu0 %v7829
        %v7831 = vpop.xlane.xlu0 %7830
        %v7832 = vmax.f32 %v7751, %v7752
        %7833 = vmax.xlane.f32.xlu0 %v7832
        %v7834 = vpop.xlane.xlu0 %7833
        %v7835 = vmax.f32 %v7753, %v7754
        %7836 = vmax.xlane.f32.xlu0 %v7835
        %v7837 = vpop.xlane.xlu0 %7836
        %v7838 = vmax.f32 %v7755, %v7756
        %7839 = vmax.xlane.f32.xlu0 %v7838
        %v7840 = vpop.xlane.xlu0 %7839
        %v7841 = vmax.f32 %v7757, %v7758
        %7842 = vmax.xlane.f32.xlu0 %v7841
        %v7843 = vpop.xlane.xlu0 %7842
        %v7844 = vmax.f32 %v7759, %v7760
        %7845 = vmax.xlane.f32.xlu0 %v7844
        %v7846 = vpop.xlane.xlu0 %7845
        %v7847 = vmax.f32 %v7761, %v7762
        %7848 = vmax.xlane.f32.xlu0 %v7847
        %v7849 = vpop.xlane.xlu0 %7848
        %v7850 = vmax.f32 %v7763, %v7764
        %7851 = vmax.xlane.f32.xlu0 %v7850
        %v7852 = vpop.xlane.xlu0 %7851
        %v7853 = vmax.f32 %v7765, %v7766
        %7854 = vmax.xlane.f32.xlu0 %v7853
        %v7855 = vpop.xlane.xlu0 %7854
        %v7856 = vmax.f32 %v7767, %v7768
        %7857 = vmax.xlane.f32.xlu0 %v7856
        %v7858 = vpop.xlane.xlu0 %7857
        %v7859 = vmax.f32 %v7769, %v7770
        %7860 = vmax.xlane.f32.xlu0 %v7859
        %v7861 = vpop.xlane.xlu0 %7860
        %v7862 = vmax.f32 %v7771, %v7772
        %7863 = vmax.xlane.f32.xlu0 %v7862
        %v7864 = vpop.xlane.xlu0 %7863
        %v7865 = vmax.f32 %v7773, %v7774
        %7866 = vmax.xlane.f32.xlu0 %v7865
        %v7867 = vpop.xlane.xlu0 %7866
        %v7868 = vmax.f32 %v7775, %v7776
        %7869 = vmax.xlane.f32.xlu0 %v7868
        %v7870 = vpop.xlane.xlu0 %7869
        %v7871 = vmax.f32 %v7777, %v7778
        %7872 = vmax.xlane.f32.xlu0 %v7871
        %v7873 = vpop.xlane.xlu0 %7872
        %v7874 = vmax.f32 %v7779, %v7780
        %7875 = vmax.xlane.f32.xlu0 %v7874
        %v7876 = vpop.xlane.xlu0 %7875
        %vm7877 = vcmp.eq.f32.partialorder %v7717, %v7783
        %vm7878 = vcmp.eq.f32.partialorder %v7718, %v7783
        %vm7879 = vcmp.eq.f32.partialorder %v7719, %v7786
        %vm7880 = vcmp.eq.f32.partialorder %v7720, %v7786
        %vm7881 = vcmp.eq.f32.partialorder %v7721, %v7789
        %vm7882 = vcmp.eq.f32.partialorder %v7722, %v7789
        %vm7883 = vcmp.eq.f32.partialorder %v7723, %v7792
        %vm7884 = vcmp.eq.f32.partialorder %v7724, %v7792
        %vm7885 = vcmp.eq.f32.partialorder %v7725, %v7795
        %vm7886 = vcmp.eq.f32.partialorder %v7726, %v7795
        %vm7887 = vcmp.eq.f32.partialorder %v7727, %v7798
        %vm7888 = vcmp.eq.f32.partialorder %v7728, %v7798
        %vm7889 = vcmp.eq.f32.partialorder %v7729, %v7801
        %vm7890 = vcmp.eq.f32.partialorder %v7730, %v7801
        %vm7891 = vcmp.eq.f32.partialorder %v7731, %v7804
        %vm7892 = vcmp.eq.f32.partialorder %v7732, %v7804
        %vm7893 = vcmp.eq.f32.partialorder %v7733, %v7807
        %vm7894 = vcmp.eq.f32.partialorder %v7734, %v7807
        %vm7895 = vcmp.eq.f32.partialorder %v7735, %v7810
        %vm7896 = vcmp.eq.f32.partialorder %v7736, %v7810
        %vm7897 = vcmp.eq.f32.partialorder %v7737, %v7813
        %vm7898 = vcmp.eq.f32.partialorder %v7738, %v7813
        %vm7899 = vcmp.eq.f32.partialorder %v7739, %v7816
        %vm7900 = vcmp.eq.f32.partialorder %v7740, %v7816
        %vm7901 = vcmp.eq.f32.partialorder %v7741, %v7819
        %vm7902 = vcmp.eq.f32.partialorder %v7742, %v7819
        %vm7903 = vcmp.eq.f32.partialorder %v7743, %v7822
        %vm7904 = vcmp.eq.f32.partialorder %v7744, %v7822
        %vm7905 = vcmp.eq.f32.partialorder %v7745, %v7825
        %vm7906 = vcmp.eq.f32.partialorder %v7746, %v7825
        %vm7907 = vcmp.eq.f32.partialorder %v7747, %v7828
        %vm7908 = vcmp.eq.f32.partialorder %v7748, %v7828
        %vm7909 = vcmp.eq.f32.partialorder %v7749, %v7831
        %vm7910 = vcmp.eq.f32.partialorder %v7750, %v7831
        %vm7911 = vcmp.eq.f32.partialorder %v7751, %v7834
        %vm7912 = vcmp.eq.f32.partialorder %v7752, %v7834
        %vm7913 = vcmp.eq.f32.partialorder %v7753, %v7837
        %vm7914 = vcmp.eq.f32.partialorder %v7754, %v7837
        %vm7915 = vcmp.eq.f32.partialorder %v7755, %v7840
        %vm7916 = vcmp.eq.f32.partialorder %v7756, %v7840
        %vm7917 = vcmp.eq.f32.partialorder %v7757, %v7843
        %vm7918 = vcmp.eq.f32.partialorder %v7758, %v7843
        %vm7919 = vcmp.eq.f32.partialorder %v7759, %v7846
        %vm7920 = vcmp.eq.f32.partialorder %v7760, %v7846
        %vm7921 = vcmp.eq.f32.partialorder %v7761, %v7849
        %vm7922 = vcmp.eq.f32.partialorder %v7762, %v7849
        %vm7923 = vcmp.eq.f32.partialorder %v7763, %v7852
        %vm7924 = vcmp.eq.f32.partialorder %v7764, %v7852
        %vm7925 = vcmp.eq.f32.partialorder %v7765, %v7855
        %vm7926 = vcmp.eq.f32.partialorder %v7766, %v7855
        %vm7927 = vcmp.eq.f32.partialorder %v7767, %v7858
        %vm7928 = vcmp.eq.f32.partialorder %v7768, %v7858
        %vm7929 = vcmp.eq.f32.partialorder %v7769, %v7861
        %vm7930 = vcmp.eq.f32.partialorder %v7770, %v7861
        %vm7931 = vcmp.eq.f32.partialorder %v7771, %v7864
        %vm7932 = vcmp.eq.f32.partialorder %v7772, %v7864
        %vm7933 = vcmp.eq.f32.partialorder %v7773, %v7867
        %vm7934 = vcmp.eq.f32.partialorder %v7774, %v7867
        %vm7935 = vcmp.eq.f32.partialorder %v7775, %v7870
        %vm7936 = vcmp.eq.f32.partialorder %v7776, %v7870
        %vm7937 = vcmp.eq.f32.partialorder %v7777, %v7873
        %vm7938 = vcmp.eq.f32.partialorder %v7778, %v7873
        %vm7939 = vcmp.eq.f32.partialorder %v7779, %v7876
        %vm7940 = vcmp.eq.f32.partialorder %v7780, %v7876
        %v7941 = vsel %vm7877, %v707, 256
        %v7942 = vsel %vm7878, %v708, 256
        %v7943 = vsel %vm7879, %v707, 256
        %v7944 = vsel %vm7880, %v708, 256
        %v7945 = vsel %vm7881, %v707, 256
        %v7946 = vsel %vm7882, %v708, 256
        %v7947 = vsel %vm7883, %v707, 256
        %v7948 = vsel %vm7884, %v708, 256
        %v7949 = vsel %vm7885, %v707, 256
        %v7950 = vsel %vm7886, %v708, 256
        %v7951 = vsel %vm7887, %v707, 256
        %v7952 = vsel %vm7888, %v708, 256
        %v7953 = vsel %vm7889, %v707, 256
        %v7954 = vsel %vm7890, %v708, 256
        %v7955 = vsel %vm7891, %v707, 256
        %v7956 = vsel %vm7892, %v708, 256
        %v7957 = vsel %vm7893, %v707, 256
        %v7958 = vsel %vm7894, %v708, 256
        %v7959 = vsel %vm7895, %v707, 256
        %v7960 = vsel %vm7896, %v708, 256
        %v7961 = vsel %vm7897, %v707, 256
        %v7962 = vsel %vm7898, %v708, 256
        %v7963 = vsel %vm7899, %v707, 256
        %v7964 = vsel %vm7900, %v708, 256
        %v7965 = vsel %vm7901, %v707, 256
        %v7966 = vsel %vm7902, %v708, 256
        %v7967 = vsel %vm7903, %v707, 256
        %v7968 = vsel %vm7904, %v708, 256
        %v7969 = vsel %vm7905, %v707, 256
        %v7970 = vsel %vm7906, %v708, 256
        %v7971 = vsel %vm7907, %v707, 256
        %v7972 = vsel %vm7908, %v708, 256
        %v7973 = vsel %vm7909, %v707, 256
        %v7974 = vsel %vm7910, %v708, 256
        %v7975 = vsel %vm7911, %v707, 256
        %v7976 = vsel %vm7912, %v708, 256
        %v7977 = vsel %vm7913, %v707, 256
        %v7978 = vsel %vm7914, %v708, 256
        %v7979 = vsel %vm7915, %v707, 256
        %v7980 = vsel %vm7916, %v708, 256
        %v7981 = vsel %vm7917, %v707, 256
        %v7982 = vsel %vm7918, %v708, 256
        %v7983 = vsel %vm7919, %v707, 256
        %v7984 = vsel %vm7920, %v708, 256
        %v7985 = vsel %vm7921, %v707, 256
        %v7986 = vsel %vm7922, %v708, 256
        %v7987 = vsel %vm7923, %v707, 256
        %v7988 = vsel %vm7924, %v708, 256
        %v7989 = vsel %vm7925, %v707, 256
        %v7990 = vsel %vm7926, %v708, 256
        %v7991 = vsel %vm7927, %v707, 256
        %v7992 = vsel %vm7928, %v708, 256
        %v7993 = vsel %vm7929, %v707, 256
        %v7994 = vsel %vm7930, %v708, 256
        %v7995 = vsel %vm7931, %v707, 256
        %v7996 = vsel %vm7932, %v708, 256
        %v7997 = vsel %vm7933, %v707, 256
        %v7998 = vsel %vm7934, %v708, 256
        %v7999 = vsel %vm7935, %v707, 256
        %v8000 = vsel %vm7936, %v708, 256
        %v8001 = vsel %vm7937, %v707, 256
        %v8002 = vsel %vm7938, %v708, 256
        %v8003 = vsel %vm7939, %v707, 256
        %v8004 = vsel %vm7940, %v708, 256
        %vm8005 = vcmp.lt.s32.totalorder %v7941, %v7942
        %v8006 = vsel %vm8005, %v7941, %v7942
        %v8007 = vand.u32 %v8006, 65535
        %v8008 = vshra.s32 %v8006, 16
        %v8009 = vcvt.s32.f32 %v8007
        %v8010 = vcvt.s32.f32 %v8008
        %8011 = vmin.xlane.f32.xlu0 %v8010
        %v8012 = vpop.xlane.xlu0 %8011
        %vm8013 = vcmp.eq.f32.partialorder %v8010, %v8012
        %v8014 = vsel %vm8013, %v8009, inf
        %8015 = vmin.xlane.f32.xlu0 %v8014
        %v8016 = vpop.xlane.xlu0 %8015
        %v8017 = vcvt.f32.s32 %v8016
        %v8018 = vcvt.f32.s32 %v8012
        %v8019 = vshll.u32 %v8018, 16
        %v8020 = vadd.s32 %v8019, %v8017
        %vm8021 = vcmp.lt.s32.totalorder %v7943, %v7944
        %v8022 = vsel %vm8021, %v7943, %v7944
        %v8023 = vand.u32 %v8022, 65535
        %v8024 = vshra.s32 %v8022, 16
        %v8025 = vcvt.s32.f32 %v8023
        %v8026 = vcvt.s32.f32 %v8024
        %8027 = vmin.xlane.f32.xlu0 %v8026
        %v8028 = vpop.xlane.xlu0 %8027
        %vm8029 = vcmp.eq.f32.partialorder %v8026, %v8028
        %v8030 = vsel %vm8029, %v8025, inf
        %8031 = vmin.xlane.f32.xlu0 %v8030
        %v8032 = vpop.xlane.xlu0 %8031
        %v8033 = vcvt.f32.s32 %v8032
        %v8034 = vcvt.f32.s32 %v8028
        %v8035 = vshll.u32 %v8034, 16
        %v8036 = vadd.s32 %v8035, %v8033
        %vm8037 = vcmp.lt.s32.totalorder %v7945, %v7946
        %v8038 = vsel %vm8037, %v7945, %v7946
        %v8039 = vand.u32 %v8038, 65535
        %v8040 = vshra.s32 %v8038, 16
        %v8041 = vcvt.s32.f32 %v8039
        %v8042 = vcvt.s32.f32 %v8040
        %8043 = vmin.xlane.f32.xlu0 %v8042
        %v8044 = vpop.xlane.xlu0 %8043
        %vm8045 = vcmp.eq.f32.partialorder %v8042, %v8044
        %v8046 = vsel %vm8045, %v8041, inf
        %8047 = vmin.xlane.f32.xlu0 %v8046
        %v8048 = vpop.xlane.xlu0 %8047
        %v8049 = vcvt.f32.s32 %v8048
        %v8050 = vcvt.f32.s32 %v8044
        %v8051 = vshll.u32 %v8050, 16
        %v8052 = vadd.s32 %v8051, %v8049
        %vm8053 = vcmp.lt.s32.totalorder %v7947, %v7948
        %v8054 = vsel %vm8053, %v7947, %v7948
        %v8055 = vand.u32 %v8054, 65535
        %v8056 = vshra.s32 %v8054, 16
        %v8057 = vcvt.s32.f32 %v8055
        %v8058 = vcvt.s32.f32 %v8056
        %8059 = vmin.xlane.f32.xlu0 %v8058
        %v8060 = vpop.xlane.xlu0 %8059
        %vm8061 = vcmp.eq.f32.partialorder %v8058, %v8060
        %v8062 = vsel %vm8061, %v8057, inf
        %8063 = vmin.xlane.f32.xlu0 %v8062
        %v8064 = vpop.xlane.xlu0 %8063
        %v8065 = vcvt.f32.s32 %v8064
        %v8066 = vcvt.f32.s32 %v8060
        %v8067 = vshll.u32 %v8066, 16
        %v8068 = vadd.s32 %v8067, %v8065
        %vm8069 = vcmp.lt.s32.totalorder %v7949, %v7950
        %v8070 = vsel %vm8069, %v7949, %v7950
        %v8071 = vand.u32 %v8070, 65535
        %v8072 = vshra.s32 %v8070, 16
        %v8073 = vcvt.s32.f32 %v8071
        %v8074 = vcvt.s32.f32 %v8072
        %8075 = vmin.xlane.f32.xlu0 %v8074
        %v8076 = vpop.xlane.xlu0 %8075
        %vm8077 = vcmp.eq.f32.partialorder %v8074, %v8076
        %v8078 = vsel %vm8077, %v8073, inf
        %8079 = vmin.xlane.f32.xlu0 %v8078
        %v8080 = vpop.xlane.xlu0 %8079
        %v8081 = vcvt.f32.s32 %v8080
        %v8082 = vcvt.f32.s32 %v8076
        %v8083 = vshll.u32 %v8082, 16
        %v8084 = vadd.s32 %v8083, %v8081
        %vm8085 = vcmp.lt.s32.totalorder %v7951, %v7952
        %v8086 = vsel %vm8085, %v7951, %v7952
        %v8087 = vand.u32 %v8086, 65535
        %v8088 = vshra.s32 %v8086, 16
        %v8089 = vcvt.s32.f32 %v8087
        %v8090 = vcvt.s32.f32 %v8088
        %8091 = vmin.xlane.f32.xlu0 %v8090
        %v8092 = vpop.xlane.xlu0 %8091
        %vm8093 = vcmp.eq.f32.partialorder %v8090, %v8092
        %v8094 = vsel %vm8093, %v8089, inf
        %8095 = vmin.xlane.f32.xlu0 %v8094
        %v8096 = vpop.xlane.xlu0 %8095
        %v8097 = vcvt.f32.s32 %v8096
        %v8098 = vcvt.f32.s32 %v8092
        %v8099 = vshll.u32 %v8098, 16
        %v8100 = vadd.s32 %v8099, %v8097
        %vm8101 = vcmp.lt.s32.totalorder %v7953, %v7954
        %v8102 = vsel %vm8101, %v7953, %v7954
        %v8103 = vand.u32 %v8102, 65535
        %v8104 = vshra.s32 %v8102, 16
        %v8105 = vcvt.s32.f32 %v8103
        %v8106 = vcvt.s32.f32 %v8104
        %8107 = vmin.xlane.f32.xlu0 %v8106
        %v8108 = vpop.xlane.xlu0 %8107
        %vm8109 = vcmp.eq.f32.partialorder %v8106, %v8108
        %v8110 = vsel %vm8109, %v8105, inf
        %8111 = vmin.xlane.f32.xlu0 %v8110
        %v8112 = vpop.xlane.xlu0 %8111
        %v8113 = vcvt.f32.s32 %v8112
        %v8114 = vcvt.f32.s32 %v8108
        %v8115 = vshll.u32 %v8114, 16
        %v8116 = vadd.s32 %v8115, %v8113
        %vm8117 = vcmp.lt.s32.totalorder %v7955, %v7956
        %v8118 = vsel %vm8117, %v7955, %v7956
        %v8119 = vand.u32 %v8118, 65535
        %v8120 = vshra.s32 %v8118, 16
        %v8121 = vcvt.s32.f32 %v8119
        %v8122 = vcvt.s32.f32 %v8120
        %8123 = vmin.xlane.f32.xlu0 %v8122
        %v8124 = vpop.xlane.xlu0 %8123
        %vm8125 = vcmp.eq.f32.partialorder %v8122, %v8124
        %v8126 = vsel %vm8125, %v8121, inf
        %8127 = vmin.xlane.f32.xlu0 %v8126
        %v8128 = vpop.xlane.xlu0 %8127
        %v8129 = vcvt.f32.s32 %v8128
        %v8130 = vcvt.f32.s32 %v8124
        %v8131 = vshll.u32 %v8130, 16
        %v8132 = vadd.s32 %v8131, %v8129
        %vm8133 = vcmp.lt.s32.totalorder %v7957, %v7958
        %v8134 = vsel %vm8133, %v7957, %v7958
        %v8135 = vand.u32 %v8134, 65535
        %v8136 = vshra.s32 %v8134, 16
        %v8137 = vcvt.s32.f32 %v8135
        %v8138 = vcvt.s32.f32 %v8136
        %8139 = vmin.xlane.f32.xlu0 %v8138
        %v8140 = vpop.xlane.xlu0 %8139
        %vm8141 = vcmp.eq.f32.partialorder %v8138, %v8140
        %v8142 = vsel %vm8141, %v8137, inf
        %8143 = vmin.xlane.f32.xlu0 %v8142
        %v8144 = vpop.xlane.xlu0 %8143
        %v8145 = vcvt.f32.s32 %v8144
        %v8146 = vcvt.f32.s32 %v8140
        %v8147 = vshll.u32 %v8146, 16
        %v8148 = vadd.s32 %v8147, %v8145
        %vm8149 = vcmp.lt.s32.totalorder %v7959, %v7960
        %v8150 = vsel %vm8149, %v7959, %v7960
        %v8151 = vand.u32 %v8150, 65535
        %v8152 = vshra.s32 %v8150, 16
        %v8153 = vcvt.s32.f32 %v8151
        %v8154 = vcvt.s32.f32 %v8152
        %8155 = vmin.xlane.f32.xlu0 %v8154
        %v8156 = vpop.xlane.xlu0 %8155
        %vm8157 = vcmp.eq.f32.partialorder %v8154, %v8156
        %v8158 = vsel %vm8157, %v8153, inf
        %8159 = vmin.xlane.f32.xlu0 %v8158
        %v8160 = vpop.xlane.xlu0 %8159
        %v8161 = vcvt.f32.s32 %v8160
        %v8162 = vcvt.f32.s32 %v8156
        %v8163 = vshll.u32 %v8162, 16
        %v8164 = vadd.s32 %v8163, %v8161
        %vm8165 = vcmp.lt.s32.totalorder %v7961, %v7962
        %v8166 = vsel %vm8165, %v7961, %v7962
        %v8167 = vand.u32 %v8166, 65535
        %v8168 = vshra.s32 %v8166, 16
        %v8169 = vcvt.s32.f32 %v8167
        %v8170 = vcvt.s32.f32 %v8168
        %8171 = vmin.xlane.f32.xlu0 %v8170
        %v8172 = vpop.xlane.xlu0 %8171
        %vm8173 = vcmp.eq.f32.partialorder %v8170, %v8172
        %v8174 = vsel %vm8173, %v8169, inf
        %8175 = vmin.xlane.f32.xlu0 %v8174
        %v8176 = vpop.xlane.xlu0 %8175
        %v8177 = vcvt.f32.s32 %v8176
        %v8178 = vcvt.f32.s32 %v8172
        %v8179 = vshll.u32 %v8178, 16
        %v8180 = vadd.s32 %v8179, %v8177
        %vm8181 = vcmp.lt.s32.totalorder %v7963, %v7964
        %v8182 = vsel %vm8181, %v7963, %v7964
        %v8183 = vand.u32 %v8182, 65535
        %v8184 = vshra.s32 %v8182, 16
        %v8185 = vcvt.s32.f32 %v8183
        %v8186 = vcvt.s32.f32 %v8184
        %8187 = vmin.xlane.f32.xlu0 %v8186
        %v8188 = vpop.xlane.xlu0 %8187
        %vm8189 = vcmp.eq.f32.partialorder %v8186, %v8188
        %v8190 = vsel %vm8189, %v8185, inf
        %8191 = vmin.xlane.f32.xlu0 %v8190
        %v8192 = vpop.xlane.xlu0 %8191
        %v8193 = vcvt.f32.s32 %v8192
        %v8194 = vcvt.f32.s32 %v8188
        %v8195 = vshll.u32 %v8194, 16
        %v8196 = vadd.s32 %v8195, %v8193
        %vm8197 = vcmp.lt.s32.totalorder %v7965, %v7966
        %v8198 = vsel %vm8197, %v7965, %v7966
        %v8199 = vand.u32 %v8198, 65535
        %v8200 = vshra.s32 %v8198, 16
        %v8201 = vcvt.s32.f32 %v8199
        %v8202 = vcvt.s32.f32 %v8200
        %8203 = vmin.xlane.f32.xlu0 %v8202
        %v8204 = vpop.xlane.xlu0 %8203
        %vm8205 = vcmp.eq.f32.partialorder %v8202, %v8204
        %v8206 = vsel %vm8205, %v8201, inf
        %8207 = vmin.xlane.f32.xlu0 %v8206
        %v8208 = vpop.xlane.xlu0 %8207
        %v8209 = vcvt.f32.s32 %v8208
        %v8210 = vcvt.f32.s32 %v8204
        %v8211 = vshll.u32 %v8210, 16
        %v8212 = vadd.s32 %v8211, %v8209
        %vm8213 = vcmp.lt.s32.totalorder %v7967, %v7968
        %v8214 = vsel %vm8213, %v7967, %v7968
        %v8215 = vand.u32 %v8214, 65535
        %v8216 = vshra.s32 %v8214, 16
        %v8217 = vcvt.s32.f32 %v8215
        %v8218 = vcvt.s32.f32 %v8216
        %8219 = vmin.xlane.f32.xlu0 %v8218
        %v8220 = vpop.xlane.xlu0 %8219
        %vm8221 = vcmp.eq.f32.partialorder %v8218, %v8220
        %v8222 = vsel %vm8221, %v8217, inf
        %8223 = vmin.xlane.f32.xlu0 %v8222
        %v8224 = vpop.xlane.xlu0 %8223
        %v8225 = vcvt.f32.s32 %v8224
        %v8226 = vcvt.f32.s32 %v8220
        %v8227 = vshll.u32 %v8226, 16
        %v8228 = vadd.s32 %v8227, %v8225
        %vm8229 = vcmp.lt.s32.totalorder %v7969, %v7970
        %v8230 = vsel %vm8229, %v7969, %v7970
        %v8231 = vand.u32 %v8230, 65535
        %v8232 = vshra.s32 %v8230, 16
        %v8233 = vcvt.s32.f32 %v8231
        %v8234 = vcvt.s32.f32 %v8232
        %8235 = vmin.xlane.f32.xlu0 %v8234
        %v8236 = vpop.xlane.xlu0 %8235
        %vm8237 = vcmp.eq.f32.partialorder %v8234, %v8236
        %v8238 = vsel %vm8237, %v8233, inf
        %8239 = vmin.xlane.f32.xlu0 %v8238
        %v8240 = vpop.xlane.xlu0 %8239
        %v8241 = vcvt.f32.s32 %v8240
        %v8242 = vcvt.f32.s32 %v8236
        %v8243 = vshll.u32 %v8242, 16
        %v8244 = vadd.s32 %v8243, %v8241
        %vm8245 = vcmp.lt.s32.totalorder %v7971, %v7972
        %v8246 = vsel %vm8245, %v7971, %v7972
        %v8247 = vand.u32 %v8246, 65535
        %v8248 = vshra.s32 %v8246, 16
        %v8249 = vcvt.s32.f32 %v8247
        %v8250 = vcvt.s32.f32 %v8248
        %8251 = vmin.xlane.f32.xlu0 %v8250
        %v8252 = vpop.xlane.xlu0 %8251
        %vm8253 = vcmp.eq.f32.partialorder %v8250, %v8252
        %v8254 = vsel %vm8253, %v8249, inf
        %8255 = vmin.xlane.f32.xlu0 %v8254
        %v8256 = vpop.xlane.xlu0 %8255
        %v8257 = vcvt.f32.s32 %v8256
        %v8258 = vcvt.f32.s32 %v8252
        %v8259 = vshll.u32 %v8258, 16
        %v8260 = vadd.s32 %v8259, %v8257
        %vm8261 = vcmp.lt.s32.totalorder %v7973, %v7974
        %v8262 = vsel %vm8261, %v7973, %v7974
        %v8263 = vand.u32 %v8262, 65535
        %v8264 = vshra.s32 %v8262, 16
        %v8265 = vcvt.s32.f32 %v8263
        %v8266 = vcvt.s32.f32 %v8264
        %8267 = vmin.xlane.f32.xlu0 %v8266
        %v8268 = vpop.xlane.xlu0 %8267
        %vm8269 = vcmp.eq.f32.partialorder %v8266, %v8268
        %v8270 = vsel %vm8269, %v8265, inf
        %8271 = vmin.xlane.f32.xlu0 %v8270
        %v8272 = vpop.xlane.xlu0 %8271
        %v8273 = vcvt.f32.s32 %v8272
        %v8274 = vcvt.f32.s32 %v8268
        %v8275 = vshll.u32 %v8274, 16
        %v8276 = vadd.s32 %v8275, %v8273
        %vm8277 = vcmp.lt.s32.totalorder %v7975, %v7976
        %v8278 = vsel %vm8277, %v7975, %v7976
        %v8279 = vand.u32 %v8278, 65535
        %v8280 = vshra.s32 %v8278, 16
        %v8281 = vcvt.s32.f32 %v8279
        %v8282 = vcvt.s32.f32 %v8280
        %8283 = vmin.xlane.f32.xlu0 %v8282
        %v8284 = vpop.xlane.xlu0 %8283
        %vm8285 = vcmp.eq.f32.partialorder %v8282, %v8284
        %v8286 = vsel %vm8285, %v8281, inf
        %8287 = vmin.xlane.f32.xlu0 %v8286
        %v8288 = vpop.xlane.xlu0 %8287
        %v8289 = vcvt.f32.s32 %v8288
        %v8290 = vcvt.f32.s32 %v8284
        %v8291 = vshll.u32 %v8290, 16
        %v8292 = vadd.s32 %v8291, %v8289
        %vm8293 = vcmp.lt.s32.totalorder %v7977, %v7978
        %v8294 = vsel %vm8293, %v7977, %v7978
        %v8295 = vand.u32 %v8294, 65535
        %v8296 = vshra.s32 %v8294, 16
        %v8297 = vcvt.s32.f32 %v8295
        %v8298 = vcvt.s32.f32 %v8296
        %8299 = vmin.xlane.f32.xlu0 %v8298
        %v8300 = vpop.xlane.xlu0 %8299
        %vm8301 = vcmp.eq.f32.partialorder %v8298, %v8300
        %v8302 = vsel %vm8301, %v8297, inf
        %8303 = vmin.xlane.f32.xlu0 %v8302
        %v8304 = vpop.xlane.xlu0 %8303
        %v8305 = vcvt.f32.s32 %v8304
        %v8306 = vcvt.f32.s32 %v8300
        %v8307 = vshll.u32 %v8306, 16
        %v8308 = vadd.s32 %v8307, %v8305
        %vm8309 = vcmp.lt.s32.totalorder %v7979, %v7980
        %v8310 = vsel %vm8309, %v7979, %v7980
        %v8311 = vand.u32 %v8310, 65535
        %v8312 = vshra.s32 %v8310, 16
        %v8313 = vcvt.s32.f32 %v8311
        %v8314 = vcvt.s32.f32 %v8312
        %8315 = vmin.xlane.f32.xlu0 %v8314
        %v8316 = vpop.xlane.xlu0 %8315
        %vm8317 = vcmp.eq.f32.partialorder %v8314, %v8316
        %v8318 = vsel %vm8317, %v8313, inf
        %8319 = vmin.xlane.f32.xlu0 %v8318
        %v8320 = vpop.xlane.xlu0 %8319
        %v8321 = vcvt.f32.s32 %v8320
        %v8322 = vcvt.f32.s32 %v8316
        %v8323 = vshll.u32 %v8322, 16
        %v8324 = vadd.s32 %v8323, %v8321
        %vm8325 = vcmp.lt.s32.totalorder %v7981, %v7982
        %v8326 = vsel %vm8325, %v7981, %v7982
        %v8327 = vand.u32 %v8326, 65535
        %v8328 = vshra.s32 %v8326, 16
        %v8329 = vcvt.s32.f32 %v8327
        %v8330 = vcvt.s32.f32 %v8328
        %8331 = vmin.xlane.f32.xlu0 %v8330
        %v8332 = vpop.xlane.xlu0 %8331
        %vm8333 = vcmp.eq.f32.partialorder %v8330, %v8332
        %v8334 = vsel %vm8333, %v8329, inf
        %8335 = vmin.xlane.f32.xlu0 %v8334
        %v8336 = vpop.xlane.xlu0 %8335
        %v8337 = vcvt.f32.s32 %v8336
        %v8338 = vcvt.f32.s32 %v8332
        %v8339 = vshll.u32 %v8338, 16
        %v8340 = vadd.s32 %v8339, %v8337
        %vm8341 = vcmp.lt.s32.totalorder %v7983, %v7984
        %v8342 = vsel %vm8341, %v7983, %v7984
        %v8343 = vand.u32 %v8342, 65535
        %v8344 = vshra.s32 %v8342, 16
        %v8345 = vcvt.s32.f32 %v8343
        %v8346 = vcvt.s32.f32 %v8344
        %8347 = vmin.xlane.f32.xlu0 %v8346
        %v8348 = vpop.xlane.xlu0 %8347
        %vm8349 = vcmp.eq.f32.partialorder %v8346, %v8348
        %v8350 = vsel %vm8349, %v8345, inf
        %8351 = vmin.xlane.f32.xlu0 %v8350
        %v8352 = vpop.xlane.xlu0 %8351
        %v8353 = vcvt.f32.s32 %v8352
        %v8354 = vcvt.f32.s32 %v8348
        %v8355 = vshll.u32 %v8354, 16
        %v8356 = vadd.s32 %v8355, %v8353
        %vm8357 = vcmp.lt.s32.totalorder %v7985, %v7986
        %v8358 = vsel %vm8357, %v7985, %v7986
        %v8359 = vand.u32 %v8358, 65535
        %v8360 = vshra.s32 %v8358, 16
        %v8361 = vcvt.s32.f32 %v8359
        %v8362 = vcvt.s32.f32 %v8360
        %8363 = vmin.xlane.f32.xlu0 %v8362
        %v8364 = vpop.xlane.xlu0 %8363
        %vm8365 = vcmp.eq.f32.partialorder %v8362, %v8364
        %v8366 = vsel %vm8365, %v8361, inf
        %8367 = vmin.xlane.f32.xlu0 %v8366
        %v8368 = vpop.xlane.xlu0 %8367
        %v8369 = vcvt.f32.s32 %v8368
        %v8370 = vcvt.f32.s32 %v8364
        %v8371 = vshll.u32 %v8370, 16
        %v8372 = vadd.s32 %v8371, %v8369
        %vm8373 = vcmp.lt.s32.totalorder %v7987, %v7988
        %v8374 = vsel %vm8373, %v7987, %v7988
        %v8375 = vand.u32 %v8374, 65535
        %v8376 = vshra.s32 %v8374, 16
        %v8377 = vcvt.s32.f32 %v8375
        %v8378 = vcvt.s32.f32 %v8376
        %8379 = vmin.xlane.f32.xlu0 %v8378
        %v8380 = vpop.xlane.xlu0 %8379
        %vm8381 = vcmp.eq.f32.partialorder %v8378, %v8380
        %v8382 = vsel %vm8381, %v8377, inf
        %8383 = vmin.xlane.f32.xlu0 %v8382
        %v8384 = vpop.xlane.xlu0 %8383
        %v8385 = vcvt.f32.s32 %v8384
        %v8386 = vcvt.f32.s32 %v8380
        %v8387 = vshll.u32 %v8386, 16
        %v8388 = vadd.s32 %v8387, %v8385
        %vm8389 = vcmp.lt.s32.totalorder %v7989, %v7990
        %v8390 = vsel %vm8389, %v7989, %v7990
        %v8391 = vand.u32 %v8390, 65535
        %v8392 = vshra.s32 %v8390, 16
        %v8393 = vcvt.s32.f32 %v8391
        %v8394 = vcvt.s32.f32 %v8392
        %8395 = vmin.xlane.f32.xlu0 %v8394
        %v8396 = vpop.xlane.xlu0 %8395
        %vm8397 = vcmp.eq.f32.partialorder %v8394, %v8396
        %v8398 = vsel %vm8397, %v8393, inf
        %8399 = vmin.xlane.f32.xlu0 %v8398
        %v8400 = vpop.xlane.xlu0 %8399
        %v8401 = vcvt.f32.s32 %v8400
        %v8402 = vcvt.f32.s32 %v8396
        %v8403 = vshll.u32 %v8402, 16
        %v8404 = vadd.s32 %v8403, %v8401
        %vm8405 = vcmp.lt.s32.totalorder %v7991, %v7992
        %v8406 = vsel %vm8405, %v7991, %v7992
        %v8407 = vand.u32 %v8406, 65535
        %v8408 = vshra.s32 %v8406, 16
        %v8409 = vcvt.s32.f32 %v8407
        %v8410 = vcvt.s32.f32 %v8408
        %8411 = vmin.xlane.f32.xlu0 %v8410
        %v8412 = vpop.xlane.xlu0 %8411
        %vm8413 = vcmp.eq.f32.partialorder %v8410, %v8412
        %v8414 = vsel %vm8413, %v8409, inf
        %8415 = vmin.xlane.f32.xlu0 %v8414
        %v8416 = vpop.xlane.xlu0 %8415
        %v8417 = vcvt.f32.s32 %v8416
        %v8418 = vcvt.f32.s32 %v8412
        %v8419 = vshll.u32 %v8418, 16
        %v8420 = vadd.s32 %v8419, %v8417
        %vm8421 = vcmp.lt.s32.totalorder %v7993, %v7994
        %v8422 = vsel %vm8421, %v7993, %v7994
        %v8423 = vand.u32 %v8422, 65535
        %v8424 = vshra.s32 %v8422, 16
        %v8425 = vcvt.s32.f32 %v8423
        %v8426 = vcvt.s32.f32 %v8424
        %8427 = vmin.xlane.f32.xlu0 %v8426
        %v8428 = vpop.xlane.xlu0 %8427
        %vm8429 = vcmp.eq.f32.partialorder %v8426, %v8428
        %v8430 = vsel %vm8429, %v8425, inf
        %8431 = vmin.xlane.f32.xlu0 %v8430
        %v8432 = vpop.xlane.xlu0 %8431
        %v8433 = vcvt.f32.s32 %v8432
        %v8434 = vcvt.f32.s32 %v8428
        %v8435 = vshll.u32 %v8434, 16
        %v8436 = vadd.s32 %v8435, %v8433
        %vm8437 = vcmp.lt.s32.totalorder %v7995, %v7996
        %v8438 = vsel %vm8437, %v7995, %v7996
        %v8439 = vand.u32 %v8438, 65535
        %v8440 = vshra.s32 %v8438, 16
        %v8441 = vcvt.s32.f32 %v8439
        %v8442 = vcvt.s32.f32 %v8440
        %8443 = vmin.xlane.f32.xlu0 %v8442
        %v8444 = vpop.xlane.xlu0 %8443
        %vm8445 = vcmp.eq.f32.partialorder %v8442, %v8444
        %v8446 = vsel %vm8445, %v8441, inf
        %8447 = vmin.xlane.f32.xlu0 %v8446
        %v8448 = vpop.xlane.xlu0 %8447
        %v8449 = vcvt.f32.s32 %v8448
        %v8450 = vcvt.f32.s32 %v8444
        %v8451 = vshll.u32 %v8450, 16
        %v8452 = vadd.s32 %v8451, %v8449
        %vm8453 = vcmp.lt.s32.totalorder %v7997, %v7998
        %v8454 = vsel %vm8453, %v7997, %v7998
        %v8455 = vand.u32 %v8454, 65535
        %v8456 = vshra.s32 %v8454, 16
        %v8457 = vcvt.s32.f32 %v8455
        %v8458 = vcvt.s32.f32 %v8456
        %8459 = vmin.xlane.f32.xlu0 %v8458
        %v8460 = vpop.xlane.xlu0 %8459
        %vm8461 = vcmp.eq.f32.partialorder %v8458, %v8460
        %v8462 = vsel %vm8461, %v8457, inf
        %8463 = vmin.xlane.f32.xlu0 %v8462
        %v8464 = vpop.xlane.xlu0 %8463
        %v8465 = vcvt.f32.s32 %v8464
        %v8466 = vcvt.f32.s32 %v8460
        %v8467 = vshll.u32 %v8466, 16
        %v8468 = vadd.s32 %v8467, %v8465
        %vm8469 = vcmp.lt.s32.totalorder %v7999, %v8000
        %v8470 = vsel %vm8469, %v7999, %v8000
        %v8471 = vand.u32 %v8470, 65535
        %v8472 = vshra.s32 %v8470, 16
        %v8473 = vcvt.s32.f32 %v8471
        %v8474 = vcvt.s32.f32 %v8472
        %8475 = vmin.xlane.f32.xlu0 %v8474
        %v8476 = vpop.xlane.xlu0 %8475
        %vm8477 = vcmp.eq.f32.partialorder %v8474, %v8476
        %v8478 = vsel %vm8477, %v8473, inf
        %8479 = vmin.xlane.f32.xlu0 %v8478
        %v8480 = vpop.xlane.xlu0 %8479
        %v8481 = vcvt.f32.s32 %v8480
        %v8482 = vcvt.f32.s32 %v8476
        %v8483 = vshll.u32 %v8482, 16
        %v8484 = vadd.s32 %v8483, %v8481
        %vm8485 = vcmp.lt.s32.totalorder %v8001, %v8002
        %v8486 = vsel %vm8485, %v8001, %v8002
        %v8487 = vand.u32 %v8486, 65535
        %v8488 = vshra.s32 %v8486, 16
        %v8489 = vcvt.s32.f32 %v8487
        %v8490 = vcvt.s32.f32 %v8488
        %8491 = vmin.xlane.f32.xlu0 %v8490
        %v8492 = vpop.xlane.xlu0 %8491
        %vm8493 = vcmp.eq.f32.partialorder %v8490, %v8492
        %v8494 = vsel %vm8493, %v8489, inf
        %8495 = vmin.xlane.f32.xlu0 %v8494
        %v8496 = vpop.xlane.xlu0 %8495
        %v8497 = vcvt.f32.s32 %v8496
        %v8498 = vcvt.f32.s32 %v8492
        %v8499 = vshll.u32 %v8498, 16
        %v8500 = vadd.s32 %v8499, %v8497
        %vm8501 = vcmp.lt.s32.totalorder %v8003, %v8004
        %v8502 = vsel %vm8501, %v8003, %v8004
        %v8503 = vand.u32 %v8502, 65535
        %v8504 = vshra.s32 %v8502, 16
        %v8505 = vcvt.s32.f32 %v8503
        %v8506 = vcvt.s32.f32 %v8504
        %8507 = vmin.xlane.f32.xlu0 %v8506
        %v8508 = vpop.xlane.xlu0 %8507
        %vm8509 = vcmp.eq.f32.partialorder %v8506, %v8508
        %v8510 = vsel %vm8509, %v8505, inf
        %8511 = vmin.xlane.f32.xlu0 %v8510
        %v8512 = vpop.xlane.xlu0 %8511
        %v8513 = vcvt.f32.s32 %v8512
        %v8514 = vcvt.f32.s32 %v8508
        %v8515 = vshll.u32 %v8514, 16
        %v8516 = vadd.s32 %v8515, %v8513
        %vm8517 = vcmp.eq.s32.totalorder %v707, %v8020
        %vm8518 = vcmp.eq.s32.totalorder %v708, %v8020
        %vm8519 = vcmp.eq.s32.totalorder %v707, %v8036
        %vm8520 = vcmp.eq.s32.totalorder %v708, %v8036
        %vm8521 = vcmp.eq.s32.totalorder %v707, %v8052
        %vm8522 = vcmp.eq.s32.totalorder %v708, %v8052
        %vm8523 = vcmp.eq.s32.totalorder %v707, %v8068
        %vm8524 = vcmp.eq.s32.totalorder %v708, %v8068
        %vm8525 = vcmp.eq.s32.totalorder %v707, %v8084
        %vm8526 = vcmp.eq.s32.totalorder %v708, %v8084
        %vm8527 = vcmp.eq.s32.totalorder %v707, %v8100
        %vm8528 = vcmp.eq.s32.totalorder %v708, %v8100
        %vm8529 = vcmp.eq.s32.totalorder %v707, %v8116
        %vm8530 = vcmp.eq.s32.totalorder %v708, %v8116
        %vm8531 = vcmp.eq.s32.totalorder %v707, %v8132
        %vm8532 = vcmp.eq.s32.totalorder %v708, %v8132
        %vm8533 = vcmp.eq.s32.totalorder %v707, %v8148
        %vm8534 = vcmp.eq.s32.totalorder %v708, %v8148
        %vm8535 = vcmp.eq.s32.totalorder %v707, %v8164
        %vm8536 = vcmp.eq.s32.totalorder %v708, %v8164
        %vm8537 = vcmp.eq.s32.totalorder %v707, %v8180
        %vm8538 = vcmp.eq.s32.totalorder %v708, %v8180
        %vm8539 = vcmp.eq.s32.totalorder %v707, %v8196
        %vm8540 = vcmp.eq.s32.totalorder %v708, %v8196
        %vm8541 = vcmp.eq.s32.totalorder %v707, %v8212
        %vm8542 = vcmp.eq.s32.totalorder %v708, %v8212
        %vm8543 = vcmp.eq.s32.totalorder %v707, %v8228
        %vm8544 = vcmp.eq.s32.totalorder %v708, %v8228
        %vm8545 = vcmp.eq.s32.totalorder %v707, %v8244
        %vm8546 = vcmp.eq.s32.totalorder %v708, %v8244
        %vm8547 = vcmp.eq.s32.totalorder %v707, %v8260
        %vm8548 = vcmp.eq.s32.totalorder %v708, %v8260
        %vm8549 = vcmp.eq.s32.totalorder %v707, %v8276
        %vm8550 = vcmp.eq.s32.totalorder %v708, %v8276
        %vm8551 = vcmp.eq.s32.totalorder %v707, %v8292
        %vm8552 = vcmp.eq.s32.totalorder %v708, %v8292
        %vm8553 = vcmp.eq.s32.totalorder %v707, %v8308
        %vm8554 = vcmp.eq.s32.totalorder %v708, %v8308
        %vm8555 = vcmp.eq.s32.totalorder %v707, %v8324
        %vm8556 = vcmp.eq.s32.totalorder %v708, %v8324
        %vm8557 = vcmp.eq.s32.totalorder %v707, %v8340
        %vm8558 = vcmp.eq.s32.totalorder %v708, %v8340
        %vm8559 = vcmp.eq.s32.totalorder %v707, %v8356
        %vm8560 = vcmp.eq.s32.totalorder %v708, %v8356
        %vm8561 = vcmp.eq.s32.totalorder %v707, %v8372
        %vm8562 = vcmp.eq.s32.totalorder %v708, %v8372
        %vm8563 = vcmp.eq.s32.totalorder %v707, %v8388
        %vm8564 = vcmp.eq.s32.totalorder %v708, %v8388
        %vm8565 = vcmp.eq.s32.totalorder %v707, %v8404
        %vm8566 = vcmp.eq.s32.totalorder %v708, %v8404
        %vm8567 = vcmp.eq.s32.totalorder %v707, %v8420
        %vm8568 = vcmp.eq.s32.totalorder %v708, %v8420
        %vm8569 = vcmp.eq.s32.totalorder %v707, %v8436
        %vm8570 = vcmp.eq.s32.totalorder %v708, %v8436
        %vm8571 = vcmp.eq.s32.totalorder %v707, %v8452
        %vm8572 = vcmp.eq.s32.totalorder %v708, %v8452
        %vm8573 = vcmp.eq.s32.totalorder %v707, %v8468
        %vm8574 = vcmp.eq.s32.totalorder %v708, %v8468
        %vm8575 = vcmp.eq.s32.totalorder %v707, %v8484
        %vm8576 = vcmp.eq.s32.totalorder %v708, %v8484
        %vm8577 = vcmp.eq.s32.totalorder %v707, %v8500
        %vm8578 = vcmp.eq.s32.totalorder %v708, %v8500
        %vm8579 = vcmp.eq.s32.totalorder %v707, %v8516
        %vm8580 = vcmp.eq.s32.totalorder %v708, %v8516
        %v8581 = vsub.f32 %v7783, %v711
        %v8582 = vsub.f32 %v7786, %v714
        %v8583 = vsub.f32 %v7789, %v717
        %v8584 = vsub.f32 %v7792, %v720
        %v8585 = vsub.f32 %v7795, %v723
        %v8586 = vsub.f32 %v7798, %v726
        %v8587 = vsub.f32 %v7801, %v729
        %v8588 = vsub.f32 %v7804, %v732
        %v8589 = vsub.f32 %v7807, %v735
        %v8590 = vsub.f32 %v7810, %v738
        %v8591 = vsub.f32 %v7813, %v741
        %v8592 = vsub.f32 %v7816, %v744
        %v8593 = vsub.f32 %v7819, %v747
        %v8594 = vsub.f32 %v7822, %v750
        %v8595 = vsub.f32 %v7825, %v753
        %v8596 = vsub.f32 %v7828, %v756
        %v8597 = vsub.f32 %v7831, %v759
        %v8598 = vsub.f32 %v7834, %v762
        %v8599 = vsub.f32 %v7837, %v765
        %v8600 = vsub.f32 %v7840, %v768
        %v8601 = vsub.f32 %v7843, %v771
        %v8602 = vsub.f32 %v7846, %v774
        %v8603 = vsub.f32 %v7849, %v777
        %v8604 = vsub.f32 %v7852, %v780
        %v8605 = vsub.f32 %v7855, %v783
        %v8606 = vsub.f32 %v7858, %v786
        %v8607 = vsub.f32 %v7861, %v789
        %v8608 = vsub.f32 %v7864, %v792
        %v8609 = vsub.f32 %v7867, %v795
        %v8610 = vsub.f32 %v7870, %v798
        %v8611 = vsub.f32 %v7873, %v801
        %v8612 = vsub.f32 %v7876, %v804
        %v8613 = vmul.f32 %v8581, 1.442695
        %v8614 = vpow.pop %v8613
        %v8615 = vmul.f32 %v8582, 1.442695
        %v8616 = vpow.pop %v8615
        %v8617 = vmul.f32 %v8583, 1.442695
        %v8618 = vpow.pop %v8617
        %v8619 = vmul.f32 %v8584, 1.442695
        %v8620 = vpow.pop %v8619
        %v8621 = vmul.f32 %v8585, 1.442695
        %v8622 = vpow.pop %v8621
        %v8623 = vmul.f32 %v8586, 1.442695
        %v8624 = vpow.pop %v8623
        %v8625 = vmul.f32 %v8587, 1.442695
        %v8626 = vpow.pop %v8625
        %v8627 = vmul.f32 %v8588, 1.442695
        %v8628 = vpow.pop %v8627
        %v8629 = vmul.f32 %v8589, 1.442695
        %v8630 = vpow.pop %v8629
        %v8631 = vmul.f32 %v8590, 1.442695
        %v8632 = vpow.pop %v8631
        %v8633 = vmul.f32 %v8591, 1.442695
        %v8634 = vpow.pop %v8633
        %v8635 = vmul.f32 %v8592, 1.442695
        %v8636 = vpow.pop %v8635
        %v8637 = vmul.f32 %v8593, 1.442695
        %v8638 = vpow.pop %v8637
        %v8639 = vmul.f32 %v8594, 1.442695
        %v8640 = vpow.pop %v8639
        %v8641 = vmul.f32 %v8595, 1.442695
        %v8642 = vpow.pop %v8641
        %v8643 = vmul.f32 %v8596, 1.442695
        %v8644 = vpow.pop %v8643
        %v8645 = vmul.f32 %v8597, 1.442695
        %v8646 = vpow.pop %v8645
        %v8647 = vmul.f32 %v8598, 1.442695
        %v8648 = vpow.pop %v8647
        %v8649 = vmul.f32 %v8599, 1.442695
        %v8650 = vpow.pop %v8649
        %v8651 = vmul.f32 %v8600, 1.442695
        %v8652 = vpow.pop %v8651
        %v8653 = vmul.f32 %v8601, 1.442695
        %v8654 = vpow.pop %v8653
        %v8655 = vmul.f32 %v8602, 1.442695
        %v8656 = vpow.pop %v8655
        %v8657 = vmul.f32 %v8603, 1.442695
        %v8658 = vpow.pop %v8657
        %v8659 = vmul.f32 %v8604, 1.442695
        %v8660 = vpow.pop %v8659
        %v8661 = vmul.f32 %v8605, 1.442695
        %v8662 = vpow.pop %v8661
        %v8663 = vmul.f32 %v8606, 1.442695
        %v8664 = vpow.pop %v8663
        %v8665 = vmul.f32 %v8607, 1.442695
        %v8666 = vpow.pop %v8665
        %v8667 = vmul.f32 %v8608, 1.442695
        %v8668 = vpow.pop %v8667
        %v8669 = vmul.f32 %v8609, 1.442695
        %v8670 = vpow.pop %v8669
        %v8671 = vmul.f32 %v8610, 1.442695
        %v8672 = vpow.pop %v8671
        %v8673 = vmul.f32 %v8611, 1.442695
        %v8674 = vpow.pop %v8673
        %v8675 = vmul.f32 %v8612, 1.442695
        %v8676 = vpow.pop %v8675
        %v8677 = vsel %vm8517, %v8614, %v7653
        %v8678 = vsel %vm8518, %v8614, %v7654
        %v8679 = vsel %vm8519, %v8616, %v7655
        %v8680 = vsel %vm8520, %v8616, %v7656
        %v8681 = vsel %vm8521, %v8618, %v7657
        %v8682 = vsel %vm8522, %v8618, %v7658
        %v8683 = vsel %vm8523, %v8620, %v7659
        %v8684 = vsel %vm8524, %v8620, %v7660
        %v8685 = vsel %vm8525, %v8622, %v7661
        %v8686 = vsel %vm8526, %v8622, %v7662
        %v8687 = vsel %vm8527, %v8624, %v7663
        %v8688 = vsel %vm8528, %v8624, %v7664
        %v8689 = vsel %vm8529, %v8626, %v7665
        %v8690 = vsel %vm8530, %v8626, %v7666
        %v8691 = vsel %vm8531, %v8628, %v7667
        %v8692 = vsel %vm8532, %v8628, %v7668
        %v8693 = vsel %vm8533, %v8630, %v7669
        %v8694 = vsel %vm8534, %v8630, %v7670
        %v8695 = vsel %vm8535, %v8632, %v7671
        %v8696 = vsel %vm8536, %v8632, %v7672
        %v8697 = vsel %vm8537, %v8634, %v7673
        %v8698 = vsel %vm8538, %v8634, %v7674
        %v8699 = vsel %vm8539, %v8636, %v7675
        %v8700 = vsel %vm8540, %v8636, %v7676
        %v8701 = vsel %vm8541, %v8638, %v7677
        %v8702 = vsel %vm8542, %v8638, %v7678
        %v8703 = vsel %vm8543, %v8640, %v7679
        %v8704 = vsel %vm8544, %v8640, %v7680
        %v8705 = vsel %vm8545, %v8642, %v7681
        %v8706 = vsel %vm8546, %v8642, %v7682
        %v8707 = vsel %vm8547, %v8644, %v7683
        %v8708 = vsel %vm8548, %v8644, %v7684
        %v8709 = vsel %vm8549, %v8646, %v7685
        %v8710 = vsel %vm8550, %v8646, %v7686
        %v8711 = vsel %vm8551, %v8648, %v7687
        %v8712 = vsel %vm8552, %v8648, %v7688
        %v8713 = vsel %vm8553, %v8650, %v7689
        %v8714 = vsel %vm8554, %v8650, %v7690
        %v8715 = vsel %vm8555, %v8652, %v7691
        %v8716 = vsel %vm8556, %v8652, %v7692
        %v8717 = vsel %vm8557, %v8654, %v7693
        %v8718 = vsel %vm8558, %v8654, %v7694
        %v8719 = vsel %vm8559, %v8656, %v7695
        %v8720 = vsel %vm8560, %v8656, %v7696
        %v8721 = vsel %vm8561, %v8658, %v7697
        %v8722 = vsel %vm8562, %v8658, %v7698
        %v8723 = vsel %vm8563, %v8660, %v7699
        %v8724 = vsel %vm8564, %v8660, %v7700
        %v8725 = vsel %vm8565, %v8662, %v7701
        %v8726 = vsel %vm8566, %v8662, %v7702
        %v8727 = vsel %vm8567, %v8664, %v7703
        %v8728 = vsel %vm8568, %v8664, %v7704
        %v8729 = vsel %vm8569, %v8666, %v7705
        %v8730 = vsel %vm8570, %v8666, %v7706
        %v8731 = vsel %vm8571, %v8668, %v7707
        %v8732 = vsel %vm8572, %v8668, %v7708
        %v8733 = vsel %vm8573, %v8670, %v7709
        %v8734 = vsel %vm8574, %v8670, %v7710
        %v8735 = vsel %vm8575, %v8672, %v7711
        %v8736 = vsel %vm8576, %v8672, %v7712
        %v8737 = vsel %vm8577, %v8674, %v7713
        %v8738 = vsel %vm8578, %v8674, %v7714
        %v8739 = vsel %vm8579, %v8676, %v7715
        %v8740 = vsel %vm8580, %v8676, %v7716
        %v8741 = vld [vmem:[#allocation3] sm:$0xff]
        %v8742 = vld [vmem:[#allocation3 + $0x8] sm:$0xff]
        %v8743 = vld [vmem:[#allocation3 + $0x10] sm:$0x1]
        %v8744 = vld [vmem:[#allocation3 + $0x18] sm:$0x1]
        %8745 = vmatprep.subr.mxu0 %v8678
        %8746 = vmatpush1.xpose.msra.mxu0 %v8677
        %8747 = vmatprep.subr.mxu0 %v8680
        %8748 = vmatpush1.xpose.msra.mxu0 %v8679
        %8749 = vmatprep.subr.mxu0 %v8682
        %8750 = vmatpush1.xpose.msra.mxu0 %v8681
        %8751 = vmatprep.subr.mxu0 %v8684
        %8752 = vmatpush1.xpose.msra.mxu0 %v8683
        %8753 = vmatprep.subr.mxu0 %v8686
        %8754 = vmatpush1.xpose.msra.mxu0 %v8685
        %8755 = vmatprep.subr.mxu0 %v8688
        %8756 = vmatpush1.xpose.msra.mxu0 %v8687
        %8757 = vmatprep.subr.mxu0 %v8690
        %8758 = vmatpush1.xpose.msra.mxu0 %v8689
        %8759 = vmatprep.subr.mxu0 %v8692
        %8760 = vmatpush1.xpose.msra.mxu0 %v8691
        %8761 = vmatprep.subr.mxu0 %v8694
        %8762 = vmatpush1.xpose.msra.mxu0 %v8693
        %8763 = vmatprep.subr.mxu0 %v8696
        %8764 = vmatpush1.xpose.msra.mxu0 %v8695
        %8765 = vmatprep.subr.mxu0 %v8698
        %8766 = vmatpush1.xpose.msra.mxu0 %v8697
        %8767 = vmatprep.subr.mxu0 %v8700
        %8768 = vmatpush1.xpose.msra.mxu0 %v8699
        %8769 = vmatprep.subr.mxu0 %v8702
        %8770 = vmatpush1.xpose.msra.mxu0 %v8701
        %8771 = vmatprep.subr.mxu0 %v8704
        %8772 = vmatpush1.xpose.msra.mxu0 %v8703
        %8773 = vmatprep.subr.mxu0 %v8706
        %8774 = vmatpush1.xpose.msra.mxu0 %v8705
        %8775 = vmatprep.subr.mxu0 %v8708
        %8776 = vmatpush1.xpose.msra.mxu0 %v8707
        %8777 = vmatprep.subr.mxu0 %v8710
        %8778 = vmatpush1.xpose.msra.mxu0 %v8709
        %8779 = vmatprep.subr.mxu0 %v8712
        %8780 = vmatpush1.xpose.msra.mxu0 %v8711
        %8781 = vmatprep.subr.mxu0 %v8714
        %8782 = vmatpush1.xpose.msra.mxu0 %v8713
        %8783 = vmatprep.subr.mxu0 %v8716
        %8784 = vmatpush1.xpose.msra.mxu0 %v8715
        %8785 = vmatprep.subr.mxu0 %v8718
        %8786 = vmatpush1.xpose.msra.mxu0 %v8717
        %8787 = vmatprep.subr.mxu0 %v8720
        %8788 = vmatpush1.xpose.msra.mxu0 %v8719
        %8789 = vmatprep.subr.mxu0 %v8722
        %8790 = vmatpush1.xpose.msra.mxu0 %v8721
        %8791 = vmatprep.subr.mxu0 %v8724
        %8792 = vmatpush1.xpose.msra.mxu0 %v8723
        %8793 = vmatprep.subr.mxu0 %v8726
        %8794 = vmatpush1.xpose.msra.mxu0 %v8725
        %8795 = vmatprep.subr.mxu0 %v8728
        %8796 = vmatpush1.xpose.msra.mxu0 %v8727
        %8797 = vmatprep.subr.mxu0 %v8730
        %8798 = vmatpush1.xpose.msra.mxu0 %v8729
        %8799 = vmatprep.subr.mxu0 %v8732
        %8800 = vmatpush1.xpose.msra.mxu0 %v8731
        %8801 = vmatprep.subr.mxu0 %v8734
        %8802 = vmatpush1.xpose.msra.mxu0 %v8733
        %8803 = vmatprep.subr.mxu0 %v8736
        %8804 = vmatpush1.xpose.msra.mxu0 %v8735
        %8805 = vmatprep.subr.mxu0 %v8738
        %8806 = vmatpush1.xpose.msra.mxu0 %v8737
        %8807 = vmatprep.subr.mxu0 %v8740
        %8808 = vmatpush1.xpose.msra.mxu0 %v8739
        %8809 = vmatprep.mubr.f32.mxu0 %v8742
        %8810 = vmatmul.mubr.f32.gmra.mrb[0].mxu0 %v8741
        %v8811 = vpop.f32.mrb[0].mxu0
        %v8812 = vadd.f32 0.0, %v8811
        %v8813 = vpop.f32.mrb[0].mxu0
        %v8814 = vadd.f32 0.0, %v8813
        %8815 = vmatprep.mubr.f32.mxu0 %v8744
        %8816 = vmatmul.mubr.f32.gmra.mrb[0].mxu0 %v8743
        %v8817 = vpop.f32.mrb[0].mxu0
        %v8818 = vadd.f32 0.0, %v8817
        %v8819 = vpop.f32.mrb[0].mxu0
        %v8820 = vadd.f32 0.0, %v8819
        %8821 = vdwg.mxu0
        %v8822 = vlaneseq
        %v8823 = vshrl.u32 %v8822, 7
        %v8824 = vsub.s32 0, %v8823
        %v8825 = vrot.slane %v8818, %v8824
        %v8826 = vlaneseq
        %v8827 = vshrl.u32 %v8826, 7
        %v8828 = vsub.s32 0, %v8827
        %v8829 = vrot.slane %v8820, %v8828
        %v8830 = vrcp.pop %v8825
        %v8831 = vmul.f32 %v8812, %v8830
        %v8832 = vrcp.pop %v8829
        %v8833 = vmul.f32 %v8814, %v8832
        %8834 = vst [vmem:[%s220] sm:$0xff] %v8831
        %8835 = vst [vmem:[%s220 + $0x8] sm:$0xff] %v8833
        %s8836 = sand.u32 %s105, 1
        %s8837 = scalar_lea.sflag [#allocation6], %s8836
        %s8838 = sand.u32 %s105, 1
        %s8839 = smul.addr %s8838, 16
        %s8840 = scalar_lea.vmem [#allocation9], %s8839
        // Predicated region
        $region41: #{tpu_custom_call.1} parent=27 // pred_check
          %p8841 = pneg %p115
        $region42: #{tpu_custom_call.1} parent=27 // pred_check_branch
          %8843 = sbr.rel (%p8841) target = $region44
        $region43: #{tpu_custom_call.1} parent=27 // pred_region
          %s8844 = sadd.s32 %s28, %s29
          %s8845 = smul.u32 2, %s8844
          %s8847 = ssub.s32 256, 256
          %8848 = vsyncadd %s8837, %s8847
          %s8849 = smul.addr %s27, 2
          %s8850 = sadd.s32 %s8845, %s8849
          %s8851 = smul.addr %s8850, 128
          %s8852 = scalar_lea.hbm %s2, %s8851
          %s8854 = sshll.u32 %s8840, 4
          %s8855 = int_to_ptr.vmem [resolvable:$true] %s8854
          %8857 = dma.vmem_to_hbm [thread:$0]  %s8855, 256, %s8852, %s8837
        $region44: #{tpu_custom_call.1} parent=27 // pred_fallthru
          _
      $region28: #{tpu_custom_call.1} parent=5 // pred_fallthru
        _
      %p8858 = scmp.le.s32.totalorder 2, %s17
      // Predicated region
      $region45: #{tpu_custom_call.1} parent=5 // pred_check
        %p8859 = pneg %p8858
      $region46: #{tpu_custom_call.1} parent=5 // pred_check_branch
        %8861 = sbr.rel (%p8859) target = $region48
      $region47: #{tpu_custom_call.1} parent=5 // pred_region
        %s8862 = ssub.s32 %s17, 2
        // Predicated region
        $region49: #{tpu_custom_call.1} parent=47 // pred_check
          %p8863 = pneg %p121
        $region50: #{tpu_custom_call.1} parent=47 // pred_check_branch
          %8865 = sbr.rel (%p8863) target = $region52
        $region51: #{tpu_custom_call.1} parent=47 // pred_region
          %s8866 = sand.u32 %s106, 1
          %s8867 = scalar_lea.sflag [#allocation6], %s8866
          %s8868 = sand.u32 %s106, 1
          %s8869 = smul.addr %s8868, 16
          %s8870 = scalar_lea.vmem [#allocation9], %s8869
          %8871 = dma.done %s8867, 256
        $region52: #{tpu_custom_call.1} parent=47 // pred_fallthru
          _
      $region48: #{tpu_custom_call.1} parent=5 // pred_fallthru
        _
    $region6: #{tpu_custom_call.1} parent=1 // loop_footer
      %s21 = sadd.s32 1, %s17
    $region7: #{tpu_custom_call.1} parent=1 // loop_footer_branch
      %16 = sbr.rel target = $region3
    $region8: #{tpu_custom_call.1} parent=1 // loop_exit
      _
    %8872 = vsyncpa [#allocation5], 1
    %s8873 = scalar_lea.sflag [#allocation5], 1
    %8874 = vsyncpa %s8873, 1
    %8875 = vsyncpa [#allocation8], 1
    %s8876 = scalar_lea.sflag [#allocation8], 1
    %8877 = vsyncpa %s8876, 1
    %8878 = vsyncpa [#allocation6], 1
    %s8879 = scalar_lea.sflag [#allocation6], 1
    %8880 = vsyncpa %s8879, 1

</llo_original>
